<compile_context>
chip_gen: v6e
topology: v6e:2x2x1
jax: 0.10.0
libtpu: 0.0.40
codegen_flags: <defaults>
</compile_context>

<pallas_src>
import math
import functools

import jax
import jax.numpy as jnp
from jax.experimental import pallas as pl
from jax.experimental.pallas import tpu as pltpu

F_PAD = 128      # input-feature dim padded so the x load / first-matmul K are lane-aligned
OUT_PAD = 128    # MLP-head output padded so the per-step store is lane-dense


# ------------------------------ fused kernel --------------------------------

def _fused_transformer_kernel(
        x_ref, pe_ref, mask_ref, proj_w_ref, proj_b_ref,
        in_w_ref, in_b_ref, out_w_ref, out_b_ref,
        ff1_w_ref, ff1_b_ref, ff2_w_ref, ff2_b_ref,
        ln1_g_ref, ln1_b_ref, ln2_g_ref, ln2_b_ref,
        fc1_w_ref, fc1_b_ref, fc2_w_ref, fc2_b_ref, fc3_w_ref, fc3_b_ref,
        o_ref, *, bt, seq, nhead, eps):
    """One grid step == `bt` batch elements; the whole forward pass stays in VMEM."""
    D = proj_w_ref.shape[1]
    L = in_w_ref.shape[0]
    H = nhead
    S = seq
    R = bt * S
    Dh = D // H
    scale = 1.0 / math.sqrt(Dh)
    bf16 = jnp.bfloat16

    def mm(a, w):
        # bf16 operands on the MXU, f32 accumulation.
        return jnp.dot(a.astype(bf16), w, preferred_element_type=jnp.float32)

    def layer_norm(v, g, b):
        mu = jnp.mean(v, axis=-1, keepdims=True)
        var = jnp.mean(jnp.square(v - mu), axis=-1, keepdims=True)
        return (v - mu) * jax.lax.rsqrt(var + eps) * g + b

    # Per-head lane masks (hoisted out of the layer loop; 1/sqrt(Dh) folded into q mask).
    head_mask = mask_ref[...]                                   # [H, D] f32, 1 on head lanes
    q_mask = head_mask * scale                                  # f32

    # ---- input projection + positional encoding (all Bt*S rows at once) ----
    h = mm(x_ref[...], proj_w_ref[...]) + proj_b_ref[...] + pe_ref[...]       # [R, D] f32

    # ---- num_layers x TransformerEncoderLayer (post-norm, ReLU FFN) ---------
    for li in range(L):                        # unrolled; weights stay VMEM-resident
        # -- multi-head self-attention (heads batched via lane masks) --
        qkv = mm(h, in_w_ref[li]) + in_b_ref[li]                              # [R, 3D] f32
        qkv3 = qkv.reshape(bt, S, 3 * D)
        q = qkv3[:, :, :D]                                                    # [bt, S, D]
        k = qkv3[:, :, D:2 * D]
        v = qkv3[:, :, 2 * D:]

        # Scores for all (batch, head) pairs from one batched matmul of masked-q
        # against full-D keys (zeroed lanes make the 128-wide contraction per-head).
        qm = (q[:, None, :, :] * q_mask[None, :, None, :]).reshape(bt, H * S, D)
        s = jnp.einsum('brd,bjd->brj', qm.astype(bf16), k.astype(bf16),
                       preferred_element_type=jnp.float32)                    # [bt, H*S, S]
        m = jnp.max(s, axis=-1, keepdims=True)
        p = jnp.exp(s - m)
        p = p * pl.reciprocal(jnp.sum(p, axis=-1, keepdims=True), approx=True)

        # PV with (batch*head) as the matmul batch dim; summing over the head axis of
        # the masked result merges the heads and lands lane-dense in [R, D].
        vm = (v[:, None, :, :] * head_mask[None, :, None, :]).reshape(bt * H, S, D)
        pv = jnp.einsum('gij,gjd->gid',
                        p.reshape(bt * H, S, S).astype(bf16), vm.astype(bf16),
                        preferred_element_type=jnp.float32)                   # [bt*H, S, D]
        attn = pv.reshape(bt, H, S, D).sum(axis=1).reshape(R, D)              # [R, D]

        attn = mm(attn, out_w_ref[li]) + out_b_ref[li]                        # out_proj
        h = layer_norm(h + attn, ln1_g_ref[li], ln1_b_ref[li])                # norm1

        ff = jnp.maximum(mm(h, ff1_w_ref[li]) + ff1_b_ref[li], 0.0)           # relu FFN
        ff = mm(ff, ff2_w_ref[li]) + ff2_b_ref[li]
        h = layer_norm(h + ff, ln2_g_ref[li], ln2_b_ref[li])                  # norm2

    # ---- mean pool over sequence + MLP head (Bt rows at once) ---------------
    pooled = jnp.mean(h.reshape(bt, S, D), axis=1)                            # [bt, D]
    y = jnp.maximum(mm(pooled, fc1_w_ref[...]) + fc1_b_ref[...], 0.0)
    y = jnp.maximum(mm(y, fc2_w_ref[...]) + fc2_b_ref[...], 0.0)
    y = mm(y, fc3_w_ref[...]) + fc3_b_ref[...]                                # [bt, OUT_PAD]
    o_ref[0] = y.astype(o_ref.dtype)


def _full_spec(shape):
    """Whole-array block with a constant index -> DMA'd once, stays VMEM-resident."""
    nd = len(shape)
    return pl.BlockSpec(tuple(shape), lambda i, _nd=nd: (0,) * _nd)


# ------------------------- parameters & forward pass ------------------------

def make_positional_encoding(max_len, d_model):
    position = jnp.arange(max_len, dtype=jnp.float32)[:, None]
    div_term = jnp.exp(jnp.arange(0, d_model, 2, dtype=jnp.float32)
                       * (-math.log(10000.0) / d_model))
    pe = jnp.zeros((max_len, d_model), jnp.float32)
    pe = pe.at[:, 0::2].set(jnp.sin(position * div_term))
    pe = pe.at[:, 1::2].set(jnp.cos(position * div_term))
    return pe


def init_params(key, input_dim, d_model, nhead, num_layers, output_dim, dim_ff=512,
                max_len=5000):
    def dense(k, fan_in, fan_out):
        kw, kb = jax.random.split(k)
        w = jax.random.normal(kw, (fan_in, fan_out), jnp.float32) * 0.02
        b = jax.random.normal(kb, (fan_out,), jnp.float32) * 0.02
        return w, b.reshape(1, fan_out)          # biases prepacked as (1, dim) rows

    keys = jax.random.split(key, 4 + num_layers)
    params = {}
    params["proj_w"], params["proj_b"] = dense(keys[0], input_dim, d_model)
    params["pe"] = make_positional_encoding(max_len, d_model)

    acc = {n: [] for n in ("in_w", "in_b", "out_w", "out_b", "ff1_w", "ff1_b",
                           "ff2_w", "ff2_b", "ln1_g", "ln1_b", "ln2_g", "ln2_b")}
    for li in range(num_layers):
        lk = jax.random.split(keys[1 + li], 4)
        w, b = dense(lk[0], d_model, 3 * d_model)   # packed q,k,v projection
        acc["in_w"].append(w); acc["in_b"].append(b)
        w, b = dense(lk[1], d_model, d_model)
        acc["out_w"].append(w); acc["out_b"].append(b)
        w, b = dense(lk[2], d_model, dim_ff)
        acc["ff1_w"].append(w); acc["ff1_b"].append(b)
        w, b = dense(lk[3], dim_ff, d_model)
        acc["ff2_w"].append(w); acc["ff2_b"].append(b)
        acc["ln1_g"].append(jnp.ones((1, d_model), jnp.float32))
        acc["ln1_b"].append(jnp.zeros((1, d_model), jnp.float32))
        acc["ln2_g"].append(jnp.ones((1, d_model), jnp.float32))
        acc["ln2_b"].append(jnp.zeros((1, d_model), jnp.float32))
    for name, vals in acc.items():
        params[name] = jnp.stack(vals, axis=0)      # stacked along leading layer axis

    params["fc1_w"], params["fc1_b"] = dense(keys[-3], d_model, 256)
    params["fc2_w"], params["fc2_b"] = dense(keys[-2], 256, 128)
    params["fc3_w"], params["fc3_b"] = dense(keys[-1], 128, output_dim)
    return params


def transformer_predictor_forward(x, params, nhead, *, target_rows=256):
    B, S, F = x.shape
    D = params["proj_w"].shape[1]
    OUT = params["fc3_w"].shape[1]
    H = nhead
    Dh = D // H
    bf = jnp.bfloat16

    # ---- batch tile: ~target_rows MXU rows per step, keep >= 2 grid steps (v7x 2 TCs) ---
    bt = max(1, target_rows // S)
    if B >= 2:
        bt = min(bt, pl.cdiv(B, 2))
    bt = min(bt, B)
    steps = pl.cdiv(B, bt)
    b_pad = steps * bt

    # ---- activations: pad features F->F_PAD, batch->b_pad, flatten to row slabs ----
    x_p = jnp.zeros((b_pad, S, F_PAD), bf).at[:B, :, :F].set(x.astype(bf))
    x_flat = x_p.reshape(b_pad * S, F_PAD)

    pe_tiled = jnp.tile(params["pe"][:S].astype(jnp.float32), (bt, 1))        # [bt*S, D]
    head_mask = (jnp.arange(D)[None, :] // Dh
                 == jnp.arange(H)[:, None]).astype(jnp.float32)               # [H, D]

    proj_w = jnp.zeros((F_PAD, D), bf).at[:F].set(params["proj_w"].astype(bf))
    fc3_w = jnp.zeros((params["fc3_w"].shape[0], OUT_PAD), bf).at[:, :OUT].set(
        params["fc3_w"].astype(bf))
    fc3_b = jnp.zeros((1, OUT_PAD), jnp.float32).at[:, :OUT].set(params["fc3_b"])

    weight_args = (
        pe_tiled, head_mask, proj_w, params["proj_b"],
        params["in_w"].astype(bf), params["in_b"],
        params["out_w"].astype(bf), params["out_b"],
        params["ff1_w"].astype(bf), params["ff1_b"],
        params["ff2_w"].astype(bf), params["ff2_b"],
        params["ln1_g"], params["ln1_b"], params["ln2_g"], params["ln2_b"],
        params["fc1_w"].astype(bf), params["fc1_b"],
        params["fc2_w"].astype(bf), params["fc2_b"],
        fc3_w, fc3_b,
    )

    in_specs = [pl.BlockSpec((bt * S, F_PAD), lambda i: (i, 0))]      # per-step input slab
    in_specs += [_full_spec(w.shape) for w in weight_args]            # resident weights

    out = pl.pallas_call(
        functools.partial(_fused_transformer_kernel,
                          bt=bt, seq=S, nhead=nhead, eps=1e-5),
        out_shape=jax.ShapeDtypeStruct((steps, bt, OUT_PAD), jnp.float32),
        grid=(steps,),
        in_specs=in_specs,
        out_specs=pl.BlockSpec((1, bt, OUT_PAD), lambda i: (i, 0, 0)),
        compiler_params=pltpu.CompilerParams(
            dimension_semantics=("parallel",),     # shards grid steps across TCs on v7x
            vmem_limit_bytes=32 * 1024 * 1024,
        ),
    )(x_flat, *weight_args)

    return out.reshape(steps * bt, OUT_PAD)[:B, :OUT].astype(x.dtype)


# ---------------------------------- main -------------------------------------

if __name__ == "__main__":
    B, S = 2, 8
    INPUT_DIM, D_MODEL, NHEAD, NUM_LAYERS, OUTPUT_DIM = 50, 128, 8, 4, 3

    key = jax.random.PRNGKey(0)
    kx, kp = jax.random.split(key)
    x = jax.random.normal(kx, (B, S, INPUT_DIM), jnp.float32)
    params = init_params(kp, INPUT_DIM, D_MODEL, NHEAD, NUM_LAYERS, OUTPUT_DIM)

    fwd = jax.jit(functools.partial(transformer_predictor_forward, nhead=NHEAD))
    out = fwd(x, params)
    jax.block_until_ready(out)
    assert out.shape == (B, OUTPUT_DIM)
    print("KERNEL_OK")
</pallas_src>

<mosaic_0001>
module attributes {stable_mosaic.version = 11 : i64} {
  func.func @_fused_transformer_kernel(%arg0: i32, %arg1: memref<8x128xbf16, #tpu.memory_space<vmem>>, %arg2: memref<8x128xf32, #tpu.memory_space<vmem>>, %arg3: memref<8x128xf32, #tpu.memory_space<vmem>>, %arg4: memref<128x128xbf16, #tpu.memory_space<vmem>>, %arg5: memref<1x128xf32, #tpu.memory_space<vmem>>, %arg6: memref<4x128x384xbf16, #tpu.memory_space<vmem>>, %arg7: memref<4x1x384xf32, #tpu.memory_space<vmem>>, %arg8: memref<4x128x128xbf16, #tpu.memory_space<vmem>>, %arg9: memref<4x1x128xf32, #tpu.memory_space<vmem>>, %arg10: memref<4x128x512xbf16, #tpu.memory_space<vmem>>, %arg11: memref<4x1x512xf32, #tpu.memory_space<vmem>>, %arg12: memref<4x512x128xbf16, #tpu.memory_space<vmem>>, %arg13: memref<4x1x128xf32, #tpu.memory_space<vmem>>, %arg14: memref<4x1x128xf32, #tpu.memory_space<vmem>>, %arg15: memref<4x1x128xf32, #tpu.memory_space<vmem>>, %arg16: memref<4x1x128xf32, #tpu.memory_space<vmem>>, %arg17: memref<4x1x128xf32, #tpu.memory_space<vmem>>, %arg18: memref<128x256xbf16, #tpu.memory_space<vmem>>, %arg19: memref<1x256xf32, #tpu.memory_space<vmem>>, %arg20: memref<256x128xbf16, #tpu.memory_space<vmem>>, %arg21: memref<1x128xf32, #tpu.memory_space<vmem>>, %arg22: memref<128x128xbf16, #tpu.memory_space<vmem>>, %arg23: memref<1x128xf32, #tpu.memory_space<vmem>>, %arg24: memref<1x1x128xf32, #tpu.memory_space<vmem>>) attributes {dimension_semantics = [#tpu.dimension_semantics<parallel>], iteration_bounds = array<i64: 2>, scalar_prefetch = 0 : i64, scratch_operands = 0 : i64, tpu.core_type = #tpu.core_type<tc>, window_params = [{transform_indices = @transform_0, window_bounds = array<i64: 8, 128>}, {pipeline_mode = #tpu.pipeline_mode<synchronous>, transform_indices = @transform_1, window_bounds = array<i64: 8, 128>}, {pipeline_mode = #tpu.pipeline_mode<synchronous>, transform_indices = @transform_2, window_bounds = array<i64: 8, 128>}, {pipeline_mode = #tpu.pipeline_mode<synchronous>, transform_indices = @transform_3, window_bounds = array<i64: 128, 128>}, {pipeline_mode = #tpu.pipeline_mode<synchronous>, transform_indices = @transform_4, window_bounds = array<i64: 1, 128>}, {pipeline_mode = #tpu.pipeline_mode<synchronous>, transform_indices = @transform_5, window_bounds = array<i64: 4, 128, 384>}, {pipeline_mode = #tpu.pipeline_mode<synchronous>, transform_indices = @transform_6, window_bounds = array<i64: 4, 1, 384>}, {pipeline_mode = #tpu.pipeline_mode<synchronous>, transform_indices = @transform_7, window_bounds = array<i64: 4, 128, 128>}, {pipeline_mode = #tpu.pipeline_mode<synchronous>, transform_indices = @transform_8, window_bounds = array<i64: 4, 1, 128>}, {pipeline_mode = #tpu.pipeline_mode<synchronous>, transform_indices = @transform_9, window_bounds = array<i64: 4, 128, 512>}, {pipeline_mode = #tpu.pipeline_mode<synchronous>, transform_indices = @transform_10, window_bounds = array<i64: 4, 1, 512>}, {pipeline_mode = #tpu.pipeline_mode<synchronous>, transform_indices = @transform_11, window_bounds = array<i64: 4, 512, 128>}, {pipeline_mode = #tpu.pipeline_mode<synchronous>, transform_indices = @transform_12, window_bounds = array<i64: 4, 1, 128>}, {pipeline_mode = #tpu.pipeline_mode<synchronous>, transform_indices = @transform_13, window_bounds = array<i64: 4, 1, 128>}, {pipeline_mode = #tpu.pipeline_mode<synchronous>, transform_indices = @transform_14, window_bounds = array<i64: 4, 1, 128>}, {pipeline_mode = #tpu.pipeline_mode<synchronous>, transform_indices = @transform_15, window_bounds = array<i64: 4, 1, 128>}, {pipeline_mode = #tpu.pipeline_mode<synchronous>, transform_indices = @transform_16, window_bounds = array<i64: 4, 1, 128>}, {pipeline_mode = #tpu.pipeline_mode<synchronous>, transform_indices = @transform_17, window_bounds = array<i64: 128, 256>}, {pipeline_mode = #tpu.pipeline_mode<synchronous>, transform_indices = @transform_18, window_bounds = array<i64: 1, 256>}, {pipeline_mode = #tpu.pipeline_mode<synchronous>, transform_indices = @transform_19, window_bounds = array<i64: 256, 128>}, {pipeline_mode = #tpu.pipeline_mode<synchronous>, transform_indices = @transform_20, window_bounds = array<i64: 1, 128>}, {pipeline_mode = #tpu.pipeline_mode<synchronous>, transform_indices = @transform_21, window_bounds = array<i64: 128, 128>}, {pipeline_mode = #tpu.pipeline_mode<synchronous>, transform_indices = @transform_22, window_bounds = array<i64: 1, 128>}, {transform_indices = @transform_23, window_bounds = array<i64: 1, 1, 128>}]} {
    %c0 = arith.constant 0 : index
    %c0_0 = arith.constant 0 : index
    %0 = vector.load %arg3[%c0, %c0_0] : memref<8x128xf32, #tpu.memory_space<vmem>>, vector<8x128xf32>
    %cst = arith.constant 2.500000e-01 : f32
    %1 = vector.broadcast %cst : f32 to vector<8x128xf32>
    %2 = arith.mulf %0, %1 : vector<8x128xf32>
    %c0_1 = arith.constant 0 : index
    %c0_2 = arith.constant 0 : index
    %3 = vector.load %arg1[%c0_1, %c0_2] : memref<8x128xbf16, #tpu.memory_space<vmem>>, vector<8x128xbf16>
    %c0_3 = arith.constant 0 : index
    %c0_4 = arith.constant 0 : index
    %4 = vector.load %arg4[%c0_3, %c0_4] : memref<128x128xbf16, #tpu.memory_space<vmem>>, vector<128x128xbf16>
    %cst_5 = arith.constant dense<0.000000e+00> : vector<8x128xf32>
    %5 = tpu.matmul %3, %4, %cst_5 {dimension_numbers = #tpu.dot_dimension_numbers<[1], [0], [0], [1], [0, 0, 1, 1], [], []>} : vector<8x128xbf16>, vector<128x128xbf16>, vector<8x128xf32> -> vector<8x128xf32>
    %c0_6 = arith.constant 0 : index
    %c0_7 = arith.constant 0 : index
    %6 = vector.load %arg5[%c0_6, %c0_7] : memref<1x128xf32, #tpu.memory_space<vmem>>, vector<1x128xf32>
    %7 = vector.broadcast %6 : vector<1x128xf32> to vector<8x128xf32>
    %8 = arith.addf %5, %7 : vector<8x128xf32>
    %c0_8 = arith.constant 0 : index
    %c0_9 = arith.constant 0 : index
    %9 = vector.load %arg2[%c0_8, %c0_9] : memref<8x128xf32, #tpu.memory_space<vmem>>, vector<8x128xf32>
    %10 = arith.addf %8, %9 : vector<8x128xf32>
    %c0_10 = arith.constant 0 : index
    %c0_11 = arith.constant 0 : index
    %c0_12 = arith.constant 0 : index
    %11 = vector.load %arg6[%c0_10, %c0_11, %c0_12] : memref<4x128x384xbf16, #tpu.memory_space<vmem>>, vector<1x128x384xbf16>
    %12 = vector.shape_cast %11 : vector<1x128x384xbf16> to vector<128x384xbf16>
    %13 = arith.truncf %10 : vector<8x128xf32> to vector<8x128xbf16>
    %cst_13 = arith.constant dense<0.000000e+00> : vector<8x384xf32>
    %14 = tpu.matmul %13, %12, %cst_13 {dimension_numbers = #tpu.dot_dimension_numbers<[1], [0], [0], [1], [0, 0, 1, 1], [], []>} : vector<8x128xbf16>, vector<128x384xbf16>, vector<8x384xf32> -> vector<8x384xf32>
    %c0_14 = arith.constant 0 : index
    %c0_15 = arith.constant 0 : index
    %c0_16 = arith.constant 0 : index
    %15 = vector.load %arg7[%c0_14, %c0_15, %c0_16] : memref<4x1x384xf32, #tpu.memory_space<vmem>>, vector<1x1x384xf32>
    %16 = vector.shape_cast %15 : vector<1x1x384xf32> to vector<1x384xf32>
    %17 = vector.broadcast %16 : vector<1x384xf32> to vector<8x384xf32>
    %18 = arith.addf %14, %17 : vector<8x384xf32>
    %19 = vector.shape_cast %18 : vector<8x384xf32> to vector<1x8x384xf32>
    %20 = vector.extract_strided_slice %19 {offsets = [0, 0, 0], sizes = [1, 8, 128], strides = [1, 1, 1]} : vector<1x8x384xf32> to vector<1x8x128xf32>
    %21 = vector.extract_strided_slice %19 {offsets = [0, 0, 128], sizes = [1, 8, 128], strides = [1, 1, 1]} : vector<1x8x384xf32> to vector<1x8x128xf32>
    %22 = vector.extract_strided_slice %19 {offsets = [0, 0, 256], sizes = [1, 8, 128], strides = [1, 1, 1]} : vector<1x8x384xf32> to vector<1x8x128xf32>
    %23 = vector.shape_cast %20 : vector<1x8x128xf32> to vector<1x1x8x128xf32>
    %24 = vector.shape_cast %2 : vector<8x128xf32> to vector<1x8x1x128xf32>
    %25 = vector.broadcast %23 : vector<1x1x8x128xf32> to vector<1x8x8x128xf32>
    %26 = vector.broadcast %24 : vector<1x8x1x128xf32> to vector<1x8x8x128xf32>
    %27 = arith.mulf %25, %26 : vector<1x8x8x128xf32>
    %28 = vector.shape_cast %27 : vector<1x8x8x128xf32> to vector<1x64x128xf32>
    %29 = arith.truncf %28 : vector<1x64x128xf32> to vector<1x64x128xbf16>
    %30 = arith.truncf %21 : vector<1x8x128xf32> to vector<1x8x128xbf16>
    "tpu.trace_start"() <{level = 10 : i32, message = "brd,bjd->brj"}> : () -> ()
    %cst_17 = arith.constant dense<0.000000e+00> : vector<1x64x8xf32>
    %31 = tpu.matmul %29, %30, %cst_17 {dimension_numbers = #tpu.dot_dimension_numbers<[2], [2], [1], [1], [0, 0, 0, 1, 1, 1], [0], [0]>} : vector<1x64x128xbf16>, vector<1x8x128xbf16>, vector<1x64x8xf32> -> vector<1x64x8xf32>
    "tpu.trace_stop"() : () -> ()
    %cst_18 = arith.constant dense<0xFF800000> : vector<1x64xf32>
    %32 = vector.multi_reduction <maximumf>, %31, %cst_18 [2] : vector<1x64x8xf32> to vector<1x64xf32>
    %33 = vector.shape_cast %32 : vector<1x64xf32> to vector<1x64x1xf32>
    %34 = vector.broadcast %33 : vector<1x64x1xf32> to vector<1x64x8xf32>
    %35 = arith.subf %31, %34 : vector<1x64x8xf32>
    %36 = math.exp %35 : vector<1x64x8xf32>
    %cst_19 = arith.constant dense<0.000000e+00> : vector<1x64xf32>
    %37 = vector.multi_reduction <add>, %36, %cst_19 [2] : vector<1x64x8xf32> to vector<1x64xf32>
    %38 = vector.shape_cast %37 : vector<1x64xf32> to vector<1x64x1xf32>
    %39 = tpu.reciprocal %38 {approx = true} : vector<1x64x1xf32> -> vector<1x64x1xf32>
    %40 = vector.broadcast %39 : vector<1x64x1xf32> to vector<1x64x8xf32>
    %41 = arith.mulf %36, %40 : vector<1x64x8xf32>
    %42 = vector.shape_cast %22 : vector<1x8x128xf32> to vector<1x1x8x128xf32>
    %43 = vector.shape_cast %0 : vector<8x128xf32> to vector<1x8x1x128xf32>
    %44 = vector.broadcast %42 : vector<1x1x8x128xf32> to vector<1x8x8x128xf32>
    %45 = vector.broadcast %43 : vector<1x8x1x128xf32> to vector<1x8x8x128xf32>
    %46 = arith.mulf %44, %45 : vector<1x8x8x128xf32>
    %47 = vector.shape_cast %46 : vector<1x8x8x128xf32> to vector<8x8x128xf32>
    %48 = vector.shape_cast %41 : vector<1x64x8xf32> to vector<8x8x8xf32>
    %49 = arith.truncf %48 : vector<8x8x8xf32> to vector<8x8x8xbf16>
    %50 = arith.truncf %47 : vector<8x8x128xf32> to vector<8x8x128xbf16>
    "tpu.trace_start"() <{level = 10 : i32, message = "gij,gjd->gid"}> : () -> ()
    %cst_20 = arith.constant dense<0.000000e+00> : vector<8x8x128xf32>
    %51 = tpu.matmul %49, %50, %cst_20 {dimension_numbers = #tpu.dot_dimension_numbers<[2], [1], [1], [2], [0, 0, 0, 1, 1, 2], [0], [0]>} : vector<8x8x8xbf16>, vector<8x8x128xbf16>, vector<8x8x128xf32> -> vector<8x8x128xf32>
    "tpu.trace_stop"() : () -> ()
    %52 = vector.shape_cast %51 : vector<8x8x128xf32> to vector<1x8x8x128xf32>
    %cst_21 = arith.constant dense<0.000000e+00> : vector<1x8x128xf32>
    %53 = vector.multi_reduction <add>, %52, %cst_21 [1] : vector<1x8x8x128xf32> to vector<1x8x128xf32>
    %54 = vector.shape_cast %53 : vector<1x8x128xf32> to vector<8x128xf32>
    %c0_22 = arith.constant 0 : index
    %c0_23 = arith.constant 0 : index
    %c0_24 = arith.constant 0 : index
    %55 = vector.load %arg8[%c0_22, %c0_23, %c0_24] : memref<4x128x128xbf16, #tpu.memory_space<vmem>>, vector<1x128x128xbf16>
    %56 = vector.shape_cast %55 : vector<1x128x128xbf16> to vector<128x128xbf16>
    %57 = arith.truncf %54 : vector<8x128xf32> to vector<8x128xbf16>
    %cst_25 = arith.constant dense<0.000000e+00> : vector<8x128xf32>
    %58 = tpu.matmul %57, %56, %cst_25 {dimension_numbers = #tpu.dot_dimension_numbers<[1], [0], [0], [1], [0, 0, 1, 1], [], []>} : vector<8x128xbf16>, vector<128x128xbf16>, vector<8x128xf32> -> vector<8x128xf32>
    %c0_26 = arith.constant 0 : index
    %c0_27 = arith.constant 0 : index
    %c0_28 = arith.constant 0 : index
    %59 = vector.load %arg9[%c0_26, %c0_27, %c0_28] : memref<4x1x128xf32, #tpu.memory_space<vmem>>, vector<1x1x128xf32>
    %60 = vector.shape_cast %59 : vector<1x1x128xf32> to vector<1x128xf32>
    %61 = vector.broadcast %60 : vector<1x128xf32> to vector<8x128xf32>
    %62 = arith.addf %58, %61 : vector<8x128xf32>
    %63 = arith.addf %10, %62 : vector<8x128xf32>
    %c0_29 = arith.constant 0 : index
    %c0_30 = arith.constant 0 : index
    %c0_31 = arith.constant 0 : index
    %64 = vector.load %arg14[%c0_29, %c0_30, %c0_31] : memref<4x1x128xf32, #tpu.memory_space<vmem>>, vector<1x1x128xf32>
    %65 = vector.shape_cast %64 : vector<1x1x128xf32> to vector<1x128xf32>
    %c0_32 = arith.constant 0 : index
    %c0_33 = arith.constant 0 : index
    %c0_34 = arith.constant 0 : index
    %66 = vector.load %arg15[%c0_32, %c0_33, %c0_34] : memref<4x1x128xf32, #tpu.memory_space<vmem>>, vector<1x1x128xf32>
    %67 = vector.shape_cast %66 : vector<1x1x128xf32> to vector<1x128xf32>
    %cst_35 = arith.constant dense<0.000000e+00> : vector<8xf32>
    %68 = vector.multi_reduction <add>, %63, %cst_35 [1] : vector<8x128xf32> to vector<8xf32>
    %69 = vector.shape_cast %68 : vector<8xf32> to vector<8x1xf32>
    %cst_36 = arith.constant 1.280000e+02 : f32
    %70 = vector.broadcast %cst_36 : f32 to vector<8x1xf32>
    %71 = arith.divf %69, %70 : vector<8x1xf32>
    %72 = vector.broadcast %71 : vector<8x1xf32> to vector<8x128xf32>
    %73 = arith.subf %63, %72 : vector<8x128xf32>
    %74 = arith.mulf %73, %73 : vector<8x128xf32>
    %cst_37 = arith.constant dense<0.000000e+00> : vector<8xf32>
    %75 = vector.multi_reduction <add>, %74, %cst_37 [1] : vector<8x128xf32> to vector<8xf32>
    %76 = vector.shape_cast %75 : vector<8xf32> to vector<8x1xf32>
    %cst_38 = arith.constant 1.280000e+02 : f32
    %77 = vector.broadcast %cst_38 : f32 to vector<8x1xf32>
    %78 = arith.divf %76, %77 : vector<8x1xf32>
    %79 = vector.broadcast %71 : vector<8x1xf32> to vector<8x128xf32>
    %80 = arith.subf %63, %79 : vector<8x128xf32>
    %cst_39 = arith.constant 9.99999974E-6 : f32
    %81 = vector.broadcast %cst_39 : f32 to vector<8x1xf32>
    %82 = arith.addf %78, %81 : vector<8x1xf32>
    %83 = math.rsqrt %82 : vector<8x1xf32>
    %84 = vector.broadcast %83 : vector<8x1xf32> to vector<8x128xf32>
    %85 = arith.mulf %80, %84 : vector<8x128xf32>
    %86 = vector.broadcast %65 : vector<1x128xf32> to vector<8x128xf32>
    %87 = arith.mulf %85, %86 : vector<8x128xf32>
    %88 = vector.broadcast %67 : vector<1x128xf32> to vector<8x128xf32>
    %89 = arith.addf %87, %88 : vector<8x128xf32>
    %c0_40 = arith.constant 0 : index
    %c0_41 = arith.constant 0 : index
    %c0_42 = arith.constant 0 : index
    %90 = vector.load %arg10[%c0_40, %c0_41, %c0_42] : memref<4x128x512xbf16, #tpu.memory_space<vmem>>, vector<1x128x512xbf16>
    %91 = vector.shape_cast %90 : vector<1x128x512xbf16> to vector<128x512xbf16>
    %92 = arith.truncf %89 : vector<8x128xf32> to vector<8x128xbf16>
    %cst_43 = arith.constant dense<0.000000e+00> : vector<8x512xf32>
    %93 = tpu.matmul %92, %91, %cst_43 {dimension_numbers = #tpu.dot_dimension_numbers<[1], [0], [0], [1], [0, 0, 1, 1], [], []>} : vector<8x128xbf16>, vector<128x512xbf16>, vector<8x512xf32> -> vector<8x512xf32>
    %c0_44 = arith.constant 0 : index
    %c0_45 = arith.constant 0 : index
    %c0_46 = arith.constant 0 : index
    %94 = vector.load %arg11[%c0_44, %c0_45, %c0_46] : memref<4x1x512xf32, #tpu.memory_space<vmem>>, vector<1x1x512xf32>
    %95 = vector.shape_cast %94 : vector<1x1x512xf32> to vector<1x512xf32>
    %96 = vector.broadcast %95 : vector<1x512xf32> to vector<8x512xf32>
    %97 = arith.addf %93, %96 : vector<8x512xf32>
    %cst_47 = arith.constant 0.000000e+00 : f32
    %98 = vector.broadcast %cst_47 : f32 to vector<8x512xf32>
    %99 = arith.maximumf %97, %98 : vector<8x512xf32>
    %c0_48 = arith.constant 0 : index
    %c0_49 = arith.constant 0 : index
    %c0_50 = arith.constant 0 : index
    %100 = vector.load %arg12[%c0_48, %c0_49, %c0_50] : memref<4x512x128xbf16, #tpu.memory_space<vmem>>, vector<1x512x128xbf16>
    %101 = vector.shape_cast %100 : vector<1x512x128xbf16> to vector<512x128xbf16>
    %102 = arith.truncf %99 : vector<8x512xf32> to vector<8x512xbf16>
    %cst_51 = arith.constant dense<0.000000e+00> : vector<8x128xf32>
    %103 = tpu.matmul %102, %101, %cst_51 {dimension_numbers = #tpu.dot_dimension_numbers<[1], [0], [0], [1], [0, 0, 1, 1], [], []>} : vector<8x512xbf16>, vector<512x128xbf16>, vector<8x128xf32> -> vector<8x128xf32>
    %c0_52 = arith.constant 0 : index
    %c0_53 = arith.constant 0 : index
    %c0_54 = arith.constant 0 : index
    %104 = vector.load %arg13[%c0_52, %c0_53, %c0_54] : memref<4x1x128xf32, #tpu.memory_space<vmem>>, vector<1x1x128xf32>
    %105 = vector.shape_cast %104 : vector<1x1x128xf32> to vector<1x128xf32>
    %106 = vector.broadcast %105 : vector<1x128xf32> to vector<8x128xf32>
    %107 = arith.addf %103, %106 : vector<8x128xf32>
    %108 = arith.addf %89, %107 : vector<8x128xf32>
    %c0_55 = arith.constant 0 : index
    %c0_56 = arith.constant 0 : index
    %c0_57 = arith.constant 0 : index
    %109 = vector.load %arg16[%c0_55, %c0_56, %c0_57] : memref<4x1x128xf32, #tpu.memory_space<vmem>>, vector<1x1x128xf32>
    %110 = vector.shape_cast %109 : vector<1x1x128xf32> to vector<1x128xf32>
    %c0_58 = arith.constant 0 : index
    %c0_59 = arith.constant 0 : index
    %c0_60 = arith.constant 0 : index
    %111 = vector.load %arg17[%c0_58, %c0_59, %c0_60] : memref<4x1x128xf32, #tpu.memory_space<vmem>>, vector<1x1x128xf32>
    %112 = vector.shape_cast %111 : vector<1x1x128xf32> to vector<1x128xf32>
    %cst_61 = arith.constant dense<0.000000e+00> : vector<8xf32>
    %113 = vector.multi_reduction <add>, %108, %cst_61 [1] : vector<8x128xf32> to vector<8xf32>
    %114 = vector.shape_cast %113 : vector<8xf32> to vector<8x1xf32>
    %cst_62 = arith.constant 1.280000e+02 : f32
    %115 = vector.broadcast %cst_62 : f32 to vector<8x1xf32>
    %116 = arith.divf %114, %115 : vector<8x1xf32>
    %117 = vector.broadcast %116 : vector<8x1xf32> to vector<8x128xf32>
    %118 = arith.subf %108, %117 : vector<8x128xf32>
    %119 = arith.mulf %118, %118 : vector<8x128xf32>
    %cst_63 = arith.constant dense<0.000000e+00> : vector<8xf32>
    %120 = vector.multi_reduction <add>, %119, %cst_63 [1] : vector<8x128xf32> to vector<8xf32>
    %121 = vector.shape_cast %120 : vector<8xf32> to vector<8x1xf32>
    %cst_64 = arith.constant 1.280000e+02 : f32
    %122 = vector.broadcast %cst_64 : f32 to vector<8x1xf32>
    %123 = arith.divf %121, %122 : vector<8x1xf32>
    %124 = vector.broadcast %116 : vector<8x1xf32> to vector<8x128xf32>
    %125 = arith.subf %108, %124 : vector<8x128xf32>
    %cst_65 = arith.constant 9.99999974E-6 : f32
    %126 = vector.broadcast %cst_65 : f32 to vector<8x1xf32>
    %127 = arith.addf %123, %126 : vector<8x1xf32>
    %128 = math.rsqrt %127 : vector<8x1xf32>
    %129 = vector.broadcast %128 : vector<8x1xf32> to vector<8x128xf32>
    %130 = arith.mulf %125, %129 : vector<8x128xf32>
    %131 = vector.broadcast %110 : vector<1x128xf32> to vector<8x128xf32>
    %132 = arith.mulf %130, %131 : vector<8x128xf32>
    %133 = vector.broadcast %112 : vector<1x128xf32> to vector<8x128xf32>
    %134 = arith.addf %132, %133 : vector<8x128xf32>
    %c1 = arith.constant 1 : index
    %c0_66 = arith.constant 0 : index
    %c0_67 = arith.constant 0 : index
    %135 = vector.load %arg6[%c1, %c0_66, %c0_67] : memref<4x128x384xbf16, #tpu.memory_space<vmem>>, vector<1x128x384xbf16>
    %136 = vector.shape_cast %135 : vector<1x128x384xbf16> to vector<128x384xbf16>
    %137 = arith.truncf %134 : vector<8x128xf32> to vector<8x128xbf16>
    %cst_68 = arith.constant dense<0.000000e+00> : vector<8x384xf32>
    %138 = tpu.matmul %137, %136, %cst_68 {dimension_numbers = #tpu.dot_dimension_numbers<[1], [0], [0], [1], [0, 0, 1, 1], [], []>} : vector<8x128xbf16>, vector<128x384xbf16>, vector<8x384xf32> -> vector<8x384xf32>
    %c1_69 = arith.constant 1 : index
    %c0_70 = arith.constant 0 : index
    %c0_71 = arith.constant 0 : index
    %139 = vector.load %arg7[%c1_69, %c0_70, %c0_71] : memref<4x1x384xf32, #tpu.memory_space<vmem>>, vector<1x1x384xf32>
    %140 = vector.shape_cast %139 : vector<1x1x384xf32> to vector<1x384xf32>
    %141 = vector.broadcast %140 : vector<1x384xf32> to vector<8x384xf32>
    %142 = arith.addf %138, %141 : vector<8x384xf32>
    %143 = vector.shape_cast %142 : vector<8x384xf32> to vector<1x8x384xf32>
    %144 = vector.extract_strided_slice %143 {offsets = [0, 0, 0], sizes = [1, 8, 128], strides = [1, 1, 1]} : vector<1x8x384xf32> to vector<1x8x128xf32>
    %145 = vector.extract_strided_slice %143 {offsets = [0, 0, 128], sizes = [1, 8, 128], strides = [1, 1, 1]} : vector<1x8x384xf32> to vector<1x8x128xf32>
    %146 = vector.extract_strided_slice %143 {offsets = [0, 0, 256], sizes = [1, 8, 128], strides = [1, 1, 1]} : vector<1x8x384xf32> to vector<1x8x128xf32>
    %147 = vector.shape_cast %144 : vector<1x8x128xf32> to vector<1x1x8x128xf32>
    %148 = vector.shape_cast %2 : vector<8x128xf32> to vector<1x8x1x128xf32>
    %149 = vector.broadcast %147 : vector<1x1x8x128xf32> to vector<1x8x8x128xf32>
    %150 = vector.broadcast %148 : vector<1x8x1x128xf32> to vector<1x8x8x128xf32>
    %151 = arith.mulf %149, %150 : vector<1x8x8x128xf32>
    %152 = vector.shape_cast %151 : vector<1x8x8x128xf32> to vector<1x64x128xf32>
    %153 = arith.truncf %152 : vector<1x64x128xf32> to vector<1x64x128xbf16>
    %154 = arith.truncf %145 : vector<1x8x128xf32> to vector<1x8x128xbf16>
    "tpu.trace_start"() <{level = 10 : i32, message = "brd,bjd->brj"}> : () -> ()
    %cst_72 = arith.constant dense<0.000000e+00> : vector<1x64x8xf32>
    %155 = tpu.matmul %153, %154, %cst_72 {dimension_numbers = #tpu.dot_dimension_numbers<[2], [2], [1], [1], [0, 0, 0, 1, 1, 1], [0], [0]>} : vector<1x64x128xbf16>, vector<1x8x128xbf16>, vector<1x64x8xf32> -> vector<1x64x8xf32>
    "tpu.trace_stop"() : () -> ()
    %cst_73 = arith.constant dense<0xFF800000> : vector<1x64xf32>
    %156 = vector.multi_reduction <maximumf>, %155, %cst_73 [2] : vector<1x64x8xf32> to vector<1x64xf32>
    %157 = vector.shape_cast %156 : vector<1x64xf32> to vector<1x64x1xf32>
    %158 = vector.broadcast %157 : vector<1x64x1xf32> to vector<1x64x8xf32>
    %159 = arith.subf %155, %158 : vector<1x64x8xf32>
    %160 = math.exp %159 : vector<1x64x8xf32>
    %cst_74 = arith.constant dense<0.000000e+00> : vector<1x64xf32>
    %161 = vector.multi_reduction <add>, %160, %cst_74 [2] : vector<1x64x8xf32> to vector<1x64xf32>
    %162 = vector.shape_cast %161 : vector<1x64xf32> to vector<1x64x1xf32>
    %163 = tpu.reciprocal %162 {approx = true} : vector<1x64x1xf32> -> vector<1x64x1xf32>
    %164 = vector.broadcast %163 : vector<1x64x1xf32> to vector<1x64x8xf32>
    %165 = arith.mulf %160, %164 : vector<1x64x8xf32>
    %166 = vector.shape_cast %146 : vector<1x8x128xf32> to vector<1x1x8x128xf32>
    %167 = vector.shape_cast %0 : vector<8x128xf32> to vector<1x8x1x128xf32>
    %168 = vector.broadcast %166 : vector<1x1x8x128xf32> to vector<1x8x8x128xf32>
    %169 = vector.broadcast %167 : vector<1x8x1x128xf32> to vector<1x8x8x128xf32>
    %170 = arith.mulf %168, %169 : vector<1x8x8x128xf32>
    %171 = vector.shape_cast %170 : vector<1x8x8x128xf32> to vector<8x8x128xf32>
    %172 = vector.shape_cast %165 : vector<1x64x8xf32> to vector<8x8x8xf32>
    %173 = arith.truncf %172 : vector<8x8x8xf32> to vector<8x8x8xbf16>
    %174 = arith.truncf %171 : vector<8x8x128xf32> to vector<8x8x128xbf16>
    "tpu.trace_start"() <{level = 10 : i32, message = "gij,gjd->gid"}> : () -> ()
    %cst_75 = arith.constant dense<0.000000e+00> : vector<8x8x128xf32>
    %175 = tpu.matmul %173, %174, %cst_75 {dimension_numbers = #tpu.dot_dimension_numbers<[2], [1], [1], [2], [0, 0, 0, 1, 1, 2], [0], [0]>} : vector<8x8x8xbf16>, vector<8x8x128xbf16>, vector<8x8x128xf32> -> vector<8x8x128xf32>
    "tpu.trace_stop"() : () -> ()
    %176 = vector.shape_cast %175 : vector<8x8x128xf32> to vector<1x8x8x128xf32>
    %cst_76 = arith.constant dense<0.000000e+00> : vector<1x8x128xf32>
    %177 = vector.multi_reduction <add>, %176, %cst_76 [1] : vector<1x8x8x128xf32> to vector<1x8x128xf32>
    %178 = vector.shape_cast %177 : vector<1x8x128xf32> to vector<8x128xf32>
    %c1_77 = arith.constant 1 : index
    %c0_78 = arith.constant 0 : index
    %c0_79 = arith.constant 0 : index
    %179 = vector.load %arg8[%c1_77, %c0_78, %c0_79] : memref<4x128x128xbf16, #tpu.memory_space<vmem>>, vector<1x128x128xbf16>
    %180 = vector.shape_cast %179 : vector<1x128x128xbf16> to vector<128x128xbf16>
    %181 = arith.truncf %178 : vector<8x128xf32> to vector<8x128xbf16>
    %cst_80 = arith.constant dense<0.000000e+00> : vector<8x128xf32>
    %182 = tpu.matmul %181, %180, %cst_80 {dimension_numbers = #tpu.dot_dimension_numbers<[1], [0], [0], [1], [0, 0, 1, 1], [], []>} : vector<8x128xbf16>, vector<128x128xbf16>, vector<8x128xf32> -> vector<8x128xf32>
    %c1_81 = arith.constant 1 : index
    %c0_82 = arith.constant 0 : index
    %c0_83 = arith.constant 0 : index
    %183 = vector.load %arg9[%c1_81, %c0_82, %c0_83] : memref<4x1x128xf32, #tpu.memory_space<vmem>>, vector<1x1x128xf32>
    %184 = vector.shape_cast %183 : vector<1x1x128xf32> to vector<1x128xf32>
    %185 = vector.broadcast %184 : vector<1x128xf32> to vector<8x128xf32>
    %186 = arith.addf %182, %185 : vector<8x128xf32>
    %187 = arith.addf %134, %186 : vector<8x128xf32>
    %c1_84 = arith.constant 1 : index
    %c0_85 = arith.constant 0 : index
    %c0_86 = arith.constant 0 : index
    %188 = vector.load %arg14[%c1_84, %c0_85, %c0_86] : memref<4x1x128xf32, #tpu.memory_space<vmem>>, vector<1x1x128xf32>
    %189 = vector.shape_cast %188 : vector<1x1x128xf32> to vector<1x128xf32>
    %c1_87 = arith.constant 1 : index
    %c0_88 = arith.constant 0 : index
    %c0_89 = arith.constant 0 : index
    %190 = vector.load %arg15[%c1_87, %c0_88, %c0_89] : memref<4x1x128xf32, #tpu.memory_space<vmem>>, vector<1x1x128xf32>
    %191 = vector.shape_cast %190 : vector<1x1x128xf32> to vector<1x128xf32>
    %cst_90 = arith.constant dense<0.000000e+00> : vector<8xf32>
    %192 = vector.multi_reduction <add>, %187, %cst_90 [1] : vector<8x128xf32> to vector<8xf32>
    %193 = vector.shape_cast %192 : vector<8xf32> to vector<8x1xf32>
    %cst_91 = arith.constant 1.280000e+02 : f32
    %194 = vector.broadcast %cst_91 : f32 to vector<8x1xf32>
    %195 = arith.divf %193, %194 : vector<8x1xf32>
    %196 = vector.broadcast %195 : vector<8x1xf32> to vector<8x128xf32>
    %197 = arith.subf %187, %196 : vector<8x128xf32>
    %198 = arith.mulf %197, %197 : vector<8x128xf32>
    %cst_92 = arith.constant dense<0.000000e+00> : vector<8xf32>
    %199 = vector.multi_reduction <add>, %198, %cst_92 [1] : vector<8x128xf32> to vector<8xf32>
    %200 = vector.shape_cast %199 : vector<8xf32> to vector<8x1xf32>
    %cst_93 = arith.constant 1.280000e+02 : f32
    %201 = vector.broadcast %cst_93 : f32 to vector<8x1xf32>
    %202 = arith.divf %200, %201 : vector<8x1xf32>
    %203 = vector.broadcast %195 : vector<8x1xf32> to vector<8x128xf32>
    %204 = arith.subf %187, %203 : vector<8x128xf32>
    %cst_94 = arith.constant 9.99999974E-6 : f32
    %205 = vector.broadcast %cst_94 : f32 to vector<8x1xf32>
    %206 = arith.addf %202, %205 : vector<8x1xf32>
    %207 = math.rsqrt %206 : vector<8x1xf32>
    %208 = vector.broadcast %207 : vector<8x1xf32> to vector<8x128xf32>
    %209 = arith.mulf %204, %208 : vector<8x128xf32>
    %210 = vector.broadcast %189 : vector<1x128xf32> to vector<8x128xf32>
    %211 = arith.mulf %209, %210 : vector<8x128xf32>
    %212 = vector.broadcast %191 : vector<1x128xf32> to vector<8x128xf32>
    %213 = arith.addf %211, %212 : vector<8x128xf32>
    %c1_95 = arith.constant 1 : index
    %c0_96 = arith.constant 0 : index
    %c0_97 = arith.constant 0 : index
    %214 = vector.load %arg10[%c1_95, %c0_96, %c0_97] : memref<4x128x512xbf16, #tpu.memory_space<vmem>>, vector<1x128x512xbf16>
    %215 = vector.shape_cast %214 : vector<1x128x512xbf16> to vector<128x512xbf16>
    %216 = arith.truncf %213 : vector<8x128xf32> to vector<8x128xbf16>
    %cst_98 = arith.constant dense<0.000000e+00> : vector<8x512xf32>
    %217 = tpu.matmul %216, %215, %cst_98 {dimension_numbers = #tpu.dot_dimension_numbers<[1], [0], [0], [1], [0, 0, 1, 1], [], []>} : vector<8x128xbf16>, vector<128x512xbf16>, vector<8x512xf32> -> vector<8x512xf32>
    %c1_99 = arith.constant 1 : index
    %c0_100 = arith.constant 0 : index
    %c0_101 = arith.constant 0 : index
    %218 = vector.load %arg11[%c1_99, %c0_100, %c0_101] : memref<4x1x512xf32, #tpu.memory_space<vmem>>, vector<1x1x512xf32>
    %219 = vector.shape_cast %218 : vector<1x1x512xf32> to vector<1x512xf32>
    %220 = vector.broadcast %219 : vector<1x512xf32> to vector<8x512xf32>
    %221 = arith.addf %217, %220 : vector<8x512xf32>
    %cst_102 = arith.constant 0.000000e+00 : f32
    %222 = vector.broadcast %cst_102 : f32 to vector<8x512xf32>
    %223 = arith.maximumf %221, %222 : vector<8x512xf32>
    %c1_103 = arith.constant 1 : index
    %c0_104 = arith.constant 0 : index
    %c0_105 = arith.constant 0 : index
    %224 = vector.load %arg12[%c1_103, %c0_104, %c0_105] : memref<4x512x128xbf16, #tpu.memory_space<vmem>>, vector<1x512x128xbf16>
    %225 = vector.shape_cast %224 : vector<1x512x128xbf16> to vector<512x128xbf16>
    %226 = arith.truncf %223 : vector<8x512xf32> to vector<8x512xbf16>
    %cst_106 = arith.constant dense<0.000000e+00> : vector<8x128xf32>
    %227 = tpu.matmul %226, %225, %cst_106 {dimension_numbers = #tpu.dot_dimension_numbers<[1], [0], [0], [1], [0, 0, 1, 1], [], []>} : vector<8x512xbf16>, vector<512x128xbf16>, vector<8x128xf32> -> vector<8x128xf32>
    %c1_107 = arith.constant 1 : index
    %c0_108 = arith.constant 0 : index
    %c0_109 = arith.constant 0 : index
    %228 = vector.load %arg13[%c1_107, %c0_108, %c0_109] : memref<4x1x128xf32, #tpu.memory_space<vmem>>, vector<1x1x128xf32>
    %229 = vector.shape_cast %228 : vector<1x1x128xf32> to vector<1x128xf32>
    %230 = vector.broadcast %229 : vector<1x128xf32> to vector<8x128xf32>
    %231 = arith.addf %227, %230 : vector<8x128xf32>
    %232 = arith.addf %213, %231 : vector<8x128xf32>
    %c1_110 = arith.constant 1 : index
    %c0_111 = arith.constant 0 : index
    %c0_112 = arith.constant 0 : index
    %233 = vector.load %arg16[%c1_110, %c0_111, %c0_112] : memref<4x1x128xf32, #tpu.memory_space<vmem>>, vector<1x1x128xf32>
    %234 = vector.shape_cast %233 : vector<1x1x128xf32> to vector<1x128xf32>
    %c1_113 = arith.constant 1 : index
    %c0_114 = arith.constant 0 : index
    %c0_115 = arith.constant 0 : index
    %235 = vector.load %arg17[%c1_113, %c0_114, %c0_115] : memref<4x1x128xf32, #tpu.memory_space<vmem>>, vector<1x1x128xf32>
    %236 = vector.shape_cast %235 : vector<1x1x128xf32> to vector<1x128xf32>
    %cst_116 = arith.constant dense<0.000000e+00> : vector<8xf32>
    %237 = vector.multi_reduction <add>, %232, %cst_116 [1] : vector<8x128xf32> to vector<8xf32>
    %238 = vector.shape_cast %237 : vector<8xf32> to vector<8x1xf32>
    %cst_117 = arith.constant 1.280000e+02 : f32
    %239 = vector.broadcast %cst_117 : f32 to vector<8x1xf32>
    %240 = arith.divf %238, %239 : vector<8x1xf32>
    %241 = vector.broadcast %240 : vector<8x1xf32> to vector<8x128xf32>
    %242 = arith.subf %232, %241 : vector<8x128xf32>
    %243 = arith.mulf %242, %242 : vector<8x128xf32>
    %cst_118 = arith.constant dense<0.000000e+00> : vector<8xf32>
    %244 = vector.multi_reduction <add>, %243, %cst_118 [1] : vector<8x128xf32> to vector<8xf32>
    %245 = vector.shape_cast %244 : vector<8xf32> to vector<8x1xf32>
    %cst_119 = arith.constant 1.280000e+02 : f32
    %246 = vector.broadcast %cst_119 : f32 to vector<8x1xf32>
    %247 = arith.divf %245, %246 : vector<8x1xf32>
    %248 = vector.broadcast %240 : vector<8x1xf32> to vector<8x128xf32>
    %249 = arith.subf %232, %248 : vector<8x128xf32>
    %cst_120 = arith.constant 9.99999974E-6 : f32
    %250 = vector.broadcast %cst_120 : f32 to vector<8x1xf32>
    %251 = arith.addf %247, %250 : vector<8x1xf32>
    %252 = math.rsqrt %251 : vector<8x1xf32>
    %253 = vector.broadcast %252 : vector<8x1xf32> to vector<8x128xf32>
    %254 = arith.mulf %249, %253 : vector<8x128xf32>
    %255 = vector.broadcast %234 : vector<1x128xf32> to vector<8x128xf32>
    %256 = arith.mulf %254, %255 : vector<8x128xf32>
    %257 = vector.broadcast %236 : vector<1x128xf32> to vector<8x128xf32>
    %258 = arith.addf %256, %257 : vector<8x128xf32>
    %c2 = arith.constant 2 : index
    %c0_121 = arith.constant 0 : index
    %c0_122 = arith.constant 0 : index
    %259 = vector.load %arg6[%c2, %c0_121, %c0_122] : memref<4x128x384xbf16, #tpu.memory_space<vmem>>, vector<1x128x384xbf16>
    %260 = vector.shape_cast %259 : vector<1x128x384xbf16> to vector<128x384xbf16>
    %261 = arith.truncf %258 : vector<8x128xf32> to vector<8x128xbf16>
    %cst_123 = arith.constant dense<0.000000e+00> : vector<8x384xf32>
    %262 = tpu.matmul %261, %260, %cst_123 {dimension_numbers = #tpu.dot_dimension_numbers<[1], [0], [0], [1], [0, 0, 1, 1], [], []>} : vector<8x128xbf16>, vector<128x384xbf16>, vector<8x384xf32> -> vector<8x384xf32>
    %c2_124 = arith.constant 2 : index
    %c0_125 = arith.constant 0 : index
    %c0_126 = arith.constant 0 : index
    %263 = vector.load %arg7[%c2_124, %c0_125, %c0_126] : memref<4x1x384xf32, #tpu.memory_space<vmem>>, vector<1x1x384xf32>
    %264 = vector.shape_cast %263 : vector<1x1x384xf32> to vector<1x384xf32>
    %265 = vector.broadcast %264 : vector<1x384xf32> to vector<8x384xf32>
    %266 = arith.addf %262, %265 : vector<8x384xf32>
    %267 = vector.shape_cast %266 : vector<8x384xf32> to vector<1x8x384xf32>
    %268 = vector.extract_strided_slice %267 {offsets = [0, 0, 0], sizes = [1, 8, 128], strides = [1, 1, 1]} : vector<1x8x384xf32> to vector<1x8x128xf32>
    %269 = vector.extract_strided_slice %267 {offsets = [0, 0, 128], sizes = [1, 8, 128], strides = [1, 1, 1]} : vector<1x8x384xf32> to vector<1x8x128xf32>
    %270 = vector.extract_strided_slice %267 {offsets = [0, 0, 256], sizes = [1, 8, 128], strides = [1, 1, 1]} : vector<1x8x384xf32> to vector<1x8x128xf32>
    %271 = vector.shape_cast %268 : vector<1x8x128xf32> to vector<1x1x8x128xf32>
    %272 = vector.shape_cast %2 : vector<8x128xf32> to vector<1x8x1x128xf32>
    %273 = vector.broadcast %271 : vector<1x1x8x128xf32> to vector<1x8x8x128xf32>
    %274 = vector.broadcast %272 : vector<1x8x1x128xf32> to vector<1x8x8x128xf32>
    %275 = arith.mulf %273, %274 : vector<1x8x8x128xf32>
    %276 = vector.shape_cast %275 : vector<1x8x8x128xf32> to vector<1x64x128xf32>
    %277 = arith.truncf %276 : vector<1x64x128xf32> to vector<1x64x128xbf16>
    %278 = arith.truncf %269 : vector<1x8x128xf32> to vector<1x8x128xbf16>
    "tpu.trace_start"() <{level = 10 : i32, message = "brd,bjd->brj"}> : () -> ()
    %cst_127 = arith.constant dense<0.000000e+00> : vector<1x64x8xf32>
    %279 = tpu.matmul %277, %278, %cst_127 {dimension_numbers = #tpu.dot_dimension_numbers<[2], [2], [1], [1], [0, 0, 0, 1, 1, 1], [0], [0]>} : vector<1x64x128xbf16>, vector<1x8x128xbf16>, vector<1x64x8xf32> -> vector<1x64x8xf32>
    "tpu.trace_stop"() : () -> ()
    %cst_128 = arith.constant dense<0xFF800000> : vector<1x64xf32>
    %280 = vector.multi_reduction <maximumf>, %279, %cst_128 [2] : vector<1x64x8xf32> to vector<1x64xf32>
    %281 = vector.shape_cast %280 : vector<1x64xf32> to vector<1x64x1xf32>
    %282 = vector.broadcast %281 : vector<1x64x1xf32> to vector<1x64x8xf32>
    %283 = arith.subf %279, %282 : vector<1x64x8xf32>
    %284 = math.exp %283 : vector<1x64x8xf32>
    %cst_129 = arith.constant dense<0.000000e+00> : vector<1x64xf32>
    %285 = vector.multi_reduction <add>, %284, %cst_129 [2] : vector<1x64x8xf32> to vector<1x64xf32>
    %286 = vector.shape_cast %285 : vector<1x64xf32> to vector<1x64x1xf32>
    %287 = tpu.reciprocal %286 {approx = true} : vector<1x64x1xf32> -> vector<1x64x1xf32>
    %288 = vector.broadcast %287 : vector<1x64x1xf32> to vector<1x64x8xf32>
    %289 = arith.mulf %284, %288 : vector<1x64x8xf32>
    %290 = vector.shape_cast %270 : vector<1x8x128xf32> to vector<1x1x8x128xf32>
    %291 = vector.shape_cast %0 : vector<8x128xf32> to vector<1x8x1x128xf32>
    %292 = vector.broadcast %290 : vector<1x1x8x128xf32> to vector<1x8x8x128xf32>
    %293 = vector.broadcast %291 : vector<1x8x1x128xf32> to vector<1x8x8x128xf32>
    %294 = arith.mulf %292, %293 : vector<1x8x8x128xf32>
    %295 = vector.shape_cast %294 : vector<1x8x8x128xf32> to vector<8x8x128xf32>
    %296 = vector.shape_cast %289 : vector<1x64x8xf32> to vector<8x8x8xf32>
    %297 = arith.truncf %296 : vector<8x8x8xf32> to vector<8x8x8xbf16>
    %298 = arith.truncf %295 : vector<8x8x128xf32> to vector<8x8x128xbf16>
    "tpu.trace_start"() <{level = 10 : i32, message = "gij,gjd->gid"}> : () -> ()
    %cst_130 = arith.constant dense<0.000000e+00> : vector<8x8x128xf32>
    %299 = tpu.matmul %297, %298, %cst_130 {dimension_numbers = #tpu.dot_dimension_numbers<[2], [1], [1], [2], [0, 0, 0, 1, 1, 2], [0], [0]>} : vector<8x8x8xbf16>, vector<8x8x128xbf16>, vector<8x8x128xf32> -> vector<8x8x128xf32>
    "tpu.trace_stop"() : () -> ()
    %300 = vector.shape_cast %299 : vector<8x8x128xf32> to vector<1x8x8x128xf32>
    %cst_131 = arith.constant dense<0.000000e+00> : vector<1x8x128xf32>
    %301 = vector.multi_reduction <add>, %300, %cst_131 [1] : vector<1x8x8x128xf32> to vector<1x8x128xf32>
    %302 = vector.shape_cast %301 : vector<1x8x128xf32> to vector<8x128xf32>
    %c2_132 = arith.constant 2 : index
    %c0_133 = arith.constant 0 : index
    %c0_134 = arith.constant 0 : index
    %303 = vector.load %arg8[%c2_132, %c0_133, %c0_134] : memref<4x128x128xbf16, #tpu.memory_space<vmem>>, vector<1x128x128xbf16>
    %304 = vector.shape_cast %303 : vector<1x128x128xbf16> to vector<128x128xbf16>
    %305 = arith.truncf %302 : vector<8x128xf32> to vector<8x128xbf16>
    %cst_135 = arith.constant dense<0.000000e+00> : vector<8x128xf32>
    %306 = tpu.matmul %305, %304, %cst_135 {dimension_numbers = #tpu.dot_dimension_numbers<[1], [0], [0], [1], [0, 0, 1, 1], [], []>} : vector<8x128xbf16>, vector<128x128xbf16>, vector<8x128xf32> -> vector<8x128xf32>
    %c2_136 = arith.constant 2 : index
    %c0_137 = arith.constant 0 : index
    %c0_138 = arith.constant 0 : index
    %307 = vector.load %arg9[%c2_136, %c0_137, %c0_138] : memref<4x1x128xf32, #tpu.memory_space<vmem>>, vector<1x1x128xf32>
    %308 = vector.shape_cast %307 : vector<1x1x128xf32> to vector<1x128xf32>
    %309 = vector.broadcast %308 : vector<1x128xf32> to vector<8x128xf32>
    %310 = arith.addf %306, %309 : vector<8x128xf32>
    %311 = arith.addf %258, %310 : vector<8x128xf32>
    %c2_139 = arith.constant 2 : index
    %c0_140 = arith.constant 0 : index
    %c0_141 = arith.constant 0 : index
    %312 = vector.load %arg14[%c2_139, %c0_140, %c0_141] : memref<4x1x128xf32, #tpu.memory_space<vmem>>, vector<1x1x128xf32>
    %313 = vector.shape_cast %312 : vector<1x1x128xf32> to vector<1x128xf32>
    %c2_142 = arith.constant 2 : index
    %c0_143 = arith.constant 0 : index
    %c0_144 = arith.constant 0 : index
    %314 = vector.load %arg15[%c2_142, %c0_143, %c0_144] : memref<4x1x128xf32, #tpu.memory_space<vmem>>, vector<1x1x128xf32>
    %315 = vector.shape_cast %314 : vector<1x1x128xf32> to vector<1x128xf32>
    %cst_145 = arith.constant dense<0.000000e+00> : vector<8xf32>
    %316 = vector.multi_reduction <add>, %311, %cst_145 [1] : vector<8x128xf32> to vector<8xf32>
    %317 = vector.shape_cast %316 : vector<8xf32> to vector<8x1xf32>
    %cst_146 = arith.constant 1.280000e+02 : f32
    %318 = vector.broadcast %cst_146 : f32 to vector<8x1xf32>
    %319 = arith.divf %317, %318 : vector<8x1xf32>
    %320 = vector.broadcast %319 : vector<8x1xf32> to vector<8x128xf32>
    %321 = arith.subf %311, %320 : vector<8x128xf32>
    %322 = arith.mulf %321, %321 : vector<8x128xf32>
    %cst_147 = arith.constant dense<0.000000e+00> : vector<8xf32>
    %323 = vector.multi_reduction <add>, %322, %cst_147 [1] : vector<8x128xf32> to vector<8xf32>
    %324 = vector.shape_cast %323 : vector<8xf32> to vector<8x1xf32>
    %cst_148 = arith.constant 1.280000e+02 : f32
    %325 = vector.broadcast %cst_148 : f32 to vector<8x1xf32>
    %326 = arith.divf %324, %325 : vector<8x1xf32>
    %327 = vector.broadcast %319 : vector<8x1xf32> to vector<8x128xf32>
    %328 = arith.subf %311, %327 : vector<8x128xf32>
    %cst_149 = arith.constant 9.99999974E-6 : f32
    %329 = vector.broadcast %cst_149 : f32 to vector<8x1xf32>
    %330 = arith.addf %326, %329 : vector<8x1xf32>
    %331 = math.rsqrt %330 : vector<8x1xf32>
    %332 = vector.broadcast %331 : vector<8x1xf32> to vector<8x128xf32>
    %333 = arith.mulf %328, %332 : vector<8x128xf32>
    %334 = vector.broadcast %313 : vector<1x128xf32> to vector<8x128xf32>
    %335 = arith.mulf %333, %334 : vector<8x128xf32>
    %336 = vector.broadcast %315 : vector<1x128xf32> to vector<8x128xf32>
    %337 = arith.addf %335, %336 : vector<8x128xf32>
    %c2_150 = arith.constant 2 : index
    %c0_151 = arith.constant 0 : index
    %c0_152 = arith.constant 0 : index
    %338 = vector.load %arg10[%c2_150, %c0_151, %c0_152] : memref<4x128x512xbf16, #tpu.memory_space<vmem>>, vector<1x128x512xbf16>
    %339 = vector.shape_cast %338 : vector<1x128x512xbf16> to vector<128x512xbf16>
    %340 = arith.truncf %337 : vector<8x128xf32> to vector<8x128xbf16>
    %cst_153 = arith.constant dense<0.000000e+00> : vector<8x512xf32>
    %341 = tpu.matmul %340, %339, %cst_153 {dimension_numbers = #tpu.dot_dimension_numbers<[1], [0], [0], [1], [0, 0, 1, 1], [], []>} : vector<8x128xbf16>, vector<128x512xbf16>, vector<8x512xf32> -> vector<8x512xf32>
    %c2_154 = arith.constant 2 : index
    %c0_155 = arith.constant 0 : index
    %c0_156 = arith.constant 0 : index
    %342 = vector.load %arg11[%c2_154, %c0_155, %c0_156] : memref<4x1x512xf32, #tpu.memory_space<vmem>>, vector<1x1x512xf32>
    %343 = vector.shape_cast %342 : vector<1x1x512xf32> to vector<1x512xf32>
    %344 = vector.broadcast %343 : vector<1x512xf32> to vector<8x512xf32>
    %345 = arith.addf %341, %344 : vector<8x512xf32>
    %cst_157 = arith.constant 0.000000e+00 : f32
    %346 = vector.broadcast %cst_157 : f32 to vector<8x512xf32>
    %347 = arith.maximumf %345, %346 : vector<8x512xf32>
    %c2_158 = arith.constant 2 : index
    %c0_159 = arith.constant 0 : index
    %c0_160 = arith.constant 0 : index
    %348 = vector.load %arg12[%c2_158, %c0_159, %c0_160] : memref<4x512x128xbf16, #tpu.memory_space<vmem>>, vector<1x512x128xbf16>
    %349 = vector.shape_cast %348 : vector<1x512x128xbf16> to vector<512x128xbf16>
    %350 = arith.truncf %347 : vector<8x512xf32> to vector<8x512xbf16>
    %cst_161 = arith.constant dense<0.000000e+00> : vector<8x128xf32>
    %351 = tpu.matmul %350, %349, %cst_161 {dimension_numbers = #tpu.dot_dimension_numbers<[1], [0], [0], [1], [0, 0, 1, 1], [], []>} : vector<8x512xbf16>, vector<512x128xbf16>, vector<8x128xf32> -> vector<8x128xf32>
    %c2_162 = arith.constant 2 : index
    %c0_163 = arith.constant 0 : index
    %c0_164 = arith.constant 0 : index
    %352 = vector.load %arg13[%c2_162, %c0_163, %c0_164] : memref<4x1x128xf32, #tpu.memory_space<vmem>>, vector<1x1x128xf32>
    %353 = vector.shape_cast %352 : vector<1x1x128xf32> to vector<1x128xf32>
    %354 = vector.broadcast %353 : vector<1x128xf32> to vector<8x128xf32>
    %355 = arith.addf %351, %354 : vector<8x128xf32>
    %356 = arith.addf %337, %355 : vector<8x128xf32>
    %c2_165 = arith.constant 2 : index
    %c0_166 = arith.constant 0 : index
    %c0_167 = arith.constant 0 : index
    %357 = vector.load %arg16[%c2_165, %c0_166, %c0_167] : memref<4x1x128xf32, #tpu.memory_space<vmem>>, vector<1x1x128xf32>
    %358 = vector.shape_cast %357 : vector<1x1x128xf32> to vector<1x128xf32>
    %c2_168 = arith.constant 2 : index
    %c0_169 = arith.constant 0 : index
    %c0_170 = arith.constant 0 : index
    %359 = vector.load %arg17[%c2_168, %c0_169, %c0_170] : memref<4x1x128xf32, #tpu.memory_space<vmem>>, vector<1x1x128xf32>
    %360 = vector.shape_cast %359 : vector<1x1x128xf32> to vector<1x128xf32>
    %cst_171 = arith.constant dense<0.000000e+00> : vector<8xf32>
    %361 = vector.multi_reduction <add>, %356, %cst_171 [1] : vector<8x128xf32> to vector<8xf32>
    %362 = vector.shape_cast %361 : vector<8xf32> to vector<8x1xf32>
    %cst_172 = arith.constant 1.280000e+02 : f32
    %363 = vector.broadcast %cst_172 : f32 to vector<8x1xf32>
    %364 = arith.divf %362, %363 : vector<8x1xf32>
    %365 = vector.broadcast %364 : vector<8x1xf32> to vector<8x128xf32>
    %366 = arith.subf %356, %365 : vector<8x128xf32>
    %367 = arith.mulf %366, %366 : vector<8x128xf32>
    %cst_173 = arith.constant dense<0.000000e+00> : vector<8xf32>
    %368 = vector.multi_reduction <add>, %367, %cst_173 [1] : vector<8x128xf32> to vector<8xf32>
    %369 = vector.shape_cast %368 : vector<8xf32> to vector<8x1xf32>
    %cst_174 = arith.constant 1.280000e+02 : f32
    %370 = vector.broadcast %cst_174 : f32 to vector<8x1xf32>
    %371 = arith.divf %369, %370 : vector<8x1xf32>
    %372 = vector.broadcast %364 : vector<8x1xf32> to vector<8x128xf32>
    %373 = arith.subf %356, %372 : vector<8x128xf32>
    %cst_175 = arith.constant 9.99999974E-6 : f32
    %374 = vector.broadcast %cst_175 : f32 to vector<8x1xf32>
    %375 = arith.addf %371, %374 : vector<8x1xf32>
    %376 = math.rsqrt %375 : vector<8x1xf32>
    %377 = vector.broadcast %376 : vector<8x1xf32> to vector<8x128xf32>
    %378 = arith.mulf %373, %377 : vector<8x128xf32>
    %379 = vector.broadcast %358 : vector<1x128xf32> to vector<8x128xf32>
    %380 = arith.mulf %378, %379 : vector<8x128xf32>
    %381 = vector.broadcast %360 : vector<1x128xf32> to vector<8x128xf32>
    %382 = arith.addf %380, %381 : vector<8x128xf32>
    %c3 = arith.constant 3 : index
    %c0_176 = arith.constant 0 : index
    %c0_177 = arith.constant 0 : index
    %383 = vector.load %arg6[%c3, %c0_176, %c0_177] : memref<4x128x384xbf16, #tpu.memory_space<vmem>>, vector<1x128x384xbf16>
    %384 = vector.shape_cast %383 : vector<1x128x384xbf16> to vector<128x384xbf16>
    %385 = arith.truncf %382 : vector<8x128xf32> to vector<8x128xbf16>
    %cst_178 = arith.constant dense<0.000000e+00> : vector<8x384xf32>
    %386 = tpu.matmul %385, %384, %cst_178 {dimension_numbers = #tpu.dot_dimension_numbers<[1], [0], [0], [1], [0, 0, 1, 1], [], []>} : vector<8x128xbf16>, vector<128x384xbf16>, vector<8x384xf32> -> vector<8x384xf32>
    %c3_179 = arith.constant 3 : index
    %c0_180 = arith.constant 0 : index
    %c0_181 = arith.constant 0 : index
    %387 = vector.load %arg7[%c3_179, %c0_180, %c0_181] : memref<4x1x384xf32, #tpu.memory_space<vmem>>, vector<1x1x384xf32>
    %388 = vector.shape_cast %387 : vector<1x1x384xf32> to vector<1x384xf32>
    %389 = vector.broadcast %388 : vector<1x384xf32> to vector<8x384xf32>
    %390 = arith.addf %386, %389 : vector<8x384xf32>
    %391 = vector.shape_cast %390 : vector<8x384xf32> to vector<1x8x384xf32>
    %392 = vector.extract_strided_slice %391 {offsets = [0, 0, 0], sizes = [1, 8, 128], strides = [1, 1, 1]} : vector<1x8x384xf32> to vector<1x8x128xf32>
    %393 = vector.extract_strided_slice %391 {offsets = [0, 0, 128], sizes = [1, 8, 128], strides = [1, 1, 1]} : vector<1x8x384xf32> to vector<1x8x128xf32>
    %394 = vector.extract_strided_slice %391 {offsets = [0, 0, 256], sizes = [1, 8, 128], strides = [1, 1, 1]} : vector<1x8x384xf32> to vector<1x8x128xf32>
    %395 = vector.shape_cast %392 : vector<1x8x128xf32> to vector<1x1x8x128xf32>
    %396 = vector.shape_cast %2 : vector<8x128xf32> to vector<1x8x1x128xf32>
    %397 = vector.broadcast %395 : vector<1x1x8x128xf32> to vector<1x8x8x128xf32>
    %398 = vector.broadcast %396 : vector<1x8x1x128xf32> to vector<1x8x8x128xf32>
    %399 = arith.mulf %397, %398 : vector<1x8x8x128xf32>
    %400 = vector.shape_cast %399 : vector<1x8x8x128xf32> to vector<1x64x128xf32>
    %401 = arith.truncf %400 : vector<1x64x128xf32> to vector<1x64x128xbf16>
    %402 = arith.truncf %393 : vector<1x8x128xf32> to vector<1x8x128xbf16>
    "tpu.trace_start"() <{level = 10 : i32, message = "brd,bjd->brj"}> : () -> ()
    %cst_182 = arith.constant dense<0.000000e+00> : vector<1x64x8xf32>
    %403 = tpu.matmul %401, %402, %cst_182 {dimension_numbers = #tpu.dot_dimension_numbers<[2], [2], [1], [1], [0, 0, 0, 1, 1, 1], [0], [0]>} : vector<1x64x128xbf16>, vector<1x8x128xbf16>, vector<1x64x8xf32> -> vector<1x64x8xf32>
    "tpu.trace_stop"() : () -> ()
    %cst_183 = arith.constant dense<0xFF800000> : vector<1x64xf32>
    %404 = vector.multi_reduction <maximumf>, %403, %cst_183 [2] : vector<1x64x8xf32> to vector<1x64xf32>
    %405 = vector.shape_cast %404 : vector<1x64xf32> to vector<1x64x1xf32>
    %406 = vector.broadcast %405 : vector<1x64x1xf32> to vector<1x64x8xf32>
    %407 = arith.subf %403, %406 : vector<1x64x8xf32>
    %408 = math.exp %407 : vector<1x64x8xf32>
    %cst_184 = arith.constant dense<0.000000e+00> : vector<1x64xf32>
    %409 = vector.multi_reduction <add>, %408, %cst_184 [2] : vector<1x64x8xf32> to vector<1x64xf32>
    %410 = vector.shape_cast %409 : vector<1x64xf32> to vector<1x64x1xf32>
    %411 = tpu.reciprocal %410 {approx = true} : vector<1x64x1xf32> -> vector<1x64x1xf32>
    %412 = vector.broadcast %411 : vector<1x64x1xf32> to vector<1x64x8xf32>
    %413 = arith.mulf %408, %412 : vector<1x64x8xf32>
    %414 = vector.shape_cast %394 : vector<1x8x128xf32> to vector<1x1x8x128xf32>
    %415 = vector.shape_cast %0 : vector<8x128xf32> to vector<1x8x1x128xf32>
    %416 = vector.broadcast %414 : vector<1x1x8x128xf32> to vector<1x8x8x128xf32>
    %417 = vector.broadcast %415 : vector<1x8x1x128xf32> to vector<1x8x8x128xf32>
    %418 = arith.mulf %416, %417 : vector<1x8x8x128xf32>
    %419 = vector.shape_cast %418 : vector<1x8x8x128xf32> to vector<8x8x128xf32>
    %420 = vector.shape_cast %413 : vector<1x64x8xf32> to vector<8x8x8xf32>
    %421 = arith.truncf %420 : vector<8x8x8xf32> to vector<8x8x8xbf16>
    %422 = arith.truncf %419 : vector<8x8x128xf32> to vector<8x8x128xbf16>
    "tpu.trace_start"() <{level = 10 : i32, message = "gij,gjd->gid"}> : () -> ()
    %cst_185 = arith.constant dense<0.000000e+00> : vector<8x8x128xf32>
    %423 = tpu.matmul %421, %422, %cst_185 {dimension_numbers = #tpu.dot_dimension_numbers<[2], [1], [1], [2], [0, 0, 0, 1, 1, 2], [0], [0]>} : vector<8x8x8xbf16>, vector<8x8x128xbf16>, vector<8x8x128xf32> -> vector<8x8x128xf32>
    "tpu.trace_stop"() : () -> ()
    %424 = vector.shape_cast %423 : vector<8x8x128xf32> to vector<1x8x8x128xf32>
    %cst_186 = arith.constant dense<0.000000e+00> : vector<1x8x128xf32>
    %425 = vector.multi_reduction <add>, %424, %cst_186 [1] : vector<1x8x8x128xf32> to vector<1x8x128xf32>
    %426 = vector.shape_cast %425 : vector<1x8x128xf32> to vector<8x128xf32>
    %c3_187 = arith.constant 3 : index
    %c0_188 = arith.constant 0 : index
    %c0_189 = arith.constant 0 : index
    %427 = vector.load %arg8[%c3_187, %c0_188, %c0_189] : memref<4x128x128xbf16, #tpu.memory_space<vmem>>, vector<1x128x128xbf16>
    %428 = vector.shape_cast %427 : vector<1x128x128xbf16> to vector<128x128xbf16>
    %429 = arith.truncf %426 : vector<8x128xf32> to vector<8x128xbf16>
    %cst_190 = arith.constant dense<0.000000e+00> : vector<8x128xf32>
    %430 = tpu.matmul %429, %428, %cst_190 {dimension_numbers = #tpu.dot_dimension_numbers<[1], [0], [0], [1], [0, 0, 1, 1], [], []>} : vector<8x128xbf16>, vector<128x128xbf16>, vector<8x128xf32> -> vector<8x128xf32>
    %c3_191 = arith.constant 3 : index
    %c0_192 = arith.constant 0 : index
    %c0_193 = arith.constant 0 : index
    %431 = vector.load %arg9[%c3_191, %c0_192, %c0_193] : memref<4x1x128xf32, #tpu.memory_space<vmem>>, vector<1x1x128xf32>
    %432 = vector.shape_cast %431 : vector<1x1x128xf32> to vector<1x128xf32>
    %433 = vector.broadcast %432 : vector<1x128xf32> to vector<8x128xf32>
    %434 = arith.addf %430, %433 : vector<8x128xf32>
    %435 = arith.addf %382, %434 : vector<8x128xf32>
    %c3_194 = arith.constant 3 : index
    %c0_195 = arith.constant 0 : index
    %c0_196 = arith.constant 0 : index
    %436 = vector.load %arg14[%c3_194, %c0_195, %c0_196] : memref<4x1x128xf32, #tpu.memory_space<vmem>>, vector<1x1x128xf32>
    %437 = vector.shape_cast %436 : vector<1x1x128xf32> to vector<1x128xf32>
    %c3_197 = arith.constant 3 : index
    %c0_198 = arith.constant 0 : index
    %c0_199 = arith.constant 0 : index
    %438 = vector.load %arg15[%c3_197, %c0_198, %c0_199] : memref<4x1x128xf32, #tpu.memory_space<vmem>>, vector<1x1x128xf32>
    %439 = vector.shape_cast %438 : vector<1x1x128xf32> to vector<1x128xf32>
    %cst_200 = arith.constant dense<0.000000e+00> : vector<8xf32>
    %440 = vector.multi_reduction <add>, %435, %cst_200 [1] : vector<8x128xf32> to vector<8xf32>
    %441 = vector.shape_cast %440 : vector<8xf32> to vector<8x1xf32>
    %cst_201 = arith.constant 1.280000e+02 : f32
    %442 = vector.broadcast %cst_201 : f32 to vector<8x1xf32>
    %443 = arith.divf %441, %442 : vector<8x1xf32>
    %444 = vector.broadcast %443 : vector<8x1xf32> to vector<8x128xf32>
    %445 = arith.subf %435, %444 : vector<8x128xf32>
    %446 = arith.mulf %445, %445 : vector<8x128xf32>
    %cst_202 = arith.constant dense<0.000000e+00> : vector<8xf32>
    %447 = vector.multi_reduction <add>, %446, %cst_202 [1] : vector<8x128xf32> to vector<8xf32>
    %448 = vector.shape_cast %447 : vector<8xf32> to vector<8x1xf32>
    %cst_203 = arith.constant 1.280000e+02 : f32
    %449 = vector.broadcast %cst_203 : f32 to vector<8x1xf32>
    %450 = arith.divf %448, %449 : vector<8x1xf32>
    %451 = vector.broadcast %443 : vector<8x1xf32> to vector<8x128xf32>
    %452 = arith.subf %435, %451 : vector<8x128xf32>
    %cst_204 = arith.constant 9.99999974E-6 : f32
    %453 = vector.broadcast %cst_204 : f32 to vector<8x1xf32>
    %454 = arith.addf %450, %453 : vector<8x1xf32>
    %455 = math.rsqrt %454 : vector<8x1xf32>
    %456 = vector.broadcast %455 : vector<8x1xf32> to vector<8x128xf32>
    %457 = arith.mulf %452, %456 : vector<8x128xf32>
    %458 = vector.broadcast %437 : vector<1x128xf32> to vector<8x128xf32>
    %459 = arith.mulf %457, %458 : vector<8x128xf32>
    %460 = vector.broadcast %439 : vector<1x128xf32> to vector<8x128xf32>
    %461 = arith.addf %459, %460 : vector<8x128xf32>
    %c3_205 = arith.constant 3 : index
    %c0_206 = arith.constant 0 : index
    %c0_207 = arith.constant 0 : index
    %462 = vector.load %arg10[%c3_205, %c0_206, %c0_207] : memref<4x128x512xbf16, #tpu.memory_space<vmem>>, vector<1x128x512xbf16>
    %463 = vector.shape_cast %462 : vector<1x128x512xbf16> to vector<128x512xbf16>
    %464 = arith.truncf %461 : vector<8x128xf32> to vector<8x128xbf16>
    %cst_208 = arith.constant dense<0.000000e+00> : vector<8x512xf32>
    %465 = tpu.matmul %464, %463, %cst_208 {dimension_numbers = #tpu.dot_dimension_numbers<[1], [0], [0], [1], [0, 0, 1, 1], [], []>} : vector<8x128xbf16>, vector<128x512xbf16>, vector<8x512xf32> -> vector<8x512xf32>
    %c3_209 = arith.constant 3 : index
    %c0_210 = arith.constant 0 : index
    %c0_211 = arith.constant 0 : index
    %466 = vector.load %arg11[%c3_209, %c0_210, %c0_211] : memref<4x1x512xf32, #tpu.memory_space<vmem>>, vector<1x1x512xf32>
    %467 = vector.shape_cast %466 : vector<1x1x512xf32> to vector<1x512xf32>
    %468 = vector.broadcast %467 : vector<1x512xf32> to vector<8x512xf32>
    %469 = arith.addf %465, %468 : vector<8x512xf32>
    %cst_212 = arith.constant 0.000000e+00 : f32
    %470 = vector.broadcast %cst_212 : f32 to vector<8x512xf32>
    %471 = arith.maximumf %469, %470 : vector<8x512xf32>
    %c3_213 = arith.constant 3 : index
    %c0_214 = arith.constant 0 : index
    %c0_215 = arith.constant 0 : index
    %472 = vector.load %arg12[%c3_213, %c0_214, %c0_215] : memref<4x512x128xbf16, #tpu.memory_space<vmem>>, vector<1x512x128xbf16>
    %473 = vector.shape_cast %472 : vector<1x512x128xbf16> to vector<512x128xbf16>
    %474 = arith.truncf %471 : vector<8x512xf32> to vector<8x512xbf16>
    %cst_216 = arith.constant dense<0.000000e+00> : vector<8x128xf32>
    %475 = tpu.matmul %474, %473, %cst_216 {dimension_numbers = #tpu.dot_dimension_numbers<[1], [0], [0], [1], [0, 0, 1, 1], [], []>} : vector<8x512xbf16>, vector<512x128xbf16>, vector<8x128xf32> -> vector<8x128xf32>
    %c3_217 = arith.constant 3 : index
    %c0_218 = arith.constant 0 : index
    %c0_219 = arith.constant 0 : index
    %476 = vector.load %arg13[%c3_217, %c0_218, %c0_219] : memref<4x1x128xf32, #tpu.memory_space<vmem>>, vector<1x1x128xf32>
    %477 = vector.shape_cast %476 : vector<1x1x128xf32> to vector<1x128xf32>
    %478 = vector.broadcast %477 : vector<1x128xf32> to vector<8x128xf32>
    %479 = arith.addf %475, %478 : vector<8x128xf32>
    %480 = arith.addf %461, %479 : vector<8x128xf32>
    %c3_220 = arith.constant 3 : index
    %c0_221 = arith.constant 0 : index
    %c0_222 = arith.constant 0 : index
    %481 = vector.load %arg16[%c3_220, %c0_221, %c0_222] : memref<4x1x128xf32, #tpu.memory_space<vmem>>, vector<1x1x128xf32>
    %482 = vector.shape_cast %481 : vector<1x1x128xf32> to vector<1x128xf32>
    %c3_223 = arith.constant 3 : index
    %c0_224 = arith.constant 0 : index
    %c0_225 = arith.constant 0 : index
    %483 = vector.load %arg17[%c3_223, %c0_224, %c0_225] : memref<4x1x128xf32, #tpu.memory_space<vmem>>, vector<1x1x128xf32>
    %484 = vector.shape_cast %483 : vector<1x1x128xf32> to vector<1x128xf32>
    %cst_226 = arith.constant dense<0.000000e+00> : vector<8xf32>
    %485 = vector.multi_reduction <add>, %480, %cst_226 [1] : vector<8x128xf32> to vector<8xf32>
    %486 = vector.shape_cast %485 : vector<8xf32> to vector<8x1xf32>
    %cst_227 = arith.constant 1.280000e+02 : f32
    %487 = vector.broadcast %cst_227 : f32 to vector<8x1xf32>
    %488 = arith.divf %486, %487 : vector<8x1xf32>
    %489 = vector.broadcast %488 : vector<8x1xf32> to vector<8x128xf32>
    %490 = arith.subf %480, %489 : vector<8x128xf32>
    %491 = arith.mulf %490, %490 : vector<8x128xf32>
    %cst_228 = arith.constant dense<0.000000e+00> : vector<8xf32>
    %492 = vector.multi_reduction <add>, %491, %cst_228 [1] : vector<8x128xf32> to vector<8xf32>
    %493 = vector.shape_cast %492 : vector<8xf32> to vector<8x1xf32>
    %cst_229 = arith.constant 1.280000e+02 : f32
    %494 = vector.broadcast %cst_229 : f32 to vector<8x1xf32>
    %495 = arith.divf %493, %494 : vector<8x1xf32>
    %496 = vector.broadcast %488 : vector<8x1xf32> to vector<8x128xf32>
    %497 = arith.subf %480, %496 : vector<8x128xf32>
    %cst_230 = arith.constant 9.99999974E-6 : f32
    %498 = vector.broadcast %cst_230 : f32 to vector<8x1xf32>
    %499 = arith.addf %495, %498 : vector<8x1xf32>
    %500 = math.rsqrt %499 : vector<8x1xf32>
    %501 = vector.broadcast %500 : vector<8x1xf32> to vector<8x128xf32>
    %502 = arith.mulf %497, %501 : vector<8x128xf32>
    %503 = vector.broadcast %482 : vector<1x128xf32> to vector<8x128xf32>
    %504 = arith.mulf %502, %503 : vector<8x128xf32>
    %505 = vector.broadcast %484 : vector<1x128xf32> to vector<8x128xf32>
    %506 = arith.addf %504, %505 : vector<8x128xf32>
    %507 = vector.shape_cast %506 : vector<8x128xf32> to vector<1x8x128xf32>
    %cst_231 = arith.constant dense<0.000000e+00> : vector<1x128xf32>
    %508 = vector.multi_reduction <add>, %507, %cst_231 [1] : vector<1x8x128xf32> to vector<1x128xf32>
    %cst_232 = arith.constant 8.000000e+00 : f32
    %509 = vector.broadcast %cst_232 : f32 to vector<1x128xf32>
    %510 = arith.divf %508, %509 : vector<1x128xf32>
    %c0_233 = arith.constant 0 : index
    %c0_234 = arith.constant 0 : index
    %511 = vector.load %arg18[%c0_233, %c0_234] : memref<128x256xbf16, #tpu.memory_space<vmem>>, vector<128x256xbf16>
    %512 = arith.truncf %510 : vector<1x128xf32> to vector<1x128xbf16>
    %cst_235 = arith.constant dense<0.000000e+00> : vector<1x256xf32>
    %513 = tpu.matmul %512, %511, %cst_235 {dimension_numbers = #tpu.dot_dimension_numbers<[1], [0], [0], [1], [0, 0, 1, 1], [], []>} : vector<1x128xbf16>, vector<128x256xbf16>, vector<1x256xf32> -> vector<1x256xf32>
    %c0_236 = arith.constant 0 : index
    %c0_237 = arith.constant 0 : index
    %514 = vector.load %arg19[%c0_236, %c0_237] : memref<1x256xf32, #tpu.memory_space<vmem>>, vector<1x256xf32>
    %515 = arith.addf %513, %514 : vector<1x256xf32>
    %cst_238 = arith.constant 0.000000e+00 : f32
    %516 = vector.broadcast %cst_238 : f32 to vector<1x256xf32>
    %517 = arith.maximumf %515, %516 : vector<1x256xf32>
    %c0_239 = arith.constant 0 : index
    %c0_240 = arith.constant 0 : index
    %518 = vector.load %arg20[%c0_239, %c0_240] : memref<256x128xbf16, #tpu.memory_space<vmem>>, vector<256x128xbf16>
    %519 = arith.truncf %517 : vector<1x256xf32> to vector<1x256xbf16>
    %cst_241 = arith.constant dense<0.000000e+00> : vector<1x128xf32>
    %520 = tpu.matmul %519, %518, %cst_241 {dimension_numbers = #tpu.dot_dimension_numbers<[1], [0], [0], [1], [0, 0, 1, 1], [], []>} : vector<1x256xbf16>, vector<256x128xbf16>, vector<1x128xf32> -> vector<1x128xf32>
    %c0_242 = arith.constant 0 : index
    %c0_243 = arith.constant 0 : index
    %521 = vector.load %arg21[%c0_242, %c0_243] : memref<1x128xf32, #tpu.memory_space<vmem>>, vector<1x128xf32>
    %522 = arith.addf %520, %521 : vector<1x128xf32>
    %cst_244 = arith.constant 0.000000e+00 : f32
    %523 = vector.broadcast %cst_244 : f32 to vector<1x128xf32>
    %524 = arith.maximumf %522, %523 : vector<1x128xf32>
    %c0_245 = arith.constant 0 : index
    %c0_246 = arith.constant 0 : index
    %525 = vector.load %arg22[%c0_245, %c0_246] : memref<128x128xbf16, #tpu.memory_space<vmem>>, vector<128x128xbf16>
    %526 = arith.truncf %524 : vector<1x128xf32> to vector<1x128xbf16>
    %cst_247 = arith.constant dense<0.000000e+00> : vector<1x128xf32>
    %527 = tpu.matmul %526, %525, %cst_247 {dimension_numbers = #tpu.dot_dimension_numbers<[1], [0], [0], [1], [0, 0, 1, 1], [], []>} : vector<1x128xbf16>, vector<128x128xbf16>, vector<1x128xf32> -> vector<1x128xf32>
    %c0_248 = arith.constant 0 : index
    %c0_249 = arith.constant 0 : index
    %528 = vector.load %arg23[%c0_248, %c0_249] : memref<1x128xf32, #tpu.memory_space<vmem>>, vector<1x128xf32>
    %529 = arith.addf %527, %528 : vector<1x128xf32>
    %c0_250 = arith.constant 0 : index
    %c0_251 = arith.constant 0 : index
    %c0_252 = arith.constant 0 : index
    %530 = vector.load %arg24[%c0_250, %c0_251, %c0_252] : memref<1x1x128xf32, #tpu.memory_space<vmem>>, vector<1x1x128xf32>
    %531 = vector.shape_cast %530 : vector<1x1x128xf32> to vector<1x128xf32>
    %532 = vector.shape_cast %529 : vector<1x128xf32> to vector<1x1x128xf32>
    tpu.vector_store %arg24[%c0_250, %c0_251, %c0_252], %532 {strides = array<i32>} : memref<1x1x128xf32, #tpu.memory_space<vmem>>, vector<1x1x128xf32>,
    return
  }
  func.func @transform_0(%arg0: i32) -> (i32, i32) {
    %c0_i32 = arith.constant 0 : i32
    %c0_i32_0 = arith.constant 0 : i32
    return %arg0, %c0_i32 : i32, i32
  }
  func.func @transform_1(%arg0: i32) -> (i32, i32) {
    %c0_i32 = arith.constant 0 : i32
    %c0_i32_0 = arith.constant 0 : i32
    %c0_i32_1 = arith.constant 0 : i32
    return %c0_i32, %c0_i32_0 : i32, i32
  }
  func.func @transform_2(%arg0: i32) -> (i32, i32) {
    %c0_i32 = arith.constant 0 : i32
    %c0_i32_0 = arith.constant 0 : i32
    %c0_i32_1 = arith.constant 0 : i32
    return %c0_i32, %c0_i32_0 : i32, i32
  }
  func.func @transform_3(%arg0: i32) -> (i32, i32) {
    %c0_i32 = arith.constant 0 : i32
    %c0_i32_0 = arith.constant 0 : i32
    %c0_i32_1 = arith.constant 0 : i32
    return %c0_i32, %c0_i32_0 : i32, i32
  }
  func.func @transform_4(%arg0: i32) -> (i32, i32) {
    %c0_i32 = arith.constant 0 : i32
    %c0_i32_0 = arith.constant 0 : i32
    %c0_i32_1 = arith.constant 0 : i32
    return %c0_i32, %c0_i32_0 : i32, i32
  }
  func.func @transform_5(%arg0: i32) -> (i32, i32, i32) {
    %c0_i32 = arith.constant 0 : i32
    %c0_i32_0 = arith.constant 0 : i32
    %c0_i32_1 = arith.constant 0 : i32
    %c0_i32_2 = arith.constant 0 : i32
    return %c0_i32, %c0_i32_0, %c0_i32_1 : i32, i32, i32
  }
  func.func @transform_6(%arg0: i32) -> (i32, i32, i32) {
    %c0_i32 = arith.constant 0 : i32
    %c0_i32_0 = arith.constant 0 : i32
    %c0_i32_1 = arith.constant 0 : i32
    %c0_i32_2 = arith.constant 0 : i32
    return %c0_i32, %c0_i32_0, %c0_i32_1 : i32, i32, i32
  }
  func.func @transform_7(%arg0: i32) -> (i32, i32, i32) {
    %c0_i32 = arith.constant 0 : i32
    %c0_i32_0 = arith.constant 0 : i32
    %c0_i32_1 = arith.constant 0 : i32
    %c0_i32_2 = arith.constant 0 : i32
    return %c0_i32, %c0_i32_0, %c0_i32_1 : i32, i32, i32
  }
  func.func @transform_8(%arg0: i32) -> (i32, i32, i32) {
    %c0_i32 = arith.constant 0 : i32
    %c0_i32_0 = arith.constant 0 : i32
    %c0_i32_1 = arith.constant 0 : i32
    %c0_i32_2 = arith.constant 0 : i32
    return %c0_i32, %c0_i32_0, %c0_i32_1 : i32, i32, i32
  }
  func.func @transform_9(%arg0: i32) -> (i32, i32, i32) {
    %c0_i32 = arith.constant 0 : i32
    %c0_i32_0 = arith.constant 0 : i32
    %c0_i32_1 = arith.constant 0 : i32
    %c0_i32_2 = arith.constant 0 : i32
    return %c0_i32, %c0_i32_0, %c0_i32_1 : i32, i32, i32
  }
  func.func @transform_10(%arg0: i32) -> (i32, i32, i32) {
    %c0_i32 = arith.constant 0 : i32
    %c0_i32_0 = arith.constant 0 : i32
    %c0_i32_1 = arith.constant 0 : i32
    %c0_i32_2 = arith.constant 0 : i32
    return %c0_i32, %c0_i32_0, %c0_i32_1 : i32, i32, i32
  }
  func.func @transform_11(%arg0: i32) -> (i32, i32, i32) {
    %c0_i32 = arith.constant 0 : i32
    %c0_i32_0 = arith.constant 0 : i32
    %c0_i32_1 = arith.constant 0 : i32
    %c0_i32_2 = arith.constant 0 : i32
    return %c0_i32, %c0_i32_0, %c0_i32_1 : i32, i32, i32
  }
  func.func @transform_12(%arg0: i32) -> (i32, i32, i32) {
    %c0_i32 = arith.constant 0 : i32
    %c0_i32_0 = arith.constant 0 : i32
    %c0_i32_1 = arith.constant 0 : i32
    %c0_i32_2 = arith.constant 0 : i32
    return %c0_i32, %c0_i32_0, %c0_i32_1 : i32, i32, i32
  }
  func.func @transform_13(%arg0: i32) -> (i32, i32, i32) {
    %c0_i32 = arith.constant 0 : i32
    %c0_i32_0 = arith.constant 0 : i32
    %c0_i32_1 = arith.constant 0 : i32
    %c0_i32_2 = arith.constant 0 : i32
    return %c0_i32, %c0_i32_0, %c0_i32_1 : i32, i32, i32
  }
  func.func @transform_14(%arg0: i32) -> (i32, i32, i32) {
    %c0_i32 = arith.constant 0 : i32
    %c0_i32_0 = arith.constant 0 : i32
    %c0_i32_1 = arith.constant 0 : i32
    %c0_i32_2 = arith.constant 0 : i32
    return %c0_i32, %c0_i32_0, %c0_i32_1 : i32, i32, i32
  }
  func.func @transform_15(%arg0: i32) -> (i32, i32, i32) {
    %c0_i32 = arith.constant 0 : i32
    %c0_i32_0 = arith.constant 0 : i32
    %c0_i32_1 = arith.constant 0 : i32
    %c0_i32_2 = arith.constant 0 : i32
    return %c0_i32, %c0_i32_0, %c0_i32_1 : i32, i32, i32
  }
  func.func @transform_16(%arg0: i32) -> (i32, i32, i32) {
    %c0_i32 = arith.constant 0 : i32
    %c0_i32_0 = arith.constant 0 : i32
    %c0_i32_1 = arith.constant 0 : i32
    %c0_i32_2 = arith.constant 0 : i32
    return %c0_i32, %c0_i32_0, %c0_i32_1 : i32, i32, i32
  }
  func.func @transform_17(%arg0: i32) -> (i32, i32) {
    %c0_i32 = arith.constant 0 : i32
    %c0_i32_0 = arith.constant 0 : i32
    %c0_i32_1 = arith.constant 0 : i32
    return %c0_i32, %c0_i32_0 : i32, i32
  }
  func.func @transform_18(%arg0: i32) -> (i32, i32) {
    %c0_i32 = arith.constant 0 : i32
    %c0_i32_0 = arith.constant 0 : i32
    %c0_i32_1 = arith.constant 0 : i32
    return %c0_i32, %c0_i32_0 : i32, i32
  }
  func.func @transform_19(%arg0: i32) -> (i32, i32) {
    %c0_i32 = arith.constant 0 : i32
    %c0_i32_0 = arith.constant 0 : i32
    %c0_i32_1 = arith.constant 0 : i32
    return %c0_i32, %c0_i32_0 : i32, i32
  }
  func.func @transform_20(%arg0: i32) -> (i32, i32) {
    %c0_i32 = arith.constant 0 : i32
    %c0_i32_0 = arith.constant 0 : i32
    %c0_i32_1 = arith.constant 0 : i32
    return %c0_i32, %c0_i32_0 : i32, i32
  }
  func.func @transform_21(%arg0: i32) -> (i32, i32) {
    %c0_i32 = arith.constant 0 : i32
    %c0_i32_0 = arith.constant 0 : i32
    %c0_i32_1 = arith.constant 0 : i32
    return %c0_i32, %c0_i32_0 : i32, i32
  }
  func.func @transform_22(%arg0: i32) -> (i32, i32) {
    %c0_i32 = arith.constant 0 : i32
    %c0_i32_0 = arith.constant 0 : i32
    %c0_i32_1 = arith.constant 0 : i32
    return %c0_i32, %c0_i32_0 : i32, i32
  }
  func.func @transform_23(%arg0: i32) -> (i32, i32, i32) {
    %c0_i32 = arith.constant 0 : i32
    %c0_i32_0 = arith.constant 0 : i32
    %c0_i32_1 = arith.constant 0 : i32
    return %arg0, %c0_i32, %c0_i32_0 : i32, i32, i32
  }
}

</mosaic_0001>

<llo_original>
// kernel: transformer_predictor_forward.1
$region0: #{transformer_predictor_forward.1}
  #allocation0 [shape = 'u32[]', space=smem, size = 0x4, offset = 0x4, fixed_abs, tag = 'smem constant byte address 0x4 - core index']
  #allocation1 [shape = 'u32[144,128]{1,0:T(1,128)}', space=vmem, size = 0x12000, scoped, tag = 'internal scratch']
  %s0 = inlined_call_operand.vmem [shape: bf16[16,128], index: 0, kind: input, shape index: {}]
  %s1 = inlined_call_operand.vmem [shape: f32[8,128], index: 1, kind: input, shape index: {}]
  %s2 = inlined_call_operand.vmem [shape: f32[8,128], index: 2, kind: input, shape index: {}]
  %s3 = inlined_call_operand.vmem [shape: bf16[128,128], index: 3, kind: input, shape index: {}]
  %s4 = inlined_call_operand.vmem [shape: f32[1,128], index: 4, kind: input, shape index: {}]
  %s5 = inlined_call_operand.vmem [shape: bf16[4,128,384], index: 5, kind: input, shape index: {}]
  %s6 = inlined_call_operand.vmem [shape: f32[4,1,384], index: 6, kind: input, shape index: {}]
  %s7 = inlined_call_operand.vmem [shape: bf16[4,128,128], index: 7, kind: input, shape index: {}]
  %s8 = inlined_call_operand.vmem [shape: f32[4,1,128], index: 8, kind: input, shape index: {}]
  %s9 = inlined_call_operand.vmem [shape: bf16[4,128,512], index: 9, kind: input, shape index: {}]
  %s10 = inlined_call_operand.vmem [shape: f32[4,1,512], index: 10, kind: input, shape index: {}]
  %s11 = inlined_call_operand.vmem [shape: bf16[4,512,128], index: 11, kind: input, shape index: {}]
  %s12 = inlined_call_operand.vmem [shape: f32[4,1,128], index: 12, kind: input, shape index: {}]
  %s13 = inlined_call_operand.vmem [shape: f32[4,1,128], index: 13, kind: input, shape index: {}]
  %s14 = inlined_call_operand.vmem [shape: f32[4,1,128], index: 14, kind: input, shape index: {}]
  %s15 = inlined_call_operand.vmem [shape: f32[4,1,128], index: 15, kind: input, shape index: {}]
  %s16 = inlined_call_operand.vmem [shape: f32[4,1,128], index: 16, kind: input, shape index: {}]
  %s17 = inlined_call_operand.vmem [shape: bf16[128,256], index: 17, kind: input, shape index: {}]
  %s18 = inlined_call_operand.vmem [shape: f32[1,256], index: 18, kind: input, shape index: {}]
  %s19 = inlined_call_operand.vmem [shape: bf16[256,128], index: 19, kind: input, shape index: {}]
  %s20 = inlined_call_operand.vmem [shape: f32[1,128], index: 20, kind: input, shape index: {}]
  %s21 = inlined_call_operand.vmem [shape: bf16[128,128], index: 21, kind: input, shape index: {}]
  %s22 = inlined_call_operand.vmem [shape: f32[1,128], index: 22, kind: input, shape index: {}]
  %s23 = inlined_call_operand.hbm [shape: f32[2,1,128], index: 23, kind: output, shape index: {}]
  %s24 = sld [smem:[#allocation0]]
  $region125: #{transformer_predictor_forward.1} parent=0
    _
  %s26 = ssub.s32 1, %s24
  %s27 = scalar_select 0, %s26, %s24
  $region1: #{transformer_predictor_forward.1} parent=0
    #allocation2 [shape = 'u8[1024]{0}', space=vmem, size = 0x400, scoped, tag = 'output window, operand 0']
    #allocation3 [shape = 's32[2]{0}', space=sflag, size = 0x8, scoped, tag = 'scoped memory for transformer_predictor_forward.1']
    %28 = vsyncpa [#allocation3], 0
    %s29 = scalar_lea.sflag [#allocation3], 1
    %30 = vsyncpa %s29, 0
    loop: start=0, step=1, limit=4
    $region2: #{transformer_predictor_forward.1} parent=1 // loop_pre_header
      _
    $region3: #{transformer_predictor_forward.1} parent=1 // loop_header
      %s32 = sphi 0, %s36
      %p33 = scmp.ge.s32.totalorder %s32, 4
      %s42 = sphi 0, %s44
      %s45 = sphi 0, %s42
      %s46 = sphi 0, %s45
      %s62 = sphi 0, %s46
      %s66 = sphi 0, %s66
      %s68 = sphi 0, %s66
      %s69 = sphi 0, %s68
      %s83 = sphi 0, %s69
      %s87 = sphi 0, %s87
      %s89 = sphi 0, %s87
      %s90 = sphi 0, %s89
      %s104 = sphi 0, %s90
      %s108 = sphi 0, %s108
      %s110 = sphi 0, %s108
      %s111 = sphi 0, %s110
      %s125 = sphi 0, %s111
      %s129 = sphi 0, %s129
      %s131 = sphi 0, %s129
      %s132 = sphi 0, %s131
      %s146 = sphi 0, %s132
      %s150 = sphi 0, %s150
      %s152 = sphi 0, %s150
      %s153 = sphi 0, %s152
      %s167 = sphi 0, %s153
      %s171 = sphi 0, %s171
      %s173 = sphi 0, %s171
      %s174 = sphi 0, %s173
      %s188 = sphi 0, %s174
      %s192 = sphi 0, %s192
      %s194 = sphi 0, %s192
      %s195 = sphi 0, %s194
      %s209 = sphi 0, %s195
      %s213 = sphi 0, %s213
      %s215 = sphi 0, %s213
      %s216 = sphi 0, %s215
      %s230 = sphi 0, %s216
      %s234 = sphi 0, %s234
      %s236 = sphi 0, %s234
      %s237 = sphi 0, %s236
      %s251 = sphi 0, %s237
      %s255 = sphi 0, %s255
      %s257 = sphi 0, %s255
      %s258 = sphi 0, %s257
      %s272 = sphi 0, %s258
      %s276 = sphi 0, %s276
      %s278 = sphi 0, %s276
      %s279 = sphi 0, %s278
      %s293 = sphi 0, %s279
      %s297 = sphi 0, %s297
      %s299 = sphi 0, %s297
      %s300 = sphi 0, %s299
      %s314 = sphi 0, %s300
      %s318 = sphi 0, %s318
      %s320 = sphi 0, %s318
      %s321 = sphi 0, %s320
      %s335 = sphi 0, %s321
      %s339 = sphi 0, %s339
      %s341 = sphi 0, %s339
      %s342 = sphi 0, %s341
      %s356 = sphi 0, %s342
      %s360 = sphi 0, %s360
      %s362 = sphi 0, %s360
      %s363 = sphi 0, %s362
      %s377 = sphi 0, %s363
      %s381 = sphi 0, %s381
      %s383 = sphi 0, %s381
      %s384 = sphi 0, %s383
      %s398 = sphi 0, %s384
      %s402 = sphi 0, %s402
      %s404 = sphi 0, %s402
      %s405 = sphi 0, %s404
      %s419 = sphi 0, %s405
      %s423 = sphi 0, %s423
      %s425 = sphi 0, %s423
      %s426 = sphi 0, %s425
      %s440 = sphi 0, %s426
      %s444 = sphi 0, %s444
      %s446 = sphi 0, %s444
      %s447 = sphi 0, %s446
      %s461 = sphi 0, %s447
      %s465 = sphi 0, %s465
      %s467 = sphi 0, %s465
      %s468 = sphi 0, %s467
      %s482 = sphi 0, %s468
      %s486 = sphi 0, %s486
      %s488 = sphi 0, %s486
      %s489 = sphi 0, %s488
      %s503 = sphi 0, %s489
      %s507 = sphi 0, %s507
      %s509 = sphi 0, %s507
      %s510 = sphi 0, %s509
      %s524 = sphi 0, %s510
      %s530 = sphi 0, %s532
      %s533 = sphi 0, %s530
      %s534 = sphi 0, %s533
      %s550 = sphi 0, %s534
    $region4: #{transformer_predictor_forward.1} parent=1 // loop_header_branch
      %35 = sbr.rel (%p33) target = $region8
    $region5: #{transformer_predictor_forward.1} parent=1 // loop_body
      %s37 = ssub.s32 %s32, 1
      %s38 = ssub.s32 %s32, 2
      %s39 = sadd.s32 %s32, 1
      %s40 = ssub.s32 %s32, %s39
      %p41 = scmp.eq.s32.totalorder %s40, 0
      %s43 = sadd.s32 %s42, 1
      %s44 = scalar_select %p41, %s42, %s43
      %p47 = pneg %p41
      %p48 = scmp.eq.s32.totalorder %s32, 1
      %p49 = por %p47, %p48
      %p50 = scmp.ne.s32.totalorder %s42, %s45
      %p51 = scmp.eq.s32.totalorder %s32, 0
      %p52 = por %p50, %p51
      %p53 = scmp.ne.s32.totalorder %s42, %s45
      %p54 = scmp.eq.s32.totalorder %s37, 1
      %p55 = por %p53, %p54
      %p56 = scmp.ne.s32.totalorder %s45, %s46
      %p57 = scmp.eq.s32.totalorder %s37, 0
      %p58 = por %p56, %p57
      %p59 = scmp.ne.s32.totalorder %s45, %s46
      %p60 = scmp.eq.s32.totalorder %s38, 1
      %p61 = por %p59, %p60
      %p63 = scmp.ne.s32.totalorder %s46, %s62
      %p64 = scmp.eq.s32.totalorder %s38, 0
      %p65 = por %p63, %p64
      %s67 = sadd.s32 %s66, 1
      %p70 = scmp.eq.s32.totalorder %s32, 1
      %p71 = scmp.ne.s32.totalorder %s66, %s68
      %p72 = scmp.eq.s32.totalorder %s32, 0
      %p73 = por %p71, %p72
      %p74 = scmp.ne.s32.totalorder %s66, %s68
      %p75 = scmp.eq.s32.totalorder %s37, 1
      %p76 = por %p74, %p75
      %p77 = scmp.ne.s32.totalorder %s68, %s69
      %p78 = scmp.eq.s32.totalorder %s37, 0
      %p79 = por %p77, %p78
      %p80 = scmp.ne.s32.totalorder %s68, %s69
      %p81 = scmp.eq.s32.totalorder %s38, 1
      %p82 = por %p80, %p81
      %p84 = scmp.ne.s32.totalorder %s69, %s83
      %p85 = scmp.eq.s32.totalorder %s38, 0
      %p86 = por %p84, %p85
      %s88 = sadd.s32 %s87, 1
      %p91 = scmp.eq.s32.totalorder %s32, 1
      %p92 = scmp.ne.s32.totalorder %s87, %s89
      %p93 = scmp.eq.s32.totalorder %s32, 0
      %p94 = por %p92, %p93
      %p95 = scmp.ne.s32.totalorder %s87, %s89
      %p96 = scmp.eq.s32.totalorder %s37, 1
      %p97 = por %p95, %p96
      %p98 = scmp.ne.s32.totalorder %s89, %s90
      %p99 = scmp.eq.s32.totalorder %s37, 0
      %p100 = por %p98, %p99
      %p101 = scmp.ne.s32.totalorder %s89, %s90
      %p102 = scmp.eq.s32.totalorder %s38, 1
      %p103 = por %p101, %p102
      %p105 = scmp.ne.s32.totalorder %s90, %s104
      %p106 = scmp.eq.s32.totalorder %s38, 0
      %p107 = por %p105, %p106
      %s109 = sadd.s32 %s108, 1
      %p112 = scmp.eq.s32.totalorder %s32, 1
      %p113 = scmp.ne.s32.totalorder %s108, %s110
      %p114 = scmp.eq.s32.totalorder %s32, 0
      %p115 = por %p113, %p114
      %p116 = scmp.ne.s32.totalorder %s108, %s110
      %p117 = scmp.eq.s32.totalorder %s37, 1
      %p118 = por %p116, %p117
      %p119 = scmp.ne.s32.totalorder %s110, %s111
      %p120 = scmp.eq.s32.totalorder %s37, 0
      %p121 = por %p119, %p120
      %p122 = scmp.ne.s32.totalorder %s110, %s111
      %p123 = scmp.eq.s32.totalorder %s38, 1
      %p124 = por %p122, %p123
      %p126 = scmp.ne.s32.totalorder %s111, %s125
      %p127 = scmp.eq.s32.totalorder %s38, 0
      %p128 = por %p126, %p127
      %s130 = sadd.s32 %s129, 1
      %p133 = scmp.eq.s32.totalorder %s32, 1
      %p134 = scmp.ne.s32.totalorder %s129, %s131
      %p135 = scmp.eq.s32.totalorder %s32, 0
      %p136 = por %p134, %p135
      %p137 = scmp.ne.s32.totalorder %s129, %s131
      %p138 = scmp.eq.s32.totalorder %s37, 1
      %p139 = por %p137, %p138
      %p140 = scmp.ne.s32.totalorder %s131, %s132
      %p141 = scmp.eq.s32.totalorder %s37, 0
      %p142 = por %p140, %p141
      %p143 = scmp.ne.s32.totalorder %s131, %s132
      %p144 = scmp.eq.s32.totalorder %s38, 1
      %p145 = por %p143, %p144
      %p147 = scmp.ne.s32.totalorder %s132, %s146
      %p148 = scmp.eq.s32.totalorder %s38, 0
      %p149 = por %p147, %p148
      %s151 = sadd.s32 %s150, 1
      %p154 = scmp.eq.s32.totalorder %s32, 1
      %p155 = scmp.ne.s32.totalorder %s150, %s152
      %p156 = scmp.eq.s32.totalorder %s32, 0
      %p157 = por %p155, %p156
      %p158 = scmp.ne.s32.totalorder %s150, %s152
      %p159 = scmp.eq.s32.totalorder %s37, 1
      %p160 = por %p158, %p159
      %p161 = scmp.ne.s32.totalorder %s152, %s153
      %p162 = scmp.eq.s32.totalorder %s37, 0
      %p163 = por %p161, %p162
      %p164 = scmp.ne.s32.totalorder %s152, %s153
      %p165 = scmp.eq.s32.totalorder %s38, 1
      %p166 = por %p164, %p165
      %p168 = scmp.ne.s32.totalorder %s153, %s167
      %p169 = scmp.eq.s32.totalorder %s38, 0
      %p170 = por %p168, %p169
      %s172 = sadd.s32 %s171, 1
      %p175 = scmp.eq.s32.totalorder %s32, 1
      %p176 = scmp.ne.s32.totalorder %s171, %s173
      %p177 = scmp.eq.s32.totalorder %s32, 0
      %p178 = por %p176, %p177
      %p179 = scmp.ne.s32.totalorder %s171, %s173
      %p180 = scmp.eq.s32.totalorder %s37, 1
      %p181 = por %p179, %p180
      %p182 = scmp.ne.s32.totalorder %s173, %s174
      %p183 = scmp.eq.s32.totalorder %s37, 0
      %p184 = por %p182, %p183
      %p185 = scmp.ne.s32.totalorder %s173, %s174
      %p186 = scmp.eq.s32.totalorder %s38, 1
      %p187 = por %p185, %p186
      %p189 = scmp.ne.s32.totalorder %s174, %s188
      %p190 = scmp.eq.s32.totalorder %s38, 0
      %p191 = por %p189, %p190
      %s193 = sadd.s32 %s192, 1
      %p196 = scmp.eq.s32.totalorder %s32, 1
      %p197 = scmp.ne.s32.totalorder %s192, %s194
      %p198 = scmp.eq.s32.totalorder %s32, 0
      %p199 = por %p197, %p198
      %p200 = scmp.ne.s32.totalorder %s192, %s194
      %p201 = scmp.eq.s32.totalorder %s37, 1
      %p202 = por %p200, %p201
      %p203 = scmp.ne.s32.totalorder %s194, %s195
      %p204 = scmp.eq.s32.totalorder %s37, 0
      %p205 = por %p203, %p204
      %p206 = scmp.ne.s32.totalorder %s194, %s195
      %p207 = scmp.eq.s32.totalorder %s38, 1
      %p208 = por %p206, %p207
      %p210 = scmp.ne.s32.totalorder %s195, %s209
      %p211 = scmp.eq.s32.totalorder %s38, 0
      %p212 = por %p210, %p211
      %s214 = sadd.s32 %s213, 1
      %p217 = scmp.eq.s32.totalorder %s32, 1
      %p218 = scmp.ne.s32.totalorder %s213, %s215
      %p219 = scmp.eq.s32.totalorder %s32, 0
      %p220 = por %p218, %p219
      %p221 = scmp.ne.s32.totalorder %s213, %s215
      %p222 = scmp.eq.s32.totalorder %s37, 1
      %p223 = por %p221, %p222
      %p224 = scmp.ne.s32.totalorder %s215, %s216
      %p225 = scmp.eq.s32.totalorder %s37, 0
      %p226 = por %p224, %p225
      %p227 = scmp.ne.s32.totalorder %s215, %s216
      %p228 = scmp.eq.s32.totalorder %s38, 1
      %p229 = por %p227, %p228
      %p231 = scmp.ne.s32.totalorder %s216, %s230
      %p232 = scmp.eq.s32.totalorder %s38, 0
      %p233 = por %p231, %p232
      %s235 = sadd.s32 %s234, 1
      %p238 = scmp.eq.s32.totalorder %s32, 1
      %p239 = scmp.ne.s32.totalorder %s234, %s236
      %p240 = scmp.eq.s32.totalorder %s32, 0
      %p241 = por %p239, %p240
      %p242 = scmp.ne.s32.totalorder %s234, %s236
      %p243 = scmp.eq.s32.totalorder %s37, 1
      %p244 = por %p242, %p243
      %p245 = scmp.ne.s32.totalorder %s236, %s237
      %p246 = scmp.eq.s32.totalorder %s37, 0
      %p247 = por %p245, %p246
      %p248 = scmp.ne.s32.totalorder %s236, %s237
      %p249 = scmp.eq.s32.totalorder %s38, 1
      %p250 = por %p248, %p249
      %p252 = scmp.ne.s32.totalorder %s237, %s251
      %p253 = scmp.eq.s32.totalorder %s38, 0
      %p254 = por %p252, %p253
      %s256 = sadd.s32 %s255, 1
      %p259 = scmp.eq.s32.totalorder %s32, 1
      %p260 = scmp.ne.s32.totalorder %s255, %s257
      %p261 = scmp.eq.s32.totalorder %s32, 0
      %p262 = por %p260, %p261
      %p263 = scmp.ne.s32.totalorder %s255, %s257
      %p264 = scmp.eq.s32.totalorder %s37, 1
      %p265 = por %p263, %p264
      %p266 = scmp.ne.s32.totalorder %s257, %s258
      %p267 = scmp.eq.s32.totalorder %s37, 0
      %p268 = por %p266, %p267
      %p269 = scmp.ne.s32.totalorder %s257, %s258
      %p270 = scmp.eq.s32.totalorder %s38, 1
      %p271 = por %p269, %p270
      %p273 = scmp.ne.s32.totalorder %s258, %s272
      %p274 = scmp.eq.s32.totalorder %s38, 0
      %p275 = por %p273, %p274
      %s277 = sadd.s32 %s276, 1
      %p280 = scmp.eq.s32.totalorder %s32, 1
      %p281 = scmp.ne.s32.totalorder %s276, %s278
      %p282 = scmp.eq.s32.totalorder %s32, 0
      %p283 = por %p281, %p282
      %p284 = scmp.ne.s32.totalorder %s276, %s278
      %p285 = scmp.eq.s32.totalorder %s37, 1
      %p286 = por %p284, %p285
      %p287 = scmp.ne.s32.totalorder %s278, %s279
      %p288 = scmp.eq.s32.totalorder %s37, 0
      %p289 = por %p287, %p288
      %p290 = scmp.ne.s32.totalorder %s278, %s279
      %p291 = scmp.eq.s32.totalorder %s38, 1
      %p292 = por %p290, %p291
      %p294 = scmp.ne.s32.totalorder %s279, %s293
      %p295 = scmp.eq.s32.totalorder %s38, 0
      %p296 = por %p294, %p295
      %s298 = sadd.s32 %s297, 1
      %p301 = scmp.eq.s32.totalorder %s32, 1
      %p302 = scmp.ne.s32.totalorder %s297, %s299
      %p303 = scmp.eq.s32.totalorder %s32, 0
      %p304 = por %p302, %p303
      %p305 = scmp.ne.s32.totalorder %s297, %s299
      %p306 = scmp.eq.s32.totalorder %s37, 1
      %p307 = por %p305, %p306
      %p308 = scmp.ne.s32.totalorder %s299, %s300
      %p309 = scmp.eq.s32.totalorder %s37, 0
      %p310 = por %p308, %p309
      %p311 = scmp.ne.s32.totalorder %s299, %s300
      %p312 = scmp.eq.s32.totalorder %s38, 1
      %p313 = por %p311, %p312
      %p315 = scmp.ne.s32.totalorder %s300, %s314
      %p316 = scmp.eq.s32.totalorder %s38, 0
      %p317 = por %p315, %p316
      %s319 = sadd.s32 %s318, 1
      %p322 = scmp.eq.s32.totalorder %s32, 1
      %p323 = scmp.ne.s32.totalorder %s318, %s320
      %p324 = scmp.eq.s32.totalorder %s32, 0
      %p325 = por %p323, %p324
      %p326 = scmp.ne.s32.totalorder %s318, %s320
      %p327 = scmp.eq.s32.totalorder %s37, 1
      %p328 = por %p326, %p327
      %p329 = scmp.ne.s32.totalorder %s320, %s321
      %p330 = scmp.eq.s32.totalorder %s37, 0
      %p331 = por %p329, %p330
      %p332 = scmp.ne.s32.totalorder %s320, %s321
      %p333 = scmp.eq.s32.totalorder %s38, 1
      %p334 = por %p332, %p333
      %p336 = scmp.ne.s32.totalorder %s321, %s335
      %p337 = scmp.eq.s32.totalorder %s38, 0
      %p338 = por %p336, %p337
      %s340 = sadd.s32 %s339, 1
      %p343 = scmp.eq.s32.totalorder %s32, 1
      %p344 = scmp.ne.s32.totalorder %s339, %s341
      %p345 = scmp.eq.s32.totalorder %s32, 0
      %p346 = por %p344, %p345
      %p347 = scmp.ne.s32.totalorder %s339, %s341
      %p348 = scmp.eq.s32.totalorder %s37, 1
      %p349 = por %p347, %p348
      %p350 = scmp.ne.s32.totalorder %s341, %s342
      %p351 = scmp.eq.s32.totalorder %s37, 0
      %p352 = por %p350, %p351
      %p353 = scmp.ne.s32.totalorder %s341, %s342
      %p354 = scmp.eq.s32.totalorder %s38, 1
      %p355 = por %p353, %p354
      %p357 = scmp.ne.s32.totalorder %s342, %s356
      %p358 = scmp.eq.s32.totalorder %s38, 0
      %p359 = por %p357, %p358
      %s361 = sadd.s32 %s360, 1
      %p364 = scmp.eq.s32.totalorder %s32, 1
      %p365 = scmp.ne.s32.totalorder %s360, %s362
      %p366 = scmp.eq.s32.totalorder %s32, 0
      %p367 = por %p365, %p366
      %p368 = scmp.ne.s32.totalorder %s360, %s362
      %p369 = scmp.eq.s32.totalorder %s37, 1
      %p370 = por %p368, %p369
      %p371 = scmp.ne.s32.totalorder %s362, %s363
      %p372 = scmp.eq.s32.totalorder %s37, 0
      %p373 = por %p371, %p372
      %p374 = scmp.ne.s32.totalorder %s362, %s363
      %p375 = scmp.eq.s32.totalorder %s38, 1
      %p376 = por %p374, %p375
      %p378 = scmp.ne.s32.totalorder %s363, %s377
      %p379 = scmp.eq.s32.totalorder %s38, 0
      %p380 = por %p378, %p379
      %s382 = sadd.s32 %s381, 1
      %p385 = scmp.eq.s32.totalorder %s32, 1
      %p386 = scmp.ne.s32.totalorder %s381, %s383
      %p387 = scmp.eq.s32.totalorder %s32, 0
      %p388 = por %p386, %p387
      %p389 = scmp.ne.s32.totalorder %s381, %s383
      %p390 = scmp.eq.s32.totalorder %s37, 1
      %p391 = por %p389, %p390
      %p392 = scmp.ne.s32.totalorder %s383, %s384
      %p393 = scmp.eq.s32.totalorder %s37, 0
      %p394 = por %p392, %p393
      %p395 = scmp.ne.s32.totalorder %s383, %s384
      %p396 = scmp.eq.s32.totalorder %s38, 1
      %p397 = por %p395, %p396
      %p399 = scmp.ne.s32.totalorder %s384, %s398
      %p400 = scmp.eq.s32.totalorder %s38, 0
      %p401 = por %p399, %p400
      %s403 = sadd.s32 %s402, 1
      %p406 = scmp.eq.s32.totalorder %s32, 1
      %p407 = scmp.ne.s32.totalorder %s402, %s404
      %p408 = scmp.eq.s32.totalorder %s32, 0
      %p409 = por %p407, %p408
      %p410 = scmp.ne.s32.totalorder %s402, %s404
      %p411 = scmp.eq.s32.totalorder %s37, 1
      %p412 = por %p410, %p411
      %p413 = scmp.ne.s32.totalorder %s404, %s405
      %p414 = scmp.eq.s32.totalorder %s37, 0
      %p415 = por %p413, %p414
      %p416 = scmp.ne.s32.totalorder %s404, %s405
      %p417 = scmp.eq.s32.totalorder %s38, 1
      %p418 = por %p416, %p417
      %p420 = scmp.ne.s32.totalorder %s405, %s419
      %p421 = scmp.eq.s32.totalorder %s38, 0
      %p422 = por %p420, %p421
      %s424 = sadd.s32 %s423, 1
      %p427 = scmp.eq.s32.totalorder %s32, 1
      %p428 = scmp.ne.s32.totalorder %s423, %s425
      %p429 = scmp.eq.s32.totalorder %s32, 0
      %p430 = por %p428, %p429
      %p431 = scmp.ne.s32.totalorder %s423, %s425
      %p432 = scmp.eq.s32.totalorder %s37, 1
      %p433 = por %p431, %p432
      %p434 = scmp.ne.s32.totalorder %s425, %s426
      %p435 = scmp.eq.s32.totalorder %s37, 0
      %p436 = por %p434, %p435
      %p437 = scmp.ne.s32.totalorder %s425, %s426
      %p438 = scmp.eq.s32.totalorder %s38, 1
      %p439 = por %p437, %p438
      %p441 = scmp.ne.s32.totalorder %s426, %s440
      %p442 = scmp.eq.s32.totalorder %s38, 0
      %p443 = por %p441, %p442
      %s445 = sadd.s32 %s444, 1
      %p448 = scmp.eq.s32.totalorder %s32, 1
      %p449 = scmp.ne.s32.totalorder %s444, %s446
      %p450 = scmp.eq.s32.totalorder %s32, 0
      %p451 = por %p449, %p450
      %p452 = scmp.ne.s32.totalorder %s444, %s446
      %p453 = scmp.eq.s32.totalorder %s37, 1
      %p454 = por %p452, %p453
      %p455 = scmp.ne.s32.totalorder %s446, %s447
      %p456 = scmp.eq.s32.totalorder %s37, 0
      %p457 = por %p455, %p456
      %p458 = scmp.ne.s32.totalorder %s446, %s447
      %p459 = scmp.eq.s32.totalorder %s38, 1
      %p460 = por %p458, %p459
      %p462 = scmp.ne.s32.totalorder %s447, %s461
      %p463 = scmp.eq.s32.totalorder %s38, 0
      %p464 = por %p462, %p463
      %s466 = sadd.s32 %s465, 1
      %p469 = scmp.eq.s32.totalorder %s32, 1
      %p470 = scmp.ne.s32.totalorder %s465, %s467
      %p471 = scmp.eq.s32.totalorder %s32, 0
      %p472 = por %p470, %p471
      %p473 = scmp.ne.s32.totalorder %s465, %s467
      %p474 = scmp.eq.s32.totalorder %s37, 1
      %p475 = por %p473, %p474
      %p476 = scmp.ne.s32.totalorder %s467, %s468
      %p477 = scmp.eq.s32.totalorder %s37, 0
      %p478 = por %p476, %p477
      %p479 = scmp.ne.s32.totalorder %s467, %s468
      %p480 = scmp.eq.s32.totalorder %s38, 1
      %p481 = por %p479, %p480
      %p483 = scmp.ne.s32.totalorder %s468, %s482
      %p484 = scmp.eq.s32.totalorder %s38, 0
      %p485 = por %p483, %p484
      %s487 = sadd.s32 %s486, 1
      %p490 = scmp.eq.s32.totalorder %s32, 1
      %p491 = scmp.ne.s32.totalorder %s486, %s488
      %p492 = scmp.eq.s32.totalorder %s32, 0
      %p493 = por %p491, %p492
      %p494 = scmp.ne.s32.totalorder %s486, %s488
      %p495 = scmp.eq.s32.totalorder %s37, 1
      %p496 = por %p494, %p495
      %p497 = scmp.ne.s32.totalorder %s488, %s489
      %p498 = scmp.eq.s32.totalorder %s37, 0
      %p499 = por %p497, %p498
      %p500 = scmp.ne.s32.totalorder %s488, %s489
      %p501 = scmp.eq.s32.totalorder %s38, 1
      %p502 = por %p500, %p501
      %p504 = scmp.ne.s32.totalorder %s489, %s503
      %p505 = scmp.eq.s32.totalorder %s38, 0
      %p506 = por %p504, %p505
      %s508 = sadd.s32 %s507, 1
      %p511 = scmp.eq.s32.totalorder %s32, 1
      %p512 = scmp.ne.s32.totalorder %s507, %s509
      %p513 = scmp.eq.s32.totalorder %s32, 0
      %p514 = por %p512, %p513
      %p515 = scmp.ne.s32.totalorder %s507, %s509
      %p516 = scmp.eq.s32.totalorder %s37, 1
      %p517 = por %p515, %p516
      %p518 = scmp.ne.s32.totalorder %s509, %s510
      %p519 = scmp.eq.s32.totalorder %s37, 0
      %p520 = por %p518, %p519
      %p521 = scmp.ne.s32.totalorder %s509, %s510
      %p522 = scmp.eq.s32.totalorder %s38, 1
      %p523 = por %p521, %p522
      %p525 = scmp.ne.s32.totalorder %s510, %s524
      %p526 = scmp.eq.s32.totalorder %s38, 0
      %p527 = por %p525, %p526
      %s528 = ssub.s32 %s32, %s39
      %p529 = scmp.eq.s32.totalorder %s528, 0
      %s531 = sadd.s32 %s530, 1
      %s532 = scalar_select %p529, %s530, %s531
      %p535 = pneg %p529
      %p536 = scmp.eq.s32.totalorder %s32, 1
      %p537 = por %p535, %p536
      %p538 = scmp.ne.s32.totalorder %s530, %s533
      %p539 = scmp.eq.s32.totalorder %s32, 0
      %p540 = por %p538, %p539
      %p541 = scmp.ne.s32.totalorder %s530, %s533
      %p542 = scmp.eq.s32.totalorder %s37, 1
      %p543 = por %p541, %p542
      %p544 = scmp.ne.s32.totalorder %s533, %s534
      %p545 = scmp.eq.s32.totalorder %s37, 0
      %p546 = por %p544, %p545
      %p547 = scmp.ne.s32.totalorder %s533, %s534
      %p548 = scmp.eq.s32.totalorder %s38, 1
      %p549 = por %p547, %p548
      %p551 = scmp.ne.s32.totalorder %s534, %s550
      %p552 = scmp.eq.s32.totalorder %s38, 0
      %p553 = por %p551, %p552
      %p554 = scmp.le.s32.totalorder 1, %s32
      %p555 = scmp.lt.s32.totalorder %s32, 3
      %p556 = pnand %p554, %p555
      %p557 = pneg %p556
      // Predicated region
      $region9: #{transformer_predictor_forward.1} parent=5 // pred_check
        _
      $region10: #{transformer_predictor_forward.1} parent=5 // pred_check_branch
        %559 = sbr.rel (%p556) target = $region12
      $region11: #{transformer_predictor_forward.1} parent=5 // pred_region
        %s560 = ssub.s32 %s32, 1
        // Predicated region
        $region13: #{transformer_predictor_forward.1} parent=11 // pred_check
          %p561 = pneg %p79
        $region14: #{transformer_predictor_forward.1} parent=11 // pred_check_branch
          %563 = sbr.rel (%p561) target = $region16
        $region15: #{transformer_predictor_forward.1} parent=11 // pred_region
          _
        $region16: #{transformer_predictor_forward.1} parent=11 // pred_fallthru
          _
        // Predicated region
        $region17: #{transformer_predictor_forward.1} parent=11 // pred_check
          %p564 = pneg %p100
        $region18: #{transformer_predictor_forward.1} parent=11 // pred_check_branch
          %566 = sbr.rel (%p564) target = $region20
        $region19: #{transformer_predictor_forward.1} parent=11 // pred_region
          _
        $region20: #{transformer_predictor_forward.1} parent=11 // pred_fallthru
          _
        // Predicated region
        $region21: #{transformer_predictor_forward.1} parent=11 // pred_check
          %p567 = pneg %p121
        $region22: #{transformer_predictor_forward.1} parent=11 // pred_check_branch
          %569 = sbr.rel (%p567) target = $region24
        $region23: #{transformer_predictor_forward.1} parent=11 // pred_region
          _
        $region24: #{transformer_predictor_forward.1} parent=11 // pred_fallthru
          _
        // Predicated region
        $region25: #{transformer_predictor_forward.1} parent=11 // pred_check
          %p570 = pneg %p142
        $region26: #{transformer_predictor_forward.1} parent=11 // pred_check_branch
          %572 = sbr.rel (%p570) target = $region28
        $region27: #{transformer_predictor_forward.1} parent=11 // pred_region
          _
        $region28: #{transformer_predictor_forward.1} parent=11 // pred_fallthru
          _
        // Predicated region
        $region29: #{transformer_predictor_forward.1} parent=11 // pred_check
          %p573 = pneg %p163
        $region30: #{transformer_predictor_forward.1} parent=11 // pred_check_branch
          %575 = sbr.rel (%p573) target = $region32
        $region31: #{transformer_predictor_forward.1} parent=11 // pred_region
          _
        $region32: #{transformer_predictor_forward.1} parent=11 // pred_fallthru
          _
        // Predicated region
        $region33: #{transformer_predictor_forward.1} parent=11 // pred_check
          %p576 = pneg %p184
        $region34: #{transformer_predictor_forward.1} parent=11 // pred_check_branch
          %578 = sbr.rel (%p576) target = $region36
        $region35: #{transformer_predictor_forward.1} parent=11 // pred_region
          _
        $region36: #{transformer_predictor_forward.1} parent=11 // pred_fallthru
          _
        // Predicated region
        $region37: #{transformer_predictor_forward.1} parent=11 // pred_check
          %p579 = pneg %p205
        $region38: #{transformer_predictor_forward.1} parent=11 // pred_check_branch
          %581 = sbr.rel (%p579) target = $region40
        $region39: #{transformer_predictor_forward.1} parent=11 // pred_region
          _
        $region40: #{transformer_predictor_forward.1} parent=11 // pred_fallthru
          _
        // Predicated region
        $region41: #{transformer_predictor_forward.1} parent=11 // pred_check
          %p582 = pneg %p226
        $region42: #{transformer_predictor_forward.1} parent=11 // pred_check_branch
          %584 = sbr.rel (%p582) target = $region44
        $region43: #{transformer_predictor_forward.1} parent=11 // pred_region
          _
        $region44: #{transformer_predictor_forward.1} parent=11 // pred_fallthru
          _
        // Predicated region
        $region45: #{transformer_predictor_forward.1} parent=11 // pred_check
          %p585 = pneg %p247
        $region46: #{transformer_predictor_forward.1} parent=11 // pred_check_branch
          %587 = sbr.rel (%p585) target = $region48
        $region47: #{transformer_predictor_forward.1} parent=11 // pred_region
          _
        $region48: #{transformer_predictor_forward.1} parent=11 // pred_fallthru
          _
        // Predicated region
        $region49: #{transformer_predictor_forward.1} parent=11 // pred_check
          %p588 = pneg %p268
        $region50: #{transformer_predictor_forward.1} parent=11 // pred_check_branch
          %590 = sbr.rel (%p588) target = $region52
        $region51: #{transformer_predictor_forward.1} parent=11 // pred_region
          _
        $region52: #{transformer_predictor_forward.1} parent=11 // pred_fallthru
          _
        // Predicated region
        $region53: #{transformer_predictor_forward.1} parent=11 // pred_check
          %p591 = pneg %p289
        $region54: #{transformer_predictor_forward.1} parent=11 // pred_check_branch
          %593 = sbr.rel (%p591) target = $region56
        $region55: #{transformer_predictor_forward.1} parent=11 // pred_region
          _
        $region56: #{transformer_predictor_forward.1} parent=11 // pred_fallthru
          _
        // Predicated region
        $region57: #{transformer_predictor_forward.1} parent=11 // pred_check
          %p594 = pneg %p310
        $region58: #{transformer_predictor_forward.1} parent=11 // pred_check_branch
          %596 = sbr.rel (%p594) target = $region60
        $region59: #{transformer_predictor_forward.1} parent=11 // pred_region
          _
        $region60: #{transformer_predictor_forward.1} parent=11 // pred_fallthru
          _
        // Predicated region
        $region61: #{transformer_predictor_forward.1} parent=11 // pred_check
          %p597 = pneg %p331
        $region62: #{transformer_predictor_forward.1} parent=11 // pred_check_branch
          %599 = sbr.rel (%p597) target = $region64
        $region63: #{transformer_predictor_forward.1} parent=11 // pred_region
          _
        $region64: #{transformer_predictor_forward.1} parent=11 // pred_fallthru
          _
        // Predicated region
        $region65: #{transformer_predictor_forward.1} parent=11 // pred_check
          %p600 = pneg %p352
        $region66: #{transformer_predictor_forward.1} parent=11 // pred_check_branch
          %602 = sbr.rel (%p600) target = $region68
        $region67: #{transformer_predictor_forward.1} parent=11 // pred_region
          _
        $region68: #{transformer_predictor_forward.1} parent=11 // pred_fallthru
          _
        // Predicated region
        $region69: #{transformer_predictor_forward.1} parent=11 // pred_check
          %p603 = pneg %p373
        $region70: #{transformer_predictor_forward.1} parent=11 // pred_check_branch
          %605 = sbr.rel (%p603) target = $region72
        $region71: #{transformer_predictor_forward.1} parent=11 // pred_region
          _
        $region72: #{transformer_predictor_forward.1} parent=11 // pred_fallthru
          _
        // Predicated region
        $region73: #{transformer_predictor_forward.1} parent=11 // pred_check
          %p606 = pneg %p394
        $region74: #{transformer_predictor_forward.1} parent=11 // pred_check_branch
          %608 = sbr.rel (%p606) target = $region76
        $region75: #{transformer_predictor_forward.1} parent=11 // pred_region
          _
        $region76: #{transformer_predictor_forward.1} parent=11 // pred_fallthru
          _
        // Predicated region
        $region77: #{transformer_predictor_forward.1} parent=11 // pred_check
          %p609 = pneg %p415
        $region78: #{transformer_predictor_forward.1} parent=11 // pred_check_branch
          %611 = sbr.rel (%p609) target = $region80
        $region79: #{transformer_predictor_forward.1} parent=11 // pred_region
          _
        $region80: #{transformer_predictor_forward.1} parent=11 // pred_fallthru
          _
        // Predicated region
        $region81: #{transformer_predictor_forward.1} parent=11 // pred_check
          %p612 = pneg %p436
        $region82: #{transformer_predictor_forward.1} parent=11 // pred_check_branch
          %614 = sbr.rel (%p612) target = $region84
        $region83: #{transformer_predictor_forward.1} parent=11 // pred_region
          _
        $region84: #{transformer_predictor_forward.1} parent=11 // pred_fallthru
          _
        // Predicated region
        $region85: #{transformer_predictor_forward.1} parent=11 // pred_check
          %p615 = pneg %p457
        $region86: #{transformer_predictor_forward.1} parent=11 // pred_check_branch
          %617 = sbr.rel (%p615) target = $region88
        $region87: #{transformer_predictor_forward.1} parent=11 // pred_region
          _
        $region88: #{transformer_predictor_forward.1} parent=11 // pred_fallthru
          _
        // Predicated region
        $region89: #{transformer_predictor_forward.1} parent=11 // pred_check
          %p618 = pneg %p478
        $region90: #{transformer_predictor_forward.1} parent=11 // pred_check_branch
          %620 = sbr.rel (%p618) target = $region92
        $region91: #{transformer_predictor_forward.1} parent=11 // pred_region
          _
        $region92: #{transformer_predictor_forward.1} parent=11 // pred_fallthru
          _
        // Predicated region
        $region93: #{transformer_predictor_forward.1} parent=11 // pred_check
          %p621 = pneg %p499
        $region94: #{transformer_predictor_forward.1} parent=11 // pred_check_branch
          %623 = sbr.rel (%p621) target = $region96
        $region95: #{transformer_predictor_forward.1} parent=11 // pred_region
          _
        $region96: #{transformer_predictor_forward.1} parent=11 // pred_fallthru
          _
        // Predicated region
        $region97: #{transformer_predictor_forward.1} parent=11 // pred_check
          %p624 = pneg %p520
        $region98: #{transformer_predictor_forward.1} parent=11 // pred_check_branch
          %626 = sbr.rel (%p624) target = $region100
        $region99: #{transformer_predictor_forward.1} parent=11 // pred_region
          _
        $region100: #{transformer_predictor_forward.1} parent=11 // pred_fallthru
          _
      $region12: #{transformer_predictor_forward.1} parent=5 // pred_fallthru
        _
      %p627 = scmp.lt.s32.totalorder %s32, 2
      // Predicated region
      $region101: #{transformer_predictor_forward.1} parent=5 // pred_check
        %p628 = pneg %p627
      $region102: #{transformer_predictor_forward.1} parent=5 // pred_check_branch
        %630 = sbr.rel (%p628) target = $region104
      $region103: #{transformer_predictor_forward.1} parent=5 // pred_region
        // Predicated region
        $region105: #{transformer_predictor_forward.1} parent=103 // pred_check
          %p631 = pneg %p52
        $region106: #{transformer_predictor_forward.1} parent=103 // pred_check_branch
          %633 = sbr.rel (%p631) target = $region108
        $region107: #{transformer_predictor_forward.1} parent=103 // pred_region
          %p634 = scmp.lt.s32.totalorder %s32, 1
          %s635 = scalar_select %p634, %s32, 1
          %s636 = smul.addr %s635, 4
          %s637 = scalar_lea.vmem %s0, %s636
        $region108: #{transformer_predictor_forward.1} parent=103 // pred_fallthru
          _
      $region104: #{transformer_predictor_forward.1} parent=5 // pred_fallthru
        _
      %p638 = scmp.le.s32.totalorder 1, %s32
      %p639 = scmp.lt.s32.totalorder %s32, 3
      %p640 = pnand %p638, %p639
      %p641 = pneg %p640
      // Predicated region
      $region109: #{transformer_predictor_forward.1} parent=5 // pred_check
        _
      $region110: #{transformer_predictor_forward.1} parent=5 // pred_check_branch
        %643 = sbr.rel (%p640) target = $region112
      $region111: #{transformer_predictor_forward.1} parent=5 // pred_region
        %s644 = ssub.s32 %s32, 1
        %p645 = scmp.lt.s32.totalorder %s37, 1
        %s646 = scalar_select %p645, %s37, 1
        %s647 = smul.addr %s646, 4
        %s648 = scalar_lea.vmem %s0, %s647
        %p649 = pneg %p58
        %p650 = pneg %p55
        %p651 = pneg %p79
        %p652 = pneg %p76
        %p653 = pneg %p100
        %p654 = pneg %p97
        %p655 = pneg %p121
        %p656 = pneg %p118
        %p657 = pneg %p142
        %p658 = pneg %p139
        %p659 = pneg %p163
        %p660 = pneg %p160
        %p661 = pneg %p184
        %p662 = pneg %p181
        %p663 = pneg %p205
        %p664 = pneg %p202
        %p665 = pneg %p226
        %p666 = pneg %p223
        %p667 = pneg %p247
        %p668 = pneg %p244
        %p669 = pneg %p268
        %p670 = pneg %p265
        %p671 = pneg %p289
        %p672 = pneg %p286
        %p673 = pneg %p310
        %p674 = pneg %p307
        %p675 = pneg %p331
        %p676 = pneg %p328
        %p677 = pneg %p352
        %p678 = pneg %p349
        %p679 = pneg %p373
        %p680 = pneg %p370
        %p681 = pneg %p394
        %p682 = pneg %p391
        %p683 = pneg %p415
        %p684 = pneg %p412
        %p685 = pneg %p436
        %p686 = pneg %p433
        %p687 = pneg %p457
        %p688 = pneg %p454
        %p689 = pneg %p478
        %p690 = pneg %p475
        %p691 = pneg %p499
        %p692 = pneg %p496
        %p693 = pneg %p520
        %p694 = pneg %p517
        %p695 = pneg %p546
        %p696 = pneg %p543
        %s697 = sand.u32 %s533, 1
        %s698 = scalar_lea.sflag [#allocation3], %s697
        %s699 = sand.u32 %s533, 1
        %s700 = scalar_lea.vmem [#allocation2], %s699
        %p701 = scmp.lt.s32.totalorder %s37, 1
        %s702 = scalar_select %p701, %s37, 1
        %s703 = smul.addr %s702, 4
        %s704 = scalar_lea.vmem %s0, %s703
        %v706 = vld [vmem:[%s2] sm:$0xff]
        %v707 = vmul.f32 %v706, 0.25
        %v708 = vld [vmem:[%s704] sm:$0xf]
        %v709 = vld [vmem:[%s3] sm:$0xf]
        %v710 = vld [vmem:[%s3 + $0x4] sm:$0xf]
        %v711 = vld [vmem:[%s3 + $0x8] sm:$0xf]
        %v712 = vld [vmem:[%s3 + $0xc] sm:$0xf]
        %v713 = vld [vmem:[%s3 + $0x10] sm:$0xf]
        %v714 = vld [vmem:[%s3 + $0x14] sm:$0xf]
        %v715 = vld [vmem:[%s3 + $0x18] sm:$0xf]
        %v716 = vld [vmem:[%s3 + $0x1c] sm:$0xf]
        %v717 = vld [vmem:[%s3 + $0x20] sm:$0xf]
        %v718 = vld [vmem:[%s3 + $0x24] sm:$0xf]
        %v719 = vld [vmem:[%s3 + $0x28] sm:$0xf]
        %v720 = vld [vmem:[%s3 + $0x2c] sm:$0xf]
        %v721 = vld [vmem:[%s3 + $0x30] sm:$0xf]
        %v722 = vld [vmem:[%s3 + $0x34] sm:$0xf]
        %v723 = vld [vmem:[%s3 + $0x38] sm:$0xf]
        %v724 = vld [vmem:[%s3 + $0x3c] sm:$0xf]
        %v725 = vld [vmem:[%s4] sm:$0x1]
        %v727 = vlaneseq
        %v728 = vshrl.u32 %v727, 7
        %v729 = vsub.s32 0, %v728
        %v730 = vrot.slane %v725, %v729
        %v748 = vunpack.c.l.b16 %v709
        %v749 = vunpack.c.l.b16 %v710
        %v750 = vunpack.c.l.b16 %v711
        %v751 = vunpack.c.l.b16 %v712
        %v752 = vunpack.c.l.b16 %v713
        %v753 = vunpack.c.l.b16 %v714
        %v754 = vunpack.c.l.b16 %v715
        %v755 = vunpack.c.l.b16 %v716
        %v756 = vunpack.c.l.b16 %v717
        %v757 = vunpack.c.l.b16 %v718
        %v758 = vunpack.c.l.b16 %v719
        %v759 = vunpack.c.l.b16 %v720
        %v760 = vunpack.c.l.b16 %v721
        %v761 = vunpack.c.l.b16 %v722
        %v762 = vunpack.c.l.b16 %v723
        %v763 = vunpack.c.l.b16 %v724
        %v764 = vpack.c.b16 %v749, %v748
        %v765 = vpack.c.b16 %v751, %v750
        %v766 = vpack.c.b16 %v753, %v752
        %v767 = vpack.c.b16 %v755, %v754
        %v768 = vpack.c.b16 %v757, %v756
        %v769 = vpack.c.b16 %v759, %v758
        %v770 = vpack.c.b16 %v761, %v760
        %v771 = vpack.c.b16 %v763, %v762
        %780 = vmatprep.subr.bf16.mxu0 0
        %781 = vmatpush1.bf16.msra.mxu0 %v771
        %782 = vmatprep.subr.bf16.mxu0 0
        %783 = vmatpush1.bf16.msra.mxu0 %v770
        %784 = vmatprep.subr.bf16.mxu0 0
        %785 = vmatpush1.bf16.msra.mxu0 %v769
        %786 = vmatprep.subr.bf16.mxu0 0
        %787 = vmatpush1.bf16.msra.mxu0 %v768
        %788 = vmatprep.subr.bf16.mxu0 0
        %789 = vmatpush1.bf16.msra.mxu0 %v767
        %790 = vmatprep.subr.bf16.mxu0 0
        %791 = vmatpush1.bf16.msra.mxu0 %v766
        %792 = vmatprep.subr.bf16.mxu0 0
        %793 = vmatpush1.bf16.msra.mxu0 %v765
        %794 = vmatprep.subr.bf16.mxu0 0
        %795 = vmatpush1.bf16.msra.mxu0 %v764
        %796 = vmatprep.subr.bf16.mxu0 0
        %797 = vmatpush2.bf16.msra.mxu0 0
        %798 = vmatprep.subr.bf16.mxu0 0
        %799 = vmatpush2.bf16.msra.mxu0 0
        %800 = vmatprep.subr.bf16.mxu0 0
        %801 = vmatpush2.bf16.msra.mxu0 0
        %802 = vmatprep.subr.bf16.mxu0 0
        %803 = vmatpush2.bf16.msra.mxu0 0
        %804 = vmatprep.subr.bf16.mxu0 0
        %805 = vmatpush2.bf16.msra.mxu0 0
        %806 = vmatprep.subr.bf16.mxu0 0
        %807 = vmatpush2.bf16.msra.mxu0 0
        %808 = vmatprep.subr.bf16.mxu0 0
        %809 = vmatpush2.bf16.msra.mxu0 0
        %810 = vmatprep.subr.bf16.mxu0 0
        %811 = vmatpush2.bf16.msra.mxu0 0
        %812 = vmatprep.mubr.bf16.mxu0 0
        %813 = vmatmul.mubr.bf16.gmra.mxu0 %v708
        %v814 = vpop.f32.mrf.mxu0
        %v815 = vadd.f32 %v730, %v814
        %v816 = vpop.f32.mrf.mxu0
        %v817 = vpop.f32.mrf.mxu0
        %v818 = vpop.f32.mrf.mxu0
        %819 = vdwg.mxu0
        %v820 = vld [vmem:[%s1] sm:$0xff]
        %v821 = vadd.f32 %v815, %v820
        %v822 = vld [vmem:[%s5] sm:$0xff]
        %v823 = vld [vmem:[%s5 + $0x8] sm:$0xf]
        %v824 = vld [vmem:[%s5 + $0xc] sm:$0xff]
        %v825 = vld [vmem:[%s5 + $0x14] sm:$0xf]
        %v826 = vld [vmem:[%s5 + $0x18] sm:$0xff]
        %v827 = vld [vmem:[%s5 + $0x20] sm:$0xf]
        %v828 = vld [vmem:[%s5 + $0x24] sm:$0xff]
        %v829 = vld [vmem:[%s5 + $0x2c] sm:$0xf]
        %v830 = vld [vmem:[%s5 + $0x30] sm:$0xff]
        %v831 = vld [vmem:[%s5 + $0x38] sm:$0xf]
        %v832 = vld [vmem:[%s5 + $0x3c] sm:$0xff]
        %v833 = vld [vmem:[%s5 + $0x44] sm:$0xf]
        %v834 = vld [vmem:[%s5 + $0x48] sm:$0xff]
        %v835 = vld [vmem:[%s5 + $0x50] sm:$0xf]
        %v836 = vld [vmem:[%s5 + $0x54] sm:$0xff]
        %v837 = vld [vmem:[%s5 + $0x5c] sm:$0xf]
        %v838 = vld [vmem:[%s5 + $0x60] sm:$0xff]
        %v839 = vld [vmem:[%s5 + $0x68] sm:$0xf]
        %v840 = vld [vmem:[%s5 + $0x6c] sm:$0xff]
        %v841 = vld [vmem:[%s5 + $0x74] sm:$0xf]
        %v842 = vld [vmem:[%s5 + $0x78] sm:$0xff]
        %v843 = vld [vmem:[%s5 + $0x80] sm:$0xf]
        %v844 = vld [vmem:[%s5 + $0x84] sm:$0xff]
        %v845 = vld [vmem:[%s5 + $0x8c] sm:$0xf]
        %v846 = vld [vmem:[%s5 + $0x90] sm:$0xff]
        %v847 = vld [vmem:[%s5 + $0x98] sm:$0xf]
        %v848 = vld [vmem:[%s5 + $0x9c] sm:$0xff]
        %v849 = vld [vmem:[%s5 + $0xa4] sm:$0xf]
        %v850 = vld [vmem:[%s5 + $0xa8] sm:$0xff]
        %v851 = vld [vmem:[%s5 + $0xb0] sm:$0xf]
        %v852 = vld [vmem:[%s5 + $0xb4] sm:$0xff]
        %v853 = vld [vmem:[%s5 + $0xbc] sm:$0xf]
        %v854 = vpack.c.bf16 %v821, %v821
        %v855 = vld [vmem:[%s6] sm:$0x7]
        %v857 = vlaneseq
        %v858 = vshrl.u32 %v857, 7
        %v859 = vsub.s32 0, %v858
        %v860 = vrot.slane %v855, %v859
        %v861 = vlaneseq
        %v862 = vshrl.u32 %v861, 7
        %v863 = vsub.s32 1, %v862
        %v864 = vrot.slane %v855, %v863
        %v865 = vlaneseq
        %v866 = vshrl.u32 %v865, 7
        %v867 = vsub.s32 2, %v866
        %v868 = vrot.slane %v855, %v867
        %v904 = vunpack.c.l.b16 %v822
        %v905 = vunpack.c.h.b16 %v822
        %v906 = vunpack.c.l.b16 %v823
        %v907 = vunpack.c.l.b16 %v824
        %v908 = vunpack.c.h.b16 %v824
        %v909 = vunpack.c.l.b16 %v825
        %v910 = vunpack.c.l.b16 %v826
        %v911 = vunpack.c.h.b16 %v826
        %v912 = vunpack.c.l.b16 %v827
        %v913 = vunpack.c.l.b16 %v828
        %v914 = vunpack.c.h.b16 %v828
        %v915 = vunpack.c.l.b16 %v829
        %v916 = vunpack.c.l.b16 %v830
        %v917 = vunpack.c.h.b16 %v830
        %v918 = vunpack.c.l.b16 %v831
        %v919 = vunpack.c.l.b16 %v832
        %v920 = vunpack.c.h.b16 %v832
        %v921 = vunpack.c.l.b16 %v833
        %v922 = vunpack.c.l.b16 %v834
        %v923 = vunpack.c.h.b16 %v834
        %v924 = vunpack.c.l.b16 %v835
        %v925 = vunpack.c.l.b16 %v836
        %v926 = vunpack.c.h.b16 %v836
        %v927 = vunpack.c.l.b16 %v837
        %v928 = vunpack.c.l.b16 %v838
        %v929 = vunpack.c.h.b16 %v838
        %v930 = vunpack.c.l.b16 %v839
        %v931 = vunpack.c.l.b16 %v840
        %v932 = vunpack.c.h.b16 %v840
        %v933 = vunpack.c.l.b16 %v841
        %v934 = vunpack.c.l.b16 %v842
        %v935 = vunpack.c.h.b16 %v842
        %v936 = vunpack.c.l.b16 %v843
        %v937 = vunpack.c.l.b16 %v844
        %v938 = vunpack.c.h.b16 %v844
        %v939 = vunpack.c.l.b16 %v845
        %v940 = vunpack.c.l.b16 %v846
        %v941 = vunpack.c.h.b16 %v846
        %v942 = vunpack.c.l.b16 %v847
        %v943 = vunpack.c.l.b16 %v848
        %v944 = vunpack.c.h.b16 %v848
        %v945 = vunpack.c.l.b16 %v849
        %v946 = vunpack.c.l.b16 %v850
        %v947 = vunpack.c.h.b16 %v850
        %v948 = vunpack.c.l.b16 %v851
        %v949 = vunpack.c.l.b16 %v852
        %v950 = vunpack.c.h.b16 %v852
        %v951 = vunpack.c.l.b16 %v853
        %v952 = vpack.c.b16 %v907, %v904
        %v953 = vpack.c.b16 %v908, %v905
        %v954 = vpack.c.b16 %v909, %v906
        %v955 = vpack.c.b16 %v913, %v910
        %v956 = vpack.c.b16 %v914, %v911
        %v957 = vpack.c.b16 %v915, %v912
        %v958 = vpack.c.b16 %v919, %v916
        %v959 = vpack.c.b16 %v920, %v917
        %v960 = vpack.c.b16 %v921, %v918
        %v961 = vpack.c.b16 %v925, %v922
        %v962 = vpack.c.b16 %v926, %v923
        %v963 = vpack.c.b16 %v927, %v924
        %v964 = vpack.c.b16 %v931, %v928
        %v965 = vpack.c.b16 %v932, %v929
        %v966 = vpack.c.b16 %v933, %v930
        %v967 = vpack.c.b16 %v937, %v934
        %v968 = vpack.c.b16 %v938, %v935
        %v969 = vpack.c.b16 %v939, %v936
        %v970 = vpack.c.b16 %v943, %v940
        %v971 = vpack.c.b16 %v944, %v941
        %v972 = vpack.c.b16 %v945, %v942
        %v973 = vpack.c.b16 %v949, %v946
        %v974 = vpack.c.b16 %v950, %v947
        %v975 = vpack.c.b16 %v951, %v948
        %1000 = vmatprep.subr.bf16.mxu0 %v974
        %1001 = vmatpush1.bf16.msra.mxu0 %v973
        %1002 = vmatprep.subr.bf16.mxu0 %v971
        %1003 = vmatpush1.bf16.msra.mxu0 %v970
        %1004 = vmatprep.subr.bf16.mxu0 %v968
        %1005 = vmatpush1.bf16.msra.mxu0 %v967
        %1006 = vmatprep.subr.bf16.mxu0 %v965
        %1007 = vmatpush1.bf16.msra.mxu0 %v964
        %1008 = vmatprep.subr.bf16.mxu0 %v962
        %1009 = vmatpush1.bf16.msra.mxu0 %v961
        %1010 = vmatprep.subr.bf16.mxu0 %v959
        %1011 = vmatpush1.bf16.msra.mxu0 %v958
        %1012 = vmatprep.subr.bf16.mxu0 %v956
        %1013 = vmatpush1.bf16.msra.mxu0 %v955
        %1014 = vmatprep.subr.bf16.mxu0 %v953
        %1015 = vmatpush1.bf16.msra.mxu0 %v952
        %1016 = vmatprep.subr.bf16.mxu0 0
        %1017 = vmatpush2.bf16.msra.mxu0 0
        %1018 = vmatprep.subr.bf16.mxu0 0
        %1019 = vmatpush2.bf16.msra.mxu0 0
        %1020 = vmatprep.subr.bf16.mxu0 0
        %1021 = vmatpush2.bf16.msra.mxu0 0
        %1022 = vmatprep.subr.bf16.mxu0 0
        %1023 = vmatpush2.bf16.msra.mxu0 0
        %1024 = vmatprep.subr.bf16.mxu0 0
        %1025 = vmatpush2.bf16.msra.mxu0 0
        %1026 = vmatprep.subr.bf16.mxu0 0
        %1027 = vmatpush2.bf16.msra.mxu0 0
        %1028 = vmatprep.subr.bf16.mxu0 0
        %1029 = vmatpush2.bf16.msra.mxu0 0
        %1030 = vmatprep.subr.bf16.mxu0 0
        %1031 = vmatpush2.bf16.msra.mxu0 0
        %1032 = vmatprep.mubr.bf16.mxu0 0
        %1033 = vmatmul.mubr.bf16.gmra.mxu0 %v854
        %v1034 = vpop.f32.mrf.mxu0
        %v1035 = vadd.f32 %v860, %v1034
        %v1036 = vpop.f32.mrf.mxu0
        %v1037 = vadd.f32 %v864, %v1036
        %v1038 = vpop.f32.mrf.mxu0
        %v1039 = vpop.f32.mrf.mxu0
        %1040 = vdwg.mxu0
        %1041 = vmatprep.subr.bf16.mxu0 0
        %1042 = vmatpush1.bf16.msra.mxu0 %v975
        %1043 = vmatprep.subr.bf16.mxu0 0
        %1044 = vmatpush1.bf16.msra.mxu0 %v972
        %1045 = vmatprep.subr.bf16.mxu0 0
        %1046 = vmatpush1.bf16.msra.mxu0 %v969
        %1047 = vmatprep.subr.bf16.mxu0 0
        %1048 = vmatpush1.bf16.msra.mxu0 %v966
        %1049 = vmatprep.subr.bf16.mxu0 0
        %1050 = vmatpush1.bf16.msra.mxu0 %v963
        %1051 = vmatprep.subr.bf16.mxu0 0
        %1052 = vmatpush1.bf16.msra.mxu0 %v960
        %1053 = vmatprep.subr.bf16.mxu0 0
        %1054 = vmatpush1.bf16.msra.mxu0 %v957
        %1055 = vmatprep.subr.bf16.mxu0 0
        %1056 = vmatpush1.bf16.msra.mxu0 %v954
        %1057 = vmatprep.subr.bf16.mxu0 0
        %1058 = vmatpush2.bf16.msra.mxu0 0
        %1059 = vmatprep.subr.bf16.mxu0 0
        %1060 = vmatpush2.bf16.msra.mxu0 0
        %1061 = vmatprep.subr.bf16.mxu0 0
        %1062 = vmatpush2.bf16.msra.mxu0 0
        %1063 = vmatprep.subr.bf16.mxu0 0
        %1064 = vmatpush2.bf16.msra.mxu0 0
        %1065 = vmatprep.subr.bf16.mxu0 0
        %1066 = vmatpush2.bf16.msra.mxu0 0
        %1067 = vmatprep.subr.bf16.mxu0 0
        %1068 = vmatpush2.bf16.msra.mxu0 0
        %1069 = vmatprep.subr.bf16.mxu0 0
        %1070 = vmatpush2.bf16.msra.mxu0 0
        %1071 = vmatprep.subr.bf16.mxu0 0
        %1072 = vmatpush2.bf16.msra.mxu0 0
        %1073 = vmatprep.mubr.bf16.mxu0 0
        %1074 = vmatmul.mubr.bf16.gmra.mxu0 %v854
        %v1075 = vpop.f32.mrf.mxu0
        %v1076 = vadd.f32 %v868, %v1075
        %v1077 = vpop.f32.mrf.mxu0
        %v1078 = vpop.f32.mrf.mxu0
        %v1079 = vpop.f32.mrf.mxu0
        %1080 = vdwg.mxu0
        %v1082 = vcombine.high %v707, %v707
        %v1084 = vunpack.c.l.s4 1966171168
        %v1085 = vunpack.c.0.s8 %v1084
        %v1086 = vlaneseq
        %v1087 = vshrl.u32 %v1086, 7
        %v1088 = vsub.s32 %v1085, %v1087
        %v1089 = vrot.slane %v707, %v1088
        %v1091 = vunpack.c.l.s4 1966171168
        %v1092 = vunpack.c.0.s8 %v1091
        %v1093 = vlaneseq
        %v1094 = vshrl.u32 %v1093, 7
        %v1095 = vsub.s32 %v1092, %v1094
        %v1096 = vrot.slane %v1082, %v1095
        %v1097 = vcombine.high %v1089, %v1089
        %v1098 = vcombine.high %v1096, %v1096
        %v1100 = vunpack.c.l.s4 1966171168
        %v1101 = vunpack.c.0.s8 %v1100
        %v1102 = vlaneseq
        %v1103 = vshrl.u32 %v1102, 7
        %v1104 = vsub.s32 %v1101, %v1103
        %v1105 = vrot.slane %v1089, %v1104
        %v1107 = vunpack.c.l.s4 1966171168
        %v1108 = vunpack.c.0.s8 %v1107
        %v1109 = vlaneseq
        %v1110 = vshrl.u32 %v1109, 7
        %v1111 = vsub.s32 %v1108, %v1110
        %v1112 = vrot.slane %v1096, %v1111
        %v1114 = vunpack.c.l.s4 1966171168
        %v1115 = vunpack.c.0.s8 %v1114
        %v1116 = vlaneseq
        %v1117 = vshrl.u32 %v1116, 7
        %v1118 = vsub.s32 %v1115, %v1117
        %v1119 = vrot.slane %v1097, %v1118
        %v1121 = vunpack.c.l.s4 1966171168
        %v1122 = vunpack.c.0.s8 %v1121
        %v1123 = vlaneseq
        %v1124 = vshrl.u32 %v1123, 7
        %v1125 = vsub.s32 %v1122, %v1124
        %v1126 = vrot.slane %v1098, %v1125
        %v1127 = vcombine.high %v1105, %v1105
        %v1128 = vcombine.high %v1112, %v1112
        %v1129 = vcombine.high %v1119, %v1119
        %v1130 = vcombine.high %v1126, %v1126
        %v1131 = vlaneseq
        %v1132 = vshrl.u32 %v1131, 7
        %v1133 = vsub.s32 0, %v1132
        %v1134 = vrot.slane %v1105, %v1133
        %v1135 = vlaneseq
        %v1136 = vshrl.u32 %v1135, 7
        %v1137 = vsub.s32 0, %v1136
        %v1138 = vrot.slane %v1119, %v1137
        %v1139 = vlaneseq
        %v1140 = vshrl.u32 %v1139, 7
        %v1141 = vsub.s32 0, %v1140
        %v1142 = vrot.slane %v1127, %v1141
        %v1143 = vlaneseq
        %v1144 = vshrl.u32 %v1143, 7
        %v1145 = vsub.s32 0, %v1144
        %v1146 = vrot.slane %v1129, %v1145
        %v1147 = vlaneseq
        %v1148 = vshrl.u32 %v1147, 7
        %v1149 = vsub.s32 0, %v1148
        %v1150 = vrot.slane %v1112, %v1149
        %v1151 = vlaneseq
        %v1152 = vshrl.u32 %v1151, 7
        %v1153 = vsub.s32 0, %v1152
        %v1154 = vrot.slane %v1126, %v1153
        %v1155 = vlaneseq
        %v1156 = vshrl.u32 %v1155, 7
        %v1157 = vsub.s32 0, %v1156
        %v1158 = vrot.slane %v1128, %v1157
        %v1159 = vlaneseq
        %v1160 = vshrl.u32 %v1159, 7
        %v1161 = vsub.s32 0, %v1160
        %v1162 = vrot.slane %v1130, %v1161
        %v1171 = vmul.f32 %v1035, %v1134
        %v1172 = vmul.f32 %v1035, %v1138
        %v1173 = vmul.f32 %v1035, %v1142
        %v1174 = vmul.f32 %v1035, %v1146
        %v1175 = vmul.f32 %v1035, %v1150
        %v1176 = vmul.f32 %v1035, %v1154
        %v1177 = vmul.f32 %v1035, %v1158
        %v1178 = vmul.f32 %v1035, %v1162
        %v1179 = vpack.c.bf16 %v1172, %v1171
        %v1180 = vpack.c.bf16 %v1174, %v1173
        %v1181 = vpack.c.bf16 %v1176, %v1175
        %v1182 = vpack.c.bf16 %v1178, %v1177
        %v1183 = vpack.c.bf16 %v1037, %v1037
        %1184 = vmatprep.subr.bf16.mxu0 0
        %1185 = vmatpush1.bf16.xpose.msra.mxu0 0
        %1186 = vmatprep.subr.bf16.mxu0 0
        %1187 = vmatpush1.bf16.xpose.msra.mxu0 0
        %1188 = vmatprep.subr.bf16.mxu0 0
        %1189 = vmatpush1.bf16.xpose.msra.mxu0 0
        %1190 = vmatprep.subr.bf16.mxu0 0
        %1191 = vmatpush1.bf16.xpose.msra.mxu0 0
        %1192 = vmatprep.subr.bf16.mxu0 0
        %1193 = vmatpush1.bf16.xpose.msra.mxu0 0
        %1194 = vmatprep.subr.bf16.mxu0 0
        %1195 = vmatpush1.bf16.xpose.msra.mxu0 0
        %1196 = vmatprep.subr.bf16.mxu0 0
        %1197 = vmatpush1.bf16.xpose.msra.mxu0 0
        %1198 = vmatprep.subr.bf16.mxu0 0
        %1199 = vmatpush1.bf16.xpose.msra.mxu0 %v1183
        %1200 = vmatprep.subr.bf16.mxu0 0
        %1201 = vmatpush2.bf16.xpose.msra.mxu0 0
        %1202 = vmatprep.subr.bf16.mxu0 0
        %1203 = vmatpush2.bf16.xpose.msra.mxu0 0
        %1204 = vmatprep.subr.bf16.mxu0 0
        %1205 = vmatpush2.bf16.xpose.msra.mxu0 0
        %1206 = vmatprep.subr.bf16.mxu0 0
        %1207 = vmatpush2.bf16.xpose.msra.mxu0 0
        %1208 = vmatprep.subr.bf16.mxu0 0
        %1209 = vmatpush2.bf16.xpose.msra.mxu0 0
        %1210 = vmatprep.subr.bf16.mxu0 0
        %1211 = vmatpush2.bf16.xpose.msra.mxu0 0
        %1212 = vmatprep.subr.bf16.mxu0 0
        %1213 = vmatpush2.bf16.xpose.msra.mxu0 0
        %1214 = vmatprep.subr.bf16.mxu0 0
        %1215 = vmatpush2.bf16.xpose.msra.mxu0 0
        %1216 = vmatprep.mubr.bf16.mxu0 0
        %1217 = vmatmul.mubr.bf16.gmra.mxu0 %v1179
        %v1218 = vpop.f32.mrf.mxu0
        %v1219 = vadd.f32 0.0, %v1218
        %v1220 = vpop.f32.mrf.mxu0
        %v1221 = vpop.f32.mrf.mxu0
        %v1222 = vadd.f32 0.0, %v1221
        %v1223 = vpop.f32.mrf.mxu0
        %1224 = vmatprep.mubr.bf16.mxu0 0
        %1225 = vmatmul.mubr.bf16.gmra.mxu0 %v1180
        %v1226 = vpop.f32.mrf.mxu0
        %v1227 = vadd.f32 0.0, %v1226
        %v1228 = vpop.f32.mrf.mxu0
        %v1229 = vpop.f32.mrf.mxu0
        %v1230 = vadd.f32 0.0, %v1229
        %v1231 = vpop.f32.mrf.mxu0
        %1232 = vmatprep.mubr.bf16.mxu0 0
        %1233 = vmatmul.mubr.bf16.gmra.mxu0 %v1181
        %v1234 = vpop.f32.mrf.mxu0
        %v1235 = vadd.f32 0.0, %v1234
        %v1236 = vpop.f32.mrf.mxu0
        %v1237 = vpop.f32.mrf.mxu0
        %v1238 = vadd.f32 0.0, %v1237
        %v1239 = vpop.f32.mrf.mxu0
        %1240 = vmatprep.mubr.bf16.mxu0 0
        %1241 = vmatmul.mubr.bf16.gmra.mxu0 %v1182
        %v1242 = vpop.f32.mrf.mxu0
        %v1243 = vadd.f32 0.0, %v1242
        %v1244 = vpop.f32.mrf.mxu0
        %v1245 = vpop.f32.mrf.mxu0
        %v1246 = vadd.f32 0.0, %v1245
        %v1247 = vpop.f32.mrf.mxu0
        %1248 = vdwg.mxu0
        %vm1249 = vcmask 64512
        %v1250 = vsel %vm1249, %v1219, -inf
        %1251 = vmax.xlane.f32.xlu0 %v1250
        %v1252 = vpop.xlane.xlu0 %1251
        %v1253 = vsel %vm1249, %v1222, -inf
        %1254 = vmax.xlane.f32.xlu0 %v1253
        %v1255 = vpop.xlane.xlu0 %1254
        %v1256 = vsel %vm1249, %v1227, -inf
        %1257 = vmax.xlane.f32.xlu0 %v1256
        %v1258 = vpop.xlane.xlu0 %1257
        %v1259 = vsel %vm1249, %v1230, -inf
        %1260 = vmax.xlane.f32.xlu0 %v1259
        %v1261 = vpop.xlane.xlu0 %1260
        %v1262 = vsel %vm1249, %v1235, -inf
        %1263 = vmax.xlane.f32.xlu0 %v1262
        %v1264 = vpop.xlane.xlu0 %1263
        %v1265 = vsel %vm1249, %v1238, -inf
        %1266 = vmax.xlane.f32.xlu0 %v1265
        %v1267 = vpop.xlane.xlu0 %1266
        %v1268 = vsel %vm1249, %v1243, -inf
        %1269 = vmax.xlane.f32.xlu0 %v1268
        %v1270 = vpop.xlane.xlu0 %1269
        %v1271 = vsel %vm1249, %v1246, -inf
        %1272 = vmax.xlane.f32.xlu0 %v1271
        %v1273 = vpop.xlane.xlu0 %1272
        %v1274 = vsub.f32 %v1219, %v1252
        %v1275 = vsub.f32 %v1222, %v1255
        %v1276 = vsub.f32 %v1227, %v1258
        %v1277 = vsub.f32 %v1230, %v1261
        %v1278 = vsub.f32 %v1235, %v1264
        %v1279 = vsub.f32 %v1238, %v1267
        %v1280 = vsub.f32 %v1243, %v1270
        %v1281 = vsub.f32 %v1246, %v1273
        %v1282 = vmul.f32 %v1274, 1.442695
        %v1283 = vpow.pop %v1282
        %v1284 = vmul.f32 %v1275, 1.442695
        %v1285 = vpow.pop %v1284
        %v1286 = vmul.f32 %v1276, 1.442695
        %v1287 = vpow.pop %v1286
        %v1288 = vmul.f32 %v1277, 1.442695
        %v1289 = vpow.pop %v1288
        %v1290 = vmul.f32 %v1278, 1.442695
        %v1291 = vpow.pop %v1290
        %v1292 = vmul.f32 %v1279, 1.442695
        %v1293 = vpow.pop %v1292
        %v1294 = vmul.f32 %v1280, 1.442695
        %v1295 = vpow.pop %v1294
        %v1296 = vmul.f32 %v1281, 1.442695
        %v1297 = vpow.pop %v1296
        %v1298 = vsel %vm1249, %v1283, 0.0
        %1299 = vadd.xlane.f32.xlu0 %v1298
        %v1300 = vpop.xlane.xlu0 %1299
        %v1301 = vsel %vm1249, %v1285, 0.0
        %1302 = vadd.xlane.f32.xlu0 %v1301
        %v1303 = vpop.xlane.xlu0 %1302
        %v1304 = vsel %vm1249, %v1287, 0.0
        %1305 = vadd.xlane.f32.xlu0 %v1304
        %v1306 = vpop.xlane.xlu0 %1305
        %v1307 = vsel %vm1249, %v1289, 0.0
        %1308 = vadd.xlane.f32.xlu0 %v1307
        %v1309 = vpop.xlane.xlu0 %1308
        %v1310 = vsel %vm1249, %v1291, 0.0
        %1311 = vadd.xlane.f32.xlu0 %v1310
        %v1312 = vpop.xlane.xlu0 %1311
        %v1313 = vsel %vm1249, %v1293, 0.0
        %1314 = vadd.xlane.f32.xlu0 %v1313
        %v1315 = vpop.xlane.xlu0 %1314
        %v1316 = vsel %vm1249, %v1295, 0.0
        %1317 = vadd.xlane.f32.xlu0 %v1316
        %v1318 = vpop.xlane.xlu0 %1317
        %v1319 = vsel %vm1249, %v1297, 0.0
        %1320 = vadd.xlane.f32.xlu0 %v1319
        %v1321 = vpop.xlane.xlu0 %1320
        %v1322 = vrcp.pop %v1300
        %v1323 = vrcp.pop %v1303
        %v1324 = vrcp.pop %v1306
        %v1325 = vrcp.pop %v1309
        %v1326 = vrcp.pop %v1312
        %v1327 = vrcp.pop %v1315
        %v1328 = vrcp.pop %v1318
        %v1329 = vrcp.pop %v1321
        %v1330 = vmul.f32 %v1283, %v1322
        %v1331 = vmul.f32 %v1285, %v1323
        %v1332 = vmul.f32 %v1287, %v1324
        %v1333 = vmul.f32 %v1289, %v1325
        %v1334 = vmul.f32 %v1291, %v1326
        %v1335 = vmul.f32 %v1293, %v1327
        %v1336 = vmul.f32 %v1295, %v1328
        %v1337 = vmul.f32 %v1297, %v1329
        %v1339 = vcombine.high %v706, %v706
        %v1341 = vunpack.c.l.s4 1966171168
        %v1342 = vunpack.c.0.s8 %v1341
        %v1343 = vlaneseq
        %v1344 = vshrl.u32 %v1343, 7
        %v1345 = vsub.s32 %v1342, %v1344
        %v1346 = vrot.slane %v706, %v1345
        %v1348 = vunpack.c.l.s4 1966171168
        %v1349 = vunpack.c.0.s8 %v1348
        %v1350 = vlaneseq
        %v1351 = vshrl.u32 %v1350, 7
        %v1352 = vsub.s32 %v1349, %v1351
        %v1353 = vrot.slane %v1339, %v1352
        %v1354 = vcombine.high %v1346, %v1346
        %v1355 = vcombine.high %v1353, %v1353
        %v1357 = vunpack.c.l.s4 1966171168
        %v1358 = vunpack.c.0.s8 %v1357
        %v1359 = vlaneseq
        %v1360 = vshrl.u32 %v1359, 7
        %v1361 = vsub.s32 %v1358, %v1360
        %v1362 = vrot.slane %v1346, %v1361
        %v1364 = vunpack.c.l.s4 1966171168
        %v1365 = vunpack.c.0.s8 %v1364
        %v1366 = vlaneseq
        %v1367 = vshrl.u32 %v1366, 7
        %v1368 = vsub.s32 %v1365, %v1367
        %v1369 = vrot.slane %v1353, %v1368
        %v1371 = vunpack.c.l.s4 1966171168
        %v1372 = vunpack.c.0.s8 %v1371
        %v1373 = vlaneseq
        %v1374 = vshrl.u32 %v1373, 7
        %v1375 = vsub.s32 %v1372, %v1374
        %v1376 = vrot.slane %v1354, %v1375
        %v1378 = vunpack.c.l.s4 1966171168
        %v1379 = vunpack.c.0.s8 %v1378
        %v1380 = vlaneseq
        %v1381 = vshrl.u32 %v1380, 7
        %v1382 = vsub.s32 %v1379, %v1381
        %v1383 = vrot.slane %v1355, %v1382
        %v1384 = vcombine.high %v1362, %v1362
        %v1385 = vcombine.high %v1369, %v1369
        %v1386 = vcombine.high %v1376, %v1376
        %v1387 = vcombine.high %v1383, %v1383
        %v1388 = vlaneseq
        %v1389 = vshrl.u32 %v1388, 7
        %v1390 = vsub.s32 0, %v1389
        %v1391 = vrot.slane %v1362, %v1390
        %v1392 = vlaneseq
        %v1393 = vshrl.u32 %v1392, 7
        %v1394 = vsub.s32 0, %v1393
        %v1395 = vrot.slane %v1376, %v1394
        %v1396 = vlaneseq
        %v1397 = vshrl.u32 %v1396, 7
        %v1398 = vsub.s32 0, %v1397
        %v1399 = vrot.slane %v1384, %v1398
        %v1400 = vlaneseq
        %v1401 = vshrl.u32 %v1400, 7
        %v1402 = vsub.s32 0, %v1401
        %v1403 = vrot.slane %v1386, %v1402
        %v1404 = vlaneseq
        %v1405 = vshrl.u32 %v1404, 7
        %v1406 = vsub.s32 0, %v1405
        %v1407 = vrot.slane %v1369, %v1406
        %v1408 = vlaneseq
        %v1409 = vshrl.u32 %v1408, 7
        %v1410 = vsub.s32 0, %v1409
        %v1411 = vrot.slane %v1383, %v1410
        %v1412 = vlaneseq
        %v1413 = vshrl.u32 %v1412, 7
        %v1414 = vsub.s32 0, %v1413
        %v1415 = vrot.slane %v1385, %v1414
        %v1416 = vlaneseq
        %v1417 = vshrl.u32 %v1416, 7
        %v1418 = vsub.s32 0, %v1417
        %v1419 = vrot.slane %v1387, %v1418
        %v1428 = vmul.f32 %v1076, %v1391
        %v1429 = vmul.f32 %v1076, %v1395
        %v1430 = vmul.f32 %v1076, %v1399
        %v1431 = vmul.f32 %v1076, %v1403
        %v1432 = vmul.f32 %v1076, %v1407
        %v1433 = vmul.f32 %v1076, %v1411
        %v1434 = vmul.f32 %v1076, %v1415
        %v1435 = vmul.f32 %v1076, %v1419
        %v1436 = vpack.c.bf16 %v1330, %v1330
        %v1437 = vpack.c.bf16 %v1331, %v1331
        %v1438 = vpack.c.bf16 %v1332, %v1332
        %v1439 = vpack.c.bf16 %v1333, %v1333
        %v1440 = vpack.c.bf16 %v1334, %v1334
        %v1441 = vpack.c.bf16 %v1335, %v1335
        %v1442 = vpack.c.bf16 %v1336, %v1336
        %v1443 = vpack.c.bf16 %v1337, %v1337
        %v1444 = vpack.c.bf16 %v1428, %v1428
        %v1445 = vpack.c.bf16 %v1429, %v1429
        %v1446 = vpack.c.bf16 %v1430, %v1430
        %v1447 = vpack.c.bf16 %v1431, %v1431
        %v1448 = vpack.c.bf16 %v1432, %v1432
        %v1449 = vpack.c.bf16 %v1433, %v1433
        %v1450 = vpack.c.bf16 %v1434, %v1434
        %v1451 = vpack.c.bf16 %v1435, %v1435
        %v1453 = vsel %vm1249, %v1436, 0
        %vm1455 = vcmask 1043456
        %v1457 = vsel %vm1455, %v1444, 0
        %1459 = vmatprep.subr.bf16.mxu0 0
        %1460 = vmatpush1.bf16.msra.mxu0 0
        %1461 = vmatprep.subr.bf16.mxu0 0
        %1462 = vmatpush1.bf16.msra.mxu0 0
        %1463 = vmatprep.subr.bf16.mxu0 0
        %1464 = vmatpush1.bf16.msra.mxu0 0
        %1465 = vmatprep.subr.bf16.mxu0 0
        %1466 = vmatpush1.bf16.msra.mxu0 0
        %1467 = vmatprep.subr.bf16.mxu0 0
        %1468 = vmatpush1.bf16.msra.mxu0 0
        %1469 = vmatprep.subr.bf16.mxu0 0
        %1470 = vmatpush1.bf16.msra.mxu0 0
        %1471 = vmatprep.subr.bf16.mxu0 0
        %1472 = vmatpush1.bf16.msra.mxu0 0
        %1473 = vmatprep.subr.bf16.mxu0 0
        %1474 = vmatpush1.bf16.msra.mxu0 %v1457
        %1475 = vmatprep.subr.bf16.mxu0 0
        %1476 = vmatpush2.bf16.msra.mxu0 0
        %1477 = vmatprep.subr.bf16.mxu0 0
        %1478 = vmatpush2.bf16.msra.mxu0 0
        %1479 = vmatprep.subr.bf16.mxu0 0
        %1480 = vmatpush2.bf16.msra.mxu0 0
        %1481 = vmatprep.subr.bf16.mxu0 0
        %1482 = vmatpush2.bf16.msra.mxu0 0
        %1483 = vmatprep.subr.bf16.mxu0 0
        %1484 = vmatpush2.bf16.msra.mxu0 0
        %1485 = vmatprep.subr.bf16.mxu0 0
        %1486 = vmatpush2.bf16.msra.mxu0 0
        %1487 = vmatprep.subr.bf16.mxu0 0
        %1488 = vmatpush2.bf16.msra.mxu0 0
        %1489 = vmatprep.subr.bf16.mxu0 0
        %1490 = vmatpush2.bf16.msra.mxu0 0
        %1491 = vmatprep.mubr.bf16.mxu0 0
        %1492 = vmatmul.mubr.bf16.gmra.mxu0 %v1453
        %v1493 = vpop.f32.mrf.mxu0
        %v1494 = vadd.f32 0.0, %v1493
        %v1495 = vpop.f32.mrf.mxu0
        %v1496 = vpop.f32.mrf.mxu0
        %v1497 = vpop.f32.mrf.mxu0
        %1498 = vdwg.mxu0
        %v1500 = vsel %vm1249, %v1437, 0
        %v1503 = vsel %vm1455, %v1445, 0
        %1505 = vmatprep.subr.bf16.mxu0 0
        %1506 = vmatpush1.bf16.msra.mxu0 0
        %1507 = vmatprep.subr.bf16.mxu0 0
        %1508 = vmatpush1.bf16.msra.mxu0 0
        %1509 = vmatprep.subr.bf16.mxu0 0
        %1510 = vmatpush1.bf16.msra.mxu0 0
        %1511 = vmatprep.subr.bf16.mxu0 0
        %1512 = vmatpush1.bf16.msra.mxu0 0
        %1513 = vmatprep.subr.bf16.mxu0 0
        %1514 = vmatpush1.bf16.msra.mxu0 0
        %1515 = vmatprep.subr.bf16.mxu0 0
        %1516 = vmatpush1.bf16.msra.mxu0 0
        %1517 = vmatprep.subr.bf16.mxu0 0
        %1518 = vmatpush1.bf16.msra.mxu0 0
        %1519 = vmatprep.subr.bf16.mxu0 0
        %1520 = vmatpush1.bf16.msra.mxu0 %v1503
        %1521 = vmatprep.subr.bf16.mxu0 0
        %1522 = vmatpush2.bf16.msra.mxu0 0
        %1523 = vmatprep.subr.bf16.mxu0 0
        %1524 = vmatpush2.bf16.msra.mxu0 0
        %1525 = vmatprep.subr.bf16.mxu0 0
        %1526 = vmatpush2.bf16.msra.mxu0 0
        %1527 = vmatprep.subr.bf16.mxu0 0
        %1528 = vmatpush2.bf16.msra.mxu0 0
        %1529 = vmatprep.subr.bf16.mxu0 0
        %1530 = vmatpush2.bf16.msra.mxu0 0
        %1531 = vmatprep.subr.bf16.mxu0 0
        %1532 = vmatpush2.bf16.msra.mxu0 0
        %1533 = vmatprep.subr.bf16.mxu0 0
        %1534 = vmatpush2.bf16.msra.mxu0 0
        %1535 = vmatprep.subr.bf16.mxu0 0
        %1536 = vmatpush2.bf16.msra.mxu0 0
        %1537 = vmatprep.mubr.bf16.mxu0 0
        %1538 = vmatmul.mubr.bf16.gmra.mxu0 %v1500
        %v1539 = vpop.f32.mrf.mxu0
        %v1540 = vadd.f32 0.0, %v1539
        %v1541 = vpop.f32.mrf.mxu0
        %v1542 = vpop.f32.mrf.mxu0
        %v1543 = vpop.f32.mrf.mxu0
        %1544 = vdwg.mxu0
        %v1546 = vsel %vm1249, %v1438, 0
        %v1549 = vsel %vm1455, %v1446, 0
        %1551 = vmatprep.subr.bf16.mxu0 0
        %1552 = vmatpush1.bf16.msra.mxu0 0
        %1553 = vmatprep.subr.bf16.mxu0 0
        %1554 = vmatpush1.bf16.msra.mxu0 0
        %1555 = vmatprep.subr.bf16.mxu0 0
        %1556 = vmatpush1.bf16.msra.mxu0 0
        %1557 = vmatprep.subr.bf16.mxu0 0
        %1558 = vmatpush1.bf16.msra.mxu0 0
        %1559 = vmatprep.subr.bf16.mxu0 0
        %1560 = vmatpush1.bf16.msra.mxu0 0
        %1561 = vmatprep.subr.bf16.mxu0 0
        %1562 = vmatpush1.bf16.msra.mxu0 0
        %1563 = vmatprep.subr.bf16.mxu0 0
        %1564 = vmatpush1.bf16.msra.mxu0 0
        %1565 = vmatprep.subr.bf16.mxu0 0
        %1566 = vmatpush1.bf16.msra.mxu0 %v1549
        %1567 = vmatprep.subr.bf16.mxu0 0
        %1568 = vmatpush2.bf16.msra.mxu0 0
        %1569 = vmatprep.subr.bf16.mxu0 0
        %1570 = vmatpush2.bf16.msra.mxu0 0
        %1571 = vmatprep.subr.bf16.mxu0 0
        %1572 = vmatpush2.bf16.msra.mxu0 0
        %1573 = vmatprep.subr.bf16.mxu0 0
        %1574 = vmatpush2.bf16.msra.mxu0 0
        %1575 = vmatprep.subr.bf16.mxu0 0
        %1576 = vmatpush2.bf16.msra.mxu0 0
        %1577 = vmatprep.subr.bf16.mxu0 0
        %1578 = vmatpush2.bf16.msra.mxu0 0
        %1579 = vmatprep.subr.bf16.mxu0 0
        %1580 = vmatpush2.bf16.msra.mxu0 0
        %1581 = vmatprep.subr.bf16.mxu0 0
        %1582 = vmatpush2.bf16.msra.mxu0 0
        %1583 = vmatprep.mubr.bf16.mxu0 0
        %1584 = vmatmul.mubr.bf16.gmra.mxu0 %v1546
        %v1585 = vpop.f32.mrf.mxu0
        %v1586 = vadd.f32 0.0, %v1585
        %v1587 = vpop.f32.mrf.mxu0
        %v1588 = vpop.f32.mrf.mxu0
        %v1589 = vpop.f32.mrf.mxu0
        %1590 = vdwg.mxu0
        %v1592 = vsel %vm1249, %v1439, 0
        %v1595 = vsel %vm1455, %v1447, 0
        %1597 = vmatprep.subr.bf16.mxu0 0
        %1598 = vmatpush1.bf16.msra.mxu0 0
        %1599 = vmatprep.subr.bf16.mxu0 0
        %1600 = vmatpush1.bf16.msra.mxu0 0
        %1601 = vmatprep.subr.bf16.mxu0 0
        %1602 = vmatpush1.bf16.msra.mxu0 0
        %1603 = vmatprep.subr.bf16.mxu0 0
        %1604 = vmatpush1.bf16.msra.mxu0 0
        %1605 = vmatprep.subr.bf16.mxu0 0
        %1606 = vmatpush1.bf16.msra.mxu0 0
        %1607 = vmatprep.subr.bf16.mxu0 0
        %1608 = vmatpush1.bf16.msra.mxu0 0
        %1609 = vmatprep.subr.bf16.mxu0 0
        %1610 = vmatpush1.bf16.msra.mxu0 0
        %1611 = vmatprep.subr.bf16.mxu0 0
        %1612 = vmatpush1.bf16.msra.mxu0 %v1595
        %1613 = vmatprep.subr.bf16.mxu0 0
        %1614 = vmatpush2.bf16.msra.mxu0 0
        %1615 = vmatprep.subr.bf16.mxu0 0
        %1616 = vmatpush2.bf16.msra.mxu0 0
        %1617 = vmatprep.subr.bf16.mxu0 0
        %1618 = vmatpush2.bf16.msra.mxu0 0
        %1619 = vmatprep.subr.bf16.mxu0 0
        %1620 = vmatpush2.bf16.msra.mxu0 0
        %1621 = vmatprep.subr.bf16.mxu0 0
        %1622 = vmatpush2.bf16.msra.mxu0 0
        %1623 = vmatprep.subr.bf16.mxu0 0
        %1624 = vmatpush2.bf16.msra.mxu0 0
        %1625 = vmatprep.subr.bf16.mxu0 0
        %1626 = vmatpush2.bf16.msra.mxu0 0
        %1627 = vmatprep.subr.bf16.mxu0 0
        %1628 = vmatpush2.bf16.msra.mxu0 0
        %1629 = vmatprep.mubr.bf16.mxu0 0
        %1630 = vmatmul.mubr.bf16.gmra.mxu0 %v1592
        %v1631 = vpop.f32.mrf.mxu0
        %v1632 = vadd.f32 0.0, %v1631
        %v1633 = vpop.f32.mrf.mxu0
        %v1634 = vpop.f32.mrf.mxu0
        %v1635 = vpop.f32.mrf.mxu0
        %1636 = vdwg.mxu0
        %v1638 = vsel %vm1249, %v1440, 0
        %v1641 = vsel %vm1455, %v1448, 0
        %1643 = vmatprep.subr.bf16.mxu0 0
        %1644 = vmatpush1.bf16.msra.mxu0 0
        %1645 = vmatprep.subr.bf16.mxu0 0
        %1646 = vmatpush1.bf16.msra.mxu0 0
        %1647 = vmatprep.subr.bf16.mxu0 0
        %1648 = vmatpush1.bf16.msra.mxu0 0
        %1649 = vmatprep.subr.bf16.mxu0 0
        %1650 = vmatpush1.bf16.msra.mxu0 0
        %1651 = vmatprep.subr.bf16.mxu0 0
        %1652 = vmatpush1.bf16.msra.mxu0 0
        %1653 = vmatprep.subr.bf16.mxu0 0
        %1654 = vmatpush1.bf16.msra.mxu0 0
        %1655 = vmatprep.subr.bf16.mxu0 0
        %1656 = vmatpush1.bf16.msra.mxu0 0
        %1657 = vmatprep.subr.bf16.mxu0 0
        %1658 = vmatpush1.bf16.msra.mxu0 %v1641
        %1659 = vmatprep.subr.bf16.mxu0 0
        %1660 = vmatpush2.bf16.msra.mxu0 0
        %1661 = vmatprep.subr.bf16.mxu0 0
        %1662 = vmatpush2.bf16.msra.mxu0 0
        %1663 = vmatprep.subr.bf16.mxu0 0
        %1664 = vmatpush2.bf16.msra.mxu0 0
        %1665 = vmatprep.subr.bf16.mxu0 0
        %1666 = vmatpush2.bf16.msra.mxu0 0
        %1667 = vmatprep.subr.bf16.mxu0 0
        %1668 = vmatpush2.bf16.msra.mxu0 0
        %1669 = vmatprep.subr.bf16.mxu0 0
        %1670 = vmatpush2.bf16.msra.mxu0 0
        %1671 = vmatprep.subr.bf16.mxu0 0
        %1672 = vmatpush2.bf16.msra.mxu0 0
        %1673 = vmatprep.subr.bf16.mxu0 0
        %1674 = vmatpush2.bf16.msra.mxu0 0
        %1675 = vmatprep.mubr.bf16.mxu0 0
        %1676 = vmatmul.mubr.bf16.gmra.mxu0 %v1638
        %v1677 = vpop.f32.mrf.mxu0
        %v1678 = vadd.f32 0.0, %v1677
        %v1679 = vpop.f32.mrf.mxu0
        %v1680 = vpop.f32.mrf.mxu0
        %v1681 = vpop.f32.mrf.mxu0
        %1682 = vdwg.mxu0
        %v1684 = vsel %vm1249, %v1441, 0
        %v1687 = vsel %vm1455, %v1449, 0
        %1689 = vmatprep.subr.bf16.mxu0 0
        %1690 = vmatpush1.bf16.msra.mxu0 0
        %1691 = vmatprep.subr.bf16.mxu0 0
        %1692 = vmatpush1.bf16.msra.mxu0 0
        %1693 = vmatprep.subr.bf16.mxu0 0
        %1694 = vmatpush1.bf16.msra.mxu0 0
        %1695 = vmatprep.subr.bf16.mxu0 0
        %1696 = vmatpush1.bf16.msra.mxu0 0
        %1697 = vmatprep.subr.bf16.mxu0 0
        %1698 = vmatpush1.bf16.msra.mxu0 0
        %1699 = vmatprep.subr.bf16.mxu0 0
        %1700 = vmatpush1.bf16.msra.mxu0 0
        %1701 = vmatprep.subr.bf16.mxu0 0
        %1702 = vmatpush1.bf16.msra.mxu0 0
        %1703 = vmatprep.subr.bf16.mxu0 0
        %1704 = vmatpush1.bf16.msra.mxu0 %v1687
        %1705 = vmatprep.subr.bf16.mxu0 0
        %1706 = vmatpush2.bf16.msra.mxu0 0
        %1707 = vmatprep.subr.bf16.mxu0 0
        %1708 = vmatpush2.bf16.msra.mxu0 0
        %1709 = vmatprep.subr.bf16.mxu0 0
        %1710 = vmatpush2.bf16.msra.mxu0 0
        %1711 = vmatprep.subr.bf16.mxu0 0
        %1712 = vmatpush2.bf16.msra.mxu0 0
        %1713 = vmatprep.subr.bf16.mxu0 0
        %1714 = vmatpush2.bf16.msra.mxu0 0
        %1715 = vmatprep.subr.bf16.mxu0 0
        %1716 = vmatpush2.bf16.msra.mxu0 0
        %1717 = vmatprep.subr.bf16.mxu0 0
        %1718 = vmatpush2.bf16.msra.mxu0 0
        %1719 = vmatprep.subr.bf16.mxu0 0
        %1720 = vmatpush2.bf16.msra.mxu0 0
        %1721 = vmatprep.mubr.bf16.mxu0 0
        %1722 = vmatmul.mubr.bf16.gmra.mxu0 %v1684
        %v1723 = vpop.f32.mrf.mxu0
        %v1724 = vadd.f32 0.0, %v1723
        %v1725 = vpop.f32.mrf.mxu0
        %v1726 = vpop.f32.mrf.mxu0
        %v1727 = vpop.f32.mrf.mxu0
        %1728 = vdwg.mxu0
        %v1730 = vsel %vm1249, %v1442, 0
        %v1733 = vsel %vm1455, %v1450, 0
        %1735 = vmatprep.subr.bf16.mxu0 0
        %1736 = vmatpush1.bf16.msra.mxu0 0
        %1737 = vmatprep.subr.bf16.mxu0 0
        %1738 = vmatpush1.bf16.msra.mxu0 0
        %1739 = vmatprep.subr.bf16.mxu0 0
        %1740 = vmatpush1.bf16.msra.mxu0 0
        %1741 = vmatprep.subr.bf16.mxu0 0
        %1742 = vmatpush1.bf16.msra.mxu0 0
        %1743 = vmatprep.subr.bf16.mxu0 0
        %1744 = vmatpush1.bf16.msra.mxu0 0
        %1745 = vmatprep.subr.bf16.mxu0 0
        %1746 = vmatpush1.bf16.msra.mxu0 0
        %1747 = vmatprep.subr.bf16.mxu0 0
        %1748 = vmatpush1.bf16.msra.mxu0 0
        %1749 = vmatprep.subr.bf16.mxu0 0
        %1750 = vmatpush1.bf16.msra.mxu0 %v1733
        %1751 = vmatprep.subr.bf16.mxu0 0
        %1752 = vmatpush2.bf16.msra.mxu0 0
        %1753 = vmatprep.subr.bf16.mxu0 0
        %1754 = vmatpush2.bf16.msra.mxu0 0
        %1755 = vmatprep.subr.bf16.mxu0 0
        %1756 = vmatpush2.bf16.msra.mxu0 0
        %1757 = vmatprep.subr.bf16.mxu0 0
        %1758 = vmatpush2.bf16.msra.mxu0 0
        %1759 = vmatprep.subr.bf16.mxu0 0
        %1760 = vmatpush2.bf16.msra.mxu0 0
        %1761 = vmatprep.subr.bf16.mxu0 0
        %1762 = vmatpush2.bf16.msra.mxu0 0
        %1763 = vmatprep.subr.bf16.mxu0 0
        %1764 = vmatpush2.bf16.msra.mxu0 0
        %1765 = vmatprep.subr.bf16.mxu0 0
        %1766 = vmatpush2.bf16.msra.mxu0 0
        %1767 = vmatprep.mubr.bf16.mxu0 0
        %1768 = vmatmul.mubr.bf16.gmra.mxu0 %v1730
        %v1769 = vpop.f32.mrf.mxu0
        %v1770 = vadd.f32 0.0, %v1769
        %v1771 = vpop.f32.mrf.mxu0
        %v1772 = vpop.f32.mrf.mxu0
        %v1773 = vpop.f32.mrf.mxu0
        %1774 = vdwg.mxu0
        %v1776 = vsel %vm1249, %v1443, 0
        %v1779 = vsel %vm1455, %v1451, 0
        %1781 = vmatprep.subr.bf16.mxu0 0
        %1782 = vmatpush1.bf16.msra.mxu0 0
        %1783 = vmatprep.subr.bf16.mxu0 0
        %1784 = vmatpush1.bf16.msra.mxu0 0
        %1785 = vmatprep.subr.bf16.mxu0 0
        %1786 = vmatpush1.bf16.msra.mxu0 0
        %1787 = vmatprep.subr.bf16.mxu0 0
        %1788 = vmatpush1.bf16.msra.mxu0 0
        %1789 = vmatprep.subr.bf16.mxu0 0
        %1790 = vmatpush1.bf16.msra.mxu0 0
        %1791 = vmatprep.subr.bf16.mxu0 0
        %1792 = vmatpush1.bf16.msra.mxu0 0
        %1793 = vmatprep.subr.bf16.mxu0 0
        %1794 = vmatpush1.bf16.msra.mxu0 0
        %1795 = vmatprep.subr.bf16.mxu0 0
        %1796 = vmatpush1.bf16.msra.mxu0 %v1779
        %1797 = vmatprep.subr.bf16.mxu0 0
        %1798 = vmatpush2.bf16.msra.mxu0 0
        %1799 = vmatprep.subr.bf16.mxu0 0
        %1800 = vmatpush2.bf16.msra.mxu0 0
        %1801 = vmatprep.subr.bf16.mxu0 0
        %1802 = vmatpush2.bf16.msra.mxu0 0
        %1803 = vmatprep.subr.bf16.mxu0 0
        %1804 = vmatpush2.bf16.msra.mxu0 0
        %1805 = vmatprep.subr.bf16.mxu0 0
        %1806 = vmatpush2.bf16.msra.mxu0 0
        %1807 = vmatprep.subr.bf16.mxu0 0
        %1808 = vmatpush2.bf16.msra.mxu0 0
        %1809 = vmatprep.subr.bf16.mxu0 0
        %1810 = vmatpush2.bf16.msra.mxu0 0
        %1811 = vmatprep.subr.bf16.mxu0 0
        %1812 = vmatpush2.bf16.msra.mxu0 0
        %1813 = vmatprep.mubr.bf16.mxu0 0
        %1814 = vmatmul.mubr.bf16.gmra.mxu0 %v1776
        %v1815 = vpop.f32.mrf.mxu0
        %v1816 = vadd.f32 0.0, %v1815
        %v1817 = vpop.f32.mrf.mxu0
        %v1818 = vpop.f32.mrf.mxu0
        %v1819 = vpop.f32.mrf.mxu0
        %1820 = vdwg.mxu0
        %v1821 = vadd.f32 %v1494, %v1540
        %v1822 = vadd.f32 %v1821, %v1586
        %v1823 = vadd.f32 %v1822, %v1632
        %v1824 = vadd.f32 %v1823, %v1678
        %v1825 = vadd.f32 %v1824, %v1724
        %v1826 = vadd.f32 %v1825, %v1770
        %v1827 = vadd.f32 %v1826, %v1816
        %v1828 = vld [vmem:[%s7] sm:$0xf]
        %v1829 = vld [vmem:[%s7 + $0x4] sm:$0xf]
        %v1830 = vld [vmem:[%s7 + $0x8] sm:$0xf]
        %v1831 = vld [vmem:[%s7 + $0xc] sm:$0xf]
        %v1832 = vld [vmem:[%s7 + $0x10] sm:$0xf]
        %v1833 = vld [vmem:[%s7 + $0x14] sm:$0xf]
        %v1834 = vld [vmem:[%s7 + $0x18] sm:$0xf]
        %v1835 = vld [vmem:[%s7 + $0x1c] sm:$0xf]
        %v1836 = vld [vmem:[%s7 + $0x20] sm:$0xf]
        %v1837 = vld [vmem:[%s7 + $0x24] sm:$0xf]
        %v1838 = vld [vmem:[%s7 + $0x28] sm:$0xf]
        %v1839 = vld [vmem:[%s7 + $0x2c] sm:$0xf]
        %v1840 = vld [vmem:[%s7 + $0x30] sm:$0xf]
        %v1841 = vld [vmem:[%s7 + $0x34] sm:$0xf]
        %v1842 = vld [vmem:[%s7 + $0x38] sm:$0xf]
        %v1843 = vld [vmem:[%s7 + $0x3c] sm:$0xf]
        %v1844 = vpack.c.bf16 %v1827, %v1827
        %v1845 = vld [vmem:[%s8] sm:$0x1]
        %v1847 = vlaneseq
        %v1848 = vshrl.u32 %v1847, 7
        %v1849 = vsub.s32 0, %v1848
        %v1850 = vrot.slane %v1845, %v1849
        %v1868 = vunpack.c.l.b16 %v1828
        %v1869 = vunpack.c.l.b16 %v1829
        %v1870 = vunpack.c.l.b16 %v1830
        %v1871 = vunpack.c.l.b16 %v1831
        %v1872 = vunpack.c.l.b16 %v1832
        %v1873 = vunpack.c.l.b16 %v1833
        %v1874 = vunpack.c.l.b16 %v1834
        %v1875 = vunpack.c.l.b16 %v1835
        %v1876 = vunpack.c.l.b16 %v1836
        %v1877 = vunpack.c.l.b16 %v1837
        %v1878 = vunpack.c.l.b16 %v1838
        %v1879 = vunpack.c.l.b16 %v1839
        %v1880 = vunpack.c.l.b16 %v1840
        %v1881 = vunpack.c.l.b16 %v1841
        %v1882 = vunpack.c.l.b16 %v1842
        %v1883 = vunpack.c.l.b16 %v1843
        %v1884 = vpack.c.b16 %v1869, %v1868
        %v1885 = vpack.c.b16 %v1871, %v1870
        %v1886 = vpack.c.b16 %v1873, %v1872
        %v1887 = vpack.c.b16 %v1875, %v1874
        %v1888 = vpack.c.b16 %v1877, %v1876
        %v1889 = vpack.c.b16 %v1879, %v1878
        %v1890 = vpack.c.b16 %v1881, %v1880
        %v1891 = vpack.c.b16 %v1883, %v1882
        %1900 = vmatprep.subr.bf16.mxu0 0
        %1901 = vmatpush1.bf16.msra.mxu0 %v1891
        %1902 = vmatprep.subr.bf16.mxu0 0
        %1903 = vmatpush1.bf16.msra.mxu0 %v1890
        %1904 = vmatprep.subr.bf16.mxu0 0
        %1905 = vmatpush1.bf16.msra.mxu0 %v1889
        %1906 = vmatprep.subr.bf16.mxu0 0
        %1907 = vmatpush1.bf16.msra.mxu0 %v1888
        %1908 = vmatprep.subr.bf16.mxu0 0
        %1909 = vmatpush1.bf16.msra.mxu0 %v1887
        %1910 = vmatprep.subr.bf16.mxu0 0
        %1911 = vmatpush1.bf16.msra.mxu0 %v1886
        %1912 = vmatprep.subr.bf16.mxu0 0
        %1913 = vmatpush1.bf16.msra.mxu0 %v1885
        %1914 = vmatprep.subr.bf16.mxu0 0
        %1915 = vmatpush1.bf16.msra.mxu0 %v1884
        %1916 = vmatprep.subr.bf16.mxu0 0
        %1917 = vmatpush2.bf16.msra.mxu0 0
        %1918 = vmatprep.subr.bf16.mxu0 0
        %1919 = vmatpush2.bf16.msra.mxu0 0
        %1920 = vmatprep.subr.bf16.mxu0 0
        %1921 = vmatpush2.bf16.msra.mxu0 0
        %1922 = vmatprep.subr.bf16.mxu0 0
        %1923 = vmatpush2.bf16.msra.mxu0 0
        %1924 = vmatprep.subr.bf16.mxu0 0
        %1925 = vmatpush2.bf16.msra.mxu0 0
        %1926 = vmatprep.subr.bf16.mxu0 0
        %1927 = vmatpush2.bf16.msra.mxu0 0
        %1928 = vmatprep.subr.bf16.mxu0 0
        %1929 = vmatpush2.bf16.msra.mxu0 0
        %1930 = vmatprep.subr.bf16.mxu0 0
        %1931 = vmatpush2.bf16.msra.mxu0 0
        %1932 = vmatprep.mubr.bf16.mxu0 0
        %1933 = vmatmul.mubr.bf16.gmra.mxu0 %v1844
        %v1934 = vpop.f32.mrf.mxu0
        %v1935 = vadd.f32 %v1850, %v1934
        %v1936 = vpop.f32.mrf.mxu0
        %v1937 = vpop.f32.mrf.mxu0
        %v1938 = vpop.f32.mrf.mxu0
        %1939 = vdwg.mxu0
        %v1940 = vadd.f32 %v821, %v1935
        %v1941 = vld [vmem:[%s13] sm:$0x1]
        %v1942 = vld [vmem:[%s14] sm:$0x1]
        %1943 = vadd.xlane.f32.xlu0 %v1940
        %v1944 = vpop.xlane.xlu0 %1943
        %v1945 = vrcp.pop 128.0
        %v1946 = vmul.f32 %v1944, %v1945
        %v1947 = vsub.f32 %v1940, %v1946
        %v1948 = vmul.f32 %v1947, %v1947
        %1949 = vadd.xlane.f32.xlu0 %v1948
        %v1950 = vpop.xlane.xlu0 %1949
        %v1951 = vmul.f32 %v1950, %v1945
        %v1952 = vadd.f32 %v1951, 1e-05
        %v1953 = vrsqrt.pop %v1952
        %v1954 = vmul.f32 %v1947, %v1953
        %v1956 = vlaneseq
        %v1957 = vshrl.u32 %v1956, 7
        %v1958 = vsub.s32 0, %v1957
        %v1959 = vrot.slane %v1941, %v1958
        %v1961 = vmul.f32 %v1954, %v1959
        %v1963 = vlaneseq
        %v1964 = vshrl.u32 %v1963, 7
        %v1965 = vsub.s32 0, %v1964
        %v1966 = vrot.slane %v1942, %v1965
        %v1968 = vadd.f32 %v1961, %v1966
        %v1969 = vld [vmem:[%s9] sm:$0xff]
        %v1970 = vld [vmem:[%s9 + $0x8] sm:$0xff]
        %v1971 = vld [vmem:[%s9 + $0x10] sm:$0xff]
        %v1972 = vld [vmem:[%s9 + $0x18] sm:$0xff]
        %v1973 = vld [vmem:[%s9 + $0x20] sm:$0xff]
        %v1974 = vld [vmem:[%s9 + $0x28] sm:$0xff]
        %v1975 = vld [vmem:[%s9 + $0x30] sm:$0xff]
        %v1976 = vld [vmem:[%s9 + $0x38] sm:$0xff]
        %v1977 = vld [vmem:[%s9 + $0x40] sm:$0xff]
        %v1978 = vld [vmem:[%s9 + $0x48] sm:$0xff]
        %v1979 = vld [vmem:[%s9 + $0x50] sm:$0xff]
        %v1980 = vld [vmem:[%s9 + $0x58] sm:$0xff]
        %v1981 = vld [vmem:[%s9 + $0x60] sm:$0xff]
        %v1982 = vld [vmem:[%s9 + $0x68] sm:$0xff]
        %v1983 = vld [vmem:[%s9 + $0x70] sm:$0xff]
        %v1984 = vld [vmem:[%s9 + $0x78] sm:$0xff]
        %v1985 = vld [vmem:[%s9 + $0x80] sm:$0xff]
        %v1986 = vld [vmem:[%s9 + $0x88] sm:$0xff]
        %v1987 = vld [vmem:[%s9 + $0x90] sm:$0xff]
        %v1988 = vld [vmem:[%s9 + $0x98] sm:$0xff]
        %v1989 = vld [vmem:[%s9 + $0xa0] sm:$0xff]
        %v1990 = vld [vmem:[%s9 + $0xa8] sm:$0xff]
        %v1991 = vld [vmem:[%s9 + $0xb0] sm:$0xff]
        %v1992 = vld [vmem:[%s9 + $0xb8] sm:$0xff]
        %v1993 = vld [vmem:[%s9 + $0xc0] sm:$0xff]
        %v1994 = vld [vmem:[%s9 + $0xc8] sm:$0xff]
        %v1995 = vld [vmem:[%s9 + $0xd0] sm:$0xff]
        %v1996 = vld [vmem:[%s9 + $0xd8] sm:$0xff]
        %v1997 = vld [vmem:[%s9 + $0xe0] sm:$0xff]
        %v1998 = vld [vmem:[%s9 + $0xe8] sm:$0xff]
        %v1999 = vld [vmem:[%s9 + $0xf0] sm:$0xff]
        %v2000 = vld [vmem:[%s9 + $0xf8] sm:$0xff]
        %v2001 = vpack.c.bf16 %v1968, %v1968
        %v2002 = vld [vmem:[%s10] sm:$0xf]
        %v2004 = vlaneseq
        %v2005 = vshrl.u32 %v2004, 7
        %v2006 = vsub.s32 0, %v2005
        %v2007 = vrot.slane %v2002, %v2006
        %v2008 = vlaneseq
        %v2009 = vshrl.u32 %v2008, 7
        %v2010 = vsub.s32 1, %v2009
        %v2011 = vrot.slane %v2002, %v2010
        %v2012 = vlaneseq
        %v2013 = vshrl.u32 %v2012, 7
        %v2014 = vsub.s32 2, %v2013
        %v2015 = vrot.slane %v2002, %v2014
        %v2016 = vlaneseq
        %v2017 = vshrl.u32 %v2016, 7
        %v2018 = vsub.s32 3, %v2017
        %v2019 = vrot.slane %v2002, %v2018
        %v2056 = vunpack.c.l.b16 %v1969
        %v2057 = vunpack.c.h.b16 %v1969
        %v2058 = vunpack.c.l.b16 %v1970
        %v2059 = vunpack.c.h.b16 %v1970
        %v2060 = vunpack.c.l.b16 %v1971
        %v2061 = vunpack.c.h.b16 %v1971
        %v2062 = vunpack.c.l.b16 %v1972
        %v2063 = vunpack.c.h.b16 %v1972
        %v2064 = vunpack.c.l.b16 %v1973
        %v2065 = vunpack.c.h.b16 %v1973
        %v2066 = vunpack.c.l.b16 %v1974
        %v2067 = vunpack.c.h.b16 %v1974
        %v2068 = vunpack.c.l.b16 %v1975
        %v2069 = vunpack.c.h.b16 %v1975
        %v2070 = vunpack.c.l.b16 %v1976
        %v2071 = vunpack.c.h.b16 %v1976
        %v2072 = vunpack.c.l.b16 %v1977
        %v2073 = vunpack.c.h.b16 %v1977
        %v2074 = vunpack.c.l.b16 %v1978
        %v2075 = vunpack.c.h.b16 %v1978
        %v2076 = vunpack.c.l.b16 %v1979
        %v2077 = vunpack.c.h.b16 %v1979
        %v2078 = vunpack.c.l.b16 %v1980
        %v2079 = vunpack.c.h.b16 %v1980
        %v2080 = vunpack.c.l.b16 %v1981
        %v2081 = vunpack.c.h.b16 %v1981
        %v2082 = vunpack.c.l.b16 %v1982
        %v2083 = vunpack.c.h.b16 %v1982
        %v2084 = vunpack.c.l.b16 %v1983
        %v2085 = vunpack.c.h.b16 %v1983
        %v2086 = vunpack.c.l.b16 %v1984
        %v2087 = vunpack.c.h.b16 %v1984
        %v2088 = vunpack.c.l.b16 %v1985
        %v2089 = vunpack.c.h.b16 %v1985
        %v2090 = vunpack.c.l.b16 %v1986
        %v2091 = vunpack.c.h.b16 %v1986
        %v2092 = vunpack.c.l.b16 %v1987
        %v2093 = vunpack.c.h.b16 %v1987
        %v2094 = vunpack.c.l.b16 %v1988
        %v2095 = vunpack.c.h.b16 %v1988
        %v2096 = vunpack.c.l.b16 %v1989
        %v2097 = vunpack.c.h.b16 %v1989
        %v2098 = vunpack.c.l.b16 %v1990
        %v2099 = vunpack.c.h.b16 %v1990
        %v2100 = vunpack.c.l.b16 %v1991
        %v2101 = vunpack.c.h.b16 %v1991
        %v2102 = vunpack.c.l.b16 %v1992
        %v2103 = vunpack.c.h.b16 %v1992
        %v2104 = vunpack.c.l.b16 %v1993
        %v2105 = vunpack.c.h.b16 %v1993
        %v2106 = vunpack.c.l.b16 %v1994
        %v2107 = vunpack.c.h.b16 %v1994
        %v2108 = vunpack.c.l.b16 %v1995
        %v2109 = vunpack.c.h.b16 %v1995
        %v2110 = vunpack.c.l.b16 %v1996
        %v2111 = vunpack.c.h.b16 %v1996
        %v2112 = vunpack.c.l.b16 %v1997
        %v2113 = vunpack.c.h.b16 %v1997
        %v2114 = vunpack.c.l.b16 %v1998
        %v2115 = vunpack.c.h.b16 %v1998
        %v2116 = vunpack.c.l.b16 %v1999
        %v2117 = vunpack.c.h.b16 %v1999
        %v2118 = vunpack.c.l.b16 %v2000
        %v2119 = vunpack.c.h.b16 %v2000
        %v2120 = vpack.c.b16 %v2060, %v2056
        %v2121 = vpack.c.b16 %v2061, %v2057
        %v2122 = vpack.c.b16 %v2062, %v2058
        %v2123 = vpack.c.b16 %v2063, %v2059
        %v2124 = vpack.c.b16 %v2068, %v2064
        %v2125 = vpack.c.b16 %v2069, %v2065
        %v2126 = vpack.c.b16 %v2070, %v2066
        %v2127 = vpack.c.b16 %v2071, %v2067
        %v2128 = vpack.c.b16 %v2076, %v2072
        %v2129 = vpack.c.b16 %v2077, %v2073
        %v2130 = vpack.c.b16 %v2078, %v2074
        %v2131 = vpack.c.b16 %v2079, %v2075
        %v2132 = vpack.c.b16 %v2084, %v2080
        %v2133 = vpack.c.b16 %v2085, %v2081
        %v2134 = vpack.c.b16 %v2086, %v2082
        %v2135 = vpack.c.b16 %v2087, %v2083
        %v2136 = vpack.c.b16 %v2092, %v2088
        %v2137 = vpack.c.b16 %v2093, %v2089
        %v2138 = vpack.c.b16 %v2094, %v2090
        %v2139 = vpack.c.b16 %v2095, %v2091
        %v2140 = vpack.c.b16 %v2100, %v2096
        %v2141 = vpack.c.b16 %v2101, %v2097
        %v2142 = vpack.c.b16 %v2102, %v2098
        %v2143 = vpack.c.b16 %v2103, %v2099
        %v2144 = vpack.c.b16 %v2108, %v2104
        %v2145 = vpack.c.b16 %v2109, %v2105
        %v2146 = vpack.c.b16 %v2110, %v2106
        %v2147 = vpack.c.b16 %v2111, %v2107
        %v2148 = vpack.c.b16 %v2116, %v2112
        %v2149 = vpack.c.b16 %v2117, %v2113
        %v2150 = vpack.c.b16 %v2118, %v2114
        %v2151 = vpack.c.b16 %v2119, %v2115
        %2184 = vmatprep.subr.bf16.mxu0 %v2149
        %2185 = vmatpush1.bf16.msra.mxu0 %v2148
        %2186 = vmatprep.subr.bf16.mxu0 %v2145
        %2187 = vmatpush1.bf16.msra.mxu0 %v2144
        %2188 = vmatprep.subr.bf16.mxu0 %v2141
        %2189 = vmatpush1.bf16.msra.mxu0 %v2140
        %2190 = vmatprep.subr.bf16.mxu0 %v2137
        %2191 = vmatpush1.bf16.msra.mxu0 %v2136
        %2192 = vmatprep.subr.bf16.mxu0 %v2133
        %2193 = vmatpush1.bf16.msra.mxu0 %v2132
        %2194 = vmatprep.subr.bf16.mxu0 %v2129
        %2195 = vmatpush1.bf16.msra.mxu0 %v2128
        %2196 = vmatprep.subr.bf16.mxu0 %v2125
        %2197 = vmatpush1.bf16.msra.mxu0 %v2124
        %2198 = vmatprep.subr.bf16.mxu0 %v2121
        %2199 = vmatpush1.bf16.msra.mxu0 %v2120
        %2200 = vmatprep.subr.bf16.mxu0 0
        %2201 = vmatpush2.bf16.msra.mxu0 0
        %2202 = vmatprep.subr.bf16.mxu0 0
        %2203 = vmatpush2.bf16.msra.mxu0 0
        %2204 = vmatprep.subr.bf16.mxu0 0
        %2205 = vmatpush2.bf16.msra.mxu0 0
        %2206 = vmatprep.subr.bf16.mxu0 0
        %2207 = vmatpush2.bf16.msra.mxu0 0
        %2208 = vmatprep.subr.bf16.mxu0 0
        %2209 = vmatpush2.bf16.msra.mxu0 0
        %2210 = vmatprep.subr.bf16.mxu0 0
        %2211 = vmatpush2.bf16.msra.mxu0 0
        %2212 = vmatprep.subr.bf16.mxu0 0
        %2213 = vmatpush2.bf16.msra.mxu0 0
        %2214 = vmatprep.subr.bf16.mxu0 0
        %2215 = vmatpush2.bf16.msra.mxu0 0
        %2216 = vmatprep.mubr.bf16.mxu0 0
        %2217 = vmatmul.mubr.bf16.gmra.mxu0 %v2001
        %v2218 = vpop.f32.mrf.mxu0
        %v2219 = vadd.f32 %v2007, %v2218
        %v2220 = vpop.f32.mrf.mxu0
        %v2221 = vadd.f32 %v2011, %v2220
        %v2222 = vpop.f32.mrf.mxu0
        %v2223 = vpop.f32.mrf.mxu0
        %2224 = vdwg.mxu0
        %2225 = vmatprep.subr.bf16.mxu0 %v2151
        %2226 = vmatpush1.bf16.msra.mxu0 %v2150
        %2227 = vmatprep.subr.bf16.mxu0 %v2147
        %2228 = vmatpush1.bf16.msra.mxu0 %v2146
        %2229 = vmatprep.subr.bf16.mxu0 %v2143
        %2230 = vmatpush1.bf16.msra.mxu0 %v2142
        %2231 = vmatprep.subr.bf16.mxu0 %v2139
        %2232 = vmatpush1.bf16.msra.mxu0 %v2138
        %2233 = vmatprep.subr.bf16.mxu0 %v2135
        %2234 = vmatpush1.bf16.msra.mxu0 %v2134
        %2235 = vmatprep.subr.bf16.mxu0 %v2131
        %2236 = vmatpush1.bf16.msra.mxu0 %v2130
        %2237 = vmatprep.subr.bf16.mxu0 %v2127
        %2238 = vmatpush1.bf16.msra.mxu0 %v2126
        %2239 = vmatprep.subr.bf16.mxu0 %v2123
        %2240 = vmatpush1.bf16.msra.mxu0 %v2122
        %2241 = vmatprep.subr.bf16.mxu0 0
        %2242 = vmatpush2.bf16.msra.mxu0 0
        %2243 = vmatprep.subr.bf16.mxu0 0
        %2244 = vmatpush2.bf16.msra.mxu0 0
        %2245 = vmatprep.subr.bf16.mxu0 0
        %2246 = vmatpush2.bf16.msra.mxu0 0
        %2247 = vmatprep.subr.bf16.mxu0 0
        %2248 = vmatpush2.bf16.msra.mxu0 0
        %2249 = vmatprep.subr.bf16.mxu0 0
        %2250 = vmatpush2.bf16.msra.mxu0 0
        %2251 = vmatprep.subr.bf16.mxu0 0
        %2252 = vmatpush2.bf16.msra.mxu0 0
        %2253 = vmatprep.subr.bf16.mxu0 0
        %2254 = vmatpush2.bf16.msra.mxu0 0
        %2255 = vmatprep.subr.bf16.mxu0 0
        %2256 = vmatpush2.bf16.msra.mxu0 0
        %2257 = vmatprep.mubr.bf16.mxu0 0
        %2258 = vmatmul.mubr.bf16.gmra.mxu0 %v2001
        %v2259 = vpop.f32.mrf.mxu0
        %v2260 = vadd.f32 %v2015, %v2259
        %v2261 = vpop.f32.mrf.mxu0
        %v2262 = vadd.f32 %v2019, %v2261
        %v2263 = vpop.f32.mrf.mxu0
        %v2264 = vpop.f32.mrf.mxu0
        %2265 = vdwg.mxu0
        %v2266 = vmax.f32 %v2219, 0.0
        %v2267 = vmax.f32 %v2221, 0.0
        %v2268 = vmax.f32 %v2260, 0.0
        %v2269 = vmax.f32 %v2262, 0.0
        %v2270 = vld [vmem:[%s11] sm:$0xf]
        %v2271 = vld [vmem:[%s11 + $0x4] sm:$0xf]
        %v2272 = vld [vmem:[%s11 + $0x8] sm:$0xf]
        %v2273 = vld [vmem:[%s11 + $0xc] sm:$0xf]
        %v2274 = vld [vmem:[%s11 + $0x10] sm:$0xf]
        %v2275 = vld [vmem:[%s11 + $0x14] sm:$0xf]
        %v2276 = vld [vmem:[%s11 + $0x18] sm:$0xf]
        %v2277 = vld [vmem:[%s11 + $0x1c] sm:$0xf]
        %v2278 = vld [vmem:[%s11 + $0x20] sm:$0xf]
        %v2279 = vld [vmem:[%s11 + $0x24] sm:$0xf]
        %v2280 = vld [vmem:[%s11 + $0x28] sm:$0xf]
        %v2281 = vld [vmem:[%s11 + $0x2c] sm:$0xf]
        %v2282 = vld [vmem:[%s11 + $0x30] sm:$0xf]
        %v2283 = vld [vmem:[%s11 + $0x34] sm:$0xf]
        %v2284 = vld [vmem:[%s11 + $0x38] sm:$0xf]
        %v2285 = vld [vmem:[%s11 + $0x3c] sm:$0xf]
        %v2286 = vld [vmem:[%s11 + $0x40] sm:$0xf]
        %v2287 = vld [vmem:[%s11 + $0x44] sm:$0xf]
        %v2288 = vld [vmem:[%s11 + $0x48] sm:$0xf]
        %v2289 = vld [vmem:[%s11 + $0x4c] sm:$0xf]
        %v2290 = vld [vmem:[%s11 + $0x50] sm:$0xf]
        %v2291 = vld [vmem:[%s11 + $0x54] sm:$0xf]
        %v2292 = vld [vmem:[%s11 + $0x58] sm:$0xf]
        %v2293 = vld [vmem:[%s11 + $0x5c] sm:$0xf]
        %v2294 = vld [vmem:[%s11 + $0x60] sm:$0xf]
        %v2295 = vld [vmem:[%s11 + $0x64] sm:$0xf]
        %v2296 = vld [vmem:[%s11 + $0x68] sm:$0xf]
        %v2297 = vld [vmem:[%s11 + $0x6c] sm:$0xf]
        %v2298 = vld [vmem:[%s11 + $0x70] sm:$0xf]
        %v2299 = vld [vmem:[%s11 + $0x74] sm:$0xf]
        %v2300 = vld [vmem:[%s11 + $0x78] sm:$0xf]
        %v2301 = vld [vmem:[%s11 + $0x7c] sm:$0xf]
        %v2302 = vld [vmem:[%s11 + $0x80] sm:$0xf]
        %v2303 = vld [vmem:[%s11 + $0x84] sm:$0xf]
        %v2304 = vld [vmem:[%s11 + $0x88] sm:$0xf]
        %v2305 = vld [vmem:[%s11 + $0x8c] sm:$0xf]
        %v2306 = vld [vmem:[%s11 + $0x90] sm:$0xf]
        %v2307 = vld [vmem:[%s11 + $0x94] sm:$0xf]
        %v2308 = vld [vmem:[%s11 + $0x98] sm:$0xf]
        %v2309 = vld [vmem:[%s11 + $0x9c] sm:$0xf]
        %v2310 = vld [vmem:[%s11 + $0xa0] sm:$0xf]
        %v2311 = vld [vmem:[%s11 + $0xa4] sm:$0xf]
        %v2312 = vld [vmem:[%s11 + $0xa8] sm:$0xf]
        %v2313 = vld [vmem:[%s11 + $0xac] sm:$0xf]
        %v2314 = vld [vmem:[%s11 + $0xb0] sm:$0xf]
        %v2315 = vld [vmem:[%s11 + $0xb4] sm:$0xf]
        %v2316 = vld [vmem:[%s11 + $0xb8] sm:$0xf]
        %v2317 = vld [vmem:[%s11 + $0xbc] sm:$0xf]
        %v2318 = vld [vmem:[%s11 + $0xc0] sm:$0xf]
        %v2319 = vld [vmem:[%s11 + $0xc4] sm:$0xf]
        %v2320 = vld [vmem:[%s11 + $0xc8] sm:$0xf]
        %v2321 = vld [vmem:[%s11 + $0xcc] sm:$0xf]
        %v2322 = vld [vmem:[%s11 + $0xd0] sm:$0xf]
        %v2323 = vld [vmem:[%s11 + $0xd4] sm:$0xf]
        %v2324 = vld [vmem:[%s11 + $0xd8] sm:$0xf]
        %v2325 = vld [vmem:[%s11 + $0xdc] sm:$0xf]
        %v2326 = vld [vmem:[%s11 + $0xe0] sm:$0xf]
        %v2327 = vld [vmem:[%s11 + $0xe4] sm:$0xf]
        %v2328 = vld [vmem:[%s11 + $0xe8] sm:$0xf]
        %v2329 = vld [vmem:[%s11 + $0xec] sm:$0xf]
        %v2330 = vld [vmem:[%s11 + $0xf0] sm:$0xf]
        %v2331 = vld [vmem:[%s11 + $0xf4] sm:$0xf]
        %v2332 = vld [vmem:[%s11 + $0xf8] sm:$0xf]
        %v2333 = vld [vmem:[%s11 + $0xfc] sm:$0xf]
        %v2334 = vpack.c.bf16 %v2266, %v2266
        %v2335 = vpack.c.bf16 %v2267, %v2267
        %v2336 = vpack.c.bf16 %v2268, %v2268
        %v2337 = vpack.c.bf16 %v2269, %v2269
        %v2338 = vld [vmem:[%s12] sm:$0x1]
        %v2340 = vlaneseq
        %v2341 = vshrl.u32 %v2340, 7
        %v2342 = vsub.s32 0, %v2341
        %v2343 = vrot.slane %v2338, %v2342
        %v2409 = vunpack.c.l.b16 %v2270
        %v2410 = vunpack.c.l.b16 %v2271
        %v2411 = vunpack.c.l.b16 %v2272
        %v2412 = vunpack.c.l.b16 %v2273
        %v2413 = vunpack.c.l.b16 %v2274
        %v2414 = vunpack.c.l.b16 %v2275
        %v2415 = vunpack.c.l.b16 %v2276
        %v2416 = vunpack.c.l.b16 %v2277
        %v2417 = vunpack.c.l.b16 %v2278
        %v2418 = vunpack.c.l.b16 %v2279
        %v2419 = vunpack.c.l.b16 %v2280
        %v2420 = vunpack.c.l.b16 %v2281
        %v2421 = vunpack.c.l.b16 %v2282
        %v2422 = vunpack.c.l.b16 %v2283
        %v2423 = vunpack.c.l.b16 %v2284
        %v2424 = vunpack.c.l.b16 %v2285
        %v2425 = vunpack.c.l.b16 %v2286
        %v2426 = vunpack.c.l.b16 %v2287
        %v2427 = vunpack.c.l.b16 %v2288
        %v2428 = vunpack.c.l.b16 %v2289
        %v2429 = vunpack.c.l.b16 %v2290
        %v2430 = vunpack.c.l.b16 %v2291
        %v2431 = vunpack.c.l.b16 %v2292
        %v2432 = vunpack.c.l.b16 %v2293
        %v2433 = vunpack.c.l.b16 %v2294
        %v2434 = vunpack.c.l.b16 %v2295
        %v2435 = vunpack.c.l.b16 %v2296
        %v2436 = vunpack.c.l.b16 %v2297
        %v2437 = vunpack.c.l.b16 %v2298
        %v2438 = vunpack.c.l.b16 %v2299
        %v2439 = vunpack.c.l.b16 %v2300
        %v2440 = vunpack.c.l.b16 %v2301
        %v2441 = vunpack.c.l.b16 %v2302
        %v2442 = vunpack.c.l.b16 %v2303
        %v2443 = vunpack.c.l.b16 %v2304
        %v2444 = vunpack.c.l.b16 %v2305
        %v2445 = vunpack.c.l.b16 %v2306
        %v2446 = vunpack.c.l.b16 %v2307
        %v2447 = vunpack.c.l.b16 %v2308
        %v2448 = vunpack.c.l.b16 %v2309
        %v2449 = vunpack.c.l.b16 %v2310
        %v2450 = vunpack.c.l.b16 %v2311
        %v2451 = vunpack.c.l.b16 %v2312
        %v2452 = vunpack.c.l.b16 %v2313
        %v2453 = vunpack.c.l.b16 %v2314
        %v2454 = vunpack.c.l.b16 %v2315
        %v2455 = vunpack.c.l.b16 %v2316
        %v2456 = vunpack.c.l.b16 %v2317
        %v2457 = vunpack.c.l.b16 %v2318
        %v2458 = vunpack.c.l.b16 %v2319
        %v2459 = vunpack.c.l.b16 %v2320
        %v2460 = vunpack.c.l.b16 %v2321
        %v2461 = vunpack.c.l.b16 %v2322
        %v2462 = vunpack.c.l.b16 %v2323
        %v2463 = vunpack.c.l.b16 %v2324
        %v2464 = vunpack.c.l.b16 %v2325
        %v2465 = vunpack.c.l.b16 %v2326
        %v2466 = vunpack.c.l.b16 %v2327
        %v2467 = vunpack.c.l.b16 %v2328
        %v2468 = vunpack.c.l.b16 %v2329
        %v2469 = vunpack.c.l.b16 %v2330
        %v2470 = vunpack.c.l.b16 %v2331
        %v2471 = vunpack.c.l.b16 %v2332
        %v2472 = vunpack.c.l.b16 %v2333
        %v2473 = vpack.c.b16 %v2410, %v2409
        %v2474 = vpack.c.b16 %v2412, %v2411
        %v2475 = vpack.c.b16 %v2414, %v2413
        %v2476 = vpack.c.b16 %v2416, %v2415
        %v2477 = vpack.c.b16 %v2418, %v2417
        %v2478 = vpack.c.b16 %v2420, %v2419
        %v2479 = vpack.c.b16 %v2422, %v2421
        %v2480 = vpack.c.b16 %v2424, %v2423
        %v2481 = vpack.c.b16 %v2426, %v2425
        %v2482 = vpack.c.b16 %v2428, %v2427
        %v2483 = vpack.c.b16 %v2430, %v2429
        %v2484 = vpack.c.b16 %v2432, %v2431
        %v2485 = vpack.c.b16 %v2434, %v2433
        %v2486 = vpack.c.b16 %v2436, %v2435
        %v2487 = vpack.c.b16 %v2438, %v2437
        %v2488 = vpack.c.b16 %v2440, %v2439
        %v2489 = vpack.c.b16 %v2442, %v2441
        %v2490 = vpack.c.b16 %v2444, %v2443
        %v2491 = vpack.c.b16 %v2446, %v2445
        %v2492 = vpack.c.b16 %v2448, %v2447
        %v2493 = vpack.c.b16 %v2450, %v2449
        %v2494 = vpack.c.b16 %v2452, %v2451
        %v2495 = vpack.c.b16 %v2454, %v2453
        %v2496 = vpack.c.b16 %v2456, %v2455
        %v2497 = vpack.c.b16 %v2458, %v2457
        %v2498 = vpack.c.b16 %v2460, %v2459
        %v2499 = vpack.c.b16 %v2462, %v2461
        %v2500 = vpack.c.b16 %v2464, %v2463
        %v2501 = vpack.c.b16 %v2466, %v2465
        %v2502 = vpack.c.b16 %v2468, %v2467
        %v2503 = vpack.c.b16 %v2470, %v2469
        %v2504 = vpack.c.b16 %v2472, %v2471
        %2537 = vmatprep.subr.bf16.mxu0 0
        %2538 = vmatpush1.bf16.msra.mxu0 %v2480
        %2539 = vmatprep.subr.bf16.mxu0 0
        %2540 = vmatpush1.bf16.msra.mxu0 %v2479
        %2541 = vmatprep.subr.bf16.mxu0 0
        %2542 = vmatpush1.bf16.msra.mxu0 %v2478
        %2543 = vmatprep.subr.bf16.mxu0 0
        %2544 = vmatpush1.bf16.msra.mxu0 %v2477
        %2545 = vmatprep.subr.bf16.mxu0 0
        %2546 = vmatpush1.bf16.msra.mxu0 %v2476
        %2547 = vmatprep.subr.bf16.mxu0 0
        %2548 = vmatpush1.bf16.msra.mxu0 %v2475
        %2549 = vmatprep.subr.bf16.mxu0 0
        %2550 = vmatpush1.bf16.msra.mxu0 %v2474
        %2551 = vmatprep.subr.bf16.mxu0 0
        %2552 = vmatpush1.bf16.msra.mxu0 %v2473
        %2553 = vmatprep.subr.bf16.mxu0 0
        %2554 = vmatpush2.bf16.msra.mxu0 %v2488
        %2555 = vmatprep.subr.bf16.mxu0 0
        %2556 = vmatpush2.bf16.msra.mxu0 %v2487
        %2557 = vmatprep.subr.bf16.mxu0 0
        %2558 = vmatpush2.bf16.msra.mxu0 %v2486
        %2559 = vmatprep.subr.bf16.mxu0 0
        %2560 = vmatpush2.bf16.msra.mxu0 %v2485
        %2561 = vmatprep.subr.bf16.mxu0 0
        %2562 = vmatpush2.bf16.msra.mxu0 %v2484
        %2563 = vmatprep.subr.bf16.mxu0 0
        %2564 = vmatpush2.bf16.msra.mxu0 %v2483
        %2565 = vmatprep.subr.bf16.mxu0 0
        %2566 = vmatpush2.bf16.msra.mxu0 %v2482
        %2567 = vmatprep.subr.bf16.mxu0 0
        %2568 = vmatpush2.bf16.msra.mxu0 %v2481
        %2569 = vmatprep.mubr.bf16.mxu0 %v2335
        %2570 = vmatmul.mubr.bf16.gmra.mxu0 %v2334
        %v2571 = vpop.f32.mrf.mxu0
        %v2572 = vadd.f32 %v2343, %v2571
        %v2573 = vpop.f32.mrf.mxu0
        %v2574 = vpop.f32.mrf.mxu0
        %v2575 = vpop.f32.mrf.mxu0
        %2576 = vdwg.mxu0
        %2577 = vmatprep.subr.bf16.mxu0 0
        %2578 = vmatpush1.bf16.msra.mxu0 %v2496
        %2579 = vmatprep.subr.bf16.mxu0 0
        %2580 = vmatpush1.bf16.msra.mxu0 %v2495
        %2581 = vmatprep.subr.bf16.mxu0 0
        %2582 = vmatpush1.bf16.msra.mxu0 %v2494
        %2583 = vmatprep.subr.bf16.mxu0 0
        %2584 = vmatpush1.bf16.msra.mxu0 %v2493
        %2585 = vmatprep.subr.bf16.mxu0 0
        %2586 = vmatpush1.bf16.msra.mxu0 %v2492
        %2587 = vmatprep.subr.bf16.mxu0 0
        %2588 = vmatpush1.bf16.msra.mxu0 %v2491
        %2589 = vmatprep.subr.bf16.mxu0 0
        %2590 = vmatpush1.bf16.msra.mxu0 %v2490
        %2591 = vmatprep.subr.bf16.mxu0 0
        %2592 = vmatpush1.bf16.msra.mxu0 %v2489
        %2593 = vmatprep.subr.bf16.mxu0 0
        %2594 = vmatpush2.bf16.msra.mxu0 %v2504
        %2595 = vmatprep.subr.bf16.mxu0 0
        %2596 = vmatpush2.bf16.msra.mxu0 %v2503
        %2597 = vmatprep.subr.bf16.mxu0 0
        %2598 = vmatpush2.bf16.msra.mxu0 %v2502
        %2599 = vmatprep.subr.bf16.mxu0 0
        %2600 = vmatpush2.bf16.msra.mxu0 %v2501
        %2601 = vmatprep.subr.bf16.mxu0 0
        %2602 = vmatpush2.bf16.msra.mxu0 %v2500
        %2603 = vmatprep.subr.bf16.mxu0 0
        %2604 = vmatpush2.bf16.msra.mxu0 %v2499
        %2605 = vmatprep.subr.bf16.mxu0 0
        %2606 = vmatpush2.bf16.msra.mxu0 %v2498
        %2607 = vmatprep.subr.bf16.mxu0 0
        %2608 = vmatpush2.bf16.msra.mxu0 %v2497
        %2609 = vmatprep.mubr.bf16.mxu0 %v2337
        %2610 = vmatmul.mubr.bf16.gmra.mxu0 %v2336
        %v2611 = vpop.f32.mrf.mxu0
        %v2612 = vadd.f32 %v2572, %v2611
        %v2613 = vpop.f32.mrf.mxu0
        %v2614 = vpop.f32.mrf.mxu0
        %v2615 = vpop.f32.mrf.mxu0
        %2616 = vdwg.mxu0
        %v2617 = vadd.f32 %v1968, %v2612
        %v2618 = vld [vmem:[%s15] sm:$0x1]
        %v2619 = vld [vmem:[%s16] sm:$0x1]
        %2620 = vadd.xlane.f32.xlu0 %v2617
        %v2621 = vpop.xlane.xlu0 %2620
        %v2622 = vmul.f32 %v2621, %v1945
        %v2623 = vsub.f32 %v2617, %v2622
        %v2624 = vmul.f32 %v2623, %v2623
        %2625 = vadd.xlane.f32.xlu0 %v2624
        %v2626 = vpop.xlane.xlu0 %2625
        %v2627 = vmul.f32 %v2626, %v1945
        %v2628 = vadd.f32 %v2627, 1e-05
        %v2629 = vrsqrt.pop %v2628
        %v2630 = vmul.f32 %v2623, %v2629
        %v2632 = vlaneseq
        %v2633 = vshrl.u32 %v2632, 7
        %v2634 = vsub.s32 0, %v2633
        %v2635 = vrot.slane %v2618, %v2634
        %v2637 = vmul.f32 %v2630, %v2635
        %v2639 = vlaneseq
        %v2640 = vshrl.u32 %v2639, 7
        %v2641 = vsub.s32 0, %v2640
        %v2642 = vrot.slane %v2619, %v2641
        %v2644 = vadd.f32 %v2637, %v2642
        %s2645 = scalar_lea.vmem %s5, 192
        %v2646 = vld [vmem:[%s2645] sm:$0xff]
        %v2647 = vld [vmem:[%s2645 + $0x8] sm:$0xf]
        %v2648 = vld [vmem:[%s2645 + $0xc] sm:$0xff]
        %v2649 = vld [vmem:[%s2645 + $0x14] sm:$0xf]
        %v2650 = vld [vmem:[%s2645 + $0x18] sm:$0xff]
        %v2651 = vld [vmem:[%s2645 + $0x20] sm:$0xf]
        %v2652 = vld [vmem:[%s2645 + $0x24] sm:$0xff]
        %v2653 = vld [vmem:[%s2645 + $0x2c] sm:$0xf]
        %v2654 = vld [vmem:[%s2645 + $0x30] sm:$0xff]
        %v2655 = vld [vmem:[%s2645 + $0x38] sm:$0xf]
        %v2656 = vld [vmem:[%s2645 + $0x3c] sm:$0xff]
        %v2657 = vld [vmem:[%s2645 + $0x44] sm:$0xf]
        %v2658 = vld [vmem:[%s2645 + $0x48] sm:$0xff]
        %v2659 = vld [vmem:[%s2645 + $0x50] sm:$0xf]
        %v2660 = vld [vmem:[%s2645 + $0x54] sm:$0xff]
        %v2661 = vld [vmem:[%s2645 + $0x5c] sm:$0xf]
        %v2662 = vld [vmem:[%s2645 + $0x60] sm:$0xff]
        %v2663 = vld [vmem:[%s2645 + $0x68] sm:$0xf]
        %v2664 = vld [vmem:[%s2645 + $0x6c] sm:$0xff]
        %v2665 = vld [vmem:[%s2645 + $0x74] sm:$0xf]
        %v2666 = vld [vmem:[%s2645 + $0x78] sm:$0xff]
        %v2667 = vld [vmem:[%s2645 + $0x80] sm:$0xf]
        %v2668 = vld [vmem:[%s2645 + $0x84] sm:$0xff]
        %v2669 = vld [vmem:[%s2645 + $0x8c] sm:$0xf]
        %v2670 = vld [vmem:[%s2645 + $0x90] sm:$0xff]
        %v2671 = vld [vmem:[%s2645 + $0x98] sm:$0xf]
        %v2672 = vld [vmem:[%s2645 + $0x9c] sm:$0xff]
        %v2673 = vld [vmem:[%s2645 + $0xa4] sm:$0xf]
        %v2674 = vld [vmem:[%s2645 + $0xa8] sm:$0xff]
        %v2675 = vld [vmem:[%s2645 + $0xb0] sm:$0xf]
        %v2676 = vld [vmem:[%s2645 + $0xb4] sm:$0xff]
        %v2677 = vld [vmem:[%s2645 + $0xbc] sm:$0xf]
        %v2678 = vpack.c.bf16 %v2644, %v2644
        %s2679 = scalar_lea.vmem %s6, 3
        %v2680 = vld [vmem:[%s2679] sm:$0x7]
        %v2682 = vlaneseq
        %v2683 = vshrl.u32 %v2682, 7
        %v2684 = vsub.s32 0, %v2683
        %v2685 = vrot.slane %v2680, %v2684
        %v2686 = vlaneseq
        %v2687 = vshrl.u32 %v2686, 7
        %v2688 = vsub.s32 1, %v2687
        %v2689 = vrot.slane %v2680, %v2688
        %v2690 = vlaneseq
        %v2691 = vshrl.u32 %v2690, 7
        %v2692 = vsub.s32 2, %v2691
        %v2693 = vrot.slane %v2680, %v2692
        %v2729 = vunpack.c.l.b16 %v2646
        %v2730 = vunpack.c.h.b16 %v2646
        %v2731 = vunpack.c.l.b16 %v2647
        %v2732 = vunpack.c.l.b16 %v2648
        %v2733 = vunpack.c.h.b16 %v2648
        %v2734 = vunpack.c.l.b16 %v2649
        %v2735 = vunpack.c.l.b16 %v2650
        %v2736 = vunpack.c.h.b16 %v2650
        %v2737 = vunpack.c.l.b16 %v2651
        %v2738 = vunpack.c.l.b16 %v2652
        %v2739 = vunpack.c.h.b16 %v2652
        %v2740 = vunpack.c.l.b16 %v2653
        %v2741 = vunpack.c.l.b16 %v2654
        %v2742 = vunpack.c.h.b16 %v2654
        %v2743 = vunpack.c.l.b16 %v2655
        %v2744 = vunpack.c.l.b16 %v2656
        %v2745 = vunpack.c.h.b16 %v2656
        %v2746 = vunpack.c.l.b16 %v2657
        %v2747 = vunpack.c.l.b16 %v2658
        %v2748 = vunpack.c.h.b16 %v2658
        %v2749 = vunpack.c.l.b16 %v2659
        %v2750 = vunpack.c.l.b16 %v2660
        %v2751 = vunpack.c.h.b16 %v2660
        %v2752 = vunpack.c.l.b16 %v2661
        %v2753 = vunpack.c.l.b16 %v2662
        %v2754 = vunpack.c.h.b16 %v2662
        %v2755 = vunpack.c.l.b16 %v2663
        %v2756 = vunpack.c.l.b16 %v2664
        %v2757 = vunpack.c.h.b16 %v2664
        %v2758 = vunpack.c.l.b16 %v2665
        %v2759 = vunpack.c.l.b16 %v2666
        %v2760 = vunpack.c.h.b16 %v2666
        %v2761 = vunpack.c.l.b16 %v2667
        %v2762 = vunpack.c.l.b16 %v2668
        %v2763 = vunpack.c.h.b16 %v2668
        %v2764 = vunpack.c.l.b16 %v2669
        %v2765 = vunpack.c.l.b16 %v2670
        %v2766 = vunpack.c.h.b16 %v2670
        %v2767 = vunpack.c.l.b16 %v2671
        %v2768 = vunpack.c.l.b16 %v2672
        %v2769 = vunpack.c.h.b16 %v2672
        %v2770 = vunpack.c.l.b16 %v2673
        %v2771 = vunpack.c.l.b16 %v2674
        %v2772 = vunpack.c.h.b16 %v2674
        %v2773 = vunpack.c.l.b16 %v2675
        %v2774 = vunpack.c.l.b16 %v2676
        %v2775 = vunpack.c.h.b16 %v2676
        %v2776 = vunpack.c.l.b16 %v2677
        %v2777 = vpack.c.b16 %v2732, %v2729
        %v2778 = vpack.c.b16 %v2733, %v2730
        %v2779 = vpack.c.b16 %v2734, %v2731
        %v2780 = vpack.c.b16 %v2738, %v2735
        %v2781 = vpack.c.b16 %v2739, %v2736
        %v2782 = vpack.c.b16 %v2740, %v2737
        %v2783 = vpack.c.b16 %v2744, %v2741
        %v2784 = vpack.c.b16 %v2745, %v2742
        %v2785 = vpack.c.b16 %v2746, %v2743
        %v2786 = vpack.c.b16 %v2750, %v2747
        %v2787 = vpack.c.b16 %v2751, %v2748
        %v2788 = vpack.c.b16 %v2752, %v2749
        %v2789 = vpack.c.b16 %v2756, %v2753
        %v2790 = vpack.c.b16 %v2757, %v2754
        %v2791 = vpack.c.b16 %v2758, %v2755
        %v2792 = vpack.c.b16 %v2762, %v2759
        %v2793 = vpack.c.b16 %v2763, %v2760
        %v2794 = vpack.c.b16 %v2764, %v2761
        %v2795 = vpack.c.b16 %v2768, %v2765
        %v2796 = vpack.c.b16 %v2769, %v2766
        %v2797 = vpack.c.b16 %v2770, %v2767
        %v2798 = vpack.c.b16 %v2774, %v2771
        %v2799 = vpack.c.b16 %v2775, %v2772
        %v2800 = vpack.c.b16 %v2776, %v2773
        %2825 = vmatprep.subr.bf16.mxu0 %v2799
        %2826 = vmatpush1.bf16.msra.mxu0 %v2798
        %2827 = vmatprep.subr.bf16.mxu0 %v2796
        %2828 = vmatpush1.bf16.msra.mxu0 %v2795
        %2829 = vmatprep.subr.bf16.mxu0 %v2793
        %2830 = vmatpush1.bf16.msra.mxu0 %v2792
        %2831 = vmatprep.subr.bf16.mxu0 %v2790
        %2832 = vmatpush1.bf16.msra.mxu0 %v2789
        %2833 = vmatprep.subr.bf16.mxu0 %v2787
        %2834 = vmatpush1.bf16.msra.mxu0 %v2786
        %2835 = vmatprep.subr.bf16.mxu0 %v2784
        %2836 = vmatpush1.bf16.msra.mxu0 %v2783
        %2837 = vmatprep.subr.bf16.mxu0 %v2781
        %2838 = vmatpush1.bf16.msra.mxu0 %v2780
        %2839 = vmatprep.subr.bf16.mxu0 %v2778
        %2840 = vmatpush1.bf16.msra.mxu0 %v2777
        %2841 = vmatprep.subr.bf16.mxu0 0
        %2842 = vmatpush2.bf16.msra.mxu0 0
        %2843 = vmatprep.subr.bf16.mxu0 0
        %2844 = vmatpush2.bf16.msra.mxu0 0
        %2845 = vmatprep.subr.bf16.mxu0 0
        %2846 = vmatpush2.bf16.msra.mxu0 0
        %2847 = vmatprep.subr.bf16.mxu0 0
        %2848 = vmatpush2.bf16.msra.mxu0 0
        %2849 = vmatprep.subr.bf16.mxu0 0
        %2850 = vmatpush2.bf16.msra.mxu0 0
        %2851 = vmatprep.subr.bf16.mxu0 0
        %2852 = vmatpush2.bf16.msra.mxu0 0
        %2853 = vmatprep.subr.bf16.mxu0 0
        %2854 = vmatpush2.bf16.msra.mxu0 0
        %2855 = vmatprep.subr.bf16.mxu0 0
        %2856 = vmatpush2.bf16.msra.mxu0 0
        %2857 = vmatprep.mubr.bf16.mxu0 0
        %2858 = vmatmul.mubr.bf16.gmra.mxu0 %v2678
        %v2859 = vpop.f32.mrf.mxu0
        %v2860 = vadd.f32 %v2685, %v2859
        %v2861 = vpop.f32.mrf.mxu0
        %v2862 = vadd.f32 %v2689, %v2861
        %v2863 = vpop.f32.mrf.mxu0
        %v2864 = vpop.f32.mrf.mxu0
        %2865 = vdwg.mxu0
        %2866 = vmatprep.subr.bf16.mxu0 0
        %2867 = vmatpush1.bf16.msra.mxu0 %v2800
        %2868 = vmatprep.subr.bf16.mxu0 0
        %2869 = vmatpush1.bf16.msra.mxu0 %v2797
        %2870 = vmatprep.subr.bf16.mxu0 0
        %2871 = vmatpush1.bf16.msra.mxu0 %v2794
        %2872 = vmatprep.subr.bf16.mxu0 0
        %2873 = vmatpush1.bf16.msra.mxu0 %v2791
        %2874 = vmatprep.subr.bf16.mxu0 0
        %2875 = vmatpush1.bf16.msra.mxu0 %v2788
        %2876 = vmatprep.subr.bf16.mxu0 0
        %2877 = vmatpush1.bf16.msra.mxu0 %v2785
        %2878 = vmatprep.subr.bf16.mxu0 0
        %2879 = vmatpush1.bf16.msra.mxu0 %v2782
        %2880 = vmatprep.subr.bf16.mxu0 0
        %2881 = vmatpush1.bf16.msra.mxu0 %v2779
        %2882 = vmatprep.subr.bf16.mxu0 0
        %2883 = vmatpush2.bf16.msra.mxu0 0
        %2884 = vmatprep.subr.bf16.mxu0 0
        %2885 = vmatpush2.bf16.msra.mxu0 0
        %2886 = vmatprep.subr.bf16.mxu0 0
        %2887 = vmatpush2.bf16.msra.mxu0 0
        %2888 = vmatprep.subr.bf16.mxu0 0
        %2889 = vmatpush2.bf16.msra.mxu0 0
        %2890 = vmatprep.subr.bf16.mxu0 0
        %2891 = vmatpush2.bf16.msra.mxu0 0
        %2892 = vmatprep.subr.bf16.mxu0 0
        %2893 = vmatpush2.bf16.msra.mxu0 0
        %2894 = vmatprep.subr.bf16.mxu0 0
        %2895 = vmatpush2.bf16.msra.mxu0 0
        %2896 = vmatprep.subr.bf16.mxu0 0
        %2897 = vmatpush2.bf16.msra.mxu0 0
        %2898 = vmatprep.mubr.bf16.mxu0 0
        %2899 = vmatmul.mubr.bf16.gmra.mxu0 %v2678
        %v2900 = vpop.f32.mrf.mxu0
        %v2901 = vadd.f32 %v2693, %v2900
        %v2902 = vpop.f32.mrf.mxu0
        %v2903 = vpop.f32.mrf.mxu0
        %v2904 = vpop.f32.mrf.mxu0
        %2905 = vdwg.mxu0
        %v2906 = vmul.f32 %v2860, %v1134
        %v2907 = vmul.f32 %v2860, %v1138
        %v2908 = vmul.f32 %v2860, %v1142
        %v2909 = vmul.f32 %v2860, %v1146
        %v2910 = vmul.f32 %v2860, %v1150
        %v2911 = vmul.f32 %v2860, %v1154
        %v2912 = vmul.f32 %v2860, %v1158
        %v2913 = vmul.f32 %v2860, %v1162
        %v2914 = vpack.c.bf16 %v2907, %v2906
        %v2915 = vpack.c.bf16 %v2909, %v2908
        %v2916 = vpack.c.bf16 %v2911, %v2910
        %v2917 = vpack.c.bf16 %v2913, %v2912
        %v2918 = vpack.c.bf16 %v2862, %v2862
        %2919 = vmatprep.subr.bf16.mxu0 0
        %2920 = vmatpush1.bf16.xpose.msra.mxu0 0
        %2921 = vmatprep.subr.bf16.mxu0 0
        %2922 = vmatpush1.bf16.xpose.msra.mxu0 0
        %2923 = vmatprep.subr.bf16.mxu0 0
        %2924 = vmatpush1.bf16.xpose.msra.mxu0 0
        %2925 = vmatprep.subr.bf16.mxu0 0
        %2926 = vmatpush1.bf16.xpose.msra.mxu0 0
        %2927 = vmatprep.subr.bf16.mxu0 0
        %2928 = vmatpush1.bf16.xpose.msra.mxu0 0
        %2929 = vmatprep.subr.bf16.mxu0 0
        %2930 = vmatpush1.bf16.xpose.msra.mxu0 0
        %2931 = vmatprep.subr.bf16.mxu0 0
        %2932 = vmatpush1.bf16.xpose.msra.mxu0 0
        %2933 = vmatprep.subr.bf16.mxu0 0
        %2934 = vmatpush1.bf16.xpose.msra.mxu0 %v2918
        %2935 = vmatprep.subr.bf16.mxu0 0
        %2936 = vmatpush2.bf16.xpose.msra.mxu0 0
        %2937 = vmatprep.subr.bf16.mxu0 0
        %2938 = vmatpush2.bf16.xpose.msra.mxu0 0
        %2939 = vmatprep.subr.bf16.mxu0 0
        %2940 = vmatpush2.bf16.xpose.msra.mxu0 0
        %2941 = vmatprep.subr.bf16.mxu0 0
        %2942 = vmatpush2.bf16.xpose.msra.mxu0 0
        %2943 = vmatprep.subr.bf16.mxu0 0
        %2944 = vmatpush2.bf16.xpose.msra.mxu0 0
        %2945 = vmatprep.subr.bf16.mxu0 0
        %2946 = vmatpush2.bf16.xpose.msra.mxu0 0
        %2947 = vmatprep.subr.bf16.mxu0 0
        %2948 = vmatpush2.bf16.xpose.msra.mxu0 0
        %2949 = vmatprep.subr.bf16.mxu0 0
        %2950 = vmatpush2.bf16.xpose.msra.mxu0 0
        %2951 = vmatprep.mubr.bf16.mxu0 0
        %2952 = vmatmul.mubr.bf16.gmra.mxu0 %v2914
        %v2953 = vpop.f32.mrf.mxu0
        %v2954 = vadd.f32 0.0, %v2953
        %v2955 = vpop.f32.mrf.mxu0
        %v2956 = vpop.f32.mrf.mxu0
        %v2957 = vadd.f32 0.0, %v2956
        %v2958 = vpop.f32.mrf.mxu0
        %2959 = vmatprep.mubr.bf16.mxu0 0
        %2960 = vmatmul.mubr.bf16.gmra.mxu0 %v2915
        %v2961 = vpop.f32.mrf.mxu0
        %v2962 = vadd.f32 0.0, %v2961
        %v2963 = vpop.f32.mrf.mxu0
        %v2964 = vpop.f32.mrf.mxu0
        %v2965 = vadd.f32 0.0, %v2964
        %v2966 = vpop.f32.mrf.mxu0
        %2967 = vmatprep.mubr.bf16.mxu0 0
        %2968 = vmatmul.mubr.bf16.gmra.mxu0 %v2916
        %v2969 = vpop.f32.mrf.mxu0
        %v2970 = vadd.f32 0.0, %v2969
        %v2971 = vpop.f32.mrf.mxu0
        %v2972 = vpop.f32.mrf.mxu0
        %v2973 = vadd.f32 0.0, %v2972
        %v2974 = vpop.f32.mrf.mxu0
        %2975 = vmatprep.mubr.bf16.mxu0 0
        %2976 = vmatmul.mubr.bf16.gmra.mxu0 %v2917
        %v2977 = vpop.f32.mrf.mxu0
        %v2978 = vadd.f32 0.0, %v2977
        %v2979 = vpop.f32.mrf.mxu0
        %v2980 = vpop.f32.mrf.mxu0
        %v2981 = vadd.f32 0.0, %v2980
        %v2982 = vpop.f32.mrf.mxu0
        %2983 = vdwg.mxu0
        %v2984 = vsel %vm1249, %v2954, -inf
        %2985 = vmax.xlane.f32.xlu0 %v2984
        %v2986 = vpop.xlane.xlu0 %2985
        %v2987 = vsel %vm1249, %v2957, -inf
        %2988 = vmax.xlane.f32.xlu0 %v2987
        %v2989 = vpop.xlane.xlu0 %2988
        %v2990 = vsel %vm1249, %v2962, -inf
        %2991 = vmax.xlane.f32.xlu0 %v2990
        %v2992 = vpop.xlane.xlu0 %2991
        %v2993 = vsel %vm1249, %v2965, -inf
        %2994 = vmax.xlane.f32.xlu0 %v2993
        %v2995 = vpop.xlane.xlu0 %2994
        %v2996 = vsel %vm1249, %v2970, -inf
        %2997 = vmax.xlane.f32.xlu0 %v2996
        %v2998 = vpop.xlane.xlu0 %2997
        %v2999 = vsel %vm1249, %v2973, -inf
        %3000 = vmax.xlane.f32.xlu0 %v2999
        %v3001 = vpop.xlane.xlu0 %3000
        %v3002 = vsel %vm1249, %v2978, -inf
        %3003 = vmax.xlane.f32.xlu0 %v3002
        %v3004 = vpop.xlane.xlu0 %3003
        %v3005 = vsel %vm1249, %v2981, -inf
        %3006 = vmax.xlane.f32.xlu0 %v3005
        %v3007 = vpop.xlane.xlu0 %3006
        %v3008 = vsub.f32 %v2954, %v2986
        %v3009 = vsub.f32 %v2957, %v2989
        %v3010 = vsub.f32 %v2962, %v2992
        %v3011 = vsub.f32 %v2965, %v2995
        %v3012 = vsub.f32 %v2970, %v2998
        %v3013 = vsub.f32 %v2973, %v3001
        %v3014 = vsub.f32 %v2978, %v3004
        %v3015 = vsub.f32 %v2981, %v3007
        %v3016 = vmul.f32 %v3008, 1.442695
        %v3017 = vpow.pop %v3016
        %v3018 = vmul.f32 %v3009, 1.442695
        %v3019 = vpow.pop %v3018
        %v3020 = vmul.f32 %v3010, 1.442695
        %v3021 = vpow.pop %v3020
        %v3022 = vmul.f32 %v3011, 1.442695
        %v3023 = vpow.pop %v3022
        %v3024 = vmul.f32 %v3012, 1.442695
        %v3025 = vpow.pop %v3024
        %v3026 = vmul.f32 %v3013, 1.442695
        %v3027 = vpow.pop %v3026
        %v3028 = vmul.f32 %v3014, 1.442695
        %v3029 = vpow.pop %v3028
        %v3030 = vmul.f32 %v3015, 1.442695
        %v3031 = vpow.pop %v3030
        %v3032 = vsel %vm1249, %v3017, 0.0
        %3033 = vadd.xlane.f32.xlu0 %v3032
        %v3034 = vpop.xlane.xlu0 %3033
        %v3035 = vsel %vm1249, %v3019, 0.0
        %3036 = vadd.xlane.f32.xlu0 %v3035
        %v3037 = vpop.xlane.xlu0 %3036
        %v3038 = vsel %vm1249, %v3021, 0.0
        %3039 = vadd.xlane.f32.xlu0 %v3038
        %v3040 = vpop.xlane.xlu0 %3039
        %v3041 = vsel %vm1249, %v3023, 0.0
        %3042 = vadd.xlane.f32.xlu0 %v3041
        %v3043 = vpop.xlane.xlu0 %3042
        %v3044 = vsel %vm1249, %v3025, 0.0
        %3045 = vadd.xlane.f32.xlu0 %v3044
        %v3046 = vpop.xlane.xlu0 %3045
        %v3047 = vsel %vm1249, %v3027, 0.0
        %3048 = vadd.xlane.f32.xlu0 %v3047
        %v3049 = vpop.xlane.xlu0 %3048
        %v3050 = vsel %vm1249, %v3029, 0.0
        %3051 = vadd.xlane.f32.xlu0 %v3050
        %v3052 = vpop.xlane.xlu0 %3051
        %v3053 = vsel %vm1249, %v3031, 0.0
        %3054 = vadd.xlane.f32.xlu0 %v3053
        %v3055 = vpop.xlane.xlu0 %3054
        %v3056 = vrcp.pop %v3034
        %v3057 = vrcp.pop %v3037
        %v3058 = vrcp.pop %v3040
        %v3059 = vrcp.pop %v3043
        %v3060 = vrcp.pop %v3046
        %v3061 = vrcp.pop %v3049
        %v3062 = vrcp.pop %v3052
        %v3063 = vrcp.pop %v3055
        %v3064 = vmul.f32 %v3017, %v3056
        %v3065 = vmul.f32 %v3019, %v3057
        %v3066 = vmul.f32 %v3021, %v3058
        %v3067 = vmul.f32 %v3023, %v3059
        %v3068 = vmul.f32 %v3025, %v3060
        %v3069 = vmul.f32 %v3027, %v3061
        %v3070 = vmul.f32 %v3029, %v3062
        %v3071 = vmul.f32 %v3031, %v3063
        %v3072 = vmul.f32 %v2901, %v1391
        %v3073 = vmul.f32 %v2901, %v1395
        %v3074 = vmul.f32 %v2901, %v1399
        %v3075 = vmul.f32 %v2901, %v1403
        %v3076 = vmul.f32 %v2901, %v1407
        %v3077 = vmul.f32 %v2901, %v1411
        %v3078 = vmul.f32 %v2901, %v1415
        %v3079 = vmul.f32 %v2901, %v1419
        %v3080 = vpack.c.bf16 %v3064, %v3064
        %v3081 = vpack.c.bf16 %v3065, %v3065
        %v3082 = vpack.c.bf16 %v3066, %v3066
        %v3083 = vpack.c.bf16 %v3067, %v3067
        %v3084 = vpack.c.bf16 %v3068, %v3068
        %v3085 = vpack.c.bf16 %v3069, %v3069
        %v3086 = vpack.c.bf16 %v3070, %v3070
        %v3087 = vpack.c.bf16 %v3071, %v3071
        %v3088 = vpack.c.bf16 %v3072, %v3072
        %v3089 = vpack.c.bf16 %v3073, %v3073
        %v3090 = vpack.c.bf16 %v3074, %v3074
        %v3091 = vpack.c.bf16 %v3075, %v3075
        %v3092 = vpack.c.bf16 %v3076, %v3076
        %v3093 = vpack.c.bf16 %v3077, %v3077
        %v3094 = vpack.c.bf16 %v3078, %v3078
        %v3095 = vpack.c.bf16 %v3079, %v3079
        %v3097 = vsel %vm1249, %v3080, 0
        %v3100 = vsel %vm1455, %v3088, 0
        %3102 = vmatprep.subr.bf16.mxu0 0
        %3103 = vmatpush1.bf16.msra.mxu0 0
        %3104 = vmatprep.subr.bf16.mxu0 0
        %3105 = vmatpush1.bf16.msra.mxu0 0
        %3106 = vmatprep.subr.bf16.mxu0 0
        %3107 = vmatpush1.bf16.msra.mxu0 0
        %3108 = vmatprep.subr.bf16.mxu0 0
        %3109 = vmatpush1.bf16.msra.mxu0 0
        %3110 = vmatprep.subr.bf16.mxu0 0
        %3111 = vmatpush1.bf16.msra.mxu0 0
        %3112 = vmatprep.subr.bf16.mxu0 0
        %3113 = vmatpush1.bf16.msra.mxu0 0
        %3114 = vmatprep.subr.bf16.mxu0 0
        %3115 = vmatpush1.bf16.msra.mxu0 0
        %3116 = vmatprep.subr.bf16.mxu0 0
        %3117 = vmatpush1.bf16.msra.mxu0 %v3100
        %3118 = vmatprep.subr.bf16.mxu0 0
        %3119 = vmatpush2.bf16.msra.mxu0 0
        %3120 = vmatprep.subr.bf16.mxu0 0
        %3121 = vmatpush2.bf16.msra.mxu0 0
        %3122 = vmatprep.subr.bf16.mxu0 0
        %3123 = vmatpush2.bf16.msra.mxu0 0
        %3124 = vmatprep.subr.bf16.mxu0 0
        %3125 = vmatpush2.bf16.msra.mxu0 0
        %3126 = vmatprep.subr.bf16.mxu0 0
        %3127 = vmatpush2.bf16.msra.mxu0 0
        %3128 = vmatprep.subr.bf16.mxu0 0
        %3129 = vmatpush2.bf16.msra.mxu0 0
        %3130 = vmatprep.subr.bf16.mxu0 0
        %3131 = vmatpush2.bf16.msra.mxu0 0
        %3132 = vmatprep.subr.bf16.mxu0 0
        %3133 = vmatpush2.bf16.msra.mxu0 0
        %3134 = vmatprep.mubr.bf16.mxu0 0
        %3135 = vmatmul.mubr.bf16.gmra.mxu0 %v3097
        %v3136 = vpop.f32.mrf.mxu0
        %v3137 = vadd.f32 0.0, %v3136
        %v3138 = vpop.f32.mrf.mxu0
        %v3139 = vpop.f32.mrf.mxu0
        %v3140 = vpop.f32.mrf.mxu0
        %3141 = vdwg.mxu0
        %v3143 = vsel %vm1249, %v3081, 0
        %v3146 = vsel %vm1455, %v3089, 0
        %3148 = vmatprep.subr.bf16.mxu0 0
        %3149 = vmatpush1.bf16.msra.mxu0 0
        %3150 = vmatprep.subr.bf16.mxu0 0
        %3151 = vmatpush1.bf16.msra.mxu0 0
        %3152 = vmatprep.subr.bf16.mxu0 0
        %3153 = vmatpush1.bf16.msra.mxu0 0
        %3154 = vmatprep.subr.bf16.mxu0 0
        %3155 = vmatpush1.bf16.msra.mxu0 0
        %3156 = vmatprep.subr.bf16.mxu0 0
        %3157 = vmatpush1.bf16.msra.mxu0 0
        %3158 = vmatprep.subr.bf16.mxu0 0
        %3159 = vmatpush1.bf16.msra.mxu0 0
        %3160 = vmatprep.subr.bf16.mxu0 0
        %3161 = vmatpush1.bf16.msra.mxu0 0
        %3162 = vmatprep.subr.bf16.mxu0 0
        %3163 = vmatpush1.bf16.msra.mxu0 %v3146
        %3164 = vmatprep.subr.bf16.mxu0 0
        %3165 = vmatpush2.bf16.msra.mxu0 0
        %3166 = vmatprep.subr.bf16.mxu0 0
        %3167 = vmatpush2.bf16.msra.mxu0 0
        %3168 = vmatprep.subr.bf16.mxu0 0
        %3169 = vmatpush2.bf16.msra.mxu0 0
        %3170 = vmatprep.subr.bf16.mxu0 0
        %3171 = vmatpush2.bf16.msra.mxu0 0
        %3172 = vmatprep.subr.bf16.mxu0 0
        %3173 = vmatpush2.bf16.msra.mxu0 0
        %3174 = vmatprep.subr.bf16.mxu0 0
        %3175 = vmatpush2.bf16.msra.mxu0 0
        %3176 = vmatprep.subr.bf16.mxu0 0
        %3177 = vmatpush2.bf16.msra.mxu0 0
        %3178 = vmatprep.subr.bf16.mxu0 0
        %3179 = vmatpush2.bf16.msra.mxu0 0
        %3180 = vmatprep.mubr.bf16.mxu0 0
        %3181 = vmatmul.mubr.bf16.gmra.mxu0 %v3143
        %v3182 = vpop.f32.mrf.mxu0
        %v3183 = vadd.f32 0.0, %v3182
        %v3184 = vpop.f32.mrf.mxu0
        %v3185 = vpop.f32.mrf.mxu0
        %v3186 = vpop.f32.mrf.mxu0
        %3187 = vdwg.mxu0
        %v3189 = vsel %vm1249, %v3082, 0
        %v3192 = vsel %vm1455, %v3090, 0
        %3194 = vmatprep.subr.bf16.mxu0 0
        %3195 = vmatpush1.bf16.msra.mxu0 0
        %3196 = vmatprep.subr.bf16.mxu0 0
        %3197 = vmatpush1.bf16.msra.mxu0 0
        %3198 = vmatprep.subr.bf16.mxu0 0
        %3199 = vmatpush1.bf16.msra.mxu0 0
        %3200 = vmatprep.subr.bf16.mxu0 0
        %3201 = vmatpush1.bf16.msra.mxu0 0
        %3202 = vmatprep.subr.bf16.mxu0 0
        %3203 = vmatpush1.bf16.msra.mxu0 0
        %3204 = vmatprep.subr.bf16.mxu0 0
        %3205 = vmatpush1.bf16.msra.mxu0 0
        %3206 = vmatprep.subr.bf16.mxu0 0
        %3207 = vmatpush1.bf16.msra.mxu0 0
        %3208 = vmatprep.subr.bf16.mxu0 0
        %3209 = vmatpush1.bf16.msra.mxu0 %v3192
        %3210 = vmatprep.subr.bf16.mxu0 0
        %3211 = vmatpush2.bf16.msra.mxu0 0
        %3212 = vmatprep.subr.bf16.mxu0 0
        %3213 = vmatpush2.bf16.msra.mxu0 0
        %3214 = vmatprep.subr.bf16.mxu0 0
        %3215 = vmatpush2.bf16.msra.mxu0 0
        %3216 = vmatprep.subr.bf16.mxu0 0
        %3217 = vmatpush2.bf16.msra.mxu0 0
        %3218 = vmatprep.subr.bf16.mxu0 0
        %3219 = vmatpush2.bf16.msra.mxu0 0
        %3220 = vmatprep.subr.bf16.mxu0 0
        %3221 = vmatpush2.bf16.msra.mxu0 0
        %3222 = vmatprep.subr.bf16.mxu0 0
        %3223 = vmatpush2.bf16.msra.mxu0 0
        %3224 = vmatprep.subr.bf16.mxu0 0
        %3225 = vmatpush2.bf16.msra.mxu0 0
        %3226 = vmatprep.mubr.bf16.mxu0 0
        %3227 = vmatmul.mubr.bf16.gmra.mxu0 %v3189
        %v3228 = vpop.f32.mrf.mxu0
        %v3229 = vadd.f32 0.0, %v3228
        %v3230 = vpop.f32.mrf.mxu0
        %v3231 = vpop.f32.mrf.mxu0
        %v3232 = vpop.f32.mrf.mxu0
        %3233 = vdwg.mxu0
        %v3235 = vsel %vm1249, %v3083, 0
        %v3238 = vsel %vm1455, %v3091, 0
        %3240 = vmatprep.subr.bf16.mxu0 0
        %3241 = vmatpush1.bf16.msra.mxu0 0
        %3242 = vmatprep.subr.bf16.mxu0 0
        %3243 = vmatpush1.bf16.msra.mxu0 0
        %3244 = vmatprep.subr.bf16.mxu0 0
        %3245 = vmatpush1.bf16.msra.mxu0 0
        %3246 = vmatprep.subr.bf16.mxu0 0
        %3247 = vmatpush1.bf16.msra.mxu0 0
        %3248 = vmatprep.subr.bf16.mxu0 0
        %3249 = vmatpush1.bf16.msra.mxu0 0
        %3250 = vmatprep.subr.bf16.mxu0 0
        %3251 = vmatpush1.bf16.msra.mxu0 0
        %3252 = vmatprep.subr.bf16.mxu0 0
        %3253 = vmatpush1.bf16.msra.mxu0 0
        %3254 = vmatprep.subr.bf16.mxu0 0
        %3255 = vmatpush1.bf16.msra.mxu0 %v3238
        %3256 = vmatprep.subr.bf16.mxu0 0
        %3257 = vmatpush2.bf16.msra.mxu0 0
        %3258 = vmatprep.subr.bf16.mxu0 0
        %3259 = vmatpush2.bf16.msra.mxu0 0
        %3260 = vmatprep.subr.bf16.mxu0 0
        %3261 = vmatpush2.bf16.msra.mxu0 0
        %3262 = vmatprep.subr.bf16.mxu0 0
        %3263 = vmatpush2.bf16.msra.mxu0 0
        %3264 = vmatprep.subr.bf16.mxu0 0
        %3265 = vmatpush2.bf16.msra.mxu0 0
        %3266 = vmatprep.subr.bf16.mxu0 0
        %3267 = vmatpush2.bf16.msra.mxu0 0
        %3268 = vmatprep.subr.bf16.mxu0 0
        %3269 = vmatpush2.bf16.msra.mxu0 0
        %3270 = vmatprep.subr.bf16.mxu0 0
        %3271 = vmatpush2.bf16.msra.mxu0 0
        %3272 = vmatprep.mubr.bf16.mxu0 0
        %3273 = vmatmul.mubr.bf16.gmra.mxu0 %v3235
        %v3274 = vpop.f32.mrf.mxu0
        %v3275 = vadd.f32 0.0, %v3274
        %v3276 = vpop.f32.mrf.mxu0
        %v3277 = vpop.f32.mrf.mxu0
        %v3278 = vpop.f32.mrf.mxu0
        %3279 = vdwg.mxu0
        %v3281 = vsel %vm1249, %v3084, 0
        %v3284 = vsel %vm1455, %v3092, 0
        %3286 = vmatprep.subr.bf16.mxu0 0
        %3287 = vmatpush1.bf16.msra.mxu0 0
        %3288 = vmatprep.subr.bf16.mxu0 0
        %3289 = vmatpush1.bf16.msra.mxu0 0
        %3290 = vmatprep.subr.bf16.mxu0 0
        %3291 = vmatpush1.bf16.msra.mxu0 0
        %3292 = vmatprep.subr.bf16.mxu0 0
        %3293 = vmatpush1.bf16.msra.mxu0 0
        %3294 = vmatprep.subr.bf16.mxu0 0
        %3295 = vmatpush1.bf16.msra.mxu0 0
        %3296 = vmatprep.subr.bf16.mxu0 0
        %3297 = vmatpush1.bf16.msra.mxu0 0
        %3298 = vmatprep.subr.bf16.mxu0 0
        %3299 = vmatpush1.bf16.msra.mxu0 0
        %3300 = vmatprep.subr.bf16.mxu0 0
        %3301 = vmatpush1.bf16.msra.mxu0 %v3284
        %3302 = vmatprep.subr.bf16.mxu0 0
        %3303 = vmatpush2.bf16.msra.mxu0 0
        %3304 = vmatprep.subr.bf16.mxu0 0
        %3305 = vmatpush2.bf16.msra.mxu0 0
        %3306 = vmatprep.subr.bf16.mxu0 0
        %3307 = vmatpush2.bf16.msra.mxu0 0
        %3308 = vmatprep.subr.bf16.mxu0 0
        %3309 = vmatpush2.bf16.msra.mxu0 0
        %3310 = vmatprep.subr.bf16.mxu0 0
        %3311 = vmatpush2.bf16.msra.mxu0 0
        %3312 = vmatprep.subr.bf16.mxu0 0
        %3313 = vmatpush2.bf16.msra.mxu0 0
        %3314 = vmatprep.subr.bf16.mxu0 0
        %3315 = vmatpush2.bf16.msra.mxu0 0
        %3316 = vmatprep.subr.bf16.mxu0 0
        %3317 = vmatpush2.bf16.msra.mxu0 0
        %3318 = vmatprep.mubr.bf16.mxu0 0
        %3319 = vmatmul.mubr.bf16.gmra.mxu0 %v3281
        %v3320 = vpop.f32.mrf.mxu0
        %v3321 = vadd.f32 0.0, %v3320
        %v3322 = vpop.f32.mrf.mxu0
        %v3323 = vpop.f32.mrf.mxu0
        %v3324 = vpop.f32.mrf.mxu0
        %3325 = vdwg.mxu0
        %v3327 = vsel %vm1249, %v3085, 0
        %v3330 = vsel %vm1455, %v3093, 0
        %3332 = vmatprep.subr.bf16.mxu0 0
        %3333 = vmatpush1.bf16.msra.mxu0 0
        %3334 = vmatprep.subr.bf16.mxu0 0
        %3335 = vmatpush1.bf16.msra.mxu0 0
        %3336 = vmatprep.subr.bf16.mxu0 0
        %3337 = vmatpush1.bf16.msra.mxu0 0
        %3338 = vmatprep.subr.bf16.mxu0 0
        %3339 = vmatpush1.bf16.msra.mxu0 0
        %3340 = vmatprep.subr.bf16.mxu0 0
        %3341 = vmatpush1.bf16.msra.mxu0 0
        %3342 = vmatprep.subr.bf16.mxu0 0
        %3343 = vmatpush1.bf16.msra.mxu0 0
        %3344 = vmatprep.subr.bf16.mxu0 0
        %3345 = vmatpush1.bf16.msra.mxu0 0
        %3346 = vmatprep.subr.bf16.mxu0 0
        %3347 = vmatpush1.bf16.msra.mxu0 %v3330
        %3348 = vmatprep.subr.bf16.mxu0 0
        %3349 = vmatpush2.bf16.msra.mxu0 0
        %3350 = vmatprep.subr.bf16.mxu0 0
        %3351 = vmatpush2.bf16.msra.mxu0 0
        %3352 = vmatprep.subr.bf16.mxu0 0
        %3353 = vmatpush2.bf16.msra.mxu0 0
        %3354 = vmatprep.subr.bf16.mxu0 0
        %3355 = vmatpush2.bf16.msra.mxu0 0
        %3356 = vmatprep.subr.bf16.mxu0 0
        %3357 = vmatpush2.bf16.msra.mxu0 0
        %3358 = vmatprep.subr.bf16.mxu0 0
        %3359 = vmatpush2.bf16.msra.mxu0 0
        %3360 = vmatprep.subr.bf16.mxu0 0
        %3361 = vmatpush2.bf16.msra.mxu0 0
        %3362 = vmatprep.subr.bf16.mxu0 0
        %3363 = vmatpush2.bf16.msra.mxu0 0
        %3364 = vmatprep.mubr.bf16.mxu0 0
        %3365 = vmatmul.mubr.bf16.gmra.mxu0 %v3327
        %v3366 = vpop.f32.mrf.mxu0
        %v3367 = vadd.f32 0.0, %v3366
        %v3368 = vpop.f32.mrf.mxu0
        %v3369 = vpop.f32.mrf.mxu0
        %v3370 = vpop.f32.mrf.mxu0
        %3371 = vdwg.mxu0
        %v3373 = vsel %vm1249, %v3086, 0
        %v3376 = vsel %vm1455, %v3094, 0
        %3378 = vmatprep.subr.bf16.mxu0 0
        %3379 = vmatpush1.bf16.msra.mxu0 0
        %3380 = vmatprep.subr.bf16.mxu0 0
        %3381 = vmatpush1.bf16.msra.mxu0 0
        %3382 = vmatprep.subr.bf16.mxu0 0
        %3383 = vmatpush1.bf16.msra.mxu0 0
        %3384 = vmatprep.subr.bf16.mxu0 0
        %3385 = vmatpush1.bf16.msra.mxu0 0
        %3386 = vmatprep.subr.bf16.mxu0 0
        %3387 = vmatpush1.bf16.msra.mxu0 0
        %3388 = vmatprep.subr.bf16.mxu0 0
        %3389 = vmatpush1.bf16.msra.mxu0 0
        %3390 = vmatprep.subr.bf16.mxu0 0
        %3391 = vmatpush1.bf16.msra.mxu0 0
        %3392 = vmatprep.subr.bf16.mxu0 0
        %3393 = vmatpush1.bf16.msra.mxu0 %v3376
        %3394 = vmatprep.subr.bf16.mxu0 0
        %3395 = vmatpush2.bf16.msra.mxu0 0
        %3396 = vmatprep.subr.bf16.mxu0 0
        %3397 = vmatpush2.bf16.msra.mxu0 0
        %3398 = vmatprep.subr.bf16.mxu0 0
        %3399 = vmatpush2.bf16.msra.mxu0 0
        %3400 = vmatprep.subr.bf16.mxu0 0
        %3401 = vmatpush2.bf16.msra.mxu0 0
        %3402 = vmatprep.subr.bf16.mxu0 0
        %3403 = vmatpush2.bf16.msra.mxu0 0
        %3404 = vmatprep.subr.bf16.mxu0 0
        %3405 = vmatpush2.bf16.msra.mxu0 0
        %3406 = vmatprep.subr.bf16.mxu0 0
        %3407 = vmatpush2.bf16.msra.mxu0 0
        %3408 = vmatprep.subr.bf16.mxu0 0
        %3409 = vmatpush2.bf16.msra.mxu0 0
        %3410 = vmatprep.mubr.bf16.mxu0 0
        %3411 = vmatmul.mubr.bf16.gmra.mxu0 %v3373
        %v3412 = vpop.f32.mrf.mxu0
        %v3413 = vadd.f32 0.0, %v3412
        %v3414 = vpop.f32.mrf.mxu0
        %v3415 = vpop.f32.mrf.mxu0
        %v3416 = vpop.f32.mrf.mxu0
        %3417 = vdwg.mxu0
        %v3419 = vsel %vm1249, %v3087, 0
        %v3422 = vsel %vm1455, %v3095, 0
        %3424 = vmatprep.subr.bf16.mxu0 0
        %3425 = vmatpush1.bf16.msra.mxu0 0
        %3426 = vmatprep.subr.bf16.mxu0 0
        %3427 = vmatpush1.bf16.msra.mxu0 0
        %3428 = vmatprep.subr.bf16.mxu0 0
        %3429 = vmatpush1.bf16.msra.mxu0 0
        %3430 = vmatprep.subr.bf16.mxu0 0
        %3431 = vmatpush1.bf16.msra.mxu0 0
        %3432 = vmatprep.subr.bf16.mxu0 0
        %3433 = vmatpush1.bf16.msra.mxu0 0
        %3434 = vmatprep.subr.bf16.mxu0 0
        %3435 = vmatpush1.bf16.msra.mxu0 0
        %3436 = vmatprep.subr.bf16.mxu0 0
        %3437 = vmatpush1.bf16.msra.mxu0 0
        %3438 = vmatprep.subr.bf16.mxu0 0
        %3439 = vmatpush1.bf16.msra.mxu0 %v3422
        %3440 = vmatprep.subr.bf16.mxu0 0
        %3441 = vmatpush2.bf16.msra.mxu0 0
        %3442 = vmatprep.subr.bf16.mxu0 0
        %3443 = vmatpush2.bf16.msra.mxu0 0
        %3444 = vmatprep.subr.bf16.mxu0 0
        %3445 = vmatpush2.bf16.msra.mxu0 0
        %3446 = vmatprep.subr.bf16.mxu0 0
        %3447 = vmatpush2.bf16.msra.mxu0 0
        %3448 = vmatprep.subr.bf16.mxu0 0
        %3449 = vmatpush2.bf16.msra.mxu0 0
        %3450 = vmatprep.subr.bf16.mxu0 0
        %3451 = vmatpush2.bf16.msra.mxu0 0
        %3452 = vmatprep.subr.bf16.mxu0 0
        %3453 = vmatpush2.bf16.msra.mxu0 0
        %3454 = vmatprep.subr.bf16.mxu0 0
        %3455 = vmatpush2.bf16.msra.mxu0 0
        %3456 = vmatprep.mubr.bf16.mxu0 0
        %3457 = vmatmul.mubr.bf16.gmra.mxu0 %v3419
        %v3458 = vpop.f32.mrf.mxu0
        %v3459 = vadd.f32 0.0, %v3458
        %v3460 = vpop.f32.mrf.mxu0
        %v3461 = vpop.f32.mrf.mxu0
        %v3462 = vpop.f32.mrf.mxu0
        %3463 = vdwg.mxu0
        %v3464 = vadd.f32 %v3137, %v3183
        %v3465 = vadd.f32 %v3464, %v3229
        %v3466 = vadd.f32 %v3465, %v3275
        %v3467 = vadd.f32 %v3466, %v3321
        %v3468 = vadd.f32 %v3467, %v3367
        %v3469 = vadd.f32 %v3468, %v3413
        %v3470 = vadd.f32 %v3469, %v3459
        %s3471 = scalar_lea.vmem %s7, 64
        %v3472 = vld [vmem:[%s3471] sm:$0xf]
        %v3473 = vld [vmem:[%s3471 + $0x4] sm:$0xf]
        %v3474 = vld [vmem:[%s3471 + $0x8] sm:$0xf]
        %v3475 = vld [vmem:[%s3471 + $0xc] sm:$0xf]
        %v3476 = vld [vmem:[%s3471 + $0x10] sm:$0xf]
        %v3477 = vld [vmem:[%s3471 + $0x14] sm:$0xf]
        %v3478 = vld [vmem:[%s3471 + $0x18] sm:$0xf]
        %v3479 = vld [vmem:[%s3471 + $0x1c] sm:$0xf]
        %v3480 = vld [vmem:[%s3471 + $0x20] sm:$0xf]
        %v3481 = vld [vmem:[%s3471 + $0x24] sm:$0xf]
        %v3482 = vld [vmem:[%s3471 + $0x28] sm:$0xf]
        %v3483 = vld [vmem:[%s3471 + $0x2c] sm:$0xf]
        %v3484 = vld [vmem:[%s3471 + $0x30] sm:$0xf]
        %v3485 = vld [vmem:[%s3471 + $0x34] sm:$0xf]
        %v3486 = vld [vmem:[%s3471 + $0x38] sm:$0xf]
        %v3487 = vld [vmem:[%s3471 + $0x3c] sm:$0xf]
        %v3488 = vpack.c.bf16 %v3470, %v3470
        %s3489 = scalar_lea.vmem %s8, 1
        %v3490 = vld [vmem:[%s3489] sm:$0x1]
        %v3492 = vlaneseq
        %v3493 = vshrl.u32 %v3492, 7
        %v3494 = vsub.s32 0, %v3493
        %v3495 = vrot.slane %v3490, %v3494
        %v3513 = vunpack.c.l.b16 %v3472
        %v3514 = vunpack.c.l.b16 %v3473
        %v3515 = vunpack.c.l.b16 %v3474
        %v3516 = vunpack.c.l.b16 %v3475
        %v3517 = vunpack.c.l.b16 %v3476
        %v3518 = vunpack.c.l.b16 %v3477
        %v3519 = vunpack.c.l.b16 %v3478
        %v3520 = vunpack.c.l.b16 %v3479
        %v3521 = vunpack.c.l.b16 %v3480
        %v3522 = vunpack.c.l.b16 %v3481
        %v3523 = vunpack.c.l.b16 %v3482
        %v3524 = vunpack.c.l.b16 %v3483
        %v3525 = vunpack.c.l.b16 %v3484
        %v3526 = vunpack.c.l.b16 %v3485
        %v3527 = vunpack.c.l.b16 %v3486
        %v3528 = vunpack.c.l.b16 %v3487
        %v3529 = vpack.c.b16 %v3514, %v3513
        %v3530 = vpack.c.b16 %v3516, %v3515
        %v3531 = vpack.c.b16 %v3518, %v3517
        %v3532 = vpack.c.b16 %v3520, %v3519
        %v3533 = vpack.c.b16 %v3522, %v3521
        %v3534 = vpack.c.b16 %v3524, %v3523
        %v3535 = vpack.c.b16 %v3526, %v3525
        %v3536 = vpack.c.b16 %v3528, %v3527
        %3545 = vmatprep.subr.bf16.mxu0 0
        %3546 = vmatpush1.bf16.msra.mxu0 %v3536
        %3547 = vmatprep.subr.bf16.mxu0 0
        %3548 = vmatpush1.bf16.msra.mxu0 %v3535
        %3549 = vmatprep.subr.bf16.mxu0 0
        %3550 = vmatpush1.bf16.msra.mxu0 %v3534
        %3551 = vmatprep.subr.bf16.mxu0 0
        %3552 = vmatpush1.bf16.msra.mxu0 %v3533
        %3553 = vmatprep.subr.bf16.mxu0 0
        %3554 = vmatpush1.bf16.msra.mxu0 %v3532
        %3555 = vmatprep.subr.bf16.mxu0 0
        %3556 = vmatpush1.bf16.msra.mxu0 %v3531
        %3557 = vmatprep.subr.bf16.mxu0 0
        %3558 = vmatpush1.bf16.msra.mxu0 %v3530
        %3559 = vmatprep.subr.bf16.mxu0 0
        %3560 = vmatpush1.bf16.msra.mxu0 %v3529
        %3561 = vmatprep.subr.bf16.mxu0 0
        %3562 = vmatpush2.bf16.msra.mxu0 0
        %3563 = vmatprep.subr.bf16.mxu0 0
        %3564 = vmatpush2.bf16.msra.mxu0 0
        %3565 = vmatprep.subr.bf16.mxu0 0
        %3566 = vmatpush2.bf16.msra.mxu0 0
        %3567 = vmatprep.subr.bf16.mxu0 0
        %3568 = vmatpush2.bf16.msra.mxu0 0
        %3569 = vmatprep.subr.bf16.mxu0 0
        %3570 = vmatpush2.bf16.msra.mxu0 0
        %3571 = vmatprep.subr.bf16.mxu0 0
        %3572 = vmatpush2.bf16.msra.mxu0 0
        %3573 = vmatprep.subr.bf16.mxu0 0
        %3574 = vmatpush2.bf16.msra.mxu0 0
        %3575 = vmatprep.subr.bf16.mxu0 0
        %3576 = vmatpush2.bf16.msra.mxu0 0
        %3577 = vmatprep.mubr.bf16.mxu0 0
        %3578 = vmatmul.mubr.bf16.gmra.mxu0 %v3488
        %v3579 = vpop.f32.mrf.mxu0
        %v3580 = vadd.f32 %v3495, %v3579
        %v3581 = vpop.f32.mrf.mxu0
        %v3582 = vpop.f32.mrf.mxu0
        %v3583 = vpop.f32.mrf.mxu0
        %3584 = vdwg.mxu0
        %v3585 = vadd.f32 %v2644, %v3580
        %s3586 = scalar_lea.vmem %s13, 1
        %v3587 = vld [vmem:[%s3586] sm:$0x1]
        %s3588 = scalar_lea.vmem %s14, 1
        %v3589 = vld [vmem:[%s3588] sm:$0x1]
        %3590 = vadd.xlane.f32.xlu0 %v3585
        %v3591 = vpop.xlane.xlu0 %3590
        %v3592 = vmul.f32 %v3591, %v1945
        %v3593 = vsub.f32 %v3585, %v3592
        %v3594 = vmul.f32 %v3593, %v3593
        %3595 = vadd.xlane.f32.xlu0 %v3594
        %v3596 = vpop.xlane.xlu0 %3595
        %v3597 = vmul.f32 %v3596, %v1945
        %v3598 = vadd.f32 %v3597, 1e-05
        %v3599 = vrsqrt.pop %v3598
        %v3600 = vmul.f32 %v3593, %v3599
        %v3602 = vlaneseq
        %v3603 = vshrl.u32 %v3602, 7
        %v3604 = vsub.s32 0, %v3603
        %v3605 = vrot.slane %v3587, %v3604
        %v3607 = vmul.f32 %v3600, %v3605
        %v3609 = vlaneseq
        %v3610 = vshrl.u32 %v3609, 7
        %v3611 = vsub.s32 0, %v3610
        %v3612 = vrot.slane %v3589, %v3611
        %v3614 = vadd.f32 %v3607, %v3612
        %s3615 = scalar_lea.vmem %s9, 256
        %v3616 = vld [vmem:[%s3615] sm:$0xff]
        %v3617 = vld [vmem:[%s3615 + $0x8] sm:$0xff]
        %v3618 = vld [vmem:[%s3615 + $0x10] sm:$0xff]
        %v3619 = vld [vmem:[%s3615 + $0x18] sm:$0xff]
        %v3620 = vld [vmem:[%s3615 + $0x20] sm:$0xff]
        %v3621 = vld [vmem:[%s3615 + $0x28] sm:$0xff]
        %v3622 = vld [vmem:[%s3615 + $0x30] sm:$0xff]
        %v3623 = vld [vmem:[%s3615 + $0x38] sm:$0xff]
        %v3624 = vld [vmem:[%s3615 + $0x40] sm:$0xff]
        %v3625 = vld [vmem:[%s3615 + $0x48] sm:$0xff]
        %v3626 = vld [vmem:[%s3615 + $0x50] sm:$0xff]
        %v3627 = vld [vmem:[%s3615 + $0x58] sm:$0xff]
        %v3628 = vld [vmem:[%s3615 + $0x60] sm:$0xff]
        %v3629 = vld [vmem:[%s3615 + $0x68] sm:$0xff]
        %v3630 = vld [vmem:[%s3615 + $0x70] sm:$0xff]
        %v3631 = vld [vmem:[%s3615 + $0x78] sm:$0xff]
        %v3632 = vld [vmem:[%s3615 + $0x80] sm:$0xff]
        %v3633 = vld [vmem:[%s3615 + $0x88] sm:$0xff]
        %v3634 = vld [vmem:[%s3615 + $0x90] sm:$0xff]
        %v3635 = vld [vmem:[%s3615 + $0x98] sm:$0xff]
        %v3636 = vld [vmem:[%s3615 + $0xa0] sm:$0xff]
        %v3637 = vld [vmem:[%s3615 + $0xa8] sm:$0xff]
        %v3638 = vld [vmem:[%s3615 + $0xb0] sm:$0xff]
        %v3639 = vld [vmem:[%s3615 + $0xb8] sm:$0xff]
        %v3640 = vld [vmem:[%s3615 + $0xc0] sm:$0xff]
        %v3641 = vld [vmem:[%s3615 + $0xc8] sm:$0xff]
        %v3642 = vld [vmem:[%s3615 + $0xd0] sm:$0xff]
        %v3643 = vld [vmem:[%s3615 + $0xd8] sm:$0xff]
        %v3644 = vld [vmem:[%s3615 + $0xe0] sm:$0xff]
        %v3645 = vld [vmem:[%s3615 + $0xe8] sm:$0xff]
        %v3646 = vld [vmem:[%s3615 + $0xf0] sm:$0xff]
        %v3647 = vld [vmem:[%s3615 + $0xf8] sm:$0xff]
        %v3648 = vpack.c.bf16 %v3614, %v3614
        %s3649 = scalar_lea.vmem %s10, 4
        %v3650 = vld [vmem:[%s3649] sm:$0xf]
        %v3652 = vlaneseq
        %v3653 = vshrl.u32 %v3652, 7
        %v3654 = vsub.s32 0, %v3653
        %v3655 = vrot.slane %v3650, %v3654
        %v3656 = vlaneseq
        %v3657 = vshrl.u32 %v3656, 7
        %v3658 = vsub.s32 1, %v3657
        %v3659 = vrot.slane %v3650, %v3658
        %v3660 = vlaneseq
        %v3661 = vshrl.u32 %v3660, 7
        %v3662 = vsub.s32 2, %v3661
        %v3663 = vrot.slane %v3650, %v3662
        %v3664 = vlaneseq
        %v3665 = vshrl.u32 %v3664, 7
        %v3666 = vsub.s32 3, %v3665
        %v3667 = vrot.slane %v3650, %v3666
        %v3704 = vunpack.c.l.b16 %v3616
        %v3705 = vunpack.c.h.b16 %v3616
        %v3706 = vunpack.c.l.b16 %v3617
        %v3707 = vunpack.c.h.b16 %v3617
        %v3708 = vunpack.c.l.b16 %v3618
        %v3709 = vunpack.c.h.b16 %v3618
        %v3710 = vunpack.c.l.b16 %v3619
        %v3711 = vunpack.c.h.b16 %v3619
        %v3712 = vunpack.c.l.b16 %v3620
        %v3713 = vunpack.c.h.b16 %v3620
        %v3714 = vunpack.c.l.b16 %v3621
        %v3715 = vunpack.c.h.b16 %v3621
        %v3716 = vunpack.c.l.b16 %v3622
        %v3717 = vunpack.c.h.b16 %v3622
        %v3718 = vunpack.c.l.b16 %v3623
        %v3719 = vunpack.c.h.b16 %v3623
        %v3720 = vunpack.c.l.b16 %v3624
        %v3721 = vunpack.c.h.b16 %v3624
        %v3722 = vunpack.c.l.b16 %v3625
        %v3723 = vunpack.c.h.b16 %v3625
        %v3724 = vunpack.c.l.b16 %v3626
        %v3725 = vunpack.c.h.b16 %v3626
        %v3726 = vunpack.c.l.b16 %v3627
        %v3727 = vunpack.c.h.b16 %v3627
        %v3728 = vunpack.c.l.b16 %v3628
        %v3729 = vunpack.c.h.b16 %v3628
        %v3730 = vunpack.c.l.b16 %v3629
        %v3731 = vunpack.c.h.b16 %v3629
        %v3732 = vunpack.c.l.b16 %v3630
        %v3733 = vunpack.c.h.b16 %v3630
        %v3734 = vunpack.c.l.b16 %v3631
        %v3735 = vunpack.c.h.b16 %v3631
        %v3736 = vunpack.c.l.b16 %v3632
        %v3737 = vunpack.c.h.b16 %v3632
        %v3738 = vunpack.c.l.b16 %v3633
        %v3739 = vunpack.c.h.b16 %v3633
        %v3740 = vunpack.c.l.b16 %v3634
        %v3741 = vunpack.c.h.b16 %v3634
        %v3742 = vunpack.c.l.b16 %v3635
        %v3743 = vunpack.c.h.b16 %v3635
        %v3744 = vunpack.c.l.b16 %v3636
        %v3745 = vunpack.c.h.b16 %v3636
        %v3746 = vunpack.c.l.b16 %v3637
        %v3747 = vunpack.c.h.b16 %v3637
        %v3748 = vunpack.c.l.b16 %v3638
        %v3749 = vunpack.c.h.b16 %v3638
        %v3750 = vunpack.c.l.b16 %v3639
        %v3751 = vunpack.c.h.b16 %v3639
        %v3752 = vunpack.c.l.b16 %v3640
        %v3753 = vunpack.c.h.b16 %v3640
        %v3754 = vunpack.c.l.b16 %v3641
        %v3755 = vunpack.c.h.b16 %v3641
        %v3756 = vunpack.c.l.b16 %v3642
        %v3757 = vunpack.c.h.b16 %v3642
        %v3758 = vunpack.c.l.b16 %v3643
        %v3759 = vunpack.c.h.b16 %v3643
        %v3760 = vunpack.c.l.b16 %v3644
        %v3761 = vunpack.c.h.b16 %v3644
        %v3762 = vunpack.c.l.b16 %v3645
        %v3763 = vunpack.c.h.b16 %v3645
        %v3764 = vunpack.c.l.b16 %v3646
        %v3765 = vunpack.c.h.b16 %v3646
        %v3766 = vunpack.c.l.b16 %v3647
        %v3767 = vunpack.c.h.b16 %v3647
        %v3768 = vpack.c.b16 %v3708, %v3704
        %v3769 = vpack.c.b16 %v3709, %v3705
        %v3770 = vpack.c.b16 %v3710, %v3706
        %v3771 = vpack.c.b16 %v3711, %v3707
        %v3772 = vpack.c.b16 %v3716, %v3712
        %v3773 = vpack.c.b16 %v3717, %v3713
        %v3774 = vpack.c.b16 %v3718, %v3714
        %v3775 = vpack.c.b16 %v3719, %v3715
        %v3776 = vpack.c.b16 %v3724, %v3720
        %v3777 = vpack.c.b16 %v3725, %v3721
        %v3778 = vpack.c.b16 %v3726, %v3722
        %v3779 = vpack.c.b16 %v3727, %v3723
        %v3780 = vpack.c.b16 %v3732, %v3728
        %v3781 = vpack.c.b16 %v3733, %v3729
        %v3782 = vpack.c.b16 %v3734, %v3730
        %v3783 = vpack.c.b16 %v3735, %v3731
        %v3784 = vpack.c.b16 %v3740, %v3736
        %v3785 = vpack.c.b16 %v3741, %v3737
        %v3786 = vpack.c.b16 %v3742, %v3738
        %v3787 = vpack.c.b16 %v3743, %v3739
        %v3788 = vpack.c.b16 %v3748, %v3744
        %v3789 = vpack.c.b16 %v3749, %v3745
        %v3790 = vpack.c.b16 %v3750, %v3746
        %v3791 = vpack.c.b16 %v3751, %v3747
        %v3792 = vpack.c.b16 %v3756, %v3752
        %v3793 = vpack.c.b16 %v3757, %v3753
        %v3794 = vpack.c.b16 %v3758, %v3754
        %v3795 = vpack.c.b16 %v3759, %v3755
        %v3796 = vpack.c.b16 %v3764, %v3760
        %v3797 = vpack.c.b16 %v3765, %v3761
        %v3798 = vpack.c.b16 %v3766, %v3762
        %v3799 = vpack.c.b16 %v3767, %v3763
        %3832 = vmatprep.subr.bf16.mxu0 %v3797
        %3833 = vmatpush1.bf16.msra.mxu0 %v3796
        %3834 = vmatprep.subr.bf16.mxu0 %v3793
        %3835 = vmatpush1.bf16.msra.mxu0 %v3792
        %3836 = vmatprep.subr.bf16.mxu0 %v3789
        %3837 = vmatpush1.bf16.msra.mxu0 %v3788
        %3838 = vmatprep.subr.bf16.mxu0 %v3785
        %3839 = vmatpush1.bf16.msra.mxu0 %v3784
        %3840 = vmatprep.subr.bf16.mxu0 %v3781
        %3841 = vmatpush1.bf16.msra.mxu0 %v3780
        %3842 = vmatprep.subr.bf16.mxu0 %v3777
        %3843 = vmatpush1.bf16.msra.mxu0 %v3776
        %3844 = vmatprep.subr.bf16.mxu0 %v3773
        %3845 = vmatpush1.bf16.msra.mxu0 %v3772
        %3846 = vmatprep.subr.bf16.mxu0 %v3769
        %3847 = vmatpush1.bf16.msra.mxu0 %v3768
        %3848 = vmatprep.subr.bf16.mxu0 0
        %3849 = vmatpush2.bf16.msra.mxu0 0
        %3850 = vmatprep.subr.bf16.mxu0 0
        %3851 = vmatpush2.bf16.msra.mxu0 0
        %3852 = vmatprep.subr.bf16.mxu0 0
        %3853 = vmatpush2.bf16.msra.mxu0 0
        %3854 = vmatprep.subr.bf16.mxu0 0
        %3855 = vmatpush2.bf16.msra.mxu0 0
        %3856 = vmatprep.subr.bf16.mxu0 0
        %3857 = vmatpush2.bf16.msra.mxu0 0
        %3858 = vmatprep.subr.bf16.mxu0 0
        %3859 = vmatpush2.bf16.msra.mxu0 0
        %3860 = vmatprep.subr.bf16.mxu0 0
        %3861 = vmatpush2.bf16.msra.mxu0 0
        %3862 = vmatprep.subr.bf16.mxu0 0
        %3863 = vmatpush2.bf16.msra.mxu0 0
        %3864 = vmatprep.mubr.bf16.mxu0 0
        %3865 = vmatmul.mubr.bf16.gmra.mxu0 %v3648
        %v3866 = vpop.f32.mrf.mxu0
        %v3867 = vadd.f32 %v3655, %v3866
        %v3868 = vpop.f32.mrf.mxu0
        %v3869 = vadd.f32 %v3659, %v3868
        %v3870 = vpop.f32.mrf.mxu0
        %v3871 = vpop.f32.mrf.mxu0
        %3872 = vdwg.mxu0
        %3873 = vmatprep.subr.bf16.mxu0 %v3799
        %3874 = vmatpush1.bf16.msra.mxu0 %v3798
        %3875 = vmatprep.subr.bf16.mxu0 %v3795
        %3876 = vmatpush1.bf16.msra.mxu0 %v3794
        %3877 = vmatprep.subr.bf16.mxu0 %v3791
        %3878 = vmatpush1.bf16.msra.mxu0 %v3790
        %3879 = vmatprep.subr.bf16.mxu0 %v3787
        %3880 = vmatpush1.bf16.msra.mxu0 %v3786
        %3881 = vmatprep.subr.bf16.mxu0 %v3783
        %3882 = vmatpush1.bf16.msra.mxu0 %v3782
        %3883 = vmatprep.subr.bf16.mxu0 %v3779
        %3884 = vmatpush1.bf16.msra.mxu0 %v3778
        %3885 = vmatprep.subr.bf16.mxu0 %v3775
        %3886 = vmatpush1.bf16.msra.mxu0 %v3774
        %3887 = vmatprep.subr.bf16.mxu0 %v3771
        %3888 = vmatpush1.bf16.msra.mxu0 %v3770
        %3889 = vmatprep.subr.bf16.mxu0 0
        %3890 = vmatpush2.bf16.msra.mxu0 0
        %3891 = vmatprep.subr.bf16.mxu0 0
        %3892 = vmatpush2.bf16.msra.mxu0 0
        %3893 = vmatprep.subr.bf16.mxu0 0
        %3894 = vmatpush2.bf16.msra.mxu0 0
        %3895 = vmatprep.subr.bf16.mxu0 0
        %3896 = vmatpush2.bf16.msra.mxu0 0
        %3897 = vmatprep.subr.bf16.mxu0 0
        %3898 = vmatpush2.bf16.msra.mxu0 0
        %3899 = vmatprep.subr.bf16.mxu0 0
        %3900 = vmatpush2.bf16.msra.mxu0 0
        %3901 = vmatprep.subr.bf16.mxu0 0
        %3902 = vmatpush2.bf16.msra.mxu0 0
        %3903 = vmatprep.subr.bf16.mxu0 0
        %3904 = vmatpush2.bf16.msra.mxu0 0
        %3905 = vmatprep.mubr.bf16.mxu0 0
        %3906 = vmatmul.mubr.bf16.gmra.mxu0 %v3648
        %v3907 = vpop.f32.mrf.mxu0
        %v3908 = vadd.f32 %v3663, %v3907
        %v3909 = vpop.f32.mrf.mxu0
        %v3910 = vadd.f32 %v3667, %v3909
        %v3911 = vpop.f32.mrf.mxu0
        %v3912 = vpop.f32.mrf.mxu0
        %3913 = vdwg.mxu0
        %v3914 = vmax.f32 %v3867, 0.0
        %v3915 = vmax.f32 %v3869, 0.0
        %v3916 = vmax.f32 %v3908, 0.0
        %v3917 = vmax.f32 %v3910, 0.0
        %s3918 = scalar_lea.vmem %s11, 256
        %v3919 = vld [vmem:[%s3918] sm:$0xf]
        %v3920 = vld [vmem:[%s3918 + $0x4] sm:$0xf]
        %v3921 = vld [vmem:[%s3918 + $0x8] sm:$0xf]
        %v3922 = vld [vmem:[%s3918 + $0xc] sm:$0xf]
        %v3923 = vld [vmem:[%s3918 + $0x10] sm:$0xf]
        %v3924 = vld [vmem:[%s3918 + $0x14] sm:$0xf]
        %v3925 = vld [vmem:[%s3918 + $0x18] sm:$0xf]
        %v3926 = vld [vmem:[%s3918 + $0x1c] sm:$0xf]
        %v3927 = vld [vmem:[%s3918 + $0x20] sm:$0xf]
        %v3928 = vld [vmem:[%s3918 + $0x24] sm:$0xf]
        %v3929 = vld [vmem:[%s3918 + $0x28] sm:$0xf]
        %v3930 = vld [vmem:[%s3918 + $0x2c] sm:$0xf]
        %v3931 = vld [vmem:[%s3918 + $0x30] sm:$0xf]
        %v3932 = vld [vmem:[%s3918 + $0x34] sm:$0xf]
        %v3933 = vld [vmem:[%s3918 + $0x38] sm:$0xf]
        %v3934 = vld [vmem:[%s3918 + $0x3c] sm:$0xf]
        %v3935 = vld [vmem:[%s3918 + $0x40] sm:$0xf]
        %v3936 = vld [vmem:[%s3918 + $0x44] sm:$0xf]
        %v3937 = vld [vmem:[%s3918 + $0x48] sm:$0xf]
        %v3938 = vld [vmem:[%s3918 + $0x4c] sm:$0xf]
        %v3939 = vld [vmem:[%s3918 + $0x50] sm:$0xf]
        %v3940 = vld [vmem:[%s3918 + $0x54] sm:$0xf]
        %v3941 = vld [vmem:[%s3918 + $0x58] sm:$0xf]
        %v3942 = vld [vmem:[%s3918 + $0x5c] sm:$0xf]
        %v3943 = vld [vmem:[%s3918 + $0x60] sm:$0xf]
        %v3944 = vld [vmem:[%s3918 + $0x64] sm:$0xf]
        %v3945 = vld [vmem:[%s3918 + $0x68] sm:$0xf]
        %v3946 = vld [vmem:[%s3918 + $0x6c] sm:$0xf]
        %v3947 = vld [vmem:[%s3918 + $0x70] sm:$0xf]
        %v3948 = vld [vmem:[%s3918 + $0x74] sm:$0xf]
        %v3949 = vld [vmem:[%s3918 + $0x78] sm:$0xf]
        %v3950 = vld [vmem:[%s3918 + $0x7c] sm:$0xf]
        %v3951 = vld [vmem:[%s3918 + $0x80] sm:$0xf]
        %v3952 = vld [vmem:[%s3918 + $0x84] sm:$0xf]
        %v3953 = vld [vmem:[%s3918 + $0x88] sm:$0xf]
        %v3954 = vld [vmem:[%s3918 + $0x8c] sm:$0xf]
        %v3955 = vld [vmem:[%s3918 + $0x90] sm:$0xf]
        %v3956 = vld [vmem:[%s3918 + $0x94] sm:$0xf]
        %v3957 = vld [vmem:[%s3918 + $0x98] sm:$0xf]
        %v3958 = vld [vmem:[%s3918 + $0x9c] sm:$0xf]
        %v3959 = vld [vmem:[%s3918 + $0xa0] sm:$0xf]
        %v3960 = vld [vmem:[%s3918 + $0xa4] sm:$0xf]
        %v3961 = vld [vmem:[%s3918 + $0xa8] sm:$0xf]
        %v3962 = vld [vmem:[%s3918 + $0xac] sm:$0xf]
        %v3963 = vld [vmem:[%s3918 + $0xb0] sm:$0xf]
        %v3964 = vld [vmem:[%s3918 + $0xb4] sm:$0xf]
        %v3965 = vld [vmem:[%s3918 + $0xb8] sm:$0xf]
        %v3966 = vld [vmem:[%s3918 + $0xbc] sm:$0xf]
        %v3967 = vld [vmem:[%s3918 + $0xc0] sm:$0xf]
        %v3968 = vld [vmem:[%s3918 + $0xc4] sm:$0xf]
        %v3969 = vld [vmem:[%s3918 + $0xc8] sm:$0xf]
        %v3970 = vld [vmem:[%s3918 + $0xcc] sm:$0xf]
        %v3971 = vld [vmem:[%s3918 + $0xd0] sm:$0xf]
        %v3972 = vld [vmem:[%s3918 + $0xd4] sm:$0xf]
        %v3973 = vld [vmem:[%s3918 + $0xd8] sm:$0xf]
        %v3974 = vld [vmem:[%s3918 + $0xdc] sm:$0xf]
        %v3975 = vld [vmem:[%s3918 + $0xe0] sm:$0xf]
        %v3976 = vld [vmem:[%s3918 + $0xe4] sm:$0xf]
        %v3977 = vld [vmem:[%s3918 + $0xe8] sm:$0xf]
        %v3978 = vld [vmem:[%s3918 + $0xec] sm:$0xf]
        %v3979 = vld [vmem:[%s3918 + $0xf0] sm:$0xf]
        %v3980 = vld [vmem:[%s3918 + $0xf4] sm:$0xf]
        %v3981 = vld [vmem:[%s3918 + $0xf8] sm:$0xf]
        %v3982 = vld [vmem:[%s3918 + $0xfc] sm:$0xf]
        %v3983 = vpack.c.bf16 %v3914, %v3914
        %v3984 = vpack.c.bf16 %v3915, %v3915
        %v3985 = vpack.c.bf16 %v3916, %v3916
        %v3986 = vpack.c.bf16 %v3917, %v3917
        %s3987 = scalar_lea.vmem %s12, 1
        %v3988 = vld [vmem:[%s3987] sm:$0x1]
        %v3990 = vlaneseq
        %v3991 = vshrl.u32 %v3990, 7
        %v3992 = vsub.s32 0, %v3991
        %v3993 = vrot.slane %v3988, %v3992
        %v4059 = vunpack.c.l.b16 %v3919
        %v4060 = vunpack.c.l.b16 %v3920
        %v4061 = vunpack.c.l.b16 %v3921
        %v4062 = vunpack.c.l.b16 %v3922
        %v4063 = vunpack.c.l.b16 %v3923
        %v4064 = vunpack.c.l.b16 %v3924
        %v4065 = vunpack.c.l.b16 %v3925
        %v4066 = vunpack.c.l.b16 %v3926
        %v4067 = vunpack.c.l.b16 %v3927
        %v4068 = vunpack.c.l.b16 %v3928
        %v4069 = vunpack.c.l.b16 %v3929
        %v4070 = vunpack.c.l.b16 %v3930
        %v4071 = vunpack.c.l.b16 %v3931
        %v4072 = vunpack.c.l.b16 %v3932
        %v4073 = vunpack.c.l.b16 %v3933
        %v4074 = vunpack.c.l.b16 %v3934
        %v4075 = vunpack.c.l.b16 %v3935
        %v4076 = vunpack.c.l.b16 %v3936
        %v4077 = vunpack.c.l.b16 %v3937
        %v4078 = vunpack.c.l.b16 %v3938
        %v4079 = vunpack.c.l.b16 %v3939
        %v4080 = vunpack.c.l.b16 %v3940
        %v4081 = vunpack.c.l.b16 %v3941
        %v4082 = vunpack.c.l.b16 %v3942
        %v4083 = vunpack.c.l.b16 %v3943
        %v4084 = vunpack.c.l.b16 %v3944
        %v4085 = vunpack.c.l.b16 %v3945
        %v4086 = vunpack.c.l.b16 %v3946
        %v4087 = vunpack.c.l.b16 %v3947
        %v4088 = vunpack.c.l.b16 %v3948
        %v4089 = vunpack.c.l.b16 %v3949
        %v4090 = vunpack.c.l.b16 %v3950
        %v4091 = vunpack.c.l.b16 %v3951
        %v4092 = vunpack.c.l.b16 %v3952
        %v4093 = vunpack.c.l.b16 %v3953
        %v4094 = vunpack.c.l.b16 %v3954
        %v4095 = vunpack.c.l.b16 %v3955
        %v4096 = vunpack.c.l.b16 %v3956
        %v4097 = vunpack.c.l.b16 %v3957
        %v4098 = vunpack.c.l.b16 %v3958
        %v4099 = vunpack.c.l.b16 %v3959
        %v4100 = vunpack.c.l.b16 %v3960
        %v4101 = vunpack.c.l.b16 %v3961
        %v4102 = vunpack.c.l.b16 %v3962
        %v4103 = vunpack.c.l.b16 %v3963
        %v4104 = vunpack.c.l.b16 %v3964
        %v4105 = vunpack.c.l.b16 %v3965
        %v4106 = vunpack.c.l.b16 %v3966
        %v4107 = vunpack.c.l.b16 %v3967
        %v4108 = vunpack.c.l.b16 %v3968
        %v4109 = vunpack.c.l.b16 %v3969
        %v4110 = vunpack.c.l.b16 %v3970
        %v4111 = vunpack.c.l.b16 %v3971
        %v4112 = vunpack.c.l.b16 %v3972
        %v4113 = vunpack.c.l.b16 %v3973
        %v4114 = vunpack.c.l.b16 %v3974
        %v4115 = vunpack.c.l.b16 %v3975
        %v4116 = vunpack.c.l.b16 %v3976
        %v4117 = vunpack.c.l.b16 %v3977
        %v4118 = vunpack.c.l.b16 %v3978
        %v4119 = vunpack.c.l.b16 %v3979
        %v4120 = vunpack.c.l.b16 %v3980
        %v4121 = vunpack.c.l.b16 %v3981
        %v4122 = vunpack.c.l.b16 %v3982
        %v4123 = vpack.c.b16 %v4060, %v4059
        %v4124 = vpack.c.b16 %v4062, %v4061
        %v4125 = vpack.c.b16 %v4064, %v4063
        %v4126 = vpack.c.b16 %v4066, %v4065
        %v4127 = vpack.c.b16 %v4068, %v4067
        %v4128 = vpack.c.b16 %v4070, %v4069
        %v4129 = vpack.c.b16 %v4072, %v4071
        %v4130 = vpack.c.b16 %v4074, %v4073
        %v4131 = vpack.c.b16 %v4076, %v4075
        %v4132 = vpack.c.b16 %v4078, %v4077
        %v4133 = vpack.c.b16 %v4080, %v4079
        %v4134 = vpack.c.b16 %v4082, %v4081
        %v4135 = vpack.c.b16 %v4084, %v4083
        %v4136 = vpack.c.b16 %v4086, %v4085
        %v4137 = vpack.c.b16 %v4088, %v4087
        %v4138 = vpack.c.b16 %v4090, %v4089
        %v4139 = vpack.c.b16 %v4092, %v4091
        %v4140 = vpack.c.b16 %v4094, %v4093
        %v4141 = vpack.c.b16 %v4096, %v4095
        %v4142 = vpack.c.b16 %v4098, %v4097
        %v4143 = vpack.c.b16 %v4100, %v4099
        %v4144 = vpack.c.b16 %v4102, %v4101
        %v4145 = vpack.c.b16 %v4104, %v4103
        %v4146 = vpack.c.b16 %v4106, %v4105
        %v4147 = vpack.c.b16 %v4108, %v4107
        %v4148 = vpack.c.b16 %v4110, %v4109
        %v4149 = vpack.c.b16 %v4112, %v4111
        %v4150 = vpack.c.b16 %v4114, %v4113
        %v4151 = vpack.c.b16 %v4116, %v4115
        %v4152 = vpack.c.b16 %v4118, %v4117
        %v4153 = vpack.c.b16 %v4120, %v4119
        %v4154 = vpack.c.b16 %v4122, %v4121
        %4187 = vmatprep.subr.bf16.mxu0 0
        %4188 = vmatpush1.bf16.msra.mxu0 %v4130
        %4189 = vmatprep.subr.bf16.mxu0 0
        %4190 = vmatpush1.bf16.msra.mxu0 %v4129
        %4191 = vmatprep.subr.bf16.mxu0 0
        %4192 = vmatpush1.bf16.msra.mxu0 %v4128
        %4193 = vmatprep.subr.bf16.mxu0 0
        %4194 = vmatpush1.bf16.msra.mxu0 %v4127
        %4195 = vmatprep.subr.bf16.mxu0 0
        %4196 = vmatpush1.bf16.msra.mxu0 %v4126
        %4197 = vmatprep.subr.bf16.mxu0 0
        %4198 = vmatpush1.bf16.msra.mxu0 %v4125
        %4199 = vmatprep.subr.bf16.mxu0 0
        %4200 = vmatpush1.bf16.msra.mxu0 %v4124
        %4201 = vmatprep.subr.bf16.mxu0 0
        %4202 = vmatpush1.bf16.msra.mxu0 %v4123
        %4203 = vmatprep.subr.bf16.mxu0 0
        %4204 = vmatpush2.bf16.msra.mxu0 %v4138
        %4205 = vmatprep.subr.bf16.mxu0 0
        %4206 = vmatpush2.bf16.msra.mxu0 %v4137
        %4207 = vmatprep.subr.bf16.mxu0 0
        %4208 = vmatpush2.bf16.msra.mxu0 %v4136
        %4209 = vmatprep.subr.bf16.mxu0 0
        %4210 = vmatpush2.bf16.msra.mxu0 %v4135
        %4211 = vmatprep.subr.bf16.mxu0 0
        %4212 = vmatpush2.bf16.msra.mxu0 %v4134
        %4213 = vmatprep.subr.bf16.mxu0 0
        %4214 = vmatpush2.bf16.msra.mxu0 %v4133
        %4215 = vmatprep.subr.bf16.mxu0 0
        %4216 = vmatpush2.bf16.msra.mxu0 %v4132
        %4217 = vmatprep.subr.bf16.mxu0 0
        %4218 = vmatpush2.bf16.msra.mxu0 %v4131
        %4219 = vmatprep.mubr.bf16.mxu0 %v3984
        %4220 = vmatmul.mubr.bf16.gmra.mxu0 %v3983
        %v4221 = vpop.f32.mrf.mxu0
        %v4222 = vadd.f32 %v3993, %v4221
        %v4223 = vpop.f32.mrf.mxu0
        %v4224 = vpop.f32.mrf.mxu0
        %v4225 = vpop.f32.mrf.mxu0
        %4226 = vdwg.mxu0
        %4227 = vmatprep.subr.bf16.mxu0 0
        %4228 = vmatpush1.bf16.msra.mxu0 %v4146
        %4229 = vmatprep.subr.bf16.mxu0 0
        %4230 = vmatpush1.bf16.msra.mxu0 %v4145
        %4231 = vmatprep.subr.bf16.mxu0 0
        %4232 = vmatpush1.bf16.msra.mxu0 %v4144
        %4233 = vmatprep.subr.bf16.mxu0 0
        %4234 = vmatpush1.bf16.msra.mxu0 %v4143
        %4235 = vmatprep.subr.bf16.mxu0 0
        %4236 = vmatpush1.bf16.msra.mxu0 %v4142
        %4237 = vmatprep.subr.bf16.mxu0 0
        %4238 = vmatpush1.bf16.msra.mxu0 %v4141
        %4239 = vmatprep.subr.bf16.mxu0 0
        %4240 = vmatpush1.bf16.msra.mxu0 %v4140
        %4241 = vmatprep.subr.bf16.mxu0 0
        %4242 = vmatpush1.bf16.msra.mxu0 %v4139
        %4243 = vmatprep.subr.bf16.mxu0 0
        %4244 = vmatpush2.bf16.msra.mxu0 %v4154
        %4245 = vmatprep.subr.bf16.mxu0 0
        %4246 = vmatpush2.bf16.msra.mxu0 %v4153
        %4247 = vmatprep.subr.bf16.mxu0 0
        %4248 = vmatpush2.bf16.msra.mxu0 %v4152
        %4249 = vmatprep.subr.bf16.mxu0 0
        %4250 = vmatpush2.bf16.msra.mxu0 %v4151
        %4251 = vmatprep.subr.bf16.mxu0 0
        %4252 = vmatpush2.bf16.msra.mxu0 %v4150
        %4253 = vmatprep.subr.bf16.mxu0 0
        %4254 = vmatpush2.bf16.msra.mxu0 %v4149
        %4255 = vmatprep.subr.bf16.mxu0 0
        %4256 = vmatpush2.bf16.msra.mxu0 %v4148
        %4257 = vmatprep.subr.bf16.mxu0 0
        %4258 = vmatpush2.bf16.msra.mxu0 %v4147
        %4259 = vmatprep.mubr.bf16.mxu0 %v3986
        %4260 = vmatmul.mubr.bf16.gmra.mxu0 %v3985
        %v4261 = vpop.f32.mrf.mxu0
        %v4262 = vadd.f32 %v4222, %v4261
        %v4263 = vpop.f32.mrf.mxu0
        %v4264 = vpop.f32.mrf.mxu0
        %v4265 = vpop.f32.mrf.mxu0
        %4266 = vdwg.mxu0
        %v4267 = vadd.f32 %v3614, %v4262
        %s4268 = scalar_lea.vmem %s15, 1
        %v4269 = vld [vmem:[%s4268] sm:$0x1]
        %s4270 = scalar_lea.vmem %s16, 1
        %v4271 = vld [vmem:[%s4270] sm:$0x1]
        %4272 = vadd.xlane.f32.xlu0 %v4267
        %v4273 = vpop.xlane.xlu0 %4272
        %v4274 = vmul.f32 %v4273, %v1945
        %v4275 = vsub.f32 %v4267, %v4274
        %v4276 = vmul.f32 %v4275, %v4275
        %4277 = vadd.xlane.f32.xlu0 %v4276
        %v4278 = vpop.xlane.xlu0 %4277
        %v4279 = vmul.f32 %v4278, %v1945
        %v4280 = vadd.f32 %v4279, 1e-05
        %v4281 = vrsqrt.pop %v4280
        %v4282 = vmul.f32 %v4275, %v4281
        %v4284 = vlaneseq
        %v4285 = vshrl.u32 %v4284, 7
        %v4286 = vsub.s32 0, %v4285
        %v4287 = vrot.slane %v4269, %v4286
        %v4289 = vmul.f32 %v4282, %v4287
        %v4291 = vlaneseq
        %v4292 = vshrl.u32 %v4291, 7
        %v4293 = vsub.s32 0, %v4292
        %v4294 = vrot.slane %v4271, %v4293
        %v4296 = vadd.f32 %v4289, %v4294
        %s4297 = scalar_lea.vmem %s5, 384
        %v4298 = vld [vmem:[%s4297] sm:$0xff]
        %v4299 = vld [vmem:[%s4297 + $0x8] sm:$0xf]
        %v4300 = vld [vmem:[%s4297 + $0xc] sm:$0xff]
        %v4301 = vld [vmem:[%s4297 + $0x14] sm:$0xf]
        %v4302 = vld [vmem:[%s4297 + $0x18] sm:$0xff]
        %v4303 = vld [vmem:[%s4297 + $0x20] sm:$0xf]
        %v4304 = vld [vmem:[%s4297 + $0x24] sm:$0xff]
        %v4305 = vld [vmem:[%s4297 + $0x2c] sm:$0xf]
        %v4306 = vld [vmem:[%s4297 + $0x30] sm:$0xff]
        %v4307 = vld [vmem:[%s4297 + $0x38] sm:$0xf]
        %v4308 = vld [vmem:[%s4297 + $0x3c] sm:$0xff]
        %v4309 = vld [vmem:[%s4297 + $0x44] sm:$0xf]
        %v4310 = vld [vmem:[%s4297 + $0x48] sm:$0xff]
        %v4311 = vld [vmem:[%s4297 + $0x50] sm:$0xf]
        %v4312 = vld [vmem:[%s4297 + $0x54] sm:$0xff]
        %v4313 = vld [vmem:[%s4297 + $0x5c] sm:$0xf]
        %v4314 = vld [vmem:[%s4297 + $0x60] sm:$0xff]
        %v4315 = vld [vmem:[%s4297 + $0x68] sm:$0xf]
        %v4316 = vld [vmem:[%s4297 + $0x6c] sm:$0xff]
        %v4317 = vld [vmem:[%s4297 + $0x74] sm:$0xf]
        %v4318 = vld [vmem:[%s4297 + $0x78] sm:$0xff]
        %v4319 = vld [vmem:[%s4297 + $0x80] sm:$0xf]
        %v4320 = vld [vmem:[%s4297 + $0x84] sm:$0xff]
        %v4321 = vld [vmem:[%s4297 + $0x8c] sm:$0xf]
        %v4322 = vld [vmem:[%s4297 + $0x90] sm:$0xff]
        %v4323 = vld [vmem:[%s4297 + $0x98] sm:$0xf]
        %v4324 = vld [vmem:[%s4297 + $0x9c] sm:$0xff]
        %v4325 = vld [vmem:[%s4297 + $0xa4] sm:$0xf]
        %v4326 = vld [vmem:[%s4297 + $0xa8] sm:$0xff]
        %v4327 = vld [vmem:[%s4297 + $0xb0] sm:$0xf]
        %v4328 = vld [vmem:[%s4297 + $0xb4] sm:$0xff]
        %v4329 = vld [vmem:[%s4297 + $0xbc] sm:$0xf]
        %v4330 = vpack.c.bf16 %v4296, %v4296
        %s4331 = scalar_lea.vmem %s6, 6
        %v4332 = vld [vmem:[%s4331] sm:$0x7]
        %v4334 = vlaneseq
        %v4335 = vshrl.u32 %v4334, 7
        %v4336 = vsub.s32 0, %v4335
        %v4337 = vrot.slane %v4332, %v4336
        %v4338 = vlaneseq
        %v4339 = vshrl.u32 %v4338, 7
        %v4340 = vsub.s32 1, %v4339
        %v4341 = vrot.slane %v4332, %v4340
        %v4342 = vlaneseq
        %v4343 = vshrl.u32 %v4342, 7
        %v4344 = vsub.s32 2, %v4343
        %v4345 = vrot.slane %v4332, %v4344
        %v4381 = vunpack.c.l.b16 %v4298
        %v4382 = vunpack.c.h.b16 %v4298
        %v4383 = vunpack.c.l.b16 %v4299
        %v4384 = vunpack.c.l.b16 %v4300
        %v4385 = vunpack.c.h.b16 %v4300
        %v4386 = vunpack.c.l.b16 %v4301
        %v4387 = vunpack.c.l.b16 %v4302
        %v4388 = vunpack.c.h.b16 %v4302
        %v4389 = vunpack.c.l.b16 %v4303
        %v4390 = vunpack.c.l.b16 %v4304
        %v4391 = vunpack.c.h.b16 %v4304
        %v4392 = vunpack.c.l.b16 %v4305
        %v4393 = vunpack.c.l.b16 %v4306
        %v4394 = vunpack.c.h.b16 %v4306
        %v4395 = vunpack.c.l.b16 %v4307
        %v4396 = vunpack.c.l.b16 %v4308
        %v4397 = vunpack.c.h.b16 %v4308
        %v4398 = vunpack.c.l.b16 %v4309
        %v4399 = vunpack.c.l.b16 %v4310
        %v4400 = vunpack.c.h.b16 %v4310
        %v4401 = vunpack.c.l.b16 %v4311
        %v4402 = vunpack.c.l.b16 %v4312
        %v4403 = vunpack.c.h.b16 %v4312
        %v4404 = vunpack.c.l.b16 %v4313
        %v4405 = vunpack.c.l.b16 %v4314
        %v4406 = vunpack.c.h.b16 %v4314
        %v4407 = vunpack.c.l.b16 %v4315
        %v4408 = vunpack.c.l.b16 %v4316
        %v4409 = vunpack.c.h.b16 %v4316
        %v4410 = vunpack.c.l.b16 %v4317
        %v4411 = vunpack.c.l.b16 %v4318
        %v4412 = vunpack.c.h.b16 %v4318
        %v4413 = vunpack.c.l.b16 %v4319
        %v4414 = vunpack.c.l.b16 %v4320
        %v4415 = vunpack.c.h.b16 %v4320
        %v4416 = vunpack.c.l.b16 %v4321
        %v4417 = vunpack.c.l.b16 %v4322
        %v4418 = vunpack.c.h.b16 %v4322
        %v4419 = vunpack.c.l.b16 %v4323
        %v4420 = vunpack.c.l.b16 %v4324
        %v4421 = vunpack.c.h.b16 %v4324
        %v4422 = vunpack.c.l.b16 %v4325
        %v4423 = vunpack.c.l.b16 %v4326
        %v4424 = vunpack.c.h.b16 %v4326
        %v4425 = vunpack.c.l.b16 %v4327
        %v4426 = vunpack.c.l.b16 %v4328
        %v4427 = vunpack.c.h.b16 %v4328
        %v4428 = vunpack.c.l.b16 %v4329
        %v4429 = vpack.c.b16 %v4384, %v4381
        %v4430 = vpack.c.b16 %v4385, %v4382
        %v4431 = vpack.c.b16 %v4386, %v4383
        %v4432 = vpack.c.b16 %v4390, %v4387
        %v4433 = vpack.c.b16 %v4391, %v4388
        %v4434 = vpack.c.b16 %v4392, %v4389
        %v4435 = vpack.c.b16 %v4396, %v4393
        %v4436 = vpack.c.b16 %v4397, %v4394
        %v4437 = vpack.c.b16 %v4398, %v4395
        %v4438 = vpack.c.b16 %v4402, %v4399
        %v4439 = vpack.c.b16 %v4403, %v4400
        %v4440 = vpack.c.b16 %v4404, %v4401
        %v4441 = vpack.c.b16 %v4408, %v4405
        %v4442 = vpack.c.b16 %v4409, %v4406
        %v4443 = vpack.c.b16 %v4410, %v4407
        %v4444 = vpack.c.b16 %v4414, %v4411
        %v4445 = vpack.c.b16 %v4415, %v4412
        %v4446 = vpack.c.b16 %v4416, %v4413
        %v4447 = vpack.c.b16 %v4420, %v4417
        %v4448 = vpack.c.b16 %v4421, %v4418
        %v4449 = vpack.c.b16 %v4422, %v4419
        %v4450 = vpack.c.b16 %v4426, %v4423
        %v4451 = vpack.c.b16 %v4427, %v4424
        %v4452 = vpack.c.b16 %v4428, %v4425
        %4477 = vmatprep.subr.bf16.mxu0 %v4451
        %4478 = vmatpush1.bf16.msra.mxu0 %v4450
        %4479 = vmatprep.subr.bf16.mxu0 %v4448
        %4480 = vmatpush1.bf16.msra.mxu0 %v4447
        %4481 = vmatprep.subr.bf16.mxu0 %v4445
        %4482 = vmatpush1.bf16.msra.mxu0 %v4444
        %4483 = vmatprep.subr.bf16.mxu0 %v4442
        %4484 = vmatpush1.bf16.msra.mxu0 %v4441
        %4485 = vmatprep.subr.bf16.mxu0 %v4439
        %4486 = vmatpush1.bf16.msra.mxu0 %v4438
        %4487 = vmatprep.subr.bf16.mxu0 %v4436
        %4488 = vmatpush1.bf16.msra.mxu0 %v4435
        %4489 = vmatprep.subr.bf16.mxu0 %v4433
        %4490 = vmatpush1.bf16.msra.mxu0 %v4432
        %4491 = vmatprep.subr.bf16.mxu0 %v4430
        %4492 = vmatpush1.bf16.msra.mxu0 %v4429
        %4493 = vmatprep.subr.bf16.mxu0 0
        %4494 = vmatpush2.bf16.msra.mxu0 0
        %4495 = vmatprep.subr.bf16.mxu0 0
        %4496 = vmatpush2.bf16.msra.mxu0 0
        %4497 = vmatprep.subr.bf16.mxu0 0
        %4498 = vmatpush2.bf16.msra.mxu0 0
        %4499 = vmatprep.subr.bf16.mxu0 0
        %4500 = vmatpush2.bf16.msra.mxu0 0
        %4501 = vmatprep.subr.bf16.mxu0 0
        %4502 = vmatpush2.bf16.msra.mxu0 0
        %4503 = vmatprep.subr.bf16.mxu0 0
        %4504 = vmatpush2.bf16.msra.mxu0 0
        %4505 = vmatprep.subr.bf16.mxu0 0
        %4506 = vmatpush2.bf16.msra.mxu0 0
        %4507 = vmatprep.subr.bf16.mxu0 0
        %4508 = vmatpush2.bf16.msra.mxu0 0
        %4509 = vmatprep.mubr.bf16.mxu0 0
        %4510 = vmatmul.mubr.bf16.gmra.mxu0 %v4330
        %v4511 = vpop.f32.mrf.mxu0
        %v4512 = vadd.f32 %v4337, %v4511
        %v4513 = vpop.f32.mrf.mxu0
        %v4514 = vadd.f32 %v4341, %v4513
        %v4515 = vpop.f32.mrf.mxu0
        %v4516 = vpop.f32.mrf.mxu0
        %4517 = vdwg.mxu0
        %4518 = vmatprep.subr.bf16.mxu0 0
        %4519 = vmatpush1.bf16.msra.mxu0 %v4452
        %4520 = vmatprep.subr.bf16.mxu0 0
        %4521 = vmatpush1.bf16.msra.mxu0 %v4449
        %4522 = vmatprep.subr.bf16.mxu0 0
        %4523 = vmatpush1.bf16.msra.mxu0 %v4446
        %4524 = vmatprep.subr.bf16.mxu0 0
        %4525 = vmatpush1.bf16.msra.mxu0 %v4443
        %4526 = vmatprep.subr.bf16.mxu0 0
        %4527 = vmatpush1.bf16.msra.mxu0 %v4440
        %4528 = vmatprep.subr.bf16.mxu0 0
        %4529 = vmatpush1.bf16.msra.mxu0 %v4437
        %4530 = vmatprep.subr.bf16.mxu0 0
        %4531 = vmatpush1.bf16.msra.mxu0 %v4434
        %4532 = vmatprep.subr.bf16.mxu0 0
        %4533 = vmatpush1.bf16.msra.mxu0 %v4431
        %4534 = vmatprep.subr.bf16.mxu0 0
        %4535 = vmatpush2.bf16.msra.mxu0 0
        %4536 = vmatprep.subr.bf16.mxu0 0
        %4537 = vmatpush2.bf16.msra.mxu0 0
        %4538 = vmatprep.subr.bf16.mxu0 0
        %4539 = vmatpush2.bf16.msra.mxu0 0
        %4540 = vmatprep.subr.bf16.mxu0 0
        %4541 = vmatpush2.bf16.msra.mxu0 0
        %4542 = vmatprep.subr.bf16.mxu0 0
        %4543 = vmatpush2.bf16.msra.mxu0 0
        %4544 = vmatprep.subr.bf16.mxu0 0
        %4545 = vmatpush2.bf16.msra.mxu0 0
        %4546 = vmatprep.subr.bf16.mxu0 0
        %4547 = vmatpush2.bf16.msra.mxu0 0
        %4548 = vmatprep.subr.bf16.mxu0 0
        %4549 = vmatpush2.bf16.msra.mxu0 0
        %4550 = vmatprep.mubr.bf16.mxu0 0
        %4551 = vmatmul.mubr.bf16.gmra.mxu0 %v4330
        %v4552 = vpop.f32.mrf.mxu0
        %v4553 = vadd.f32 %v4345, %v4552
        %v4554 = vpop.f32.mrf.mxu0
        %v4555 = vpop.f32.mrf.mxu0
        %v4556 = vpop.f32.mrf.mxu0
        %4557 = vdwg.mxu0
        %v4558 = vmul.f32 %v4512, %v1134
        %v4559 = vmul.f32 %v4512, %v1138
        %v4560 = vmul.f32 %v4512, %v1142
        %v4561 = vmul.f32 %v4512, %v1146
        %v4562 = vmul.f32 %v4512, %v1150
        %v4563 = vmul.f32 %v4512, %v1154
        %v4564 = vmul.f32 %v4512, %v1158
        %v4565 = vmul.f32 %v4512, %v1162
        %v4566 = vpack.c.bf16 %v4559, %v4558
        %v4567 = vpack.c.bf16 %v4561, %v4560
        %v4568 = vpack.c.bf16 %v4563, %v4562
        %v4569 = vpack.c.bf16 %v4565, %v4564
        %v4570 = vpack.c.bf16 %v4514, %v4514
        %4571 = vmatprep.subr.bf16.mxu0 0
        %4572 = vmatpush1.bf16.xpose.msra.mxu0 0
        %4573 = vmatprep.subr.bf16.mxu0 0
        %4574 = vmatpush1.bf16.xpose.msra.mxu0 0
        %4575 = vmatprep.subr.bf16.mxu0 0
        %4576 = vmatpush1.bf16.xpose.msra.mxu0 0
        %4577 = vmatprep.subr.bf16.mxu0 0
        %4578 = vmatpush1.bf16.xpose.msra.mxu0 0
        %4579 = vmatprep.subr.bf16.mxu0 0
        %4580 = vmatpush1.bf16.xpose.msra.mxu0 0
        %4581 = vmatprep.subr.bf16.mxu0 0
        %4582 = vmatpush1.bf16.xpose.msra.mxu0 0
        %4583 = vmatprep.subr.bf16.mxu0 0
        %4584 = vmatpush1.bf16.xpose.msra.mxu0 0
        %4585 = vmatprep.subr.bf16.mxu0 0
        %4586 = vmatpush1.bf16.xpose.msra.mxu0 %v4570
        %4587 = vmatprep.subr.bf16.mxu0 0
        %4588 = vmatpush2.bf16.xpose.msra.mxu0 0
        %4589 = vmatprep.subr.bf16.mxu0 0
        %4590 = vmatpush2.bf16.xpose.msra.mxu0 0
        %4591 = vmatprep.subr.bf16.mxu0 0
        %4592 = vmatpush2.bf16.xpose.msra.mxu0 0
        %4593 = vmatprep.subr.bf16.mxu0 0
        %4594 = vmatpush2.bf16.xpose.msra.mxu0 0
        %4595 = vmatprep.subr.bf16.mxu0 0
        %4596 = vmatpush2.bf16.xpose.msra.mxu0 0
        %4597 = vmatprep.subr.bf16.mxu0 0
        %4598 = vmatpush2.bf16.xpose.msra.mxu0 0
        %4599 = vmatprep.subr.bf16.mxu0 0
        %4600 = vmatpush2.bf16.xpose.msra.mxu0 0
        %4601 = vmatprep.subr.bf16.mxu0 0
        %4602 = vmatpush2.bf16.xpose.msra.mxu0 0
        %4603 = vmatprep.mubr.bf16.mxu0 0
        %4604 = vmatmul.mubr.bf16.gmra.mxu0 %v4566
        %v4605 = vpop.f32.mrf.mxu0
        %v4606 = vadd.f32 0.0, %v4605
        %v4607 = vpop.f32.mrf.mxu0
        %v4608 = vpop.f32.mrf.mxu0
        %v4609 = vadd.f32 0.0, %v4608
        %v4610 = vpop.f32.mrf.mxu0
        %4611 = vmatprep.mubr.bf16.mxu0 0
        %4612 = vmatmul.mubr.bf16.gmra.mxu0 %v4567
        %v4613 = vpop.f32.mrf.mxu0
        %v4614 = vadd.f32 0.0, %v4613
        %v4615 = vpop.f32.mrf.mxu0
        %v4616 = vpop.f32.mrf.mxu0
        %v4617 = vadd.f32 0.0, %v4616
        %v4618 = vpop.f32.mrf.mxu0
        %4619 = vmatprep.mubr.bf16.mxu0 0
        %4620 = vmatmul.mubr.bf16.gmra.mxu0 %v4568
        %v4621 = vpop.f32.mrf.mxu0
        %v4622 = vadd.f32 0.0, %v4621
        %v4623 = vpop.f32.mrf.mxu0
        %v4624 = vpop.f32.mrf.mxu0
        %v4625 = vadd.f32 0.0, %v4624
        %v4626 = vpop.f32.mrf.mxu0
        %4627 = vmatprep.mubr.bf16.mxu0 0
        %4628 = vmatmul.mubr.bf16.gmra.mxu0 %v4569
        %v4629 = vpop.f32.mrf.mxu0
        %v4630 = vadd.f32 0.0, %v4629
        %v4631 = vpop.f32.mrf.mxu0
        %v4632 = vpop.f32.mrf.mxu0
        %v4633 = vadd.f32 0.0, %v4632
        %v4634 = vpop.f32.mrf.mxu0
        %4635 = vdwg.mxu0
        %v4636 = vsel %vm1249, %v4606, -inf
        %4637 = vmax.xlane.f32.xlu0 %v4636
        %v4638 = vpop.xlane.xlu0 %4637
        %v4639 = vsel %vm1249, %v4609, -inf
        %4640 = vmax.xlane.f32.xlu0 %v4639
        %v4641 = vpop.xlane.xlu0 %4640
        %v4642 = vsel %vm1249, %v4614, -inf
        %4643 = vmax.xlane.f32.xlu0 %v4642
        %v4644 = vpop.xlane.xlu0 %4643
        %v4645 = vsel %vm1249, %v4617, -inf
        %4646 = vmax.xlane.f32.xlu0 %v4645
        %v4647 = vpop.xlane.xlu0 %4646
        %v4648 = vsel %vm1249, %v4622, -inf
        %4649 = vmax.xlane.f32.xlu0 %v4648
        %v4650 = vpop.xlane.xlu0 %4649
        %v4651 = vsel %vm1249, %v4625, -inf
        %4652 = vmax.xlane.f32.xlu0 %v4651
        %v4653 = vpop.xlane.xlu0 %4652
        %v4654 = vsel %vm1249, %v4630, -inf
        %4655 = vmax.xlane.f32.xlu0 %v4654
        %v4656 = vpop.xlane.xlu0 %4655
        %v4657 = vsel %vm1249, %v4633, -inf
        %4658 = vmax.xlane.f32.xlu0 %v4657
        %v4659 = vpop.xlane.xlu0 %4658
        %v4660 = vsub.f32 %v4606, %v4638
        %v4661 = vsub.f32 %v4609, %v4641
        %v4662 = vsub.f32 %v4614, %v4644
        %v4663 = vsub.f32 %v4617, %v4647
        %v4664 = vsub.f32 %v4622, %v4650
        %v4665 = vsub.f32 %v4625, %v4653
        %v4666 = vsub.f32 %v4630, %v4656
        %v4667 = vsub.f32 %v4633, %v4659
        %v4668 = vmul.f32 %v4660, 1.442695
        %v4669 = vpow.pop %v4668
        %v4670 = vmul.f32 %v4661, 1.442695
        %v4671 = vpow.pop %v4670
        %v4672 = vmul.f32 %v4662, 1.442695
        %v4673 = vpow.pop %v4672
        %v4674 = vmul.f32 %v4663, 1.442695
        %v4675 = vpow.pop %v4674
        %v4676 = vmul.f32 %v4664, 1.442695
        %v4677 = vpow.pop %v4676
        %v4678 = vmul.f32 %v4665, 1.442695
        %v4679 = vpow.pop %v4678
        %v4680 = vmul.f32 %v4666, 1.442695
        %v4681 = vpow.pop %v4680
        %v4682 = vmul.f32 %v4667, 1.442695
        %v4683 = vpow.pop %v4682
        %v4684 = vsel %vm1249, %v4669, 0.0
        %4685 = vadd.xlane.f32.xlu0 %v4684
        %v4686 = vpop.xlane.xlu0 %4685
        %v4687 = vsel %vm1249, %v4671, 0.0
        %4688 = vadd.xlane.f32.xlu0 %v4687
        %v4689 = vpop.xlane.xlu0 %4688
        %v4690 = vsel %vm1249, %v4673, 0.0
        %4691 = vadd.xlane.f32.xlu0 %v4690
        %v4692 = vpop.xlane.xlu0 %4691
        %v4693 = vsel %vm1249, %v4675, 0.0
        %4694 = vadd.xlane.f32.xlu0 %v4693
        %v4695 = vpop.xlane.xlu0 %4694
        %v4696 = vsel %vm1249, %v4677, 0.0
        %4697 = vadd.xlane.f32.xlu0 %v4696
        %v4698 = vpop.xlane.xlu0 %4697
        %v4699 = vsel %vm1249, %v4679, 0.0
        %4700 = vadd.xlane.f32.xlu0 %v4699
        %v4701 = vpop.xlane.xlu0 %4700
        %v4702 = vsel %vm1249, %v4681, 0.0
        %4703 = vadd.xlane.f32.xlu0 %v4702
        %v4704 = vpop.xlane.xlu0 %4703
        %v4705 = vsel %vm1249, %v4683, 0.0
        %4706 = vadd.xlane.f32.xlu0 %v4705
        %v4707 = vpop.xlane.xlu0 %4706
        %v4708 = vrcp.pop %v4686
        %v4709 = vrcp.pop %v4689
        %v4710 = vrcp.pop %v4692
        %v4711 = vrcp.pop %v4695
        %v4712 = vrcp.pop %v4698
        %v4713 = vrcp.pop %v4701
        %v4714 = vrcp.pop %v4704
        %v4715 = vrcp.pop %v4707
        %v4716 = vmul.f32 %v4669, %v4708
        %v4717 = vmul.f32 %v4671, %v4709
        %v4718 = vmul.f32 %v4673, %v4710
        %v4719 = vmul.f32 %v4675, %v4711
        %v4720 = vmul.f32 %v4677, %v4712
        %v4721 = vmul.f32 %v4679, %v4713
        %v4722 = vmul.f32 %v4681, %v4714
        %v4723 = vmul.f32 %v4683, %v4715
        %v4724 = vmul.f32 %v4553, %v1391
        %v4725 = vmul.f32 %v4553, %v1395
        %v4726 = vmul.f32 %v4553, %v1399
        %v4727 = vmul.f32 %v4553, %v1403
        %v4728 = vmul.f32 %v4553, %v1407
        %v4729 = vmul.f32 %v4553, %v1411
        %v4730 = vmul.f32 %v4553, %v1415
        %v4731 = vmul.f32 %v4553, %v1419
        %v4732 = vpack.c.bf16 %v4716, %v4716
        %v4733 = vpack.c.bf16 %v4717, %v4717
        %v4734 = vpack.c.bf16 %v4718, %v4718
        %v4735 = vpack.c.bf16 %v4719, %v4719
        %v4736 = vpack.c.bf16 %v4720, %v4720
        %v4737 = vpack.c.bf16 %v4721, %v4721
        %v4738 = vpack.c.bf16 %v4722, %v4722
        %v4739 = vpack.c.bf16 %v4723, %v4723
        %v4740 = vpack.c.bf16 %v4724, %v4724
        %v4741 = vpack.c.bf16 %v4725, %v4725
        %v4742 = vpack.c.bf16 %v4726, %v4726
        %v4743 = vpack.c.bf16 %v4727, %v4727
        %v4744 = vpack.c.bf16 %v4728, %v4728
        %v4745 = vpack.c.bf16 %v4729, %v4729
        %v4746 = vpack.c.bf16 %v4730, %v4730
        %v4747 = vpack.c.bf16 %v4731, %v4731
        %v4749 = vsel %vm1249, %v4732, 0
        %v4752 = vsel %vm1455, %v4740, 0
        %4754 = vmatprep.subr.bf16.mxu0 0
        %4755 = vmatpush1.bf16.msra.mxu0 0
        %4756 = vmatprep.subr.bf16.mxu0 0
        %4757 = vmatpush1.bf16.msra.mxu0 0
        %4758 = vmatprep.subr.bf16.mxu0 0
        %4759 = vmatpush1.bf16.msra.mxu0 0
        %4760 = vmatprep.subr.bf16.mxu0 0
        %4761 = vmatpush1.bf16.msra.mxu0 0
        %4762 = vmatprep.subr.bf16.mxu0 0
        %4763 = vmatpush1.bf16.msra.mxu0 0
        %4764 = vmatprep.subr.bf16.mxu0 0
        %4765 = vmatpush1.bf16.msra.mxu0 0
        %4766 = vmatprep.subr.bf16.mxu0 0
        %4767 = vmatpush1.bf16.msra.mxu0 0
        %4768 = vmatprep.subr.bf16.mxu0 0
        %4769 = vmatpush1.bf16.msra.mxu0 %v4752
        %4770 = vmatprep.subr.bf16.mxu0 0
        %4771 = vmatpush2.bf16.msra.mxu0 0
        %4772 = vmatprep.subr.bf16.mxu0 0
        %4773 = vmatpush2.bf16.msra.mxu0 0
        %4774 = vmatprep.subr.bf16.mxu0 0
        %4775 = vmatpush2.bf16.msra.mxu0 0
        %4776 = vmatprep.subr.bf16.mxu0 0
        %4777 = vmatpush2.bf16.msra.mxu0 0
        %4778 = vmatprep.subr.bf16.mxu0 0
        %4779 = vmatpush2.bf16.msra.mxu0 0
        %4780 = vmatprep.subr.bf16.mxu0 0
        %4781 = vmatpush2.bf16.msra.mxu0 0
        %4782 = vmatprep.subr.bf16.mxu0 0
        %4783 = vmatpush2.bf16.msra.mxu0 0
        %4784 = vmatprep.subr.bf16.mxu0 0
        %4785 = vmatpush2.bf16.msra.mxu0 0
        %4786 = vmatprep.mubr.bf16.mxu0 0
        %4787 = vmatmul.mubr.bf16.gmra.mxu0 %v4749
        %v4788 = vpop.f32.mrf.mxu0
        %v4789 = vadd.f32 0.0, %v4788
        %v4790 = vpop.f32.mrf.mxu0
        %v4791 = vpop.f32.mrf.mxu0
        %v4792 = vpop.f32.mrf.mxu0
        %4793 = vdwg.mxu0
        %v4795 = vsel %vm1249, %v4733, 0
        %v4798 = vsel %vm1455, %v4741, 0
        %4800 = vmatprep.subr.bf16.mxu0 0
        %4801 = vmatpush1.bf16.msra.mxu0 0
        %4802 = vmatprep.subr.bf16.mxu0 0
        %4803 = vmatpush1.bf16.msra.mxu0 0
        %4804 = vmatprep.subr.bf16.mxu0 0
        %4805 = vmatpush1.bf16.msra.mxu0 0
        %4806 = vmatprep.subr.bf16.mxu0 0
        %4807 = vmatpush1.bf16.msra.mxu0 0
        %4808 = vmatprep.subr.bf16.mxu0 0
        %4809 = vmatpush1.bf16.msra.mxu0 0
        %4810 = vmatprep.subr.bf16.mxu0 0
        %4811 = vmatpush1.bf16.msra.mxu0 0
        %4812 = vmatprep.subr.bf16.mxu0 0
        %4813 = vmatpush1.bf16.msra.mxu0 0
        %4814 = vmatprep.subr.bf16.mxu0 0
        %4815 = vmatpush1.bf16.msra.mxu0 %v4798
        %4816 = vmatprep.subr.bf16.mxu0 0
        %4817 = vmatpush2.bf16.msra.mxu0 0
        %4818 = vmatprep.subr.bf16.mxu0 0
        %4819 = vmatpush2.bf16.msra.mxu0 0
        %4820 = vmatprep.subr.bf16.mxu0 0
        %4821 = vmatpush2.bf16.msra.mxu0 0
        %4822 = vmatprep.subr.bf16.mxu0 0
        %4823 = vmatpush2.bf16.msra.mxu0 0
        %4824 = vmatprep.subr.bf16.mxu0 0
        %4825 = vmatpush2.bf16.msra.mxu0 0
        %4826 = vmatprep.subr.bf16.mxu0 0
        %4827 = vmatpush2.bf16.msra.mxu0 0
        %4828 = vmatprep.subr.bf16.mxu0 0
        %4829 = vmatpush2.bf16.msra.mxu0 0
        %4830 = vmatprep.subr.bf16.mxu0 0
        %4831 = vmatpush2.bf16.msra.mxu0 0
        %4832 = vmatprep.mubr.bf16.mxu0 0
        %4833 = vmatmul.mubr.bf16.gmra.mxu0 %v4795
        %v4834 = vpop.f32.mrf.mxu0
        %v4835 = vadd.f32 0.0, %v4834
        %v4836 = vpop.f32.mrf.mxu0
        %v4837 = vpop.f32.mrf.mxu0
        %v4838 = vpop.f32.mrf.mxu0
        %4839 = vdwg.mxu0
        %v4841 = vsel %vm1249, %v4734, 0
        %v4844 = vsel %vm1455, %v4742, 0
        %4846 = vmatprep.subr.bf16.mxu0 0
        %4847 = vmatpush1.bf16.msra.mxu0 0
        %4848 = vmatprep.subr.bf16.mxu0 0
        %4849 = vmatpush1.bf16.msra.mxu0 0
        %4850 = vmatprep.subr.bf16.mxu0 0
        %4851 = vmatpush1.bf16.msra.mxu0 0
        %4852 = vmatprep.subr.bf16.mxu0 0
        %4853 = vmatpush1.bf16.msra.mxu0 0
        %4854 = vmatprep.subr.bf16.mxu0 0
        %4855 = vmatpush1.bf16.msra.mxu0 0
        %4856 = vmatprep.subr.bf16.mxu0 0
        %4857 = vmatpush1.bf16.msra.mxu0 0
        %4858 = vmatprep.subr.bf16.mxu0 0
        %4859 = vmatpush1.bf16.msra.mxu0 0
        %4860 = vmatprep.subr.bf16.mxu0 0
        %4861 = vmatpush1.bf16.msra.mxu0 %v4844
        %4862 = vmatprep.subr.bf16.mxu0 0
        %4863 = vmatpush2.bf16.msra.mxu0 0
        %4864 = vmatprep.subr.bf16.mxu0 0
        %4865 = vmatpush2.bf16.msra.mxu0 0
        %4866 = vmatprep.subr.bf16.mxu0 0
        %4867 = vmatpush2.bf16.msra.mxu0 0
        %4868 = vmatprep.subr.bf16.mxu0 0
        %4869 = vmatpush2.bf16.msra.mxu0 0
        %4870 = vmatprep.subr.bf16.mxu0 0
        %4871 = vmatpush2.bf16.msra.mxu0 0
        %4872 = vmatprep.subr.bf16.mxu0 0
        %4873 = vmatpush2.bf16.msra.mxu0 0
        %4874 = vmatprep.subr.bf16.mxu0 0
        %4875 = vmatpush2.bf16.msra.mxu0 0
        %4876 = vmatprep.subr.bf16.mxu0 0
        %4877 = vmatpush2.bf16.msra.mxu0 0
        %4878 = vmatprep.mubr.bf16.mxu0 0
        %4879 = vmatmul.mubr.bf16.gmra.mxu0 %v4841
        %v4880 = vpop.f32.mrf.mxu0
        %v4881 = vadd.f32 0.0, %v4880
        %v4882 = vpop.f32.mrf.mxu0
        %v4883 = vpop.f32.mrf.mxu0
        %v4884 = vpop.f32.mrf.mxu0
        %4885 = vdwg.mxu0
        %v4887 = vsel %vm1249, %v4735, 0
        %v4890 = vsel %vm1455, %v4743, 0
        %4892 = vmatprep.subr.bf16.mxu0 0
        %4893 = vmatpush1.bf16.msra.mxu0 0
        %4894 = vmatprep.subr.bf16.mxu0 0
        %4895 = vmatpush1.bf16.msra.mxu0 0
        %4896 = vmatprep.subr.bf16.mxu0 0
        %4897 = vmatpush1.bf16.msra.mxu0 0
        %4898 = vmatprep.subr.bf16.mxu0 0
        %4899 = vmatpush1.bf16.msra.mxu0 0
        %4900 = vmatprep.subr.bf16.mxu0 0
        %4901 = vmatpush1.bf16.msra.mxu0 0
        %4902 = vmatprep.subr.bf16.mxu0 0
        %4903 = vmatpush1.bf16.msra.mxu0 0
        %4904 = vmatprep.subr.bf16.mxu0 0
        %4905 = vmatpush1.bf16.msra.mxu0 0
        %4906 = vmatprep.subr.bf16.mxu0 0
        %4907 = vmatpush1.bf16.msra.mxu0 %v4890
        %4908 = vmatprep.subr.bf16.mxu0 0
        %4909 = vmatpush2.bf16.msra.mxu0 0
        %4910 = vmatprep.subr.bf16.mxu0 0
        %4911 = vmatpush2.bf16.msra.mxu0 0
        %4912 = vmatprep.subr.bf16.mxu0 0
        %4913 = vmatpush2.bf16.msra.mxu0 0
        %4914 = vmatprep.subr.bf16.mxu0 0
        %4915 = vmatpush2.bf16.msra.mxu0 0
        %4916 = vmatprep.subr.bf16.mxu0 0
        %4917 = vmatpush2.bf16.msra.mxu0 0
        %4918 = vmatprep.subr.bf16.mxu0 0
        %4919 = vmatpush2.bf16.msra.mxu0 0
        %4920 = vmatprep.subr.bf16.mxu0 0
        %4921 = vmatpush2.bf16.msra.mxu0 0
        %4922 = vmatprep.subr.bf16.mxu0 0
        %4923 = vmatpush2.bf16.msra.mxu0 0
        %4924 = vmatprep.mubr.bf16.mxu0 0
        %4925 = vmatmul.mubr.bf16.gmra.mxu0 %v4887
        %v4926 = vpop.f32.mrf.mxu0
        %v4927 = vadd.f32 0.0, %v4926
        %v4928 = vpop.f32.mrf.mxu0
        %v4929 = vpop.f32.mrf.mxu0
        %v4930 = vpop.f32.mrf.mxu0
        %4931 = vdwg.mxu0
        %v4933 = vsel %vm1249, %v4736, 0
        %v4936 = vsel %vm1455, %v4744, 0
        %4938 = vmatprep.subr.bf16.mxu0 0
        %4939 = vmatpush1.bf16.msra.mxu0 0
        %4940 = vmatprep.subr.bf16.mxu0 0
        %4941 = vmatpush1.bf16.msra.mxu0 0
        %4942 = vmatprep.subr.bf16.mxu0 0
        %4943 = vmatpush1.bf16.msra.mxu0 0
        %4944 = vmatprep.subr.bf16.mxu0 0
        %4945 = vmatpush1.bf16.msra.mxu0 0
        %4946 = vmatprep.subr.bf16.mxu0 0
        %4947 = vmatpush1.bf16.msra.mxu0 0
        %4948 = vmatprep.subr.bf16.mxu0 0
        %4949 = vmatpush1.bf16.msra.mxu0 0
        %4950 = vmatprep.subr.bf16.mxu0 0
        %4951 = vmatpush1.bf16.msra.mxu0 0
        %4952 = vmatprep.subr.bf16.mxu0 0
        %4953 = vmatpush1.bf16.msra.mxu0 %v4936
        %4954 = vmatprep.subr.bf16.mxu0 0
        %4955 = vmatpush2.bf16.msra.mxu0 0
        %4956 = vmatprep.subr.bf16.mxu0 0
        %4957 = vmatpush2.bf16.msra.mxu0 0
        %4958 = vmatprep.subr.bf16.mxu0 0
        %4959 = vmatpush2.bf16.msra.mxu0 0
        %4960 = vmatprep.subr.bf16.mxu0 0
        %4961 = vmatpush2.bf16.msra.mxu0 0
        %4962 = vmatprep.subr.bf16.mxu0 0
        %4963 = vmatpush2.bf16.msra.mxu0 0
        %4964 = vmatprep.subr.bf16.mxu0 0
        %4965 = vmatpush2.bf16.msra.mxu0 0
        %4966 = vmatprep.subr.bf16.mxu0 0
        %4967 = vmatpush2.bf16.msra.mxu0 0
        %4968 = vmatprep.subr.bf16.mxu0 0
        %4969 = vmatpush2.bf16.msra.mxu0 0
        %4970 = vmatprep.mubr.bf16.mxu0 0
        %4971 = vmatmul.mubr.bf16.gmra.mxu0 %v4933
        %v4972 = vpop.f32.mrf.mxu0
        %v4973 = vadd.f32 0.0, %v4972
        %v4974 = vpop.f32.mrf.mxu0
        %v4975 = vpop.f32.mrf.mxu0
        %v4976 = vpop.f32.mrf.mxu0
        %4977 = vdwg.mxu0
        %v4979 = vsel %vm1249, %v4737, 0
        %v4982 = vsel %vm1455, %v4745, 0
        %4984 = vmatprep.subr.bf16.mxu0 0
        %4985 = vmatpush1.bf16.msra.mxu0 0
        %4986 = vmatprep.subr.bf16.mxu0 0
        %4987 = vmatpush1.bf16.msra.mxu0 0
        %4988 = vmatprep.subr.bf16.mxu0 0
        %4989 = vmatpush1.bf16.msra.mxu0 0
        %4990 = vmatprep.subr.bf16.mxu0 0
        %4991 = vmatpush1.bf16.msra.mxu0 0
        %4992 = vmatprep.subr.bf16.mxu0 0
        %4993 = vmatpush1.bf16.msra.mxu0 0
        %4994 = vmatprep.subr.bf16.mxu0 0
        %4995 = vmatpush1.bf16.msra.mxu0 0
        %4996 = vmatprep.subr.bf16.mxu0 0
        %4997 = vmatpush1.bf16.msra.mxu0 0
        %4998 = vmatprep.subr.bf16.mxu0 0
        %4999 = vmatpush1.bf16.msra.mxu0 %v4982
        %5000 = vmatprep.subr.bf16.mxu0 0
        %5001 = vmatpush2.bf16.msra.mxu0 0
        %5002 = vmatprep.subr.bf16.mxu0 0
        %5003 = vmatpush2.bf16.msra.mxu0 0
        %5004 = vmatprep.subr.bf16.mxu0 0
        %5005 = vmatpush2.bf16.msra.mxu0 0
        %5006 = vmatprep.subr.bf16.mxu0 0
        %5007 = vmatpush2.bf16.msra.mxu0 0
        %5008 = vmatprep.subr.bf16.mxu0 0
        %5009 = vmatpush2.bf16.msra.mxu0 0
        %5010 = vmatprep.subr.bf16.mxu0 0
        %5011 = vmatpush2.bf16.msra.mxu0 0
        %5012 = vmatprep.subr.bf16.mxu0 0
        %5013 = vmatpush2.bf16.msra.mxu0 0
        %5014 = vmatprep.subr.bf16.mxu0 0
        %5015 = vmatpush2.bf16.msra.mxu0 0
        %5016 = vmatprep.mubr.bf16.mxu0 0
        %5017 = vmatmul.mubr.bf16.gmra.mxu0 %v4979
        %v5018 = vpop.f32.mrf.mxu0
        %v5019 = vadd.f32 0.0, %v5018
        %v5020 = vpop.f32.mrf.mxu0
        %v5021 = vpop.f32.mrf.mxu0
        %v5022 = vpop.f32.mrf.mxu0
        %5023 = vdwg.mxu0
        %v5025 = vsel %vm1249, %v4738, 0
        %v5028 = vsel %vm1455, %v4746, 0
        %5030 = vmatprep.subr.bf16.mxu0 0
        %5031 = vmatpush1.bf16.msra.mxu0 0
        %5032 = vmatprep.subr.bf16.mxu0 0
        %5033 = vmatpush1.bf16.msra.mxu0 0
        %5034 = vmatprep.subr.bf16.mxu0 0
        %5035 = vmatpush1.bf16.msra.mxu0 0
        %5036 = vmatprep.subr.bf16.mxu0 0
        %5037 = vmatpush1.bf16.msra.mxu0 0
        %5038 = vmatprep.subr.bf16.mxu0 0
        %5039 = vmatpush1.bf16.msra.mxu0 0
        %5040 = vmatprep.subr.bf16.mxu0 0
        %5041 = vmatpush1.bf16.msra.mxu0 0
        %5042 = vmatprep.subr.bf16.mxu0 0
        %5043 = vmatpush1.bf16.msra.mxu0 0
        %5044 = vmatprep.subr.bf16.mxu0 0
        %5045 = vmatpush1.bf16.msra.mxu0 %v5028
        %5046 = vmatprep.subr.bf16.mxu0 0
        %5047 = vmatpush2.bf16.msra.mxu0 0
        %5048 = vmatprep.subr.bf16.mxu0 0
        %5049 = vmatpush2.bf16.msra.mxu0 0
        %5050 = vmatprep.subr.bf16.mxu0 0
        %5051 = vmatpush2.bf16.msra.mxu0 0
        %5052 = vmatprep.subr.bf16.mxu0 0
        %5053 = vmatpush2.bf16.msra.mxu0 0
        %5054 = vmatprep.subr.bf16.mxu0 0
        %5055 = vmatpush2.bf16.msra.mxu0 0
        %5056 = vmatprep.subr.bf16.mxu0 0
        %5057 = vmatpush2.bf16.msra.mxu0 0
        %5058 = vmatprep.subr.bf16.mxu0 0
        %5059 = vmatpush2.bf16.msra.mxu0 0
        %5060 = vmatprep.subr.bf16.mxu0 0
        %5061 = vmatpush2.bf16.msra.mxu0 0
        %5062 = vmatprep.mubr.bf16.mxu0 0
        %5063 = vmatmul.mubr.bf16.gmra.mxu0 %v5025
        %v5064 = vpop.f32.mrf.mxu0
        %v5065 = vadd.f32 0.0, %v5064
        %v5066 = vpop.f32.mrf.mxu0
        %v5067 = vpop.f32.mrf.mxu0
        %v5068 = vpop.f32.mrf.mxu0
        %5069 = vdwg.mxu0
        %v5071 = vsel %vm1249, %v4739, 0
        %v5074 = vsel %vm1455, %v4747, 0
        %5076 = vmatprep.subr.bf16.mxu0 0
        %5077 = vmatpush1.bf16.msra.mxu0 0
        %5078 = vmatprep.subr.bf16.mxu0 0
        %5079 = vmatpush1.bf16.msra.mxu0 0
        %5080 = vmatprep.subr.bf16.mxu0 0
        %5081 = vmatpush1.bf16.msra.mxu0 0
        %5082 = vmatprep.subr.bf16.mxu0 0
        %5083 = vmatpush1.bf16.msra.mxu0 0
        %5084 = vmatprep.subr.bf16.mxu0 0
        %5085 = vmatpush1.bf16.msra.mxu0 0
        %5086 = vmatprep.subr.bf16.mxu0 0
        %5087 = vmatpush1.bf16.msra.mxu0 0
        %5088 = vmatprep.subr.bf16.mxu0 0
        %5089 = vmatpush1.bf16.msra.mxu0 0
        %5090 = vmatprep.subr.bf16.mxu0 0
        %5091 = vmatpush1.bf16.msra.mxu0 %v5074
        %5092 = vmatprep.subr.bf16.mxu0 0
        %5093 = vmatpush2.bf16.msra.mxu0 0
        %5094 = vmatprep.subr.bf16.mxu0 0
        %5095 = vmatpush2.bf16.msra.mxu0 0
        %5096 = vmatprep.subr.bf16.mxu0 0
        %5097 = vmatpush2.bf16.msra.mxu0 0
        %5098 = vmatprep.subr.bf16.mxu0 0
        %5099 = vmatpush2.bf16.msra.mxu0 0
        %5100 = vmatprep.subr.bf16.mxu0 0
        %5101 = vmatpush2.bf16.msra.mxu0 0
        %5102 = vmatprep.subr.bf16.mxu0 0
        %5103 = vmatpush2.bf16.msra.mxu0 0
        %5104 = vmatprep.subr.bf16.mxu0 0
        %5105 = vmatpush2.bf16.msra.mxu0 0
        %5106 = vmatprep.subr.bf16.mxu0 0
        %5107 = vmatpush2.bf16.msra.mxu0 0
        %5108 = vmatprep.mubr.bf16.mxu0 0
        %5109 = vmatmul.mubr.bf16.gmra.mxu0 %v5071
        %v5110 = vpop.f32.mrf.mxu0
        %v5111 = vadd.f32 0.0, %v5110
        %v5112 = vpop.f32.mrf.mxu0
        %v5113 = vpop.f32.mrf.mxu0
        %v5114 = vpop.f32.mrf.mxu0
        %5115 = vdwg.mxu0
        %v5116 = vadd.f32 %v4789, %v4835
        %v5117 = vadd.f32 %v5116, %v4881
        %v5118 = vadd.f32 %v5117, %v4927
        %v5119 = vadd.f32 %v5118, %v4973
        %v5120 = vadd.f32 %v5119, %v5019
        %v5121 = vadd.f32 %v5120, %v5065
        %v5122 = vadd.f32 %v5121, %v5111
        %s5123 = scalar_lea.vmem %s7, 128
        %v5124 = vld [vmem:[%s5123] sm:$0xf]
        %v5125 = vld [vmem:[%s5123 + $0x4] sm:$0xf]
        %v5126 = vld [vmem:[%s5123 + $0x8] sm:$0xf]
        %v5127 = vld [vmem:[%s5123 + $0xc] sm:$0xf]
        %v5128 = vld [vmem:[%s5123 + $0x10] sm:$0xf]
        %v5129 = vld [vmem:[%s5123 + $0x14] sm:$0xf]
        %v5130 = vld [vmem:[%s5123 + $0x18] sm:$0xf]
        %v5131 = vld [vmem:[%s5123 + $0x1c] sm:$0xf]
        %v5132 = vld [vmem:[%s5123 + $0x20] sm:$0xf]
        %v5133 = vld [vmem:[%s5123 + $0x24] sm:$0xf]
        %v5134 = vld [vmem:[%s5123 + $0x28] sm:$0xf]
        %v5135 = vld [vmem:[%s5123 + $0x2c] sm:$0xf]
        %v5136 = vld [vmem:[%s5123 + $0x30] sm:$0xf]
        %v5137 = vld [vmem:[%s5123 + $0x34] sm:$0xf]
        %v5138 = vld [vmem:[%s5123 + $0x38] sm:$0xf]
        %v5139 = vld [vmem:[%s5123 + $0x3c] sm:$0xf]
        %v5140 = vpack.c.bf16 %v5122, %v5122
        %s5141 = scalar_lea.vmem %s8, 2
        %v5142 = vld [vmem:[%s5141] sm:$0x1]
        %v5144 = vlaneseq
        %v5145 = vshrl.u32 %v5144, 7
        %v5146 = vsub.s32 0, %v5145
        %v5147 = vrot.slane %v5142, %v5146
        %v5165 = vunpack.c.l.b16 %v5124
        %v5166 = vunpack.c.l.b16 %v5125
        %v5167 = vunpack.c.l.b16 %v5126
        %v5168 = vunpack.c.l.b16 %v5127
        %v5169 = vunpack.c.l.b16 %v5128
        %v5170 = vunpack.c.l.b16 %v5129
        %v5171 = vunpack.c.l.b16 %v5130
        %v5172 = vunpack.c.l.b16 %v5131
        %v5173 = vunpack.c.l.b16 %v5132
        %v5174 = vunpack.c.l.b16 %v5133
        %v5175 = vunpack.c.l.b16 %v5134
        %v5176 = vunpack.c.l.b16 %v5135
        %v5177 = vunpack.c.l.b16 %v5136
        %v5178 = vunpack.c.l.b16 %v5137
        %v5179 = vunpack.c.l.b16 %v5138
        %v5180 = vunpack.c.l.b16 %v5139
        %v5181 = vpack.c.b16 %v5166, %v5165
        %v5182 = vpack.c.b16 %v5168, %v5167
        %v5183 = vpack.c.b16 %v5170, %v5169
        %v5184 = vpack.c.b16 %v5172, %v5171
        %v5185 = vpack.c.b16 %v5174, %v5173
        %v5186 = vpack.c.b16 %v5176, %v5175
        %v5187 = vpack.c.b16 %v5178, %v5177
        %v5188 = vpack.c.b16 %v5180, %v5179
        %5197 = vmatprep.subr.bf16.mxu0 0
        %5198 = vmatpush1.bf16.msra.mxu0 %v5188
        %5199 = vmatprep.subr.bf16.mxu0 0
        %5200 = vmatpush1.bf16.msra.mxu0 %v5187
        %5201 = vmatprep.subr.bf16.mxu0 0
        %5202 = vmatpush1.bf16.msra.mxu0 %v5186
        %5203 = vmatprep.subr.bf16.mxu0 0
        %5204 = vmatpush1.bf16.msra.mxu0 %v5185
        %5205 = vmatprep.subr.bf16.mxu0 0
        %5206 = vmatpush1.bf16.msra.mxu0 %v5184
        %5207 = vmatprep.subr.bf16.mxu0 0
        %5208 = vmatpush1.bf16.msra.mxu0 %v5183
        %5209 = vmatprep.subr.bf16.mxu0 0
        %5210 = vmatpush1.bf16.msra.mxu0 %v5182
        %5211 = vmatprep.subr.bf16.mxu0 0
        %5212 = vmatpush1.bf16.msra.mxu0 %v5181
        %5213 = vmatprep.subr.bf16.mxu0 0
        %5214 = vmatpush2.bf16.msra.mxu0 0
        %5215 = vmatprep.subr.bf16.mxu0 0
        %5216 = vmatpush2.bf16.msra.mxu0 0
        %5217 = vmatprep.subr.bf16.mxu0 0
        %5218 = vmatpush2.bf16.msra.mxu0 0
        %5219 = vmatprep.subr.bf16.mxu0 0
        %5220 = vmatpush2.bf16.msra.mxu0 0
        %5221 = vmatprep.subr.bf16.mxu0 0
        %5222 = vmatpush2.bf16.msra.mxu0 0
        %5223 = vmatprep.subr.bf16.mxu0 0
        %5224 = vmatpush2.bf16.msra.mxu0 0
        %5225 = vmatprep.subr.bf16.mxu0 0
        %5226 = vmatpush2.bf16.msra.mxu0 0
        %5227 = vmatprep.subr.bf16.mxu0 0
        %5228 = vmatpush2.bf16.msra.mxu0 0
        %5229 = vmatprep.mubr.bf16.mxu0 0
        %5230 = vmatmul.mubr.bf16.gmra.mxu0 %v5140
        %v5231 = vpop.f32.mrf.mxu0
        %v5232 = vadd.f32 %v5147, %v5231
        %v5233 = vpop.f32.mrf.mxu0
        %v5234 = vpop.f32.mrf.mxu0
        %v5235 = vpop.f32.mrf.mxu0
        %5236 = vdwg.mxu0
        %v5237 = vadd.f32 %v4296, %v5232
        %s5238 = scalar_lea.vmem %s13, 2
        %v5239 = vld [vmem:[%s5238] sm:$0x1]
        %s5240 = scalar_lea.vmem %s14, 2
        %v5241 = vld [vmem:[%s5240] sm:$0x1]
        %5242 = vadd.xlane.f32.xlu0 %v5237
        %v5243 = vpop.xlane.xlu0 %5242
        %v5244 = vmul.f32 %v5243, %v1945
        %v5245 = vsub.f32 %v5237, %v5244
        %v5246 = vmul.f32 %v5245, %v5245
        %5247 = vadd.xlane.f32.xlu0 %v5246
        %v5248 = vpop.xlane.xlu0 %5247
        %v5249 = vmul.f32 %v5248, %v1945
        %v5250 = vadd.f32 %v5249, 1e-05
        %v5251 = vrsqrt.pop %v5250
        %v5252 = vmul.f32 %v5245, %v5251
        %v5254 = vlaneseq
        %v5255 = vshrl.u32 %v5254, 7
        %v5256 = vsub.s32 0, %v5255
        %v5257 = vrot.slane %v5239, %v5256
        %v5259 = vmul.f32 %v5252, %v5257
        %v5261 = vlaneseq
        %v5262 = vshrl.u32 %v5261, 7
        %v5263 = vsub.s32 0, %v5262
        %v5264 = vrot.slane %v5241, %v5263
        %v5266 = vadd.f32 %v5259, %v5264
        %s5267 = scalar_lea.vmem %s9, 512
        %v5268 = vld [vmem:[%s5267] sm:$0xff]
        %v5269 = vld [vmem:[%s5267 + $0x8] sm:$0xff]
        %v5270 = vld [vmem:[%s5267 + $0x10] sm:$0xff]
        %v5271 = vld [vmem:[%s5267 + $0x18] sm:$0xff]
        %v5272 = vld [vmem:[%s5267 + $0x20] sm:$0xff]
        %v5273 = vld [vmem:[%s5267 + $0x28] sm:$0xff]
        %v5274 = vld [vmem:[%s5267 + $0x30] sm:$0xff]
        %v5275 = vld [vmem:[%s5267 + $0x38] sm:$0xff]
        %v5276 = vld [vmem:[%s5267 + $0x40] sm:$0xff]
        %v5277 = vld [vmem:[%s5267 + $0x48] sm:$0xff]
        %v5278 = vld [vmem:[%s5267 + $0x50] sm:$0xff]
        %v5279 = vld [vmem:[%s5267 + $0x58] sm:$0xff]
        %v5280 = vld [vmem:[%s5267 + $0x60] sm:$0xff]
        %v5281 = vld [vmem:[%s5267 + $0x68] sm:$0xff]
        %v5282 = vld [vmem:[%s5267 + $0x70] sm:$0xff]
        %v5283 = vld [vmem:[%s5267 + $0x78] sm:$0xff]
        %v5284 = vld [vmem:[%s5267 + $0x80] sm:$0xff]
        %v5285 = vld [vmem:[%s5267 + $0x88] sm:$0xff]
        %v5286 = vld [vmem:[%s5267 + $0x90] sm:$0xff]
        %v5287 = vld [vmem:[%s5267 + $0x98] sm:$0xff]
        %v5288 = vld [vmem:[%s5267 + $0xa0] sm:$0xff]
        %v5289 = vld [vmem:[%s5267 + $0xa8] sm:$0xff]
        %v5290 = vld [vmem:[%s5267 + $0xb0] sm:$0xff]
        %v5291 = vld [vmem:[%s5267 + $0xb8] sm:$0xff]
        %v5292 = vld [vmem:[%s5267 + $0xc0] sm:$0xff]
        %v5293 = vld [vmem:[%s5267 + $0xc8] sm:$0xff]
        %v5294 = vld [vmem:[%s5267 + $0xd0] sm:$0xff]
        %v5295 = vld [vmem:[%s5267 + $0xd8] sm:$0xff]
        %v5296 = vld [vmem:[%s5267 + $0xe0] sm:$0xff]
        %v5297 = vld [vmem:[%s5267 + $0xe8] sm:$0xff]
        %v5298 = vld [vmem:[%s5267 + $0xf0] sm:$0xff]
        %v5299 = vld [vmem:[%s5267 + $0xf8] sm:$0xff]
        %v5300 = vpack.c.bf16 %v5266, %v5266
        %s5301 = scalar_lea.vmem %s10, 8
        %v5302 = vld [vmem:[%s5301] sm:$0xf]
        %v5304 = vlaneseq
        %v5305 = vshrl.u32 %v5304, 7
        %v5306 = vsub.s32 0, %v5305
        %v5307 = vrot.slane %v5302, %v5306
        %v5308 = vlaneseq
        %v5309 = vshrl.u32 %v5308, 7
        %v5310 = vsub.s32 1, %v5309
        %v5311 = vrot.slane %v5302, %v5310
        %v5312 = vlaneseq
        %v5313 = vshrl.u32 %v5312, 7
        %v5314 = vsub.s32 2, %v5313
        %v5315 = vrot.slane %v5302, %v5314
        %v5316 = vlaneseq
        %v5317 = vshrl.u32 %v5316, 7
        %v5318 = vsub.s32 3, %v5317
        %v5319 = vrot.slane %v5302, %v5318
        %v5356 = vunpack.c.l.b16 %v5268
        %v5357 = vunpack.c.h.b16 %v5268
        %v5358 = vunpack.c.l.b16 %v5269
        %v5359 = vunpack.c.h.b16 %v5269
        %v5360 = vunpack.c.l.b16 %v5270
        %v5361 = vunpack.c.h.b16 %v5270
        %v5362 = vunpack.c.l.b16 %v5271
        %v5363 = vunpack.c.h.b16 %v5271
        %v5364 = vunpack.c.l.b16 %v5272
        %v5365 = vunpack.c.h.b16 %v5272
        %v5366 = vunpack.c.l.b16 %v5273
        %v5367 = vunpack.c.h.b16 %v5273
        %v5368 = vunpack.c.l.b16 %v5274
        %v5369 = vunpack.c.h.b16 %v5274
        %v5370 = vunpack.c.l.b16 %v5275
        %v5371 = vunpack.c.h.b16 %v5275
        %v5372 = vunpack.c.l.b16 %v5276
        %v5373 = vunpack.c.h.b16 %v5276
        %v5374 = vunpack.c.l.b16 %v5277
        %v5375 = vunpack.c.h.b16 %v5277
        %v5376 = vunpack.c.l.b16 %v5278
        %v5377 = vunpack.c.h.b16 %v5278
        %v5378 = vunpack.c.l.b16 %v5279
        %v5379 = vunpack.c.h.b16 %v5279
        %v5380 = vunpack.c.l.b16 %v5280
        %v5381 = vunpack.c.h.b16 %v5280
        %v5382 = vunpack.c.l.b16 %v5281
        %v5383 = vunpack.c.h.b16 %v5281
        %v5384 = vunpack.c.l.b16 %v5282
        %v5385 = vunpack.c.h.b16 %v5282
        %v5386 = vunpack.c.l.b16 %v5283
        %v5387 = vunpack.c.h.b16 %v5283
        %v5388 = vunpack.c.l.b16 %v5284
        %v5389 = vunpack.c.h.b16 %v5284
        %v5390 = vunpack.c.l.b16 %v5285
        %v5391 = vunpack.c.h.b16 %v5285
        %v5392 = vunpack.c.l.b16 %v5286
        %v5393 = vunpack.c.h.b16 %v5286
        %v5394 = vunpack.c.l.b16 %v5287
        %v5395 = vunpack.c.h.b16 %v5287
        %v5396 = vunpack.c.l.b16 %v5288
        %v5397 = vunpack.c.h.b16 %v5288
        %v5398 = vunpack.c.l.b16 %v5289
        %v5399 = vunpack.c.h.b16 %v5289
        %v5400 = vunpack.c.l.b16 %v5290
        %v5401 = vunpack.c.h.b16 %v5290
        %v5402 = vunpack.c.l.b16 %v5291
        %v5403 = vunpack.c.h.b16 %v5291
        %v5404 = vunpack.c.l.b16 %v5292
        %v5405 = vunpack.c.h.b16 %v5292
        %v5406 = vunpack.c.l.b16 %v5293
        %v5407 = vunpack.c.h.b16 %v5293
        %v5408 = vunpack.c.l.b16 %v5294
        %v5409 = vunpack.c.h.b16 %v5294
        %v5410 = vunpack.c.l.b16 %v5295
        %v5411 = vunpack.c.h.b16 %v5295
        %v5412 = vunpack.c.l.b16 %v5296
        %v5413 = vunpack.c.h.b16 %v5296
        %v5414 = vunpack.c.l.b16 %v5297
        %v5415 = vunpack.c.h.b16 %v5297
        %v5416 = vunpack.c.l.b16 %v5298
        %v5417 = vunpack.c.h.b16 %v5298
        %v5418 = vunpack.c.l.b16 %v5299
        %v5419 = vunpack.c.h.b16 %v5299
        %v5420 = vpack.c.b16 %v5360, %v5356
        %v5421 = vpack.c.b16 %v5361, %v5357
        %v5422 = vpack.c.b16 %v5362, %v5358
        %v5423 = vpack.c.b16 %v5363, %v5359
        %v5424 = vpack.c.b16 %v5368, %v5364
        %v5425 = vpack.c.b16 %v5369, %v5365
        %v5426 = vpack.c.b16 %v5370, %v5366
        %v5427 = vpack.c.b16 %v5371, %v5367
        %v5428 = vpack.c.b16 %v5376, %v5372
        %v5429 = vpack.c.b16 %v5377, %v5373
        %v5430 = vpack.c.b16 %v5378, %v5374
        %v5431 = vpack.c.b16 %v5379, %v5375
        %v5432 = vpack.c.b16 %v5384, %v5380
        %v5433 = vpack.c.b16 %v5385, %v5381
        %v5434 = vpack.c.b16 %v5386, %v5382
        %v5435 = vpack.c.b16 %v5387, %v5383
        %v5436 = vpack.c.b16 %v5392, %v5388
        %v5437 = vpack.c.b16 %v5393, %v5389
        %v5438 = vpack.c.b16 %v5394, %v5390
        %v5439 = vpack.c.b16 %v5395, %v5391
        %v5440 = vpack.c.b16 %v5400, %v5396
        %v5441 = vpack.c.b16 %v5401, %v5397
        %v5442 = vpack.c.b16 %v5402, %v5398
        %v5443 = vpack.c.b16 %v5403, %v5399
        %v5444 = vpack.c.b16 %v5408, %v5404
        %v5445 = vpack.c.b16 %v5409, %v5405
        %v5446 = vpack.c.b16 %v5410, %v5406
        %v5447 = vpack.c.b16 %v5411, %v5407
        %v5448 = vpack.c.b16 %v5416, %v5412
        %v5449 = vpack.c.b16 %v5417, %v5413
        %v5450 = vpack.c.b16 %v5418, %v5414
        %v5451 = vpack.c.b16 %v5419, %v5415
        %5484 = vmatprep.subr.bf16.mxu0 %v5449
        %5485 = vmatpush1.bf16.msra.mxu0 %v5448
        %5486 = vmatprep.subr.bf16.mxu0 %v5445
        %5487 = vmatpush1.bf16.msra.mxu0 %v5444
        %5488 = vmatprep.subr.bf16.mxu0 %v5441
        %5489 = vmatpush1.bf16.msra.mxu0 %v5440
        %5490 = vmatprep.subr.bf16.mxu0 %v5437
        %5491 = vmatpush1.bf16.msra.mxu0 %v5436
        %5492 = vmatprep.subr.bf16.mxu0 %v5433
        %5493 = vmatpush1.bf16.msra.mxu0 %v5432
        %5494 = vmatprep.subr.bf16.mxu0 %v5429
        %5495 = vmatpush1.bf16.msra.mxu0 %v5428
        %5496 = vmatprep.subr.bf16.mxu0 %v5425
        %5497 = vmatpush1.bf16.msra.mxu0 %v5424
        %5498 = vmatprep.subr.bf16.mxu0 %v5421
        %5499 = vmatpush1.bf16.msra.mxu0 %v5420
        %5500 = vmatprep.subr.bf16.mxu0 0
        %5501 = vmatpush2.bf16.msra.mxu0 0
        %5502 = vmatprep.subr.bf16.mxu0 0
        %5503 = vmatpush2.bf16.msra.mxu0 0
        %5504 = vmatprep.subr.bf16.mxu0 0
        %5505 = vmatpush2.bf16.msra.mxu0 0
        %5506 = vmatprep.subr.bf16.mxu0 0
        %5507 = vmatpush2.bf16.msra.mxu0 0
        %5508 = vmatprep.subr.bf16.mxu0 0
        %5509 = vmatpush2.bf16.msra.mxu0 0
        %5510 = vmatprep.subr.bf16.mxu0 0
        %5511 = vmatpush2.bf16.msra.mxu0 0
        %5512 = vmatprep.subr.bf16.mxu0 0
        %5513 = vmatpush2.bf16.msra.mxu0 0
        %5514 = vmatprep.subr.bf16.mxu0 0
        %5515 = vmatpush2.bf16.msra.mxu0 0
        %5516 = vmatprep.mubr.bf16.mxu0 0
        %5517 = vmatmul.mubr.bf16.gmra.mxu0 %v5300
        %v5518 = vpop.f32.mrf.mxu0
        %v5519 = vadd.f32 %v5307, %v5518
        %v5520 = vpop.f32.mrf.mxu0
        %v5521 = vadd.f32 %v5311, %v5520
        %v5522 = vpop.f32.mrf.mxu0
        %v5523 = vpop.f32.mrf.mxu0
        %5524 = vdwg.mxu0
        %5525 = vmatprep.subr.bf16.mxu0 %v5451
        %5526 = vmatpush1.bf16.msra.mxu0 %v5450
        %5527 = vmatprep.subr.bf16.mxu0 %v5447
        %5528 = vmatpush1.bf16.msra.mxu0 %v5446
        %5529 = vmatprep.subr.bf16.mxu0 %v5443
        %5530 = vmatpush1.bf16.msra.mxu0 %v5442
        %5531 = vmatprep.subr.bf16.mxu0 %v5439
        %5532 = vmatpush1.bf16.msra.mxu0 %v5438
        %5533 = vmatprep.subr.bf16.mxu0 %v5435
        %5534 = vmatpush1.bf16.msra.mxu0 %v5434
        %5535 = vmatprep.subr.bf16.mxu0 %v5431
        %5536 = vmatpush1.bf16.msra.mxu0 %v5430
        %5537 = vmatprep.subr.bf16.mxu0 %v5427
        %5538 = vmatpush1.bf16.msra.mxu0 %v5426
        %5539 = vmatprep.subr.bf16.mxu0 %v5423
        %5540 = vmatpush1.bf16.msra.mxu0 %v5422
        %5541 = vmatprep.subr.bf16.mxu0 0
        %5542 = vmatpush2.bf16.msra.mxu0 0
        %5543 = vmatprep.subr.bf16.mxu0 0
        %5544 = vmatpush2.bf16.msra.mxu0 0
        %5545 = vmatprep.subr.bf16.mxu0 0
        %5546 = vmatpush2.bf16.msra.mxu0 0
        %5547 = vmatprep.subr.bf16.mxu0 0
        %5548 = vmatpush2.bf16.msra.mxu0 0
        %5549 = vmatprep.subr.bf16.mxu0 0
        %5550 = vmatpush2.bf16.msra.mxu0 0
        %5551 = vmatprep.subr.bf16.mxu0 0
        %5552 = vmatpush2.bf16.msra.mxu0 0
        %5553 = vmatprep.subr.bf16.mxu0 0
        %5554 = vmatpush2.bf16.msra.mxu0 0
        %5555 = vmatprep.subr.bf16.mxu0 0
        %5556 = vmatpush2.bf16.msra.mxu0 0
        %5557 = vmatprep.mubr.bf16.mxu0 0
        %5558 = vmatmul.mubr.bf16.gmra.mxu0 %v5300
        %v5559 = vpop.f32.mrf.mxu0
        %v5560 = vadd.f32 %v5315, %v5559
        %v5561 = vpop.f32.mrf.mxu0
        %v5562 = vadd.f32 %v5319, %v5561
        %v5563 = vpop.f32.mrf.mxu0
        %v5564 = vpop.f32.mrf.mxu0
        %5565 = vdwg.mxu0
        %v5566 = vmax.f32 %v5519, 0.0
        %v5567 = vmax.f32 %v5521, 0.0
        %v5568 = vmax.f32 %v5560, 0.0
        %v5569 = vmax.f32 %v5562, 0.0
        %s5570 = scalar_lea.vmem %s11, 512
        %v5571 = vld [vmem:[%s5570] sm:$0xf]
        %v5572 = vld [vmem:[%s5570 + $0x4] sm:$0xf]
        %v5573 = vld [vmem:[%s5570 + $0x8] sm:$0xf]
        %v5574 = vld [vmem:[%s5570 + $0xc] sm:$0xf]
        %v5575 = vld [vmem:[%s5570 + $0x10] sm:$0xf]
        %v5576 = vld [vmem:[%s5570 + $0x14] sm:$0xf]
        %v5577 = vld [vmem:[%s5570 + $0x18] sm:$0xf]
        %v5578 = vld [vmem:[%s5570 + $0x1c] sm:$0xf]
        %v5579 = vld [vmem:[%s5570 + $0x20] sm:$0xf]
        %v5580 = vld [vmem:[%s5570 + $0x24] sm:$0xf]
        %v5581 = vld [vmem:[%s5570 + $0x28] sm:$0xf]
        %v5582 = vld [vmem:[%s5570 + $0x2c] sm:$0xf]
        %v5583 = vld [vmem:[%s5570 + $0x30] sm:$0xf]
        %v5584 = vld [vmem:[%s5570 + $0x34] sm:$0xf]
        %v5585 = vld [vmem:[%s5570 + $0x38] sm:$0xf]
        %v5586 = vld [vmem:[%s5570 + $0x3c] sm:$0xf]
        %v5587 = vld [vmem:[%s5570 + $0x40] sm:$0xf]
        %v5588 = vld [vmem:[%s5570 + $0x44] sm:$0xf]
        %v5589 = vld [vmem:[%s5570 + $0x48] sm:$0xf]
        %v5590 = vld [vmem:[%s5570 + $0x4c] sm:$0xf]
        %v5591 = vld [vmem:[%s5570 + $0x50] sm:$0xf]
        %v5592 = vld [vmem:[%s5570 + $0x54] sm:$0xf]
        %v5593 = vld [vmem:[%s5570 + $0x58] sm:$0xf]
        %v5594 = vld [vmem:[%s5570 + $0x5c] sm:$0xf]
        %v5595 = vld [vmem:[%s5570 + $0x60] sm:$0xf]
        %v5596 = vld [vmem:[%s5570 + $0x64] sm:$0xf]
        %v5597 = vld [vmem:[%s5570 + $0x68] sm:$0xf]
        %v5598 = vld [vmem:[%s5570 + $0x6c] sm:$0xf]
        %v5599 = vld [vmem:[%s5570 + $0x70] sm:$0xf]
        %v5600 = vld [vmem:[%s5570 + $0x74] sm:$0xf]
        %v5601 = vld [vmem:[%s5570 + $0x78] sm:$0xf]
        %v5602 = vld [vmem:[%s5570 + $0x7c] sm:$0xf]
        %v5603 = vld [vmem:[%s5570 + $0x80] sm:$0xf]
        %v5604 = vld [vmem:[%s5570 + $0x84] sm:$0xf]
        %v5605 = vld [vmem:[%s5570 + $0x88] sm:$0xf]
        %v5606 = vld [vmem:[%s5570 + $0x8c] sm:$0xf]
        %v5607 = vld [vmem:[%s5570 + $0x90] sm:$0xf]
        %v5608 = vld [vmem:[%s5570 + $0x94] sm:$0xf]
        %v5609 = vld [vmem:[%s5570 + $0x98] sm:$0xf]
        %v5610 = vld [vmem:[%s5570 + $0x9c] sm:$0xf]
        %v5611 = vld [vmem:[%s5570 + $0xa0] sm:$0xf]
        %v5612 = vld [vmem:[%s5570 + $0xa4] sm:$0xf]
        %v5613 = vld [vmem:[%s5570 + $0xa8] sm:$0xf]
        %v5614 = vld [vmem:[%s5570 + $0xac] sm:$0xf]
        %v5615 = vld [vmem:[%s5570 + $0xb0] sm:$0xf]
        %v5616 = vld [vmem:[%s5570 + $0xb4] sm:$0xf]
        %v5617 = vld [vmem:[%s5570 + $0xb8] sm:$0xf]
        %v5618 = vld [vmem:[%s5570 + $0xbc] sm:$0xf]
        %v5619 = vld [vmem:[%s5570 + $0xc0] sm:$0xf]
        %v5620 = vld [vmem:[%s5570 + $0xc4] sm:$0xf]
        %v5621 = vld [vmem:[%s5570 + $0xc8] sm:$0xf]
        %v5622 = vld [vmem:[%s5570 + $0xcc] sm:$0xf]
        %v5623 = vld [vmem:[%s5570 + $0xd0] sm:$0xf]
        %v5624 = vld [vmem:[%s5570 + $0xd4] sm:$0xf]
        %v5625 = vld [vmem:[%s5570 + $0xd8] sm:$0xf]
        %v5626 = vld [vmem:[%s5570 + $0xdc] sm:$0xf]
        %v5627 = vld [vmem:[%s5570 + $0xe0] sm:$0xf]
        %v5628 = vld [vmem:[%s5570 + $0xe4] sm:$0xf]
        %v5629 = vld [vmem:[%s5570 + $0xe8] sm:$0xf]
        %v5630 = vld [vmem:[%s5570 + $0xec] sm:$0xf]
        %v5631 = vld [vmem:[%s5570 + $0xf0] sm:$0xf]
        %v5632 = vld [vmem:[%s5570 + $0xf4] sm:$0xf]
        %v5633 = vld [vmem:[%s5570 + $0xf8] sm:$0xf]
        %v5634 = vld [vmem:[%s5570 + $0xfc] sm:$0xf]
        %v5635 = vpack.c.bf16 %v5566, %v5566
        %v5636 = vpack.c.bf16 %v5567, %v5567
        %v5637 = vpack.c.bf16 %v5568, %v5568
        %v5638 = vpack.c.bf16 %v5569, %v5569
        %s5639 = scalar_lea.vmem %s12, 2
        %v5640 = vld [vmem:[%s5639] sm:$0x1]
        %v5642 = vlaneseq
        %v5643 = vshrl.u32 %v5642, 7
        %v5644 = vsub.s32 0, %v5643
        %v5645 = vrot.slane %v5640, %v5644
        %v5711 = vunpack.c.l.b16 %v5571
        %v5712 = vunpack.c.l.b16 %v5572
        %v5713 = vunpack.c.l.b16 %v5573
        %v5714 = vunpack.c.l.b16 %v5574
        %v5715 = vunpack.c.l.b16 %v5575
        %v5716 = vunpack.c.l.b16 %v5576
        %v5717 = vunpack.c.l.b16 %v5577
        %v5718 = vunpack.c.l.b16 %v5578
        %v5719 = vunpack.c.l.b16 %v5579
        %v5720 = vunpack.c.l.b16 %v5580
        %v5721 = vunpack.c.l.b16 %v5581
        %v5722 = vunpack.c.l.b16 %v5582
        %v5723 = vunpack.c.l.b16 %v5583
        %v5724 = vunpack.c.l.b16 %v5584
        %v5725 = vunpack.c.l.b16 %v5585
        %v5726 = vunpack.c.l.b16 %v5586
        %v5727 = vunpack.c.l.b16 %v5587
        %v5728 = vunpack.c.l.b16 %v5588
        %v5729 = vunpack.c.l.b16 %v5589
        %v5730 = vunpack.c.l.b16 %v5590
        %v5731 = vunpack.c.l.b16 %v5591
        %v5732 = vunpack.c.l.b16 %v5592
        %v5733 = vunpack.c.l.b16 %v5593
        %v5734 = vunpack.c.l.b16 %v5594
        %v5735 = vunpack.c.l.b16 %v5595
        %v5736 = vunpack.c.l.b16 %v5596
        %v5737 = vunpack.c.l.b16 %v5597
        %v5738 = vunpack.c.l.b16 %v5598
        %v5739 = vunpack.c.l.b16 %v5599
        %v5740 = vunpack.c.l.b16 %v5600
        %v5741 = vunpack.c.l.b16 %v5601
        %v5742 = vunpack.c.l.b16 %v5602
        %v5743 = vunpack.c.l.b16 %v5603
        %v5744 = vunpack.c.l.b16 %v5604
        %v5745 = vunpack.c.l.b16 %v5605
        %v5746 = vunpack.c.l.b16 %v5606
        %v5747 = vunpack.c.l.b16 %v5607
        %v5748 = vunpack.c.l.b16 %v5608
        %v5749 = vunpack.c.l.b16 %v5609
        %v5750 = vunpack.c.l.b16 %v5610
        %v5751 = vunpack.c.l.b16 %v5611
        %v5752 = vunpack.c.l.b16 %v5612
        %v5753 = vunpack.c.l.b16 %v5613
        %v5754 = vunpack.c.l.b16 %v5614
        %v5755 = vunpack.c.l.b16 %v5615
        %v5756 = vunpack.c.l.b16 %v5616
        %v5757 = vunpack.c.l.b16 %v5617
        %v5758 = vunpack.c.l.b16 %v5618
        %v5759 = vunpack.c.l.b16 %v5619
        %v5760 = vunpack.c.l.b16 %v5620
        %v5761 = vunpack.c.l.b16 %v5621
        %v5762 = vunpack.c.l.b16 %v5622
        %v5763 = vunpack.c.l.b16 %v5623
        %v5764 = vunpack.c.l.b16 %v5624
        %v5765 = vunpack.c.l.b16 %v5625
        %v5766 = vunpack.c.l.b16 %v5626
        %v5767 = vunpack.c.l.b16 %v5627
        %v5768 = vunpack.c.l.b16 %v5628
        %v5769 = vunpack.c.l.b16 %v5629
        %v5770 = vunpack.c.l.b16 %v5630
        %v5771 = vunpack.c.l.b16 %v5631
        %v5772 = vunpack.c.l.b16 %v5632
        %v5773 = vunpack.c.l.b16 %v5633
        %v5774 = vunpack.c.l.b16 %v5634
        %v5775 = vpack.c.b16 %v5712, %v5711
        %v5776 = vpack.c.b16 %v5714, %v5713
        %v5777 = vpack.c.b16 %v5716, %v5715
        %v5778 = vpack.c.b16 %v5718, %v5717
        %v5779 = vpack.c.b16 %v5720, %v5719
        %v5780 = vpack.c.b16 %v5722, %v5721
        %v5781 = vpack.c.b16 %v5724, %v5723
        %v5782 = vpack.c.b16 %v5726, %v5725
        %v5783 = vpack.c.b16 %v5728, %v5727
        %v5784 = vpack.c.b16 %v5730, %v5729
        %v5785 = vpack.c.b16 %v5732, %v5731
        %v5786 = vpack.c.b16 %v5734, %v5733
        %v5787 = vpack.c.b16 %v5736, %v5735
        %v5788 = vpack.c.b16 %v5738, %v5737
        %v5789 = vpack.c.b16 %v5740, %v5739
        %v5790 = vpack.c.b16 %v5742, %v5741
        %v5791 = vpack.c.b16 %v5744, %v5743
        %v5792 = vpack.c.b16 %v5746, %v5745
        %v5793 = vpack.c.b16 %v5748, %v5747
        %v5794 = vpack.c.b16 %v5750, %v5749
        %v5795 = vpack.c.b16 %v5752, %v5751
        %v5796 = vpack.c.b16 %v5754, %v5753
        %v5797 = vpack.c.b16 %v5756, %v5755
        %v5798 = vpack.c.b16 %v5758, %v5757
        %v5799 = vpack.c.b16 %v5760, %v5759
        %v5800 = vpack.c.b16 %v5762, %v5761
        %v5801 = vpack.c.b16 %v5764, %v5763
        %v5802 = vpack.c.b16 %v5766, %v5765
        %v5803 = vpack.c.b16 %v5768, %v5767
        %v5804 = vpack.c.b16 %v5770, %v5769
        %v5805 = vpack.c.b16 %v5772, %v5771
        %v5806 = vpack.c.b16 %v5774, %v5773
        %5839 = vmatprep.subr.bf16.mxu0 0
        %5840 = vmatpush1.bf16.msra.mxu0 %v5782
        %5841 = vmatprep.subr.bf16.mxu0 0
        %5842 = vmatpush1.bf16.msra.mxu0 %v5781
        %5843 = vmatprep.subr.bf16.mxu0 0
        %5844 = vmatpush1.bf16.msra.mxu0 %v5780
        %5845 = vmatprep.subr.bf16.mxu0 0
        %5846 = vmatpush1.bf16.msra.mxu0 %v5779
        %5847 = vmatprep.subr.bf16.mxu0 0
        %5848 = vmatpush1.bf16.msra.mxu0 %v5778
        %5849 = vmatprep.subr.bf16.mxu0 0
        %5850 = vmatpush1.bf16.msra.mxu0 %v5777
        %5851 = vmatprep.subr.bf16.mxu0 0
        %5852 = vmatpush1.bf16.msra.mxu0 %v5776
        %5853 = vmatprep.subr.bf16.mxu0 0
        %5854 = vmatpush1.bf16.msra.mxu0 %v5775
        %5855 = vmatprep.subr.bf16.mxu0 0
        %5856 = vmatpush2.bf16.msra.mxu0 %v5790
        %5857 = vmatprep.subr.bf16.mxu0 0
        %5858 = vmatpush2.bf16.msra.mxu0 %v5789
        %5859 = vmatprep.subr.bf16.mxu0 0
        %5860 = vmatpush2.bf16.msra.mxu0 %v5788
        %5861 = vmatprep.subr.bf16.mxu0 0
        %5862 = vmatpush2.bf16.msra.mxu0 %v5787
        %5863 = vmatprep.subr.bf16.mxu0 0
        %5864 = vmatpush2.bf16.msra.mxu0 %v5786
        %5865 = vmatprep.subr.bf16.mxu0 0
        %5866 = vmatpush2.bf16.msra.mxu0 %v5785
        %5867 = vmatprep.subr.bf16.mxu0 0
        %5868 = vmatpush2.bf16.msra.mxu0 %v5784
        %5869 = vmatprep.subr.bf16.mxu0 0
        %5870 = vmatpush2.bf16.msra.mxu0 %v5783
        %5871 = vmatprep.mubr.bf16.mxu0 %v5636
        %5872 = vmatmul.mubr.bf16.gmra.mxu0 %v5635
        %v5873 = vpop.f32.mrf.mxu0
        %v5874 = vadd.f32 %v5645, %v5873
        %v5875 = vpop.f32.mrf.mxu0
        %v5876 = vpop.f32.mrf.mxu0
        %v5877 = vpop.f32.mrf.mxu0
        %5878 = vdwg.mxu0
        %5879 = vmatprep.subr.bf16.mxu0 0
        %5880 = vmatpush1.bf16.msra.mxu0 %v5798
        %5881 = vmatprep.subr.bf16.mxu0 0
        %5882 = vmatpush1.bf16.msra.mxu0 %v5797
        %5883 = vmatprep.subr.bf16.mxu0 0
        %5884 = vmatpush1.bf16.msra.mxu0 %v5796
        %5885 = vmatprep.subr.bf16.mxu0 0
        %5886 = vmatpush1.bf16.msra.mxu0 %v5795
        %5887 = vmatprep.subr.bf16.mxu0 0
        %5888 = vmatpush1.bf16.msra.mxu0 %v5794
        %5889 = vmatprep.subr.bf16.mxu0 0
        %5890 = vmatpush1.bf16.msra.mxu0 %v5793
        %5891 = vmatprep.subr.bf16.mxu0 0
        %5892 = vmatpush1.bf16.msra.mxu0 %v5792
        %5893 = vmatprep.subr.bf16.mxu0 0
        %5894 = vmatpush1.bf16.msra.mxu0 %v5791
        %5895 = vmatprep.subr.bf16.mxu0 0
        %5896 = vmatpush2.bf16.msra.mxu0 %v5806
        %5897 = vmatprep.subr.bf16.mxu0 0
        %5898 = vmatpush2.bf16.msra.mxu0 %v5805
        %5899 = vmatprep.subr.bf16.mxu0 0
        %5900 = vmatpush2.bf16.msra.mxu0 %v5804
        %5901 = vmatprep.subr.bf16.mxu0 0
        %5902 = vmatpush2.bf16.msra.mxu0 %v5803
        %5903 = vmatprep.subr.bf16.mxu0 0
        %5904 = vmatpush2.bf16.msra.mxu0 %v5802
        %5905 = vmatprep.subr.bf16.mxu0 0
        %5906 = vmatpush2.bf16.msra.mxu0 %v5801
        %5907 = vmatprep.subr.bf16.mxu0 0
        %5908 = vmatpush2.bf16.msra.mxu0 %v5800
        %5909 = vmatprep.subr.bf16.mxu0 0
        %5910 = vmatpush2.bf16.msra.mxu0 %v5799
        %5911 = vmatprep.mubr.bf16.mxu0 %v5638
        %5912 = vmatmul.mubr.bf16.gmra.mxu0 %v5637
        %v5913 = vpop.f32.mrf.mxu0
        %v5914 = vadd.f32 %v5874, %v5913
        %v5915 = vpop.f32.mrf.mxu0
        %v5916 = vpop.f32.mrf.mxu0
        %v5917 = vpop.f32.mrf.mxu0
        %5918 = vdwg.mxu0
        %v5919 = vadd.f32 %v5266, %v5914
        %s5920 = scalar_lea.vmem %s15, 2
        %v5921 = vld [vmem:[%s5920] sm:$0x1]
        %s5922 = scalar_lea.vmem %s16, 2
        %v5923 = vld [vmem:[%s5922] sm:$0x1]
        %5924 = vadd.xlane.f32.xlu0 %v5919
        %v5925 = vpop.xlane.xlu0 %5924
        %v5926 = vmul.f32 %v5925, %v1945
        %v5927 = vsub.f32 %v5919, %v5926
        %v5928 = vmul.f32 %v5927, %v5927
        %5929 = vadd.xlane.f32.xlu0 %v5928
        %v5930 = vpop.xlane.xlu0 %5929
        %v5931 = vmul.f32 %v5930, %v1945
        %v5932 = vadd.f32 %v5931, 1e-05
        %v5933 = vrsqrt.pop %v5932
        %v5934 = vmul.f32 %v5927, %v5933
        %v5936 = vlaneseq
        %v5937 = vshrl.u32 %v5936, 7
        %v5938 = vsub.s32 0, %v5937
        %v5939 = vrot.slane %v5921, %v5938
        %v5941 = vmul.f32 %v5934, %v5939
        %v5943 = vlaneseq
        %v5944 = vshrl.u32 %v5943, 7
        %v5945 = vsub.s32 0, %v5944
        %v5946 = vrot.slane %v5923, %v5945
        %v5948 = vadd.f32 %v5941, %v5946
        %s5949 = scalar_lea.vmem %s5, 576
        %v5950 = vld [vmem:[%s5949] sm:$0xff]
        %v5951 = vld [vmem:[%s5949 + $0x8] sm:$0xf]
        %v5952 = vld [vmem:[%s5949 + $0xc] sm:$0xff]
        %v5953 = vld [vmem:[%s5949 + $0x14] sm:$0xf]
        %v5954 = vld [vmem:[%s5949 + $0x18] sm:$0xff]
        %v5955 = vld [vmem:[%s5949 + $0x20] sm:$0xf]
        %v5956 = vld [vmem:[%s5949 + $0x24] sm:$0xff]
        %v5957 = vld [vmem:[%s5949 + $0x2c] sm:$0xf]
        %v5958 = vld [vmem:[%s5949 + $0x30] sm:$0xff]
        %v5959 = vld [vmem:[%s5949 + $0x38] sm:$0xf]
        %v5960 = vld [vmem:[%s5949 + $0x3c] sm:$0xff]
        %v5961 = vld [vmem:[%s5949 + $0x44] sm:$0xf]
        %v5962 = vld [vmem:[%s5949 + $0x48] sm:$0xff]
        %v5963 = vld [vmem:[%s5949 + $0x50] sm:$0xf]
        %v5964 = vld [vmem:[%s5949 + $0x54] sm:$0xff]
        %v5965 = vld [vmem:[%s5949 + $0x5c] sm:$0xf]
        %v5966 = vld [vmem:[%s5949 + $0x60] sm:$0xff]
        %v5967 = vld [vmem:[%s5949 + $0x68] sm:$0xf]
        %v5968 = vld [vmem:[%s5949 + $0x6c] sm:$0xff]
        %v5969 = vld [vmem:[%s5949 + $0x74] sm:$0xf]
        %v5970 = vld [vmem:[%s5949 + $0x78] sm:$0xff]
        %v5971 = vld [vmem:[%s5949 + $0x80] sm:$0xf]
        %v5972 = vld [vmem:[%s5949 + $0x84] sm:$0xff]
        %v5973 = vld [vmem:[%s5949 + $0x8c] sm:$0xf]
        %v5974 = vld [vmem:[%s5949 + $0x90] sm:$0xff]
        %v5975 = vld [vmem:[%s5949 + $0x98] sm:$0xf]
        %v5976 = vld [vmem:[%s5949 + $0x9c] sm:$0xff]
        %v5977 = vld [vmem:[%s5949 + $0xa4] sm:$0xf]
        %v5978 = vld [vmem:[%s5949 + $0xa8] sm:$0xff]
        %v5979 = vld [vmem:[%s5949 + $0xb0] sm:$0xf]
        %v5980 = vld [vmem:[%s5949 + $0xb4] sm:$0xff]
        %v5981 = vld [vmem:[%s5949 + $0xbc] sm:$0xf]
        %v5982 = vpack.c.bf16 %v5948, %v5948
        %s5983 = scalar_lea.vmem %s6, 9
        %v5984 = vld [vmem:[%s5983] sm:$0x7]
        %v5986 = vlaneseq
        %v5987 = vshrl.u32 %v5986, 7
        %v5988 = vsub.s32 0, %v5987
        %v5989 = vrot.slane %v5984, %v5988
        %v5990 = vlaneseq
        %v5991 = vshrl.u32 %v5990, 7
        %v5992 = vsub.s32 1, %v5991
        %v5993 = vrot.slane %v5984, %v5992
        %v5994 = vlaneseq
        %v5995 = vshrl.u32 %v5994, 7
        %v5996 = vsub.s32 2, %v5995
        %v5997 = vrot.slane %v5984, %v5996
        %v6033 = vunpack.c.l.b16 %v5950
        %v6034 = vunpack.c.h.b16 %v5950
        %v6035 = vunpack.c.l.b16 %v5951
        %v6036 = vunpack.c.l.b16 %v5952
        %v6037 = vunpack.c.h.b16 %v5952
        %v6038 = vunpack.c.l.b16 %v5953
        %v6039 = vunpack.c.l.b16 %v5954
        %v6040 = vunpack.c.h.b16 %v5954
        %v6041 = vunpack.c.l.b16 %v5955
        %v6042 = vunpack.c.l.b16 %v5956
        %v6043 = vunpack.c.h.b16 %v5956
        %v6044 = vunpack.c.l.b16 %v5957
        %v6045 = vunpack.c.l.b16 %v5958
        %v6046 = vunpack.c.h.b16 %v5958
        %v6047 = vunpack.c.l.b16 %v5959
        %v6048 = vunpack.c.l.b16 %v5960
        %v6049 = vunpack.c.h.b16 %v5960
        %v6050 = vunpack.c.l.b16 %v5961
        %v6051 = vunpack.c.l.b16 %v5962
        %v6052 = vunpack.c.h.b16 %v5962
        %v6053 = vunpack.c.l.b16 %v5963
        %v6054 = vunpack.c.l.b16 %v5964
        %v6055 = vunpack.c.h.b16 %v5964
        %v6056 = vunpack.c.l.b16 %v5965
        %v6057 = vunpack.c.l.b16 %v5966
        %v6058 = vunpack.c.h.b16 %v5966
        %v6059 = vunpack.c.l.b16 %v5967
        %v6060 = vunpack.c.l.b16 %v5968
        %v6061 = vunpack.c.h.b16 %v5968
        %v6062 = vunpack.c.l.b16 %v5969
        %v6063 = vunpack.c.l.b16 %v5970
        %v6064 = vunpack.c.h.b16 %v5970
        %v6065 = vunpack.c.l.b16 %v5971
        %v6066 = vunpack.c.l.b16 %v5972
        %v6067 = vunpack.c.h.b16 %v5972
        %v6068 = vunpack.c.l.b16 %v5973
        %v6069 = vunpack.c.l.b16 %v5974
        %v6070 = vunpack.c.h.b16 %v5974
        %v6071 = vunpack.c.l.b16 %v5975
        %v6072 = vunpack.c.l.b16 %v5976
        %v6073 = vunpack.c.h.b16 %v5976
        %v6074 = vunpack.c.l.b16 %v5977
        %v6075 = vunpack.c.l.b16 %v5978
        %v6076 = vunpack.c.h.b16 %v5978
        %v6077 = vunpack.c.l.b16 %v5979
        %v6078 = vunpack.c.l.b16 %v5980
        %v6079 = vunpack.c.h.b16 %v5980
        %v6080 = vunpack.c.l.b16 %v5981
        %v6081 = vpack.c.b16 %v6036, %v6033
        %v6082 = vpack.c.b16 %v6037, %v6034
        %v6083 = vpack.c.b16 %v6038, %v6035
        %v6084 = vpack.c.b16 %v6042, %v6039
        %v6085 = vpack.c.b16 %v6043, %v6040
        %v6086 = vpack.c.b16 %v6044, %v6041
        %v6087 = vpack.c.b16 %v6048, %v6045
        %v6088 = vpack.c.b16 %v6049, %v6046
        %v6089 = vpack.c.b16 %v6050, %v6047
        %v6090 = vpack.c.b16 %v6054, %v6051
        %v6091 = vpack.c.b16 %v6055, %v6052
        %v6092 = vpack.c.b16 %v6056, %v6053
        %v6093 = vpack.c.b16 %v6060, %v6057
        %v6094 = vpack.c.b16 %v6061, %v6058
        %v6095 = vpack.c.b16 %v6062, %v6059
        %v6096 = vpack.c.b16 %v6066, %v6063
        %v6097 = vpack.c.b16 %v6067, %v6064
        %v6098 = vpack.c.b16 %v6068, %v6065
        %v6099 = vpack.c.b16 %v6072, %v6069
        %v6100 = vpack.c.b16 %v6073, %v6070
        %v6101 = vpack.c.b16 %v6074, %v6071
        %v6102 = vpack.c.b16 %v6078, %v6075
        %v6103 = vpack.c.b16 %v6079, %v6076
        %v6104 = vpack.c.b16 %v6080, %v6077
        %6129 = vmatprep.subr.bf16.mxu0 %v6103
        %6130 = vmatpush1.bf16.msra.mxu0 %v6102
        %6131 = vmatprep.subr.bf16.mxu0 %v6100
        %6132 = vmatpush1.bf16.msra.mxu0 %v6099
        %6133 = vmatprep.subr.bf16.mxu0 %v6097
        %6134 = vmatpush1.bf16.msra.mxu0 %v6096
        %6135 = vmatprep.subr.bf16.mxu0 %v6094
        %6136 = vmatpush1.bf16.msra.mxu0 %v6093
        %6137 = vmatprep.subr.bf16.mxu0 %v6091
        %6138 = vmatpush1.bf16.msra.mxu0 %v6090
        %6139 = vmatprep.subr.bf16.mxu0 %v6088
        %6140 = vmatpush1.bf16.msra.mxu0 %v6087
        %6141 = vmatprep.subr.bf16.mxu0 %v6085
        %6142 = vmatpush1.bf16.msra.mxu0 %v6084
        %6143 = vmatprep.subr.bf16.mxu0 %v6082
        %6144 = vmatpush1.bf16.msra.mxu0 %v6081
        %6145 = vmatprep.subr.bf16.mxu0 0
        %6146 = vmatpush2.bf16.msra.mxu0 0
        %6147 = vmatprep.subr.bf16.mxu0 0
        %6148 = vmatpush2.bf16.msra.mxu0 0
        %6149 = vmatprep.subr.bf16.mxu0 0
        %6150 = vmatpush2.bf16.msra.mxu0 0
        %6151 = vmatprep.subr.bf16.mxu0 0
        %6152 = vmatpush2.bf16.msra.mxu0 0
        %6153 = vmatprep.subr.bf16.mxu0 0
        %6154 = vmatpush2.bf16.msra.mxu0 0
        %6155 = vmatprep.subr.bf16.mxu0 0
        %6156 = vmatpush2.bf16.msra.mxu0 0
        %6157 = vmatprep.subr.bf16.mxu0 0
        %6158 = vmatpush2.bf16.msra.mxu0 0
        %6159 = vmatprep.subr.bf16.mxu0 0
        %6160 = vmatpush2.bf16.msra.mxu0 0
        %6161 = vmatprep.mubr.bf16.mxu0 0
        %6162 = vmatmul.mubr.bf16.gmra.mxu0 %v5982
        %v6163 = vpop.f32.mrf.mxu0
        %v6164 = vadd.f32 %v5989, %v6163
        %v6165 = vpop.f32.mrf.mxu0
        %v6166 = vadd.f32 %v5993, %v6165
        %v6167 = vpop.f32.mrf.mxu0
        %v6168 = vpop.f32.mrf.mxu0
        %6169 = vdwg.mxu0
        %6170 = vmatprep.subr.bf16.mxu0 0
        %6171 = vmatpush1.bf16.msra.mxu0 %v6104
        %6172 = vmatprep.subr.bf16.mxu0 0
        %6173 = vmatpush1.bf16.msra.mxu0 %v6101
        %6174 = vmatprep.subr.bf16.mxu0 0
        %6175 = vmatpush1.bf16.msra.mxu0 %v6098
        %6176 = vmatprep.subr.bf16.mxu0 0
        %6177 = vmatpush1.bf16.msra.mxu0 %v6095
        %6178 = vmatprep.subr.bf16.mxu0 0
        %6179 = vmatpush1.bf16.msra.mxu0 %v6092
        %6180 = vmatprep.subr.bf16.mxu0 0
        %6181 = vmatpush1.bf16.msra.mxu0 %v6089
        %6182 = vmatprep.subr.bf16.mxu0 0
        %6183 = vmatpush1.bf16.msra.mxu0 %v6086
        %6184 = vmatprep.subr.bf16.mxu0 0
        %6185 = vmatpush1.bf16.msra.mxu0 %v6083
        %6186 = vmatprep.subr.bf16.mxu0 0
        %6187 = vmatpush2.bf16.msra.mxu0 0
        %6188 = vmatprep.subr.bf16.mxu0 0
        %6189 = vmatpush2.bf16.msra.mxu0 0
        %6190 = vmatprep.subr.bf16.mxu0 0
        %6191 = vmatpush2.bf16.msra.mxu0 0
        %6192 = vmatprep.subr.bf16.mxu0 0
        %6193 = vmatpush2.bf16.msra.mxu0 0
        %6194 = vmatprep.subr.bf16.mxu0 0
        %6195 = vmatpush2.bf16.msra.mxu0 0
        %6196 = vmatprep.subr.bf16.mxu0 0
        %6197 = vmatpush2.bf16.msra.mxu0 0
        %6198 = vmatprep.subr.bf16.mxu0 0
        %6199 = vmatpush2.bf16.msra.mxu0 0
        %6200 = vmatprep.subr.bf16.mxu0 0
        %6201 = vmatpush2.bf16.msra.mxu0 0
        %6202 = vmatprep.mubr.bf16.mxu0 0
        %6203 = vmatmul.mubr.bf16.gmra.mxu0 %v5982
        %v6204 = vpop.f32.mrf.mxu0
        %v6205 = vadd.f32 %v5997, %v6204
        %v6206 = vpop.f32.mrf.mxu0
        %v6207 = vpop.f32.mrf.mxu0
        %v6208 = vpop.f32.mrf.mxu0
        %6209 = vdwg.mxu0
        %v6210 = vmul.f32 %v6164, %v1134
        %v6211 = vmul.f32 %v6164, %v1138
        %v6212 = vmul.f32 %v6164, %v1142
        %v6213 = vmul.f32 %v6164, %v1146
        %v6214 = vmul.f32 %v6164, %v1150
        %v6215 = vmul.f32 %v6164, %v1154
        %v6216 = vmul.f32 %v6164, %v1158
        %v6217 = vmul.f32 %v6164, %v1162
        %v6218 = vpack.c.bf16 %v6211, %v6210
        %v6219 = vpack.c.bf16 %v6213, %v6212
        %v6220 = vpack.c.bf16 %v6215, %v6214
        %v6221 = vpack.c.bf16 %v6217, %v6216
        %v6222 = vpack.c.bf16 %v6166, %v6166
        %6223 = vmatprep.subr.bf16.mxu0 0
        %6224 = vmatpush1.bf16.xpose.msra.mxu0 0
        %6225 = vmatprep.subr.bf16.mxu0 0
        %6226 = vmatpush1.bf16.xpose.msra.mxu0 0
        %6227 = vmatprep.subr.bf16.mxu0 0
        %6228 = vmatpush1.bf16.xpose.msra.mxu0 0
        %6229 = vmatprep.subr.bf16.mxu0 0
        %6230 = vmatpush1.bf16.xpose.msra.mxu0 0
        %6231 = vmatprep.subr.bf16.mxu0 0
        %6232 = vmatpush1.bf16.xpose.msra.mxu0 0
        %6233 = vmatprep.subr.bf16.mxu0 0
        %6234 = vmatpush1.bf16.xpose.msra.mxu0 0
        %6235 = vmatprep.subr.bf16.mxu0 0
        %6236 = vmatpush1.bf16.xpose.msra.mxu0 0
        %6237 = vmatprep.subr.bf16.mxu0 0
        %6238 = vmatpush1.bf16.xpose.msra.mxu0 %v6222
        %6239 = vmatprep.subr.bf16.mxu0 0
        %6240 = vmatpush2.bf16.xpose.msra.mxu0 0
        %6241 = vmatprep.subr.bf16.mxu0 0
        %6242 = vmatpush2.bf16.xpose.msra.mxu0 0
        %6243 = vmatprep.subr.bf16.mxu0 0
        %6244 = vmatpush2.bf16.xpose.msra.mxu0 0
        %6245 = vmatprep.subr.bf16.mxu0 0
        %6246 = vmatpush2.bf16.xpose.msra.mxu0 0
        %6247 = vmatprep.subr.bf16.mxu0 0
        %6248 = vmatpush2.bf16.xpose.msra.mxu0 0
        %6249 = vmatprep.subr.bf16.mxu0 0
        %6250 = vmatpush2.bf16.xpose.msra.mxu0 0
        %6251 = vmatprep.subr.bf16.mxu0 0
        %6252 = vmatpush2.bf16.xpose.msra.mxu0 0
        %6253 = vmatprep.subr.bf16.mxu0 0
        %6254 = vmatpush2.bf16.xpose.msra.mxu0 0
        %6255 = vmatprep.mubr.bf16.mxu0 0
        %6256 = vmatmul.mubr.bf16.gmra.mxu0 %v6218
        %v6257 = vpop.f32.mrf.mxu0
        %v6258 = vadd.f32 0.0, %v6257
        %v6259 = vpop.f32.mrf.mxu0
        %v6260 = vpop.f32.mrf.mxu0
        %v6261 = vadd.f32 0.0, %v6260
        %v6262 = vpop.f32.mrf.mxu0
        %6263 = vmatprep.mubr.bf16.mxu0 0
        %6264 = vmatmul.mubr.bf16.gmra.mxu0 %v6219
        %v6265 = vpop.f32.mrf.mxu0
        %v6266 = vadd.f32 0.0, %v6265
        %v6267 = vpop.f32.mrf.mxu0
        %v6268 = vpop.f32.mrf.mxu0
        %v6269 = vadd.f32 0.0, %v6268
        %v6270 = vpop.f32.mrf.mxu0
        %6271 = vmatprep.mubr.bf16.mxu0 0
        %6272 = vmatmul.mubr.bf16.gmra.mxu0 %v6220
        %v6273 = vpop.f32.mrf.mxu0
        %v6274 = vadd.f32 0.0, %v6273
        %v6275 = vpop.f32.mrf.mxu0
        %v6276 = vpop.f32.mrf.mxu0
        %v6277 = vadd.f32 0.0, %v6276
        %v6278 = vpop.f32.mrf.mxu0
        %6279 = vmatprep.mubr.bf16.mxu0 0
        %6280 = vmatmul.mubr.bf16.gmra.mxu0 %v6221
        %v6281 = vpop.f32.mrf.mxu0
        %v6282 = vadd.f32 0.0, %v6281
        %v6283 = vpop.f32.mrf.mxu0
        %v6284 = vpop.f32.mrf.mxu0
        %v6285 = vadd.f32 0.0, %v6284
        %v6286 = vpop.f32.mrf.mxu0
        %6287 = vdwg.mxu0
        %v6288 = vsel %vm1249, %v6258, -inf
        %6289 = vmax.xlane.f32.xlu0 %v6288
        %v6290 = vpop.xlane.xlu0 %6289
        %v6291 = vsel %vm1249, %v6261, -inf
        %6292 = vmax.xlane.f32.xlu0 %v6291
        %v6293 = vpop.xlane.xlu0 %6292
        %v6294 = vsel %vm1249, %v6266, -inf
        %6295 = vmax.xlane.f32.xlu0 %v6294
        %v6296 = vpop.xlane.xlu0 %6295
        %v6297 = vsel %vm1249, %v6269, -inf
        %6298 = vmax.xlane.f32.xlu0 %v6297
        %v6299 = vpop.xlane.xlu0 %6298
        %v6300 = vsel %vm1249, %v6274, -inf
        %6301 = vmax.xlane.f32.xlu0 %v6300
        %v6302 = vpop.xlane.xlu0 %6301
        %v6303 = vsel %vm1249, %v6277, -inf
        %6304 = vmax.xlane.f32.xlu0 %v6303
        %v6305 = vpop.xlane.xlu0 %6304
        %v6306 = vsel %vm1249, %v6282, -inf
        %6307 = vmax.xlane.f32.xlu0 %v6306
        %v6308 = vpop.xlane.xlu0 %6307
        %v6309 = vsel %vm1249, %v6285, -inf
        %6310 = vmax.xlane.f32.xlu0 %v6309
        %v6311 = vpop.xlane.xlu0 %6310
        %v6312 = vsub.f32 %v6258, %v6290
        %v6313 = vsub.f32 %v6261, %v6293
        %v6314 = vsub.f32 %v6266, %v6296
        %v6315 = vsub.f32 %v6269, %v6299
        %v6316 = vsub.f32 %v6274, %v6302
        %v6317 = vsub.f32 %v6277, %v6305
        %v6318 = vsub.f32 %v6282, %v6308
        %v6319 = vsub.f32 %v6285, %v6311
        %v6320 = vmul.f32 %v6312, 1.442695
        %v6321 = vpow.pop %v6320
        %v6322 = vmul.f32 %v6313, 1.442695
        %v6323 = vpow.pop %v6322
        %v6324 = vmul.f32 %v6314, 1.442695
        %v6325 = vpow.pop %v6324
        %v6326 = vmul.f32 %v6315, 1.442695
        %v6327 = vpow.pop %v6326
        %v6328 = vmul.f32 %v6316, 1.442695
        %v6329 = vpow.pop %v6328
        %v6330 = vmul.f32 %v6317, 1.442695
        %v6331 = vpow.pop %v6330
        %v6332 = vmul.f32 %v6318, 1.442695
        %v6333 = vpow.pop %v6332
        %v6334 = vmul.f32 %v6319, 1.442695
        %v6335 = vpow.pop %v6334
        %v6336 = vsel %vm1249, %v6321, 0.0
        %6337 = vadd.xlane.f32.xlu0 %v6336
        %v6338 = vpop.xlane.xlu0 %6337
        %v6339 = vsel %vm1249, %v6323, 0.0
        %6340 = vadd.xlane.f32.xlu0 %v6339
        %v6341 = vpop.xlane.xlu0 %6340
        %v6342 = vsel %vm1249, %v6325, 0.0
        %6343 = vadd.xlane.f32.xlu0 %v6342
        %v6344 = vpop.xlane.xlu0 %6343
        %v6345 = vsel %vm1249, %v6327, 0.0
        %6346 = vadd.xlane.f32.xlu0 %v6345
        %v6347 = vpop.xlane.xlu0 %6346
        %v6348 = vsel %vm1249, %v6329, 0.0
        %6349 = vadd.xlane.f32.xlu0 %v6348
        %v6350 = vpop.xlane.xlu0 %6349
        %v6351 = vsel %vm1249, %v6331, 0.0
        %6352 = vadd.xlane.f32.xlu0 %v6351
        %v6353 = vpop.xlane.xlu0 %6352
        %v6354 = vsel %vm1249, %v6333, 0.0
        %6355 = vadd.xlane.f32.xlu0 %v6354
        %v6356 = vpop.xlane.xlu0 %6355
        %v6357 = vsel %vm1249, %v6335, 0.0
        %6358 = vadd.xlane.f32.xlu0 %v6357
        %v6359 = vpop.xlane.xlu0 %6358
        %v6360 = vrcp.pop %v6338
        %v6361 = vrcp.pop %v6341
        %v6362 = vrcp.pop %v6344
        %v6363 = vrcp.pop %v6347
        %v6364 = vrcp.pop %v6350
        %v6365 = vrcp.pop %v6353
        %v6366 = vrcp.pop %v6356
        %v6367 = vrcp.pop %v6359
        %v6368 = vmul.f32 %v6321, %v6360
        %v6369 = vmul.f32 %v6323, %v6361
        %v6370 = vmul.f32 %v6325, %v6362
        %v6371 = vmul.f32 %v6327, %v6363
        %v6372 = vmul.f32 %v6329, %v6364
        %v6373 = vmul.f32 %v6331, %v6365
        %v6374 = vmul.f32 %v6333, %v6366
        %v6375 = vmul.f32 %v6335, %v6367
        %v6376 = vmul.f32 %v6205, %v1391
        %v6377 = vmul.f32 %v6205, %v1395
        %v6378 = vmul.f32 %v6205, %v1399
        %v6379 = vmul.f32 %v6205, %v1403
        %v6380 = vmul.f32 %v6205, %v1407
        %v6381 = vmul.f32 %v6205, %v1411
        %v6382 = vmul.f32 %v6205, %v1415
        %v6383 = vmul.f32 %v6205, %v1419
        %v6384 = vpack.c.bf16 %v6368, %v6368
        %v6385 = vpack.c.bf16 %v6369, %v6369
        %v6386 = vpack.c.bf16 %v6370, %v6370
        %v6387 = vpack.c.bf16 %v6371, %v6371
        %v6388 = vpack.c.bf16 %v6372, %v6372
        %v6389 = vpack.c.bf16 %v6373, %v6373
        %v6390 = vpack.c.bf16 %v6374, %v6374
        %v6391 = vpack.c.bf16 %v6375, %v6375
        %v6392 = vpack.c.bf16 %v6376, %v6376
        %v6393 = vpack.c.bf16 %v6377, %v6377
        %v6394 = vpack.c.bf16 %v6378, %v6378
        %v6395 = vpack.c.bf16 %v6379, %v6379
        %v6396 = vpack.c.bf16 %v6380, %v6380
        %v6397 = vpack.c.bf16 %v6381, %v6381
        %v6398 = vpack.c.bf16 %v6382, %v6382
        %v6399 = vpack.c.bf16 %v6383, %v6383
        %v6401 = vsel %vm1249, %v6384, 0
        %v6404 = vsel %vm1455, %v6392, 0
        %6406 = vmatprep.subr.bf16.mxu0 0
        %6407 = vmatpush1.bf16.msra.mxu0 0
        %6408 = vmatprep.subr.bf16.mxu0 0
        %6409 = vmatpush1.bf16.msra.mxu0 0
        %6410 = vmatprep.subr.bf16.mxu0 0
        %6411 = vmatpush1.bf16.msra.mxu0 0
        %6412 = vmatprep.subr.bf16.mxu0 0
        %6413 = vmatpush1.bf16.msra.mxu0 0
        %6414 = vmatprep.subr.bf16.mxu0 0
        %6415 = vmatpush1.bf16.msra.mxu0 0
        %6416 = vmatprep.subr.bf16.mxu0 0
        %6417 = vmatpush1.bf16.msra.mxu0 0
        %6418 = vmatprep.subr.bf16.mxu0 0
        %6419 = vmatpush1.bf16.msra.mxu0 0
        %6420 = vmatprep.subr.bf16.mxu0 0
        %6421 = vmatpush1.bf16.msra.mxu0 %v6404
        %6422 = vmatprep.subr.bf16.mxu0 0
        %6423 = vmatpush2.bf16.msra.mxu0 0
        %6424 = vmatprep.subr.bf16.mxu0 0
        %6425 = vmatpush2.bf16.msra.mxu0 0
        %6426 = vmatprep.subr.bf16.mxu0 0
        %6427 = vmatpush2.bf16.msra.mxu0 0
        %6428 = vmatprep.subr.bf16.mxu0 0
        %6429 = vmatpush2.bf16.msra.mxu0 0
        %6430 = vmatprep.subr.bf16.mxu0 0
        %6431 = vmatpush2.bf16.msra.mxu0 0
        %6432 = vmatprep.subr.bf16.mxu0 0
        %6433 = vmatpush2.bf16.msra.mxu0 0
        %6434 = vmatprep.subr.bf16.mxu0 0
        %6435 = vmatpush2.bf16.msra.mxu0 0
        %6436 = vmatprep.subr.bf16.mxu0 0
        %6437 = vmatpush2.bf16.msra.mxu0 0
        %6438 = vmatprep.mubr.bf16.mxu0 0
        %6439 = vmatmul.mubr.bf16.gmra.mxu0 %v6401
        %v6440 = vpop.f32.mrf.mxu0
        %v6441 = vadd.f32 0.0, %v6440
        %v6442 = vpop.f32.mrf.mxu0
        %v6443 = vpop.f32.mrf.mxu0
        %v6444 = vpop.f32.mrf.mxu0
        %6445 = vdwg.mxu0
        %v6447 = vsel %vm1249, %v6385, 0
        %v6450 = vsel %vm1455, %v6393, 0
        %6452 = vmatprep.subr.bf16.mxu0 0
        %6453 = vmatpush1.bf16.msra.mxu0 0
        %6454 = vmatprep.subr.bf16.mxu0 0
        %6455 = vmatpush1.bf16.msra.mxu0 0
        %6456 = vmatprep.subr.bf16.mxu0 0
        %6457 = vmatpush1.bf16.msra.mxu0 0
        %6458 = vmatprep.subr.bf16.mxu0 0
        %6459 = vmatpush1.bf16.msra.mxu0 0
        %6460 = vmatprep.subr.bf16.mxu0 0
        %6461 = vmatpush1.bf16.msra.mxu0 0
        %6462 = vmatprep.subr.bf16.mxu0 0
        %6463 = vmatpush1.bf16.msra.mxu0 0
        %6464 = vmatprep.subr.bf16.mxu0 0
        %6465 = vmatpush1.bf16.msra.mxu0 0
        %6466 = vmatprep.subr.bf16.mxu0 0
        %6467 = vmatpush1.bf16.msra.mxu0 %v6450
        %6468 = vmatprep.subr.bf16.mxu0 0
        %6469 = vmatpush2.bf16.msra.mxu0 0
        %6470 = vmatprep.subr.bf16.mxu0 0
        %6471 = vmatpush2.bf16.msra.mxu0 0
        %6472 = vmatprep.subr.bf16.mxu0 0
        %6473 = vmatpush2.bf16.msra.mxu0 0
        %6474 = vmatprep.subr.bf16.mxu0 0
        %6475 = vmatpush2.bf16.msra.mxu0 0
        %6476 = vmatprep.subr.bf16.mxu0 0
        %6477 = vmatpush2.bf16.msra.mxu0 0
        %6478 = vmatprep.subr.bf16.mxu0 0
        %6479 = vmatpush2.bf16.msra.mxu0 0
        %6480 = vmatprep.subr.bf16.mxu0 0
        %6481 = vmatpush2.bf16.msra.mxu0 0
        %6482 = vmatprep.subr.bf16.mxu0 0
        %6483 = vmatpush2.bf16.msra.mxu0 0
        %6484 = vmatprep.mubr.bf16.mxu0 0
        %6485 = vmatmul.mubr.bf16.gmra.mxu0 %v6447
        %v6486 = vpop.f32.mrf.mxu0
        %v6487 = vadd.f32 0.0, %v6486
        %v6488 = vpop.f32.mrf.mxu0
        %v6489 = vpop.f32.mrf.mxu0
        %v6490 = vpop.f32.mrf.mxu0
        %6491 = vdwg.mxu0
        %v6493 = vsel %vm1249, %v6386, 0
        %v6496 = vsel %vm1455, %v6394, 0
        %6498 = vmatprep.subr.bf16.mxu0 0
        %6499 = vmatpush1.bf16.msra.mxu0 0
        %6500 = vmatprep.subr.bf16.mxu0 0
        %6501 = vmatpush1.bf16.msra.mxu0 0
        %6502 = vmatprep.subr.bf16.mxu0 0
        %6503 = vmatpush1.bf16.msra.mxu0 0
        %6504 = vmatprep.subr.bf16.mxu0 0
        %6505 = vmatpush1.bf16.msra.mxu0 0
        %6506 = vmatprep.subr.bf16.mxu0 0
        %6507 = vmatpush1.bf16.msra.mxu0 0
        %6508 = vmatprep.subr.bf16.mxu0 0
        %6509 = vmatpush1.bf16.msra.mxu0 0
        %6510 = vmatprep.subr.bf16.mxu0 0
        %6511 = vmatpush1.bf16.msra.mxu0 0
        %6512 = vmatprep.subr.bf16.mxu0 0
        %6513 = vmatpush1.bf16.msra.mxu0 %v6496
        %6514 = vmatprep.subr.bf16.mxu0 0
        %6515 = vmatpush2.bf16.msra.mxu0 0
        %6516 = vmatprep.subr.bf16.mxu0 0
        %6517 = vmatpush2.bf16.msra.mxu0 0
        %6518 = vmatprep.subr.bf16.mxu0 0
        %6519 = vmatpush2.bf16.msra.mxu0 0
        %6520 = vmatprep.subr.bf16.mxu0 0
        %6521 = vmatpush2.bf16.msra.mxu0 0
        %6522 = vmatprep.subr.bf16.mxu0 0
        %6523 = vmatpush2.bf16.msra.mxu0 0
        %6524 = vmatprep.subr.bf16.mxu0 0
        %6525 = vmatpush2.bf16.msra.mxu0 0
        %6526 = vmatprep.subr.bf16.mxu0 0
        %6527 = vmatpush2.bf16.msra.mxu0 0
        %6528 = vmatprep.subr.bf16.mxu0 0
        %6529 = vmatpush2.bf16.msra.mxu0 0
        %6530 = vmatprep.mubr.bf16.mxu0 0
        %6531 = vmatmul.mubr.bf16.gmra.mxu0 %v6493
        %v6532 = vpop.f32.mrf.mxu0
        %v6533 = vadd.f32 0.0, %v6532
        %v6534 = vpop.f32.mrf.mxu0
        %v6535 = vpop.f32.mrf.mxu0
        %v6536 = vpop.f32.mrf.mxu0
        %6537 = vdwg.mxu0
        %v6539 = vsel %vm1249, %v6387, 0
        %v6542 = vsel %vm1455, %v6395, 0
        %6544 = vmatprep.subr.bf16.mxu0 0
        %6545 = vmatpush1.bf16.msra.mxu0 0
        %6546 = vmatprep.subr.bf16.mxu0 0
        %6547 = vmatpush1.bf16.msra.mxu0 0
        %6548 = vmatprep.subr.bf16.mxu0 0
        %6549 = vmatpush1.bf16.msra.mxu0 0
        %6550 = vmatprep.subr.bf16.mxu0 0
        %6551 = vmatpush1.bf16.msra.mxu0 0
        %6552 = vmatprep.subr.bf16.mxu0 0
        %6553 = vmatpush1.bf16.msra.mxu0 0
        %6554 = vmatprep.subr.bf16.mxu0 0
        %6555 = vmatpush1.bf16.msra.mxu0 0
        %6556 = vmatprep.subr.bf16.mxu0 0
        %6557 = vmatpush1.bf16.msra.mxu0 0
        %6558 = vmatprep.subr.bf16.mxu0 0
        %6559 = vmatpush1.bf16.msra.mxu0 %v6542
        %6560 = vmatprep.subr.bf16.mxu0 0
        %6561 = vmatpush2.bf16.msra.mxu0 0
        %6562 = vmatprep.subr.bf16.mxu0 0
        %6563 = vmatpush2.bf16.msra.mxu0 0
        %6564 = vmatprep.subr.bf16.mxu0 0
        %6565 = vmatpush2.bf16.msra.mxu0 0
        %6566 = vmatprep.subr.bf16.mxu0 0
        %6567 = vmatpush2.bf16.msra.mxu0 0
        %6568 = vmatprep.subr.bf16.mxu0 0
        %6569 = vmatpush2.bf16.msra.mxu0 0
        %6570 = vmatprep.subr.bf16.mxu0 0
        %6571 = vmatpush2.bf16.msra.mxu0 0
        %6572 = vmatprep.subr.bf16.mxu0 0
        %6573 = vmatpush2.bf16.msra.mxu0 0
        %6574 = vmatprep.subr.bf16.mxu0 0
        %6575 = vmatpush2.bf16.msra.mxu0 0
        %6576 = vmatprep.mubr.bf16.mxu0 0
        %6577 = vmatmul.mubr.bf16.gmra.mxu0 %v6539
        %v6578 = vpop.f32.mrf.mxu0
        %v6579 = vadd.f32 0.0, %v6578
        %v6580 = vpop.f32.mrf.mxu0
        %v6581 = vpop.f32.mrf.mxu0
        %v6582 = vpop.f32.mrf.mxu0
        %6583 = vdwg.mxu0
        %v6585 = vsel %vm1249, %v6388, 0
        %v6588 = vsel %vm1455, %v6396, 0
        %6590 = vmatprep.subr.bf16.mxu0 0
        %6591 = vmatpush1.bf16.msra.mxu0 0
        %6592 = vmatprep.subr.bf16.mxu0 0
        %6593 = vmatpush1.bf16.msra.mxu0 0
        %6594 = vmatprep.subr.bf16.mxu0 0
        %6595 = vmatpush1.bf16.msra.mxu0 0
        %6596 = vmatprep.subr.bf16.mxu0 0
        %6597 = vmatpush1.bf16.msra.mxu0 0
        %6598 = vmatprep.subr.bf16.mxu0 0
        %6599 = vmatpush1.bf16.msra.mxu0 0
        %6600 = vmatprep.subr.bf16.mxu0 0
        %6601 = vmatpush1.bf16.msra.mxu0 0
        %6602 = vmatprep.subr.bf16.mxu0 0
        %6603 = vmatpush1.bf16.msra.mxu0 0
        %6604 = vmatprep.subr.bf16.mxu0 0
        %6605 = vmatpush1.bf16.msra.mxu0 %v6588
        %6606 = vmatprep.subr.bf16.mxu0 0
        %6607 = vmatpush2.bf16.msra.mxu0 0
        %6608 = vmatprep.subr.bf16.mxu0 0
        %6609 = vmatpush2.bf16.msra.mxu0 0
        %6610 = vmatprep.subr.bf16.mxu0 0
        %6611 = vmatpush2.bf16.msra.mxu0 0
        %6612 = vmatprep.subr.bf16.mxu0 0
        %6613 = vmatpush2.bf16.msra.mxu0 0
        %6614 = vmatprep.subr.bf16.mxu0 0
        %6615 = vmatpush2.bf16.msra.mxu0 0
        %6616 = vmatprep.subr.bf16.mxu0 0
        %6617 = vmatpush2.bf16.msra.mxu0 0
        %6618 = vmatprep.subr.bf16.mxu0 0
        %6619 = vmatpush2.bf16.msra.mxu0 0
        %6620 = vmatprep.subr.bf16.mxu0 0
        %6621 = vmatpush2.bf16.msra.mxu0 0
        %6622 = vmatprep.mubr.bf16.mxu0 0
        %6623 = vmatmul.mubr.bf16.gmra.mxu0 %v6585
        %v6624 = vpop.f32.mrf.mxu0
        %v6625 = vadd.f32 0.0, %v6624
        %v6626 = vpop.f32.mrf.mxu0
        %v6627 = vpop.f32.mrf.mxu0
        %v6628 = vpop.f32.mrf.mxu0
        %6629 = vdwg.mxu0
        %v6631 = vsel %vm1249, %v6389, 0
        %v6634 = vsel %vm1455, %v6397, 0
        %6636 = vmatprep.subr.bf16.mxu0 0
        %6637 = vmatpush1.bf16.msra.mxu0 0
        %6638 = vmatprep.subr.bf16.mxu0 0
        %6639 = vmatpush1.bf16.msra.mxu0 0
        %6640 = vmatprep.subr.bf16.mxu0 0
        %6641 = vmatpush1.bf16.msra.mxu0 0
        %6642 = vmatprep.subr.bf16.mxu0 0
        %6643 = vmatpush1.bf16.msra.mxu0 0
        %6644 = vmatprep.subr.bf16.mxu0 0
        %6645 = vmatpush1.bf16.msra.mxu0 0
        %6646 = vmatprep.subr.bf16.mxu0 0
        %6647 = vmatpush1.bf16.msra.mxu0 0
        %6648 = vmatprep.subr.bf16.mxu0 0
        %6649 = vmatpush1.bf16.msra.mxu0 0
        %6650 = vmatprep.subr.bf16.mxu0 0
        %6651 = vmatpush1.bf16.msra.mxu0 %v6634
        %6652 = vmatprep.subr.bf16.mxu0 0
        %6653 = vmatpush2.bf16.msra.mxu0 0
        %6654 = vmatprep.subr.bf16.mxu0 0
        %6655 = vmatpush2.bf16.msra.mxu0 0
        %6656 = vmatprep.subr.bf16.mxu0 0
        %6657 = vmatpush2.bf16.msra.mxu0 0
        %6658 = vmatprep.subr.bf16.mxu0 0
        %6659 = vmatpush2.bf16.msra.mxu0 0
        %6660 = vmatprep.subr.bf16.mxu0 0
        %6661 = vmatpush2.bf16.msra.mxu0 0
        %6662 = vmatprep.subr.bf16.mxu0 0
        %6663 = vmatpush2.bf16.msra.mxu0 0
        %6664 = vmatprep.subr.bf16.mxu0 0
        %6665 = vmatpush2.bf16.msra.mxu0 0
        %6666 = vmatprep.subr.bf16.mxu0 0
        %6667 = vmatpush2.bf16.msra.mxu0 0
        %6668 = vmatprep.mubr.bf16.mxu0 0
        %6669 = vmatmul.mubr.bf16.gmra.mxu0 %v6631
        %v6670 = vpop.f32.mrf.mxu0
        %v6671 = vadd.f32 0.0, %v6670
        %v6672 = vpop.f32.mrf.mxu0
        %v6673 = vpop.f32.mrf.mxu0
        %v6674 = vpop.f32.mrf.mxu0
        %6675 = vdwg.mxu0
        %v6677 = vsel %vm1249, %v6390, 0
        %v6680 = vsel %vm1455, %v6398, 0
        %6682 = vmatprep.subr.bf16.mxu0 0
        %6683 = vmatpush1.bf16.msra.mxu0 0
        %6684 = vmatprep.subr.bf16.mxu0 0
        %6685 = vmatpush1.bf16.msra.mxu0 0
        %6686 = vmatprep.subr.bf16.mxu0 0
        %6687 = vmatpush1.bf16.msra.mxu0 0
        %6688 = vmatprep.subr.bf16.mxu0 0
        %6689 = vmatpush1.bf16.msra.mxu0 0
        %6690 = vmatprep.subr.bf16.mxu0 0
        %6691 = vmatpush1.bf16.msra.mxu0 0
        %6692 = vmatprep.subr.bf16.mxu0 0
        %6693 = vmatpush1.bf16.msra.mxu0 0
        %6694 = vmatprep.subr.bf16.mxu0 0
        %6695 = vmatpush1.bf16.msra.mxu0 0
        %6696 = vmatprep.subr.bf16.mxu0 0
        %6697 = vmatpush1.bf16.msra.mxu0 %v6680
        %6698 = vmatprep.subr.bf16.mxu0 0
        %6699 = vmatpush2.bf16.msra.mxu0 0
        %6700 = vmatprep.subr.bf16.mxu0 0
        %6701 = vmatpush2.bf16.msra.mxu0 0
        %6702 = vmatprep.subr.bf16.mxu0 0
        %6703 = vmatpush2.bf16.msra.mxu0 0
        %6704 = vmatprep.subr.bf16.mxu0 0
        %6705 = vmatpush2.bf16.msra.mxu0 0
        %6706 = vmatprep.subr.bf16.mxu0 0
        %6707 = vmatpush2.bf16.msra.mxu0 0
        %6708 = vmatprep.subr.bf16.mxu0 0
        %6709 = vmatpush2.bf16.msra.mxu0 0
        %6710 = vmatprep.subr.bf16.mxu0 0
        %6711 = vmatpush2.bf16.msra.mxu0 0
        %6712 = vmatprep.subr.bf16.mxu0 0
        %6713 = vmatpush2.bf16.msra.mxu0 0
        %6714 = vmatprep.mubr.bf16.mxu0 0
        %6715 = vmatmul.mubr.bf16.gmra.mxu0 %v6677
        %v6716 = vpop.f32.mrf.mxu0
        %v6717 = vadd.f32 0.0, %v6716
        %v6718 = vpop.f32.mrf.mxu0
        %v6719 = vpop.f32.mrf.mxu0
        %v6720 = vpop.f32.mrf.mxu0
        %6721 = vdwg.mxu0
        %v6723 = vsel %vm1249, %v6391, 0
        %v6726 = vsel %vm1455, %v6399, 0
        %6728 = vmatprep.subr.bf16.mxu0 0
        %6729 = vmatpush1.bf16.msra.mxu0 0
        %6730 = vmatprep.subr.bf16.mxu0 0
        %6731 = vmatpush1.bf16.msra.mxu0 0
        %6732 = vmatprep.subr.bf16.mxu0 0
        %6733 = vmatpush1.bf16.msra.mxu0 0
        %6734 = vmatprep.subr.bf16.mxu0 0
        %6735 = vmatpush1.bf16.msra.mxu0 0
        %6736 = vmatprep.subr.bf16.mxu0 0
        %6737 = vmatpush1.bf16.msra.mxu0 0
        %6738 = vmatprep.subr.bf16.mxu0 0
        %6739 = vmatpush1.bf16.msra.mxu0 0
        %6740 = vmatprep.subr.bf16.mxu0 0
        %6741 = vmatpush1.bf16.msra.mxu0 0
        %6742 = vmatprep.subr.bf16.mxu0 0
        %6743 = vmatpush1.bf16.msra.mxu0 %v6726
        %6744 = vmatprep.subr.bf16.mxu0 0
        %6745 = vmatpush2.bf16.msra.mxu0 0
        %6746 = vmatprep.subr.bf16.mxu0 0
        %6747 = vmatpush2.bf16.msra.mxu0 0
        %6748 = vmatprep.subr.bf16.mxu0 0
        %6749 = vmatpush2.bf16.msra.mxu0 0
        %6750 = vmatprep.subr.bf16.mxu0 0
        %6751 = vmatpush2.bf16.msra.mxu0 0
        %6752 = vmatprep.subr.bf16.mxu0 0
        %6753 = vmatpush2.bf16.msra.mxu0 0
        %6754 = vmatprep.subr.bf16.mxu0 0
        %6755 = vmatpush2.bf16.msra.mxu0 0
        %6756 = vmatprep.subr.bf16.mxu0 0
        %6757 = vmatpush2.bf16.msra.mxu0 0
        %6758 = vmatprep.subr.bf16.mxu0 0
        %6759 = vmatpush2.bf16.msra.mxu0 0
        %6760 = vmatprep.mubr.bf16.mxu0 0
        %6761 = vmatmul.mubr.bf16.gmra.mxu0 %v6723
        %v6762 = vpop.f32.mrf.mxu0
        %v6763 = vadd.f32 0.0, %v6762
        %v6764 = vpop.f32.mrf.mxu0
        %v6765 = vpop.f32.mrf.mxu0
        %v6766 = vpop.f32.mrf.mxu0
        %6767 = vdwg.mxu0
        %v6768 = vadd.f32 %v6441, %v6487
        %v6769 = vadd.f32 %v6768, %v6533
        %v6770 = vadd.f32 %v6769, %v6579
        %v6771 = vadd.f32 %v6770, %v6625
        %v6772 = vadd.f32 %v6771, %v6671
        %v6773 = vadd.f32 %v6772, %v6717
        %v6774 = vadd.f32 %v6773, %v6763
        %s6775 = scalar_lea.vmem %s7, 192
        %v6776 = vld [vmem:[%s6775] sm:$0xf]
        %v6777 = vld [vmem:[%s6775 + $0x4] sm:$0xf]
        %v6778 = vld [vmem:[%s6775 + $0x8] sm:$0xf]
        %v6779 = vld [vmem:[%s6775 + $0xc] sm:$0xf]
        %v6780 = vld [vmem:[%s6775 + $0x10] sm:$0xf]
        %v6781 = vld [vmem:[%s6775 + $0x14] sm:$0xf]
        %v6782 = vld [vmem:[%s6775 + $0x18] sm:$0xf]
        %v6783 = vld [vmem:[%s6775 + $0x1c] sm:$0xf]
        %v6784 = vld [vmem:[%s6775 + $0x20] sm:$0xf]
        %v6785 = vld [vmem:[%s6775 + $0x24] sm:$0xf]
        %v6786 = vld [vmem:[%s6775 + $0x28] sm:$0xf]
        %v6787 = vld [vmem:[%s6775 + $0x2c] sm:$0xf]
        %v6788 = vld [vmem:[%s6775 + $0x30] sm:$0xf]
        %v6789 = vld [vmem:[%s6775 + $0x34] sm:$0xf]
        %v6790 = vld [vmem:[%s6775 + $0x38] sm:$0xf]
        %v6791 = vld [vmem:[%s6775 + $0x3c] sm:$0xf]
        %v6792 = vpack.c.bf16 %v6774, %v6774
        %s6793 = scalar_lea.vmem %s8, 3
        %v6794 = vld [vmem:[%s6793] sm:$0x1]
        %v6796 = vlaneseq
        %v6797 = vshrl.u32 %v6796, 7
        %v6798 = vsub.s32 0, %v6797
        %v6799 = vrot.slane %v6794, %v6798
        %v6817 = vunpack.c.l.b16 %v6776
        %v6818 = vunpack.c.l.b16 %v6777
        %v6819 = vunpack.c.l.b16 %v6778
        %v6820 = vunpack.c.l.b16 %v6779
        %v6821 = vunpack.c.l.b16 %v6780
        %v6822 = vunpack.c.l.b16 %v6781
        %v6823 = vunpack.c.l.b16 %v6782
        %v6824 = vunpack.c.l.b16 %v6783
        %v6825 = vunpack.c.l.b16 %v6784
        %v6826 = vunpack.c.l.b16 %v6785
        %v6827 = vunpack.c.l.b16 %v6786
        %v6828 = vunpack.c.l.b16 %v6787
        %v6829 = vunpack.c.l.b16 %v6788
        %v6830 = vunpack.c.l.b16 %v6789
        %v6831 = vunpack.c.l.b16 %v6790
        %v6832 = vunpack.c.l.b16 %v6791
        %v6833 = vpack.c.b16 %v6818, %v6817
        %v6834 = vpack.c.b16 %v6820, %v6819
        %v6835 = vpack.c.b16 %v6822, %v6821
        %v6836 = vpack.c.b16 %v6824, %v6823
        %v6837 = vpack.c.b16 %v6826, %v6825
        %v6838 = vpack.c.b16 %v6828, %v6827
        %v6839 = vpack.c.b16 %v6830, %v6829
        %v6840 = vpack.c.b16 %v6832, %v6831
        %6849 = vmatprep.subr.bf16.mxu0 0
        %6850 = vmatpush1.bf16.msra.mxu0 %v6840
        %6851 = vmatprep.subr.bf16.mxu0 0
        %6852 = vmatpush1.bf16.msra.mxu0 %v6839
        %6853 = vmatprep.subr.bf16.mxu0 0
        %6854 = vmatpush1.bf16.msra.mxu0 %v6838
        %6855 = vmatprep.subr.bf16.mxu0 0
        %6856 = vmatpush1.bf16.msra.mxu0 %v6837
        %6857 = vmatprep.subr.bf16.mxu0 0
        %6858 = vmatpush1.bf16.msra.mxu0 %v6836
        %6859 = vmatprep.subr.bf16.mxu0 0
        %6860 = vmatpush1.bf16.msra.mxu0 %v6835
        %6861 = vmatprep.subr.bf16.mxu0 0
        %6862 = vmatpush1.bf16.msra.mxu0 %v6834
        %6863 = vmatprep.subr.bf16.mxu0 0
        %6864 = vmatpush1.bf16.msra.mxu0 %v6833
        %6865 = vmatprep.subr.bf16.mxu0 0
        %6866 = vmatpush2.bf16.msra.mxu0 0
        %6867 = vmatprep.subr.bf16.mxu0 0
        %6868 = vmatpush2.bf16.msra.mxu0 0
        %6869 = vmatprep.subr.bf16.mxu0 0
        %6870 = vmatpush2.bf16.msra.mxu0 0
        %6871 = vmatprep.subr.bf16.mxu0 0
        %6872 = vmatpush2.bf16.msra.mxu0 0
        %6873 = vmatprep.subr.bf16.mxu0 0
        %6874 = vmatpush2.bf16.msra.mxu0 0
        %6875 = vmatprep.subr.bf16.mxu0 0
        %6876 = vmatpush2.bf16.msra.mxu0 0
        %6877 = vmatprep.subr.bf16.mxu0 0
        %6878 = vmatpush2.bf16.msra.mxu0 0
        %6879 = vmatprep.subr.bf16.mxu0 0
        %6880 = vmatpush2.bf16.msra.mxu0 0
        %6881 = vmatprep.mubr.bf16.mxu0 0
        %6882 = vmatmul.mubr.bf16.gmra.mxu0 %v6792
        %v6883 = vpop.f32.mrf.mxu0
        %v6884 = vadd.f32 %v6799, %v6883
        %v6885 = vpop.f32.mrf.mxu0
        %v6886 = vpop.f32.mrf.mxu0
        %v6887 = vpop.f32.mrf.mxu0
        %6888 = vdwg.mxu0
        %v6889 = vadd.f32 %v5948, %v6884
        %s6890 = scalar_lea.vmem %s13, 3
        %v6891 = vld [vmem:[%s6890] sm:$0x1]
        %s6892 = scalar_lea.vmem %s14, 3
        %v6893 = vld [vmem:[%s6892] sm:$0x1]
        %6894 = vadd.xlane.f32.xlu0 %v6889
        %v6895 = vpop.xlane.xlu0 %6894
        %v6896 = vmul.f32 %v6895, %v1945
        %v6897 = vsub.f32 %v6889, %v6896
        %v6898 = vmul.f32 %v6897, %v6897
        %6899 = vadd.xlane.f32.xlu0 %v6898
        %v6900 = vpop.xlane.xlu0 %6899
        %v6901 = vmul.f32 %v6900, %v1945
        %v6902 = vadd.f32 %v6901, 1e-05
        %v6903 = vrsqrt.pop %v6902
        %v6904 = vmul.f32 %v6897, %v6903
        %v6906 = vlaneseq
        %v6907 = vshrl.u32 %v6906, 7
        %v6908 = vsub.s32 0, %v6907
        %v6909 = vrot.slane %v6891, %v6908
        %v6911 = vmul.f32 %v6904, %v6909
        %v6913 = vlaneseq
        %v6914 = vshrl.u32 %v6913, 7
        %v6915 = vsub.s32 0, %v6914
        %v6916 = vrot.slane %v6893, %v6915
        %v6918 = vadd.f32 %v6911, %v6916
        %s6919 = scalar_lea.vmem %s9, 768
        %v6920 = vld [vmem:[%s6919] sm:$0xff]
        %v6921 = vld [vmem:[%s6919 + $0x8] sm:$0xff]
        %v6922 = vld [vmem:[%s6919 + $0x10] sm:$0xff]
        %v6923 = vld [vmem:[%s6919 + $0x18] sm:$0xff]
        %v6924 = vld [vmem:[%s6919 + $0x20] sm:$0xff]
        %v6925 = vld [vmem:[%s6919 + $0x28] sm:$0xff]
        %v6926 = vld [vmem:[%s6919 + $0x30] sm:$0xff]
        %v6927 = vld [vmem:[%s6919 + $0x38] sm:$0xff]
        %v6928 = vld [vmem:[%s6919 + $0x40] sm:$0xff]
        %v6929 = vld [vmem:[%s6919 + $0x48] sm:$0xff]
        %v6930 = vld [vmem:[%s6919 + $0x50] sm:$0xff]
        %v6931 = vld [vmem:[%s6919 + $0x58] sm:$0xff]
        %v6932 = vld [vmem:[%s6919 + $0x60] sm:$0xff]
        %v6933 = vld [vmem:[%s6919 + $0x68] sm:$0xff]
        %v6934 = vld [vmem:[%s6919 + $0x70] sm:$0xff]
        %v6935 = vld [vmem:[%s6919 + $0x78] sm:$0xff]
        %v6936 = vld [vmem:[%s6919 + $0x80] sm:$0xff]
        %v6937 = vld [vmem:[%s6919 + $0x88] sm:$0xff]
        %v6938 = vld [vmem:[%s6919 + $0x90] sm:$0xff]
        %v6939 = vld [vmem:[%s6919 + $0x98] sm:$0xff]
        %v6940 = vld [vmem:[%s6919 + $0xa0] sm:$0xff]
        %v6941 = vld [vmem:[%s6919 + $0xa8] sm:$0xff]
        %v6942 = vld [vmem:[%s6919 + $0xb0] sm:$0xff]
        %v6943 = vld [vmem:[%s6919 + $0xb8] sm:$0xff]
        %v6944 = vld [vmem:[%s6919 + $0xc0] sm:$0xff]
        %v6945 = vld [vmem:[%s6919 + $0xc8] sm:$0xff]
        %v6946 = vld [vmem:[%s6919 + $0xd0] sm:$0xff]
        %v6947 = vld [vmem:[%s6919 + $0xd8] sm:$0xff]
        %v6948 = vld [vmem:[%s6919 + $0xe0] sm:$0xff]
        %v6949 = vld [vmem:[%s6919 + $0xe8] sm:$0xff]
        %v6950 = vld [vmem:[%s6919 + $0xf0] sm:$0xff]
        %v6951 = vld [vmem:[%s6919 + $0xf8] sm:$0xff]
        %v6952 = vpack.c.bf16 %v6918, %v6918
        %s6953 = scalar_lea.vmem %s10, 12
        %v6954 = vld [vmem:[%s6953] sm:$0xf]
        %v6956 = vlaneseq
        %v6957 = vshrl.u32 %v6956, 7
        %v6958 = vsub.s32 0, %v6957
        %v6959 = vrot.slane %v6954, %v6958
        %v6960 = vlaneseq
        %v6961 = vshrl.u32 %v6960, 7
        %v6962 = vsub.s32 1, %v6961
        %v6963 = vrot.slane %v6954, %v6962
        %v6964 = vlaneseq
        %v6965 = vshrl.u32 %v6964, 7
        %v6966 = vsub.s32 2, %v6965
        %v6967 = vrot.slane %v6954, %v6966
        %v6968 = vlaneseq
        %v6969 = vshrl.u32 %v6968, 7
        %v6970 = vsub.s32 3, %v6969
        %v6971 = vrot.slane %v6954, %v6970
        %v7008 = vunpack.c.l.b16 %v6920
        %v7009 = vunpack.c.h.b16 %v6920
        %v7010 = vunpack.c.l.b16 %v6921
        %v7011 = vunpack.c.h.b16 %v6921
        %v7012 = vunpack.c.l.b16 %v6922
        %v7013 = vunpack.c.h.b16 %v6922
        %v7014 = vunpack.c.l.b16 %v6923
        %v7015 = vunpack.c.h.b16 %v6923
        %v7016 = vunpack.c.l.b16 %v6924
        %v7017 = vunpack.c.h.b16 %v6924
        %v7018 = vunpack.c.l.b16 %v6925
        %v7019 = vunpack.c.h.b16 %v6925
        %v7020 = vunpack.c.l.b16 %v6926
        %v7021 = vunpack.c.h.b16 %v6926
        %v7022 = vunpack.c.l.b16 %v6927
        %v7023 = vunpack.c.h.b16 %v6927
        %v7024 = vunpack.c.l.b16 %v6928
        %v7025 = vunpack.c.h.b16 %v6928
        %v7026 = vunpack.c.l.b16 %v6929
        %v7027 = vunpack.c.h.b16 %v6929
        %v7028 = vunpack.c.l.b16 %v6930
        %v7029 = vunpack.c.h.b16 %v6930
        %v7030 = vunpack.c.l.b16 %v6931
        %v7031 = vunpack.c.h.b16 %v6931
        %v7032 = vunpack.c.l.b16 %v6932
        %v7033 = vunpack.c.h.b16 %v6932
        %v7034 = vunpack.c.l.b16 %v6933
        %v7035 = vunpack.c.h.b16 %v6933
        %v7036 = vunpack.c.l.b16 %v6934
        %v7037 = vunpack.c.h.b16 %v6934
        %v7038 = vunpack.c.l.b16 %v6935
        %v7039 = vunpack.c.h.b16 %v6935
        %v7040 = vunpack.c.l.b16 %v6936
        %v7041 = vunpack.c.h.b16 %v6936
        %v7042 = vunpack.c.l.b16 %v6937
        %v7043 = vunpack.c.h.b16 %v6937
        %v7044 = vunpack.c.l.b16 %v6938
        %v7045 = vunpack.c.h.b16 %v6938
        %v7046 = vunpack.c.l.b16 %v6939
        %v7047 = vunpack.c.h.b16 %v6939
        %v7048 = vunpack.c.l.b16 %v6940
        %v7049 = vunpack.c.h.b16 %v6940
        %v7050 = vunpack.c.l.b16 %v6941
        %v7051 = vunpack.c.h.b16 %v6941
        %v7052 = vunpack.c.l.b16 %v6942
        %v7053 = vunpack.c.h.b16 %v6942
        %v7054 = vunpack.c.l.b16 %v6943
        %v7055 = vunpack.c.h.b16 %v6943
        %v7056 = vunpack.c.l.b16 %v6944
        %v7057 = vunpack.c.h.b16 %v6944
        %v7058 = vunpack.c.l.b16 %v6945
        %v7059 = vunpack.c.h.b16 %v6945
        %v7060 = vunpack.c.l.b16 %v6946
        %v7061 = vunpack.c.h.b16 %v6946
        %v7062 = vunpack.c.l.b16 %v6947
        %v7063 = vunpack.c.h.b16 %v6947
        %v7064 = vunpack.c.l.b16 %v6948
        %v7065 = vunpack.c.h.b16 %v6948
        %v7066 = vunpack.c.l.b16 %v6949
        %v7067 = vunpack.c.h.b16 %v6949
        %v7068 = vunpack.c.l.b16 %v6950
        %v7069 = vunpack.c.h.b16 %v6950
        %v7070 = vunpack.c.l.b16 %v6951
        %v7071 = vunpack.c.h.b16 %v6951
        %v7072 = vpack.c.b16 %v7012, %v7008
        %v7073 = vpack.c.b16 %v7013, %v7009
        %v7074 = vpack.c.b16 %v7014, %v7010
        %v7075 = vpack.c.b16 %v7015, %v7011
        %v7076 = vpack.c.b16 %v7020, %v7016
        %v7077 = vpack.c.b16 %v7021, %v7017
        %v7078 = vpack.c.b16 %v7022, %v7018
        %v7079 = vpack.c.b16 %v7023, %v7019
        %v7080 = vpack.c.b16 %v7028, %v7024
        %v7081 = vpack.c.b16 %v7029, %v7025
        %v7082 = vpack.c.b16 %v7030, %v7026
        %v7083 = vpack.c.b16 %v7031, %v7027
        %v7084 = vpack.c.b16 %v7036, %v7032
        %v7085 = vpack.c.b16 %v7037, %v7033
        %v7086 = vpack.c.b16 %v7038, %v7034
        %v7087 = vpack.c.b16 %v7039, %v7035
        %v7088 = vpack.c.b16 %v7044, %v7040
        %v7089 = vpack.c.b16 %v7045, %v7041
        %v7090 = vpack.c.b16 %v7046, %v7042
        %v7091 = vpack.c.b16 %v7047, %v7043
        %v7092 = vpack.c.b16 %v7052, %v7048
        %v7093 = vpack.c.b16 %v7053, %v7049
        %v7094 = vpack.c.b16 %v7054, %v7050
        %v7095 = vpack.c.b16 %v7055, %v7051
        %v7096 = vpack.c.b16 %v7060, %v7056
        %v7097 = vpack.c.b16 %v7061, %v7057
        %v7098 = vpack.c.b16 %v7062, %v7058
        %v7099 = vpack.c.b16 %v7063, %v7059
        %v7100 = vpack.c.b16 %v7068, %v7064
        %v7101 = vpack.c.b16 %v7069, %v7065
        %v7102 = vpack.c.b16 %v7070, %v7066
        %v7103 = vpack.c.b16 %v7071, %v7067
        %7136 = vmatprep.subr.bf16.mxu0 %v7101
        %7137 = vmatpush1.bf16.msra.mxu0 %v7100
        %7138 = vmatprep.subr.bf16.mxu0 %v7097
        %7139 = vmatpush1.bf16.msra.mxu0 %v7096
        %7140 = vmatprep.subr.bf16.mxu0 %v7093
        %7141 = vmatpush1.bf16.msra.mxu0 %v7092
        %7142 = vmatprep.subr.bf16.mxu0 %v7089
        %7143 = vmatpush1.bf16.msra.mxu0 %v7088
        %7144 = vmatprep.subr.bf16.mxu0 %v7085
        %7145 = vmatpush1.bf16.msra.mxu0 %v7084
        %7146 = vmatprep.subr.bf16.mxu0 %v7081
        %7147 = vmatpush1.bf16.msra.mxu0 %v7080
        %7148 = vmatprep.subr.bf16.mxu0 %v7077
        %7149 = vmatpush1.bf16.msra.mxu0 %v7076
        %7150 = vmatprep.subr.bf16.mxu0 %v7073
        %7151 = vmatpush1.bf16.msra.mxu0 %v7072
        %7152 = vmatprep.subr.bf16.mxu0 0
        %7153 = vmatpush2.bf16.msra.mxu0 0
        %7154 = vmatprep.subr.bf16.mxu0 0
        %7155 = vmatpush2.bf16.msra.mxu0 0
        %7156 = vmatprep.subr.bf16.mxu0 0
        %7157 = vmatpush2.bf16.msra.mxu0 0
        %7158 = vmatprep.subr.bf16.mxu0 0
        %7159 = vmatpush2.bf16.msra.mxu0 0
        %7160 = vmatprep.subr.bf16.mxu0 0
        %7161 = vmatpush2.bf16.msra.mxu0 0
        %7162 = vmatprep.subr.bf16.mxu0 0
        %7163 = vmatpush2.bf16.msra.mxu0 0
        %7164 = vmatprep.subr.bf16.mxu0 0
        %7165 = vmatpush2.bf16.msra.mxu0 0
        %7166 = vmatprep.subr.bf16.mxu0 0
        %7167 = vmatpush2.bf16.msra.mxu0 0
        %7168 = vmatprep.mubr.bf16.mxu0 0
        %7169 = vmatmul.mubr.bf16.gmra.mxu0 %v6952
        %v7170 = vpop.f32.mrf.mxu0
        %v7171 = vadd.f32 %v6959, %v7170
        %v7172 = vpop.f32.mrf.mxu0
        %v7173 = vadd.f32 %v6963, %v7172
        %v7174 = vpop.f32.mrf.mxu0
        %v7175 = vpop.f32.mrf.mxu0
        %7176 = vdwg.mxu0
        %7177 = vmatprep.subr.bf16.mxu0 %v7103
        %7178 = vmatpush1.bf16.msra.mxu0 %v7102
        %7179 = vmatprep.subr.bf16.mxu0 %v7099
        %7180 = vmatpush1.bf16.msra.mxu0 %v7098
        %7181 = vmatprep.subr.bf16.mxu0 %v7095
        %7182 = vmatpush1.bf16.msra.mxu0 %v7094
        %7183 = vmatprep.subr.bf16.mxu0 %v7091
        %7184 = vmatpush1.bf16.msra.mxu0 %v7090
        %7185 = vmatprep.subr.bf16.mxu0 %v7087
        %7186 = vmatpush1.bf16.msra.mxu0 %v7086
        %7187 = vmatprep.subr.bf16.mxu0 %v7083
        %7188 = vmatpush1.bf16.msra.mxu0 %v7082
        %7189 = vmatprep.subr.bf16.mxu0 %v7079
        %7190 = vmatpush1.bf16.msra.mxu0 %v7078
        %7191 = vmatprep.subr.bf16.mxu0 %v7075
        %7192 = vmatpush1.bf16.msra.mxu0 %v7074
        %7193 = vmatprep.subr.bf16.mxu0 0
        %7194 = vmatpush2.bf16.msra.mxu0 0
        %7195 = vmatprep.subr.bf16.mxu0 0
        %7196 = vmatpush2.bf16.msra.mxu0 0
        %7197 = vmatprep.subr.bf16.mxu0 0
        %7198 = vmatpush2.bf16.msra.mxu0 0
        %7199 = vmatprep.subr.bf16.mxu0 0
        %7200 = vmatpush2.bf16.msra.mxu0 0
        %7201 = vmatprep.subr.bf16.mxu0 0
        %7202 = vmatpush2.bf16.msra.mxu0 0
        %7203 = vmatprep.subr.bf16.mxu0 0
        %7204 = vmatpush2.bf16.msra.mxu0 0
        %7205 = vmatprep.subr.bf16.mxu0 0
        %7206 = vmatpush2.bf16.msra.mxu0 0
        %7207 = vmatprep.subr.bf16.mxu0 0
        %7208 = vmatpush2.bf16.msra.mxu0 0
        %7209 = vmatprep.mubr.bf16.mxu0 0
        %7210 = vmatmul.mubr.bf16.gmra.mxu0 %v6952
        %v7211 = vpop.f32.mrf.mxu0
        %v7212 = vadd.f32 %v6967, %v7211
        %v7213 = vpop.f32.mrf.mxu0
        %v7214 = vadd.f32 %v6971, %v7213
        %v7215 = vpop.f32.mrf.mxu0
        %v7216 = vpop.f32.mrf.mxu0
        %7217 = vdwg.mxu0
        %v7218 = vmax.f32 %v7171, 0.0
        %v7219 = vmax.f32 %v7173, 0.0
        %v7220 = vmax.f32 %v7212, 0.0
        %v7221 = vmax.f32 %v7214, 0.0
        %s7222 = scalar_lea.vmem %s11, 768
        %v7223 = vld [vmem:[%s7222] sm:$0xf]
        %v7224 = vld [vmem:[%s7222 + $0x4] sm:$0xf]
        %v7225 = vld [vmem:[%s7222 + $0x8] sm:$0xf]
        %v7226 = vld [vmem:[%s7222 + $0xc] sm:$0xf]
        %v7227 = vld [vmem:[%s7222 + $0x10] sm:$0xf]
        %v7228 = vld [vmem:[%s7222 + $0x14] sm:$0xf]
        %v7229 = vld [vmem:[%s7222 + $0x18] sm:$0xf]
        %v7230 = vld [vmem:[%s7222 + $0x1c] sm:$0xf]
        %v7231 = vld [vmem:[%s7222 + $0x20] sm:$0xf]
        %v7232 = vld [vmem:[%s7222 + $0x24] sm:$0xf]
        %v7233 = vld [vmem:[%s7222 + $0x28] sm:$0xf]
        %v7234 = vld [vmem:[%s7222 + $0x2c] sm:$0xf]
        %v7235 = vld [vmem:[%s7222 + $0x30] sm:$0xf]
        %v7236 = vld [vmem:[%s7222 + $0x34] sm:$0xf]
        %v7237 = vld [vmem:[%s7222 + $0x38] sm:$0xf]
        %v7238 = vld [vmem:[%s7222 + $0x3c] sm:$0xf]
        %v7239 = vld [vmem:[%s7222 + $0x40] sm:$0xf]
        %v7240 = vld [vmem:[%s7222 + $0x44] sm:$0xf]
        %v7241 = vld [vmem:[%s7222 + $0x48] sm:$0xf]
        %v7242 = vld [vmem:[%s7222 + $0x4c] sm:$0xf]
        %v7243 = vld [vmem:[%s7222 + $0x50] sm:$0xf]
        %v7244 = vld [vmem:[%s7222 + $0x54] sm:$0xf]
        %v7245 = vld [vmem:[%s7222 + $0x58] sm:$0xf]
        %v7246 = vld [vmem:[%s7222 + $0x5c] sm:$0xf]
        %v7247 = vld [vmem:[%s7222 + $0x60] sm:$0xf]
        %v7248 = vld [vmem:[%s7222 + $0x64] sm:$0xf]
        %v7249 = vld [vmem:[%s7222 + $0x68] sm:$0xf]
        %v7250 = vld [vmem:[%s7222 + $0x6c] sm:$0xf]
        %v7251 = vld [vmem:[%s7222 + $0x70] sm:$0xf]
        %v7252 = vld [vmem:[%s7222 + $0x74] sm:$0xf]
        %v7253 = vld [vmem:[%s7222 + $0x78] sm:$0xf]
        %v7254 = vld [vmem:[%s7222 + $0x7c] sm:$0xf]
        %v7255 = vld [vmem:[%s7222 + $0x80] sm:$0xf]
        %v7256 = vld [vmem:[%s7222 + $0x84] sm:$0xf]
        %v7257 = vld [vmem:[%s7222 + $0x88] sm:$0xf]
        %v7258 = vld [vmem:[%s7222 + $0x8c] sm:$0xf]
        %v7259 = vld [vmem:[%s7222 + $0x90] sm:$0xf]
        %v7260 = vld [vmem:[%s7222 + $0x94] sm:$0xf]
        %v7261 = vld [vmem:[%s7222 + $0x98] sm:$0xf]
        %v7262 = vld [vmem:[%s7222 + $0x9c] sm:$0xf]
        %v7263 = vld [vmem:[%s7222 + $0xa0] sm:$0xf]
        %v7264 = vld [vmem:[%s7222 + $0xa4] sm:$0xf]
        %v7265 = vld [vmem:[%s7222 + $0xa8] sm:$0xf]
        %v7266 = vld [vmem:[%s7222 + $0xac] sm:$0xf]
        %v7267 = vld [vmem:[%s7222 + $0xb0] sm:$0xf]
        %v7268 = vld [vmem:[%s7222 + $0xb4] sm:$0xf]
        %v7269 = vld [vmem:[%s7222 + $0xb8] sm:$0xf]
        %v7270 = vld [vmem:[%s7222 + $0xbc] sm:$0xf]
        %v7271 = vld [vmem:[%s7222 + $0xc0] sm:$0xf]
        %v7272 = vld [vmem:[%s7222 + $0xc4] sm:$0xf]
        %v7273 = vld [vmem:[%s7222 + $0xc8] sm:$0xf]
        %v7274 = vld [vmem:[%s7222 + $0xcc] sm:$0xf]
        %v7275 = vld [vmem:[%s7222 + $0xd0] sm:$0xf]
        %v7276 = vld [vmem:[%s7222 + $0xd4] sm:$0xf]
        %v7277 = vld [vmem:[%s7222 + $0xd8] sm:$0xf]
        %v7278 = vld [vmem:[%s7222 + $0xdc] sm:$0xf]
        %v7279 = vld [vmem:[%s7222 + $0xe0] sm:$0xf]
        %v7280 = vld [vmem:[%s7222 + $0xe4] sm:$0xf]
        %v7281 = vld [vmem:[%s7222 + $0xe8] sm:$0xf]
        %v7282 = vld [vmem:[%s7222 + $0xec] sm:$0xf]
        %v7283 = vld [vmem:[%s7222 + $0xf0] sm:$0xf]
        %v7284 = vld [vmem:[%s7222 + $0xf4] sm:$0xf]
        %v7285 = vld [vmem:[%s7222 + $0xf8] sm:$0xf]
        %v7286 = vld [vmem:[%s7222 + $0xfc] sm:$0xf]
        %v7287 = vpack.c.bf16 %v7218, %v7218
        %v7288 = vpack.c.bf16 %v7219, %v7219
        %v7289 = vpack.c.bf16 %v7220, %v7220
        %v7290 = vpack.c.bf16 %v7221, %v7221
        %s7291 = scalar_lea.vmem %s12, 3
        %v7292 = vld [vmem:[%s7291] sm:$0x1]
        %v7294 = vlaneseq
        %v7295 = vshrl.u32 %v7294, 7
        %v7296 = vsub.s32 0, %v7295
        %v7297 = vrot.slane %v7292, %v7296
        %v7363 = vunpack.c.l.b16 %v7223
        %v7364 = vunpack.c.l.b16 %v7224
        %v7365 = vunpack.c.l.b16 %v7225
        %v7366 = vunpack.c.l.b16 %v7226
        %v7367 = vunpack.c.l.b16 %v7227
        %v7368 = vunpack.c.l.b16 %v7228
        %v7369 = vunpack.c.l.b16 %v7229
        %v7370 = vunpack.c.l.b16 %v7230
        %v7371 = vunpack.c.l.b16 %v7231
        %v7372 = vunpack.c.l.b16 %v7232
        %v7373 = vunpack.c.l.b16 %v7233
        %v7374 = vunpack.c.l.b16 %v7234
        %v7375 = vunpack.c.l.b16 %v7235
        %v7376 = vunpack.c.l.b16 %v7236
        %v7377 = vunpack.c.l.b16 %v7237
        %v7378 = vunpack.c.l.b16 %v7238
        %v7379 = vunpack.c.l.b16 %v7239
        %v7380 = vunpack.c.l.b16 %v7240
        %v7381 = vunpack.c.l.b16 %v7241
        %v7382 = vunpack.c.l.b16 %v7242
        %v7383 = vunpack.c.l.b16 %v7243
        %v7384 = vunpack.c.l.b16 %v7244
        %v7385 = vunpack.c.l.b16 %v7245
        %v7386 = vunpack.c.l.b16 %v7246
        %v7387 = vunpack.c.l.b16 %v7247
        %v7388 = vunpack.c.l.b16 %v7248
        %v7389 = vunpack.c.l.b16 %v7249
        %v7390 = vunpack.c.l.b16 %v7250
        %v7391 = vunpack.c.l.b16 %v7251
        %v7392 = vunpack.c.l.b16 %v7252
        %v7393 = vunpack.c.l.b16 %v7253
        %v7394 = vunpack.c.l.b16 %v7254
        %v7395 = vunpack.c.l.b16 %v7255
        %v7396 = vunpack.c.l.b16 %v7256
        %v7397 = vunpack.c.l.b16 %v7257
        %v7398 = vunpack.c.l.b16 %v7258
        %v7399 = vunpack.c.l.b16 %v7259
        %v7400 = vunpack.c.l.b16 %v7260
        %v7401 = vunpack.c.l.b16 %v7261
        %v7402 = vunpack.c.l.b16 %v7262
        %v7403 = vunpack.c.l.b16 %v7263
        %v7404 = vunpack.c.l.b16 %v7264
        %v7405 = vunpack.c.l.b16 %v7265
        %v7406 = vunpack.c.l.b16 %v7266
        %v7407 = vunpack.c.l.b16 %v7267
        %v7408 = vunpack.c.l.b16 %v7268
        %v7409 = vunpack.c.l.b16 %v7269
        %v7410 = vunpack.c.l.b16 %v7270
        %v7411 = vunpack.c.l.b16 %v7271
        %v7412 = vunpack.c.l.b16 %v7272
        %v7413 = vunpack.c.l.b16 %v7273
        %v7414 = vunpack.c.l.b16 %v7274
        %v7415 = vunpack.c.l.b16 %v7275
        %v7416 = vunpack.c.l.b16 %v7276
        %v7417 = vunpack.c.l.b16 %v7277
        %v7418 = vunpack.c.l.b16 %v7278
        %v7419 = vunpack.c.l.b16 %v7279
        %v7420 = vunpack.c.l.b16 %v7280
        %v7421 = vunpack.c.l.b16 %v7281
        %v7422 = vunpack.c.l.b16 %v7282
        %v7423 = vunpack.c.l.b16 %v7283
        %v7424 = vunpack.c.l.b16 %v7284
        %v7425 = vunpack.c.l.b16 %v7285
        %v7426 = vunpack.c.l.b16 %v7286
        %v7427 = vpack.c.b16 %v7364, %v7363
        %v7428 = vpack.c.b16 %v7366, %v7365
        %v7429 = vpack.c.b16 %v7368, %v7367
        %v7430 = vpack.c.b16 %v7370, %v7369
        %v7431 = vpack.c.b16 %v7372, %v7371
        %v7432 = vpack.c.b16 %v7374, %v7373
        %v7433 = vpack.c.b16 %v7376, %v7375
        %v7434 = vpack.c.b16 %v7378, %v7377
        %v7435 = vpack.c.b16 %v7380, %v7379
        %v7436 = vpack.c.b16 %v7382, %v7381
        %v7437 = vpack.c.b16 %v7384, %v7383
        %v7438 = vpack.c.b16 %v7386, %v7385
        %v7439 = vpack.c.b16 %v7388, %v7387
        %v7440 = vpack.c.b16 %v7390, %v7389
        %v7441 = vpack.c.b16 %v7392, %v7391
        %v7442 = vpack.c.b16 %v7394, %v7393
        %v7443 = vpack.c.b16 %v7396, %v7395
        %v7444 = vpack.c.b16 %v7398, %v7397
        %v7445 = vpack.c.b16 %v7400, %v7399
        %v7446 = vpack.c.b16 %v7402, %v7401
        %v7447 = vpack.c.b16 %v7404, %v7403
        %v7448 = vpack.c.b16 %v7406, %v7405
        %v7449 = vpack.c.b16 %v7408, %v7407
        %v7450 = vpack.c.b16 %v7410, %v7409
        %v7451 = vpack.c.b16 %v7412, %v7411
        %v7452 = vpack.c.b16 %v7414, %v7413
        %v7453 = vpack.c.b16 %v7416, %v7415
        %v7454 = vpack.c.b16 %v7418, %v7417
        %v7455 = vpack.c.b16 %v7420, %v7419
        %v7456 = vpack.c.b16 %v7422, %v7421
        %v7457 = vpack.c.b16 %v7424, %v7423
        %v7458 = vpack.c.b16 %v7426, %v7425
        %7491 = vmatprep.subr.bf16.mxu0 0
        %7492 = vmatpush1.bf16.msra.mxu0 %v7434
        %7493 = vmatprep.subr.bf16.mxu0 0
        %7494 = vmatpush1.bf16.msra.mxu0 %v7433
        %7495 = vmatprep.subr.bf16.mxu0 0
        %7496 = vmatpush1.bf16.msra.mxu0 %v7432
        %7497 = vmatprep.subr.bf16.mxu0 0
        %7498 = vmatpush1.bf16.msra.mxu0 %v7431
        %7499 = vmatprep.subr.bf16.mxu0 0
        %7500 = vmatpush1.bf16.msra.mxu0 %v7430
        %7501 = vmatprep.subr.bf16.mxu0 0
        %7502 = vmatpush1.bf16.msra.mxu0 %v7429
        %7503 = vmatprep.subr.bf16.mxu0 0
        %7504 = vmatpush1.bf16.msra.mxu0 %v7428
        %7505 = vmatprep.subr.bf16.mxu0 0
        %7506 = vmatpush1.bf16.msra.mxu0 %v7427
        %7507 = vmatprep.subr.bf16.mxu0 0
        %7508 = vmatpush2.bf16.msra.mxu0 %v7442
        %7509 = vmatprep.subr.bf16.mxu0 0
        %7510 = vmatpush2.bf16.msra.mxu0 %v7441
        %7511 = vmatprep.subr.bf16.mxu0 0
        %7512 = vmatpush2.bf16.msra.mxu0 %v7440
        %7513 = vmatprep.subr.bf16.mxu0 0
        %7514 = vmatpush2.bf16.msra.mxu0 %v7439
        %7515 = vmatprep.subr.bf16.mxu0 0
        %7516 = vmatpush2.bf16.msra.mxu0 %v7438
        %7517 = vmatprep.subr.bf16.mxu0 0
        %7518 = vmatpush2.bf16.msra.mxu0 %v7437
        %7519 = vmatprep.subr.bf16.mxu0 0
        %7520 = vmatpush2.bf16.msra.mxu0 %v7436
        %7521 = vmatprep.subr.bf16.mxu0 0
        %7522 = vmatpush2.bf16.msra.mxu0 %v7435
        %7523 = vmatprep.mubr.bf16.mxu0 %v7288
        %7524 = vmatmul.mubr.bf16.gmra.mxu0 %v7287
        %v7525 = vpop.f32.mrf.mxu0
        %v7526 = vadd.f32 %v7297, %v7525
        %v7527 = vpop.f32.mrf.mxu0
        %v7528 = vpop.f32.mrf.mxu0
        %v7529 = vpop.f32.mrf.mxu0
        %7530 = vdwg.mxu0
        %7531 = vmatprep.subr.bf16.mxu0 0
        %7532 = vmatpush1.bf16.msra.mxu0 %v7450
        %7533 = vmatprep.subr.bf16.mxu0 0
        %7534 = vmatpush1.bf16.msra.mxu0 %v7449
        %7535 = vmatprep.subr.bf16.mxu0 0
        %7536 = vmatpush1.bf16.msra.mxu0 %v7448
        %7537 = vmatprep.subr.bf16.mxu0 0
        %7538 = vmatpush1.bf16.msra.mxu0 %v7447
        %7539 = vmatprep.subr.bf16.mxu0 0
        %7540 = vmatpush1.bf16.msra.mxu0 %v7446
        %7541 = vmatprep.subr.bf16.mxu0 0
        %7542 = vmatpush1.bf16.msra.mxu0 %v7445
        %7543 = vmatprep.subr.bf16.mxu0 0
        %7544 = vmatpush1.bf16.msra.mxu0 %v7444
        %7545 = vmatprep.subr.bf16.mxu0 0
        %7546 = vmatpush1.bf16.msra.mxu0 %v7443
        %7547 = vmatprep.subr.bf16.mxu0 0
        %7548 = vmatpush2.bf16.msra.mxu0 %v7458
        %7549 = vmatprep.subr.bf16.mxu0 0
        %7550 = vmatpush2.bf16.msra.mxu0 %v7457
        %7551 = vmatprep.subr.bf16.mxu0 0
        %7552 = vmatpush2.bf16.msra.mxu0 %v7456
        %7553 = vmatprep.subr.bf16.mxu0 0
        %7554 = vmatpush2.bf16.msra.mxu0 %v7455
        %7555 = vmatprep.subr.bf16.mxu0 0
        %7556 = vmatpush2.bf16.msra.mxu0 %v7454
        %7557 = vmatprep.subr.bf16.mxu0 0
        %7558 = vmatpush2.bf16.msra.mxu0 %v7453
        %7559 = vmatprep.subr.bf16.mxu0 0
        %7560 = vmatpush2.bf16.msra.mxu0 %v7452
        %7561 = vmatprep.subr.bf16.mxu0 0
        %7562 = vmatpush2.bf16.msra.mxu0 %v7451
        %7563 = vmatprep.mubr.bf16.mxu0 %v7290
        %7564 = vmatmul.mubr.bf16.gmra.mxu0 %v7289
        %v7565 = vpop.f32.mrf.mxu0
        %v7566 = vadd.f32 %v7526, %v7565
        %v7567 = vpop.f32.mrf.mxu0
        %v7568 = vpop.f32.mrf.mxu0
        %v7569 = vpop.f32.mrf.mxu0
        %7570 = vdwg.mxu0
        %v7571 = vadd.f32 %v6918, %v7566
        %s7572 = scalar_lea.vmem %s15, 3
        %v7573 = vld [vmem:[%s7572] sm:$0x1]
        %s7574 = scalar_lea.vmem %s16, 3
        %v7575 = vld [vmem:[%s7574] sm:$0x1]
        %7576 = vadd.xlane.f32.xlu0 %v7571
        %v7577 = vpop.xlane.xlu0 %7576
        %v7578 = vmul.f32 %v7577, %v1945
        %v7579 = vsub.f32 %v7571, %v7578
        %v7580 = vmul.f32 %v7579, %v7579
        %7581 = vadd.xlane.f32.xlu0 %v7580
        %v7582 = vpop.xlane.xlu0 %7581
        %v7583 = vmul.f32 %v7582, %v1945
        %v7584 = vadd.f32 %v7583, 1e-05
        %v7585 = vrsqrt.pop %v7584
        %v7586 = vmul.f32 %v7579, %v7585
        %v7588 = vlaneseq
        %v7589 = vshrl.u32 %v7588, 7
        %v7590 = vsub.s32 0, %v7589
        %v7591 = vrot.slane %v7573, %v7590
        %v7593 = vmul.f32 %v7586, %v7591
        %v7595 = vlaneseq
        %v7596 = vshrl.u32 %v7595, 7
        %v7597 = vsub.s32 0, %v7596
        %v7598 = vrot.slane %v7575, %v7597
        %v7600 = vadd.f32 %v7593, %v7598
        %v7601 = vrot.slane %v7600, 4
        %v7602 = vadd.f32 %v7600, %v7601
        %v7603 = vrot.slane %v7602, 2
        %v7604 = vadd.f32 %v7602, %v7603
        %v7605 = vrot.slane %v7604, 1
        %v7606 = vadd.f32 %v7604, %v7605
        %v7607 = vrcp.pop 8.0
        %v7608 = vmul.f32 %v7606, %v7607
        %v7609 = vld [vmem:[%s17] sm:$0xff]
        %v7610 = vld [vmem:[%s17 + $0x8] sm:$0xff]
        %v7611 = vld [vmem:[%s17 + $0x10] sm:$0xff]
        %v7612 = vld [vmem:[%s17 + $0x18] sm:$0xff]
        %v7613 = vld [vmem:[%s17 + $0x20] sm:$0xff]
        %v7614 = vld [vmem:[%s17 + $0x28] sm:$0xff]
        %v7615 = vld [vmem:[%s17 + $0x30] sm:$0xff]
        %v7616 = vld [vmem:[%s17 + $0x38] sm:$0xff]
        %v7617 = vld [vmem:[%s17 + $0x40] sm:$0xff]
        %v7618 = vld [vmem:[%s17 + $0x48] sm:$0xff]
        %v7619 = vld [vmem:[%s17 + $0x50] sm:$0xff]
        %v7620 = vld [vmem:[%s17 + $0x58] sm:$0xff]
        %v7621 = vld [vmem:[%s17 + $0x60] sm:$0xff]
        %v7622 = vld [vmem:[%s17 + $0x68] sm:$0xff]
        %v7623 = vld [vmem:[%s17 + $0x70] sm:$0xff]
        %v7624 = vld [vmem:[%s17 + $0x78] sm:$0xff]
        %v7625 = vpack.c.bf16 %v7608, %v7608
        %v7626 = vld [vmem:[%s18] sm:$0x3]
        %v7643 = vunpack.c.l.b16 %v7609
        %v7644 = vunpack.c.h.b16 %v7609
        %v7645 = vunpack.c.l.b16 %v7610
        %v7646 = vunpack.c.h.b16 %v7610
        %v7647 = vunpack.c.l.b16 %v7611
        %v7648 = vunpack.c.h.b16 %v7611
        %v7649 = vunpack.c.l.b16 %v7612
        %v7650 = vunpack.c.h.b16 %v7612
        %v7651 = vunpack.c.l.b16 %v7613
        %v7652 = vunpack.c.h.b16 %v7613
        %v7653 = vunpack.c.l.b16 %v7614
        %v7654 = vunpack.c.h.b16 %v7614
        %v7655 = vunpack.c.l.b16 %v7615
        %v7656 = vunpack.c.h.b16 %v7615
        %v7657 = vunpack.c.l.b16 %v7616
        %v7658 = vunpack.c.h.b16 %v7616
        %v7659 = vunpack.c.l.b16 %v7617
        %v7660 = vunpack.c.h.b16 %v7617
        %v7661 = vunpack.c.l.b16 %v7618
        %v7662 = vunpack.c.h.b16 %v7618
        %v7663 = vunpack.c.l.b16 %v7619
        %v7664 = vunpack.c.h.b16 %v7619
        %v7665 = vunpack.c.l.b16 %v7620
        %v7666 = vunpack.c.h.b16 %v7620
        %v7667 = vunpack.c.l.b16 %v7621
        %v7668 = vunpack.c.h.b16 %v7621
        %v7669 = vunpack.c.l.b16 %v7622
        %v7670 = vunpack.c.h.b16 %v7622
        %v7671 = vunpack.c.l.b16 %v7623
        %v7672 = vunpack.c.h.b16 %v7623
        %v7673 = vunpack.c.l.b16 %v7624
        %v7674 = vunpack.c.h.b16 %v7624
        %v7675 = vpack.c.b16 %v7645, %v7643
        %v7676 = vpack.c.b16 %v7646, %v7644
        %v7677 = vpack.c.b16 %v7649, %v7647
        %v7678 = vpack.c.b16 %v7650, %v7648
        %v7679 = vpack.c.b16 %v7653, %v7651
        %v7680 = vpack.c.b16 %v7654, %v7652
        %v7681 = vpack.c.b16 %v7657, %v7655
        %v7682 = vpack.c.b16 %v7658, %v7656
        %v7683 = vpack.c.b16 %v7661, %v7659
        %v7684 = vpack.c.b16 %v7662, %v7660
        %v7685 = vpack.c.b16 %v7665, %v7663
        %v7686 = vpack.c.b16 %v7666, %v7664
        %v7687 = vpack.c.b16 %v7669, %v7667
        %v7688 = vpack.c.b16 %v7670, %v7668
        %v7689 = vpack.c.b16 %v7673, %v7671
        %v7690 = vpack.c.b16 %v7674, %v7672
        %v7708 = vlaneseq
        %v7709 = vshrl.u32 %v7708, 7
        %v7710 = vsub.s32 0, %v7709
        %v7711 = vrot.slane %v7626, %v7710
        %v7712 = vlaneseq
        %v7713 = vshrl.u32 %v7712, 7
        %v7714 = vsub.s32 1, %v7713
        %v7715 = vrot.slane %v7626, %v7714
        %7718 = vmatprep.subr.bf16.mxu0 %v7690
        %7719 = vmatpush1.bf16.msra.mxu0 %v7689
        %7720 = vmatprep.subr.bf16.mxu0 %v7688
        %7721 = vmatpush1.bf16.msra.mxu0 %v7687
        %7722 = vmatprep.subr.bf16.mxu0 %v7686
        %7723 = vmatpush1.bf16.msra.mxu0 %v7685
        %7724 = vmatprep.subr.bf16.mxu0 %v7684
        %7725 = vmatpush1.bf16.msra.mxu0 %v7683
        %7726 = vmatprep.subr.bf16.mxu0 %v7682
        %7727 = vmatpush1.bf16.msra.mxu0 %v7681
        %7728 = vmatprep.subr.bf16.mxu0 %v7680
        %7729 = vmatpush1.bf16.msra.mxu0 %v7679
        %7730 = vmatprep.subr.bf16.mxu0 %v7678
        %7731 = vmatpush1.bf16.msra.mxu0 %v7677
        %7732 = vmatprep.subr.bf16.mxu0 %v7676
        %7733 = vmatpush1.bf16.msra.mxu0 %v7675
        %7734 = vmatprep.subr.bf16.mxu0 0
        %7735 = vmatpush2.bf16.msra.mxu0 0
        %7736 = vmatprep.subr.bf16.mxu0 0
        %7737 = vmatpush2.bf16.msra.mxu0 0
        %7738 = vmatprep.subr.bf16.mxu0 0
        %7739 = vmatpush2.bf16.msra.mxu0 0
        %7740 = vmatprep.subr.bf16.mxu0 0
        %7741 = vmatpush2.bf16.msra.mxu0 0
        %7742 = vmatprep.subr.bf16.mxu0 0
        %7743 = vmatpush2.bf16.msra.mxu0 0
        %7744 = vmatprep.subr.bf16.mxu0 0
        %7745 = vmatpush2.bf16.msra.mxu0 0
        %7746 = vmatprep.subr.bf16.mxu0 0
        %7747 = vmatpush2.bf16.msra.mxu0 0
        %7748 = vmatprep.subr.bf16.mxu0 0
        %7749 = vmatpush2.bf16.msra.mxu0 0
        %7750 = vmatprep.mubr.bf16.mxu0 0
        %7751 = vmatmul.mubr.bf16.gmra.mxu0 %v7625
        %v7752 = vpop.f32.mrf.mxu0
        %v7753 = vadd.f32 %v7711, %v7752
        %v7754 = vpop.f32.mrf.mxu0
        %v7755 = vadd.f32 %v7715, %v7754
        %v7756 = vpop.f32.mrf.mxu0
        %v7757 = vpop.f32.mrf.mxu0
        %7758 = vdwg.mxu0
        %v7759 = vmax.f32 %v7753, 0.0
        %v7760 = vmax.f32 %v7755, 0.0
        %v7761 = vld [vmem:[%s19] sm:$0xf]
        %v7762 = vld [vmem:[%s19 + $0x4] sm:$0xf]
        %v7763 = vld [vmem:[%s19 + $0x8] sm:$0xf]
        %v7764 = vld [vmem:[%s19 + $0xc] sm:$0xf]
        %v7765 = vld [vmem:[%s19 + $0x10] sm:$0xf]
        %v7766 = vld [vmem:[%s19 + $0x14] sm:$0xf]
        %v7767 = vld [vmem:[%s19 + $0x18] sm:$0xf]
        %v7768 = vld [vmem:[%s19 + $0x1c] sm:$0xf]
        %v7769 = vld [vmem:[%s19 + $0x20] sm:$0xf]
        %v7770 = vld [vmem:[%s19 + $0x24] sm:$0xf]
        %v7771 = vld [vmem:[%s19 + $0x28] sm:$0xf]
        %v7772 = vld [vmem:[%s19 + $0x2c] sm:$0xf]
        %v7773 = vld [vmem:[%s19 + $0x30] sm:$0xf]
        %v7774 = vld [vmem:[%s19 + $0x34] sm:$0xf]
        %v7775 = vld [vmem:[%s19 + $0x38] sm:$0xf]
        %v7776 = vld [vmem:[%s19 + $0x3c] sm:$0xf]
        %v7777 = vld [vmem:[%s19 + $0x40] sm:$0xf]
        %v7778 = vld [vmem:[%s19 + $0x44] sm:$0xf]
        %v7779 = vld [vmem:[%s19 + $0x48] sm:$0xf]
        %v7780 = vld [vmem:[%s19 + $0x4c] sm:$0xf]
        %v7781 = vld [vmem:[%s19 + $0x50] sm:$0xf]
        %v7782 = vld [vmem:[%s19 + $0x54] sm:$0xf]
        %v7783 = vld [vmem:[%s19 + $0x58] sm:$0xf]
        %v7784 = vld [vmem:[%s19 + $0x5c] sm:$0xf]
        %v7785 = vld [vmem:[%s19 + $0x60] sm:$0xf]
        %v7786 = vld [vmem:[%s19 + $0x64] sm:$0xf]
        %v7787 = vld [vmem:[%s19 + $0x68] sm:$0xf]
        %v7788 = vld [vmem:[%s19 + $0x6c] sm:$0xf]
        %v7789 = vld [vmem:[%s19 + $0x70] sm:$0xf]
        %v7790 = vld [vmem:[%s19 + $0x74] sm:$0xf]
        %v7791 = vld [vmem:[%s19 + $0x78] sm:$0xf]
        %v7792 = vld [vmem:[%s19 + $0x7c] sm:$0xf]
        %v7793 = vpack.c.bf16 %v7759, %v7759
        %v7794 = vpack.c.bf16 %v7760, %v7760
        %v7795 = vld [vmem:[%s20] sm:$0x1]
        %v7828 = vunpack.c.l.b16 %v7761
        %v7829 = vunpack.c.l.b16 %v7762
        %v7830 = vunpack.c.l.b16 %v7763
        %v7831 = vunpack.c.l.b16 %v7764
        %v7832 = vunpack.c.l.b16 %v7765
        %v7833 = vunpack.c.l.b16 %v7766
        %v7834 = vunpack.c.l.b16 %v7767
        %v7835 = vunpack.c.l.b16 %v7768
        %v7836 = vunpack.c.l.b16 %v7769
        %v7837 = vunpack.c.l.b16 %v7770
        %v7838 = vunpack.c.l.b16 %v7771
        %v7839 = vunpack.c.l.b16 %v7772
        %v7840 = vunpack.c.l.b16 %v7773
        %v7841 = vunpack.c.l.b16 %v7774
        %v7842 = vunpack.c.l.b16 %v7775
        %v7843 = vunpack.c.l.b16 %v7776
        %v7844 = vunpack.c.l.b16 %v7777
        %v7845 = vunpack.c.l.b16 %v7778
        %v7846 = vunpack.c.l.b16 %v7779
        %v7847 = vunpack.c.l.b16 %v7780
        %v7848 = vunpack.c.l.b16 %v7781
        %v7849 = vunpack.c.l.b16 %v7782
        %v7850 = vunpack.c.l.b16 %v7783
        %v7851 = vunpack.c.l.b16 %v7784
        %v7852 = vunpack.c.l.b16 %v7785
        %v7853 = vunpack.c.l.b16 %v7786
        %v7854 = vunpack.c.l.b16 %v7787
        %v7855 = vunpack.c.l.b16 %v7788
        %v7856 = vunpack.c.l.b16 %v7789
        %v7857 = vunpack.c.l.b16 %v7790
        %v7858 = vunpack.c.l.b16 %v7791
        %v7859 = vunpack.c.l.b16 %v7792
        %v7860 = vpack.c.b16 %v7829, %v7828
        %v7861 = vpack.c.b16 %v7831, %v7830
        %v7862 = vpack.c.b16 %v7833, %v7832
        %v7863 = vpack.c.b16 %v7835, %v7834
        %v7864 = vpack.c.b16 %v7837, %v7836
        %v7865 = vpack.c.b16 %v7839, %v7838
        %v7866 = vpack.c.b16 %v7841, %v7840
        %v7867 = vpack.c.b16 %v7843, %v7842
        %v7868 = vpack.c.b16 %v7845, %v7844
        %v7869 = vpack.c.b16 %v7847, %v7846
        %v7870 = vpack.c.b16 %v7849, %v7848
        %v7871 = vpack.c.b16 %v7851, %v7850
        %v7872 = vpack.c.b16 %v7853, %v7852
        %v7873 = vpack.c.b16 %v7855, %v7854
        %v7874 = vpack.c.b16 %v7857, %v7856
        %v7875 = vpack.c.b16 %v7859, %v7858
        %7892 = vmatprep.subr.bf16.mxu0 0
        %7893 = vmatpush1.bf16.msra.mxu0 %v7867
        %7894 = vmatprep.subr.bf16.mxu0 0
        %7895 = vmatpush1.bf16.msra.mxu0 %v7866
        %7896 = vmatprep.subr.bf16.mxu0 0
        %7897 = vmatpush1.bf16.msra.mxu0 %v7865
        %7898 = vmatprep.subr.bf16.mxu0 0
        %7899 = vmatpush1.bf16.msra.mxu0 %v7864
        %7900 = vmatprep.subr.bf16.mxu0 0
        %7901 = vmatpush1.bf16.msra.mxu0 %v7863
        %7902 = vmatprep.subr.bf16.mxu0 0
        %7903 = vmatpush1.bf16.msra.mxu0 %v7862
        %7904 = vmatprep.subr.bf16.mxu0 0
        %7905 = vmatpush1.bf16.msra.mxu0 %v7861
        %7906 = vmatprep.subr.bf16.mxu0 0
        %7907 = vmatpush1.bf16.msra.mxu0 %v7860
        %7908 = vmatprep.subr.bf16.mxu0 0
        %7909 = vmatpush2.bf16.msra.mxu0 %v7875
        %7910 = vmatprep.subr.bf16.mxu0 0
        %7911 = vmatpush2.bf16.msra.mxu0 %v7874
        %7912 = vmatprep.subr.bf16.mxu0 0
        %7913 = vmatpush2.bf16.msra.mxu0 %v7873
        %7914 = vmatprep.subr.bf16.mxu0 0
        %7915 = vmatpush2.bf16.msra.mxu0 %v7872
        %7916 = vmatprep.subr.bf16.mxu0 0
        %7917 = vmatpush2.bf16.msra.mxu0 %v7871
        %7918 = vmatprep.subr.bf16.mxu0 0
        %7919 = vmatpush2.bf16.msra.mxu0 %v7870
        %7920 = vmatprep.subr.bf16.mxu0 0
        %7921 = vmatpush2.bf16.msra.mxu0 %v7869
        %7922 = vmatprep.subr.bf16.mxu0 0
        %7923 = vmatpush2.bf16.msra.mxu0 %v7868
        %7924 = vmatprep.mubr.bf16.mxu0 %v7794
        %7925 = vmatmul.mubr.bf16.gmra.mxu0 %v7793
        %v7926 = vpop.f32.mrf.mxu0
        %v7927 = vadd.f32 %v7795, %v7926
        %v7928 = vpop.f32.mrf.mxu0
        %v7929 = vpop.f32.mrf.mxu0
        %v7930 = vpop.f32.mrf.mxu0
        %7931 = vdwg.mxu0
        %v7932 = vmax.f32 %v7927, 0.0
        %v7933 = vld [vmem:[%s21] sm:$0xf]
        %v7934 = vld [vmem:[%s21 + $0x4] sm:$0xf]
        %v7935 = vld [vmem:[%s21 + $0x8] sm:$0xf]
        %v7936 = vld [vmem:[%s21 + $0xc] sm:$0xf]
        %v7937 = vld [vmem:[%s21 + $0x10] sm:$0xf]
        %v7938 = vld [vmem:[%s21 + $0x14] sm:$0xf]
        %v7939 = vld [vmem:[%s21 + $0x18] sm:$0xf]
        %v7940 = vld [vmem:[%s21 + $0x1c] sm:$0xf]
        %v7941 = vld [vmem:[%s21 + $0x20] sm:$0xf]
        %v7942 = vld [vmem:[%s21 + $0x24] sm:$0xf]
        %v7943 = vld [vmem:[%s21 + $0x28] sm:$0xf]
        %v7944 = vld [vmem:[%s21 + $0x2c] sm:$0xf]
        %v7945 = vld [vmem:[%s21 + $0x30] sm:$0xf]
        %v7946 = vld [vmem:[%s21 + $0x34] sm:$0xf]
        %v7947 = vld [vmem:[%s21 + $0x38] sm:$0xf]
        %v7948 = vld [vmem:[%s21 + $0x3c] sm:$0xf]
        %v7949 = vpack.c.bf16 %v7932, %v7932
        %v7950 = vld [vmem:[%s22] sm:$0x1]
        %v7967 = vunpack.c.l.b16 %v7933
        %v7968 = vunpack.c.l.b16 %v7934
        %v7969 = vunpack.c.l.b16 %v7935
        %v7970 = vunpack.c.l.b16 %v7936
        %v7971 = vunpack.c.l.b16 %v7937
        %v7972 = vunpack.c.l.b16 %v7938
        %v7973 = vunpack.c.l.b16 %v7939
        %v7974 = vunpack.c.l.b16 %v7940
        %v7975 = vunpack.c.l.b16 %v7941
        %v7976 = vunpack.c.l.b16 %v7942
        %v7977 = vunpack.c.l.b16 %v7943
        %v7978 = vunpack.c.l.b16 %v7944
        %v7979 = vunpack.c.l.b16 %v7945
        %v7980 = vunpack.c.l.b16 %v7946
        %v7981 = vunpack.c.l.b16 %v7947
        %v7982 = vunpack.c.l.b16 %v7948
        %v7983 = vpack.c.b16 %v7968, %v7967
        %v7984 = vpack.c.b16 %v7970, %v7969
        %v7985 = vpack.c.b16 %v7972, %v7971
        %v7986 = vpack.c.b16 %v7974, %v7973
        %v7987 = vpack.c.b16 %v7976, %v7975
        %v7988 = vpack.c.b16 %v7978, %v7977
        %v7989 = vpack.c.b16 %v7980, %v7979
        %v7990 = vpack.c.b16 %v7982, %v7981
        %7999 = vmatprep.subr.bf16.mxu0 0
        %8000 = vmatpush1.bf16.msra.mxu0 %v7990
        %8001 = vmatprep.subr.bf16.mxu0 0
        %8002 = vmatpush1.bf16.msra.mxu0 %v7989
        %8003 = vmatprep.subr.bf16.mxu0 0
        %8004 = vmatpush1.bf16.msra.mxu0 %v7988
        %8005 = vmatprep.subr.bf16.mxu0 0
        %8006 = vmatpush1.bf16.msra.mxu0 %v7987
        %8007 = vmatprep.subr.bf16.mxu0 0
        %8008 = vmatpush1.bf16.msra.mxu0 %v7986
        %8009 = vmatprep.subr.bf16.mxu0 0
        %8010 = vmatpush1.bf16.msra.mxu0 %v7985
        %8011 = vmatprep.subr.bf16.mxu0 0
        %8012 = vmatpush1.bf16.msra.mxu0 %v7984
        %8013 = vmatprep.subr.bf16.mxu0 0
        %8014 = vmatpush1.bf16.msra.mxu0 %v7983
        %8015 = vmatprep.subr.bf16.mxu0 0
        %8016 = vmatpush2.bf16.msra.mxu0 0
        %8017 = vmatprep.subr.bf16.mxu0 0
        %8018 = vmatpush2.bf16.msra.mxu0 0
        %8019 = vmatprep.subr.bf16.mxu0 0
        %8020 = vmatpush2.bf16.msra.mxu0 0
        %8021 = vmatprep.subr.bf16.mxu0 0
        %8022 = vmatpush2.bf16.msra.mxu0 0
        %8023 = vmatprep.subr.bf16.mxu0 0
        %8024 = vmatpush2.bf16.msra.mxu0 0
        %8025 = vmatprep.subr.bf16.mxu0 0
        %8026 = vmatpush2.bf16.msra.mxu0 0
        %8027 = vmatprep.subr.bf16.mxu0 0
        %8028 = vmatpush2.bf16.msra.mxu0 0
        %8029 = vmatprep.subr.bf16.mxu0 0
        %8030 = vmatpush2.bf16.msra.mxu0 0
        %8031 = vmatprep.mubr.bf16.mxu0 0
        %8032 = vmatmul.mubr.bf16.gmra.mxu0 %v7949
        %v8033 = vpop.f32.mrf.mxu0
        %v8034 = vadd.f32 %v7950, %v8033
        %v8035 = vpop.f32.mrf.mxu0
        %v8036 = vpop.f32.mrf.mxu0
        %v8037 = vpop.f32.mrf.mxu0
        %8038 = vdwg.mxu0
        %8039 = vst [vmem:[%s700] sm:$0x1] %v8034
        %s8040 = sand.u32 %s533, 1
        %s8041 = scalar_lea.sflag [#allocation3], %s8040
        %s8042 = sand.u32 %s533, 1
        %s8043 = scalar_lea.vmem [#allocation2], %s8042
        // Predicated region
        $region113: #{transformer_predictor_forward.1} parent=111 // pred_check
          %p8044 = pneg %p543
        $region114: #{transformer_predictor_forward.1} parent=111 // pred_check_branch
          %8046 = sbr.rel (%p8044) target = $region116
        $region115: #{transformer_predictor_forward.1} parent=111 // pred_region
          %s8048 = ssub.s32 16, 16
          %8049 = vsyncadd %s8041, %s8048
          %s8050 = smul.addr %s37, 16
          %s8051 = scalar_lea.hbm %s23, %s8050
          %s8053 = sshll.u32 %s8043, 4
          %s8054 = int_to_ptr.vmem [resolvable:$true] %s8053
          %8056 = dma.vmem_to_hbm [thread:$0]  %s8054, 16, %s8051, %s8041
        $region116: #{transformer_predictor_forward.1} parent=111 // pred_fallthru
          _
      $region112: #{transformer_predictor_forward.1} parent=5 // pred_fallthru
        _
      %p8057 = scmp.le.s32.totalorder 2, %s32
      // Predicated region
      $region117: #{transformer_predictor_forward.1} parent=5 // pred_check
        %p8058 = pneg %p8057
      $region118: #{transformer_predictor_forward.1} parent=5 // pred_check_branch
        %8060 = sbr.rel (%p8058) target = $region120
      $region119: #{transformer_predictor_forward.1} parent=5 // pred_region
        %s8061 = ssub.s32 %s32, 2
        // Predicated region
        $region121: #{transformer_predictor_forward.1} parent=119 // pred_check
          %p8062 = pneg %p549
        $region122: #{transformer_predictor_forward.1} parent=119 // pred_check_branch
          %8064 = sbr.rel (%p8062) target = $region124
        $region123: #{transformer_predictor_forward.1} parent=119 // pred_region
          %s8065 = sand.u32 %s534, 1
          %s8066 = scalar_lea.sflag [#allocation3], %s8065
          %s8067 = sand.u32 %s534, 1
          %s8068 = scalar_lea.vmem [#allocation2], %s8067
          %8069 = dma.done %s8066, 16
        $region124: #{transformer_predictor_forward.1} parent=119 // pred_fallthru
          _
      $region120: #{transformer_predictor_forward.1} parent=5 // pred_fallthru
        _
    $region6: #{transformer_predictor_forward.1} parent=1 // loop_footer
      %s36 = sadd.s32 1, %s32
    $region7: #{transformer_predictor_forward.1} parent=1 // loop_footer_branch
      %31 = sbr.rel target = $region3
    $region8: #{transformer_predictor_forward.1} parent=1 // loop_exit
      _
    %8070 = vsyncpa [#allocation3], 1
    %s8071 = scalar_lea.sflag [#allocation3], 1
    %8072 = vsyncpa %s8071, 1

</llo_original>
